<compile_context>
chip_gen: v7x
topology: tpu7x:2x2x1
jax: 0.10.0
libtpu: 0.0.40
codegen_flags: <defaults>
</compile_context>

<pallas_src>
import jax
import jax.numpy as jnp
from jax.experimental import pallas as pl
from jax.experimental.pallas import tpu as pltpu


BP = 8     # padded batch  -> one sublane tile
HP = 128   # padded hidden / per-gate lane stride -> one lane tile


def _gru_classifier_kernel(x_ref, h0_ref,
                           wih0_ref, whh0_ref, bih0_ref, bhhn0_ref,
                           wih1_ref, whh1_ref, bih1_ref, bhhn1_ref,
                           w1_ref, b1_ref, w2_ref, b2_ref,
                           out_ref, gi0_scr):
    # x_ref: (T*BP, I) time-major rows (batch padded to BP).
    # h0_ref: (2, BP, HP) padded hidden state.
    # Gate layout everywhere: r at lanes [0:HP), z at [HP:2HP), n at [2HP:3HP).
    bp = h0_ref.shape[1]
    hp = h0_ref.shape[2]
    T = x_ref.shape[0] // bp

    # ---- Hoisted layer-0 input projection for ALL timesteps (off the chain).
    gi0_scr[...] = (jnp.dot(x_ref[...], wih0_ref[...],
                            preferred_element_type=jnp.float32)
                    + bih0_ref[...])

    def gru_cell(gi, h_prev, whh_ref, bhhn_ref):
        # gi already contains W_ih @ x + b_ih (+ folded r/z part of b_hh).
        # bhhn_ref carries only the n-gate's b_hh (it is scaled by r).
        gh = (jnp.dot(h_prev, whh_ref[...],
                      preferred_element_type=jnp.float32)
              + bhhn_ref[...])
        gsum = gi + gh
        rz = jax.nn.sigmoid(gsum[:, :2 * hp])        # fused r/z sigmoid
        r = rz[:, :hp]                               # whole-vreg slices
        z = rz[:, hp:]
        n = jnp.tanh(gi[:, 2 * hp:] + r * gh[:, 2 * hp:])
        return (1.0 - z) * n + z * h_prev

    h_l0 = h0_ref[0]                                 # (BP, HP)
    h_l1 = h0_ref[1]                                 # (BP, HP)

    # ---- Software-pipelined, fully unrolled recurrences.
    # Prologue: layer-0 step 0 and its layer-1 input projection.
    h_l0 = gru_cell(gi0_scr[0:bp, :], h_l0, whh0_ref, bhhn0_ref)
    gi1 = (jnp.dot(h_l0, wih1_ref[...], preferred_element_type=jnp.float32)
           + bih1_ref[...])

    for t in range(1, T):
        # layer-0 step t and layer-1 step t-1 are independent chains.
        h_l0_new = gru_cell(gi0_scr[t * bp:(t + 1) * bp, :],
                            h_l0, whh0_ref, bhhn0_ref)
        h_l1 = gru_cell(gi1, h_l1, whh1_ref, bhhn1_ref)
        # layer-1 input projection for step t -- off layer-0's chain.
        gi1 = (jnp.dot(h_l0_new, wih1_ref[...],
                       preferred_element_type=jnp.float32)
               + bih1_ref[...])
        h_l0 = h_l0_new

    # Epilogue: layer-1 step T-1.
    h_l1 = gru_cell(gi1, h_l1, whh1_ref, bhhn1_ref)

    # ---- Classifier head.
    lin1 = jnp.tanh(
        jnp.dot(h_l1, w1_ref[...], preferred_element_type=jnp.float32)
        + b1_ref[...])
    out_ref[...] = (
        jnp.dot(lin1, w2_ref[...], preferred_element_type=jnp.float32)
        + b2_ref[...])


def classifier_for_acc_forward(motion_sequence, hidden_unit, params):
    """motion_sequence: (B, input_size, T) — same convention as the PyTorch module."""
    B, I, T = motion_sequence.shape
    L, Bh, H = hidden_unit.shape
    assert Bh == B and L == 2
    assert B <= BP and H <= HP
    O = params["w2"].shape[0]
    f32 = jnp.float32

    # ---------- Layout prep (plain JAX glue; padding to vreg-aligned tiles).
    x = jnp.transpose(motion_sequence, (2, 0, 1)).astype(f32)      # (T, B, I)
    x = jnp.pad(x, ((0, 0), (0, BP - B), (0, 0)))                  # (T, BP, I)
    x_flat = x.reshape(T * BP, I)

    h0 = jnp.pad(hidden_unit.astype(f32),
                 ((0, 0), (0, BP - B), (0, HP - H)))               # (2, BP, HP)

    def gate_pad_cols(w_t):
        # (K, 3H) -> (K, 3*HP), gate g occupying lanes [g*HP, g*HP+H).
        K = w_t.shape[0]
        z = jnp.zeros((K, HP - H), f32)
        return jnp.concatenate(
            [w_t[:, 0:H], z, w_t[:, H:2 * H], z, w_t[:, 2 * H:3 * H], z],
            axis=1)

    def pad_rows(w):           # (H, N) -> (HP, N)
        return jnp.pad(w, ((0, HP - H), (0, 0)))

    def gate_pad_bias(b):      # (3H,) -> (1, 3*HP)
        return gate_pad_cols(b.reshape(1, 3 * H).astype(f32))

    zH = jnp.zeros((H,), f32)

    # Layer 0
    wih0 = gate_pad_cols(params["w_ih0"].T.astype(f32))            # (I, 3*HP)
    whh0 = pad_rows(gate_pad_cols(params["w_hh0"].T.astype(f32)))  # (HP, 3*HP)
    bih0 = gate_pad_bias(params["b_ih0"]
                         + jnp.concatenate([params["b_hh0"][:2 * H], zH]))
    bhhn0 = gate_pad_bias(jnp.concatenate([zH, zH, params["b_hh0"][2 * H:]]))

    # Layer 1
    wih1 = pad_rows(gate_pad_cols(params["w_ih1"].T.astype(f32)))  # (HP, 3*HP)
    whh1 = pad_rows(gate_pad_cols(params["w_hh1"].T.astype(f32)))  # (HP, 3*HP)
    bih1 = gate_pad_bias(params["b_ih1"]
                         + jnp.concatenate([params["b_hh1"][:2 * H], zH]))
    bhhn1 = gate_pad_bias(jnp.concatenate([zH, zH, params["b_hh1"][2 * H:]]))

    # Heads
    w1 = pad_rows(params["w1"].T.astype(f32))                      # (HP, 30)
    b1 = params["b1"].reshape(1, -1).astype(f32)
    w2 = params["w2"].T.astype(f32)                                # (30, O)
    b2 = params["b2"].reshape(1, -1).astype(f32)

    kernel_inputs = (x_flat, h0,
                     wih0, whh0, bih0, bhhn0,
                     wih1, whh1, bih1, bhhn1,
                     w1, b1, w2, b2)

    vmem_spec = pl.BlockSpec(memory_space=pltpu.MemorySpace.VMEM)
    out = pl.pallas_call(
        _gru_classifier_kernel,
        out_shape=jax.ShapeDtypeStruct((BP, O), f32),
        in_specs=[vmem_spec] * len(kernel_inputs),
        out_specs=vmem_spec,
        scratch_shapes=[pltpu.VMEM((T * BP, 3 * HP), f32)],
    )(*kernel_inputs)
    return out[:B]


def init_params(key, input_size, hidden_size, lin1_size, output_size):
    """Deterministic synthetic init (uniform, PyTorch-style scale)."""
    ks = jax.random.split(key, 12)
    H = hidden_size
    s_gru = 1.0 / jnp.sqrt(H)

    def u(k, shape, scale):
        return jax.random.uniform(k, shape, jnp.float32, -scale, scale)

    return {
        "w_ih0": u(ks[0], (3 * H, input_size), s_gru),
        "w_hh0": u(ks[1], (3 * H, H), s_gru),
        "b_ih0": u(ks[2], (3 * H,), s_gru),
        "b_hh0": u(ks[3], (3 * H,), s_gru),
        "w_ih1": u(ks[4], (3 * H, H), s_gru),
        "w_hh1": u(ks[5], (3 * H, H), s_gru),
        "b_ih1": u(ks[6], (3 * H,), s_gru),
        "b_hh1": u(ks[7], (3 * H,), s_gru),
        "w1": u(ks[8], (lin1_size, H), 1.0 / jnp.sqrt(H)),
        "b1": u(ks[9], (lin1_size,), 1.0 / jnp.sqrt(H)),
        "w2": u(ks[10], (output_size, lin1_size), 1.0 / jnp.sqrt(lin1_size)),
        "b2": u(ks[11], (output_size,), 1.0 / jnp.sqrt(lin1_size)),
    }


def reference_forward(motion_sequence, hidden_unit, params):
    """Pure-JAX reference mirroring torch.nn.GRU semantics (for validation)."""
    x = jnp.transpose(motion_sequence, (2, 0, 1)).astype(jnp.float32)
    H = hidden_unit.shape[2]

    def cell(x_t, h, wih, whh, bih, bhh):
        gi = x_t @ wih.T + bih
        gh = h @ whh.T + bhh
        r = jax.nn.sigmoid(gi[:, :H] + gh[:, :H])
        z = jax.nn.sigmoid(gi[:, H:2 * H] + gh[:, H:2 * H])
        n = jnp.tanh(gi[:, 2 * H:] + r * gh[:, 2 * H:])
        return (1.0 - z) * n + z * h

    h0, h1 = hidden_unit[0], hidden_unit[1]
    for t in range(x.shape[0]):
        h0 = cell(x[t], h0, params["w_ih0"], params["w_hh0"],
                  params["b_ih0"], params["b_hh0"])
        h1 = cell(h0, h1, params["w_ih1"], params["w_hh1"],
                  params["b_ih1"], params["b_hh1"])
    lin1 = jnp.tanh(h1 @ params["w1"].T + params["b1"])
    return lin1 @ params["w2"].T + params["b2"]


if __name__ == "__main__":
    # Small shapes consistent with the module's forward (b, input_size, T).
    B, INPUT_SIZE, T = 2, 48, 16
    HIDDEN_SIZE, HIDDEN_LAYER, LIN1, OUTPUT_SIZE = 32, 2, 30, 15

    key = jax.random.PRNGKey(0)
    k_x, k_h, k_p = jax.random.split(key, 3)

    motion_sequence = jax.random.normal(k_x, (B, INPUT_SIZE, T), jnp.float32)
    # initHidden uses randn(layer, batch, hidden); generated deterministically here.
    hidden_unit = jax.random.normal(k_h, (HIDDEN_LAYER, B, HIDDEN_SIZE),
                                    jnp.float32)
    params = init_params(k_p, INPUT_SIZE, HIDDEN_SIZE, LIN1, OUTPUT_SIZE)

    out = classifier_for_acc_forward(motion_sequence, hidden_unit, params)
    out = jax.block_until_ready(out)

    ref = reference_forward(motion_sequence, hidden_unit, params)
    assert out.shape == (B, OUTPUT_SIZE)
    assert jnp.allclose(out, ref, atol=1e-4, rtol=1e-4), "mismatch vs reference"

    print("KERNEL_OK")
</pallas_src>

<mosaic_0001>
module attributes {stable_mosaic.version = 11 : i64} {
  func.func @_gru_classifier_kernel(%arg0: memref<128x48xf32, #tpu.memory_space<vmem>>, %arg1: memref<2x8x128xf32, #tpu.memory_space<vmem>>, %arg2: memref<48x384xf32, #tpu.memory_space<vmem>>, %arg3: memref<128x384xf32, #tpu.memory_space<vmem>>, %arg4: memref<1x384xf32, #tpu.memory_space<vmem>>, %arg5: memref<1x384xf32, #tpu.memory_space<vmem>>, %arg6: memref<128x384xf32, #tpu.memory_space<vmem>>, %arg7: memref<128x384xf32, #tpu.memory_space<vmem>>, %arg8: memref<1x384xf32, #tpu.memory_space<vmem>>, %arg9: memref<1x384xf32, #tpu.memory_space<vmem>>, %arg10: memref<128x30xf32, #tpu.memory_space<vmem>>, %arg11: memref<1x30xf32, #tpu.memory_space<vmem>>, %arg12: memref<30x15xf32, #tpu.memory_space<vmem>>, %arg13: memref<1x15xf32, #tpu.memory_space<vmem>>, %arg14: memref<8x15xf32, #tpu.memory_space<vmem>>, %arg15: memref<128x384xf32, #tpu.memory_space<vmem>>) attributes {dimension_semantics = [], scalar_prefetch = 0 : i64, scratch_operands = 1 : i64, tpu.core_type = #tpu.core_type<tc>} {
    %c0 = arith.constant 0 : index
    %c0_0 = arith.constant 0 : index
    %0 = vector.load %arg0[%c0, %c0_0] : memref<128x48xf32, #tpu.memory_space<vmem>>, vector<128x48xf32>
    %c0_1 = arith.constant 0 : index
    %c0_2 = arith.constant 0 : index
    %1 = vector.load %arg2[%c0_1, %c0_2] : memref<48x384xf32, #tpu.memory_space<vmem>>, vector<48x384xf32>
    %cst = arith.constant dense<0.000000e+00> : vector<128x384xf32>
    %2 = tpu.matmul %0, %1, %cst {dimension_numbers = #tpu.dot_dimension_numbers<[1], [0], [0], [1], [0, 0, 1, 1], [], []>} : vector<128x48xf32>, vector<48x384xf32>, vector<128x384xf32> -> vector<128x384xf32>
    %c0_3 = arith.constant 0 : index
    %c0_4 = arith.constant 0 : index
    %3 = vector.load %arg4[%c0_3, %c0_4] : memref<1x384xf32, #tpu.memory_space<vmem>>, vector<1x384xf32>
    %4 = vector.broadcast %3 : vector<1x384xf32> to vector<128x384xf32>
    %5 = arith.addf %2, %4 : vector<128x384xf32>
    %c0_5 = arith.constant 0 : index
    %c0_6 = arith.constant 0 : index
    %6 = vector.load %arg15[%c0_5, %c0_6] : memref<128x384xf32, #tpu.memory_space<vmem>>, vector<128x384xf32>
    tpu.vector_store %arg15[%c0_5, %c0_6], %5 {strides = array<i32>} : memref<128x384xf32, #tpu.memory_space<vmem>>, vector<128x384xf32>,
    %c0_7 = arith.constant 0 : index
    %c0_8 = arith.constant 0 : index
    %c0_9 = arith.constant 0 : index
    %7 = vector.load %arg1[%c0_7, %c0_8, %c0_9] : memref<2x8x128xf32, #tpu.memory_space<vmem>>, vector<1x8x128xf32>
    %8 = vector.shape_cast %7 : vector<1x8x128xf32> to vector<8x128xf32>
    %c1 = arith.constant 1 : index
    %c0_10 = arith.constant 0 : index
    %c0_11 = arith.constant 0 : index
    %9 = vector.load %arg1[%c1, %c0_10, %c0_11] : memref<2x8x128xf32, #tpu.memory_space<vmem>>, vector<1x8x128xf32>
    %10 = vector.shape_cast %9 : vector<1x8x128xf32> to vector<8x128xf32>
    %c0_12 = arith.constant 0 : index
    %c0_13 = arith.constant 0 : index
    %11 = vector.load %arg15[%c0_12, %c0_13] : memref<128x384xf32, #tpu.memory_space<vmem>>, vector<8x384xf32>
    %c0_14 = arith.constant 0 : index
    %c0_15 = arith.constant 0 : index
    %12 = vector.load %arg3[%c0_14, %c0_15] : memref<128x384xf32, #tpu.memory_space<vmem>>, vector<128x384xf32>
    %cst_16 = arith.constant dense<0.000000e+00> : vector<8x384xf32>
    %13 = tpu.matmul %8, %12, %cst_16 {dimension_numbers = #tpu.dot_dimension_numbers<[1], [0], [0], [1], [0, 0, 1, 1], [], []>} : vector<8x128xf32>, vector<128x384xf32>, vector<8x384xf32> -> vector<8x384xf32>
    %c0_17 = arith.constant 0 : index
    %c0_18 = arith.constant 0 : index
    %14 = vector.load %arg5[%c0_17, %c0_18] : memref<1x384xf32, #tpu.memory_space<vmem>>, vector<1x384xf32>
    %15 = vector.broadcast %14 : vector<1x384xf32> to vector<8x384xf32>
    %16 = arith.addf %13, %15 : vector<8x384xf32>
    %17 = arith.addf %11, %16 : vector<8x384xf32>
    %18 = vector.extract_strided_slice %17 {offsets = [0, 0], sizes = [8, 256], strides = [1, 1]} : vector<8x384xf32> to vector<8x256xf32>
    %19 = arith.negf %18 : vector<8x256xf32>
    %20 = math.exp %19 : vector<8x256xf32>
    %cst_19 = arith.constant 1.000000e+00 : f32
    %21 = vector.broadcast %cst_19 : f32 to vector<8x256xf32>
    %22 = arith.addf %21, %20 : vector<8x256xf32>
    %23 = arith.divf %21, %22 : vector<8x256xf32>
    %24 = vector.extract_strided_slice %23 {offsets = [0, 0], sizes = [8, 128], strides = [1, 1]} : vector<8x256xf32> to vector<8x128xf32>
    %25 = vector.extract_strided_slice %23 {offsets = [0, 128], sizes = [8, 128], strides = [1, 1]} : vector<8x256xf32> to vector<8x128xf32>
    %26 = vector.extract_strided_slice %11 {offsets = [0, 256], sizes = [8, 128], strides = [1, 1]} : vector<8x384xf32> to vector<8x128xf32>
    %27 = vector.extract_strided_slice %16 {offsets = [0, 256], sizes = [8, 128], strides = [1, 1]} : vector<8x384xf32> to vector<8x128xf32>
    %28 = arith.mulf %24, %27 : vector<8x128xf32>
    %29 = arith.addf %26, %28 : vector<8x128xf32>
    %30 = math.tanh %29 : vector<8x128xf32>
    %cst_20 = arith.constant 1.000000e+00 : f32
    %31 = vector.broadcast %cst_20 : f32 to vector<8x128xf32>
    %32 = arith.subf %31, %25 : vector<8x128xf32>
    %33 = arith.mulf %32, %30 : vector<8x128xf32>
    %34 = arith.mulf %25, %8 : vector<8x128xf32>
    %35 = arith.addf %33, %34 : vector<8x128xf32>
    %c0_21 = arith.constant 0 : index
    %c0_22 = arith.constant 0 : index
    %36 = vector.load %arg6[%c0_21, %c0_22] : memref<128x384xf32, #tpu.memory_space<vmem>>, vector<128x384xf32>
    %cst_23 = arith.constant dense<0.000000e+00> : vector<8x384xf32>
    %37 = tpu.matmul %35, %36, %cst_23 {dimension_numbers = #tpu.dot_dimension_numbers<[1], [0], [0], [1], [0, 0, 1, 1], [], []>} : vector<8x128xf32>, vector<128x384xf32>, vector<8x384xf32> -> vector<8x384xf32>
    %c0_24 = arith.constant 0 : index
    %c0_25 = arith.constant 0 : index
    %38 = vector.load %arg8[%c0_24, %c0_25] : memref<1x384xf32, #tpu.memory_space<vmem>>, vector<1x384xf32>
    %39 = vector.broadcast %38 : vector<1x384xf32> to vector<8x384xf32>
    %40 = arith.addf %37, %39 : vector<8x384xf32>
    %c8 = arith.constant 8 : index
    %c0_26 = arith.constant 0 : index
    %41 = vector.load %arg15[%c8, %c0_26] : memref<128x384xf32, #tpu.memory_space<vmem>>, vector<8x384xf32>
    %c0_27 = arith.constant 0 : index
    %c0_28 = arith.constant 0 : index
    %42 = vector.load %arg3[%c0_27, %c0_28] : memref<128x384xf32, #tpu.memory_space<vmem>>, vector<128x384xf32>
    %cst_29 = arith.constant dense<0.000000e+00> : vector<8x384xf32>
    %43 = tpu.matmul %35, %42, %cst_29 {dimension_numbers = #tpu.dot_dimension_numbers<[1], [0], [0], [1], [0, 0, 1, 1], [], []>} : vector<8x128xf32>, vector<128x384xf32>, vector<8x384xf32> -> vector<8x384xf32>
    %c0_30 = arith.constant 0 : index
    %c0_31 = arith.constant 0 : index
    %44 = vector.load %arg5[%c0_30, %c0_31] : memref<1x384xf32, #tpu.memory_space<vmem>>, vector<1x384xf32>
    %45 = vector.broadcast %44 : vector<1x384xf32> to vector<8x384xf32>
    %46 = arith.addf %43, %45 : vector<8x384xf32>
    %47 = arith.addf %41, %46 : vector<8x384xf32>
    %48 = vector.extract_strided_slice %47 {offsets = [0, 0], sizes = [8, 256], strides = [1, 1]} : vector<8x384xf32> to vector<8x256xf32>
    %49 = arith.negf %48 : vector<8x256xf32>
    %50 = math.exp %49 : vector<8x256xf32>
    %cst_32 = arith.constant 1.000000e+00 : f32
    %51 = vector.broadcast %cst_32 : f32 to vector<8x256xf32>
    %52 = arith.addf %51, %50 : vector<8x256xf32>
    %53 = arith.divf %51, %52 : vector<8x256xf32>
    %54 = vector.extract_strided_slice %53 {offsets = [0, 0], sizes = [8, 128], strides = [1, 1]} : vector<8x256xf32> to vector<8x128xf32>
    %55 = vector.extract_strided_slice %53 {offsets = [0, 128], sizes = [8, 128], strides = [1, 1]} : vector<8x256xf32> to vector<8x128xf32>
    %56 = vector.extract_strided_slice %41 {offsets = [0, 256], sizes = [8, 128], strides = [1, 1]} : vector<8x384xf32> to vector<8x128xf32>
    %57 = vector.extract_strided_slice %46 {offsets = [0, 256], sizes = [8, 128], strides = [1, 1]} : vector<8x384xf32> to vector<8x128xf32>
    %58 = arith.mulf %54, %57 : vector<8x128xf32>
    %59 = arith.addf %56, %58 : vector<8x128xf32>
    %60 = math.tanh %59 : vector<8x128xf32>
    %cst_33 = arith.constant 1.000000e+00 : f32
    %61 = vector.broadcast %cst_33 : f32 to vector<8x128xf32>
    %62 = arith.subf %61, %55 : vector<8x128xf32>
    %63 = arith.mulf %62, %60 : vector<8x128xf32>
    %64 = arith.mulf %55, %35 : vector<8x128xf32>
    %65 = arith.addf %63, %64 : vector<8x128xf32>
    %c0_34 = arith.constant 0 : index
    %c0_35 = arith.constant 0 : index
    %66 = vector.load %arg7[%c0_34, %c0_35] : memref<128x384xf32, #tpu.memory_space<vmem>>, vector<128x384xf32>
    %cst_36 = arith.constant dense<0.000000e+00> : vector<8x384xf32>
    %67 = tpu.matmul %10, %66, %cst_36 {dimension_numbers = #tpu.dot_dimension_numbers<[1], [0], [0], [1], [0, 0, 1, 1], [], []>} : vector<8x128xf32>, vector<128x384xf32>, vector<8x384xf32> -> vector<8x384xf32>
    %c0_37 = arith.constant 0 : index
    %c0_38 = arith.constant 0 : index
    %68 = vector.load %arg9[%c0_37, %c0_38] : memref<1x384xf32, #tpu.memory_space<vmem>>, vector<1x384xf32>
    %69 = vector.broadcast %68 : vector<1x384xf32> to vector<8x384xf32>
    %70 = arith.addf %67, %69 : vector<8x384xf32>
    %71 = arith.addf %40, %70 : vector<8x384xf32>
    %72 = vector.extract_strided_slice %71 {offsets = [0, 0], sizes = [8, 256], strides = [1, 1]} : vector<8x384xf32> to vector<8x256xf32>
    %73 = arith.negf %72 : vector<8x256xf32>
    %74 = math.exp %73 : vector<8x256xf32>
    %cst_39 = arith.constant 1.000000e+00 : f32
    %75 = vector.broadcast %cst_39 : f32 to vector<8x256xf32>
    %76 = arith.addf %75, %74 : vector<8x256xf32>
    %77 = arith.divf %75, %76 : vector<8x256xf32>
    %78 = vector.extract_strided_slice %77 {offsets = [0, 0], sizes = [8, 128], strides = [1, 1]} : vector<8x256xf32> to vector<8x128xf32>
    %79 = vector.extract_strided_slice %77 {offsets = [0, 128], sizes = [8, 128], strides = [1, 1]} : vector<8x256xf32> to vector<8x128xf32>
    %80 = vector.extract_strided_slice %40 {offsets = [0, 256], sizes = [8, 128], strides = [1, 1]} : vector<8x384xf32> to vector<8x128xf32>
    %81 = vector.extract_strided_slice %70 {offsets = [0, 256], sizes = [8, 128], strides = [1, 1]} : vector<8x384xf32> to vector<8x128xf32>
    %82 = arith.mulf %78, %81 : vector<8x128xf32>
    %83 = arith.addf %80, %82 : vector<8x128xf32>
    %84 = math.tanh %83 : vector<8x128xf32>
    %cst_40 = arith.constant 1.000000e+00 : f32
    %85 = vector.broadcast %cst_40 : f32 to vector<8x128xf32>
    %86 = arith.subf %85, %79 : vector<8x128xf32>
    %87 = arith.mulf %86, %84 : vector<8x128xf32>
    %88 = arith.mulf %79, %10 : vector<8x128xf32>
    %89 = arith.addf %87, %88 : vector<8x128xf32>
    %c0_41 = arith.constant 0 : index
    %c0_42 = arith.constant 0 : index
    %90 = vector.load %arg6[%c0_41, %c0_42] : memref<128x384xf32, #tpu.memory_space<vmem>>, vector<128x384xf32>
    %cst_43 = arith.constant dense<0.000000e+00> : vector<8x384xf32>
    %91 = tpu.matmul %65, %90, %cst_43 {dimension_numbers = #tpu.dot_dimension_numbers<[1], [0], [0], [1], [0, 0, 1, 1], [], []>} : vector<8x128xf32>, vector<128x384xf32>, vector<8x384xf32> -> vector<8x384xf32>
    %c0_44 = arith.constant 0 : index
    %c0_45 = arith.constant 0 : index
    %92 = vector.load %arg8[%c0_44, %c0_45] : memref<1x384xf32, #tpu.memory_space<vmem>>, vector<1x384xf32>
    %93 = vector.broadcast %92 : vector<1x384xf32> to vector<8x384xf32>
    %94 = arith.addf %91, %93 : vector<8x384xf32>
    %c16 = arith.constant 16 : index
    %c0_46 = arith.constant 0 : index
    %95 = vector.load %arg15[%c16, %c0_46] : memref<128x384xf32, #tpu.memory_space<vmem>>, vector<8x384xf32>
    %c0_47 = arith.constant 0 : index
    %c0_48 = arith.constant 0 : index
    %96 = vector.load %arg3[%c0_47, %c0_48] : memref<128x384xf32, #tpu.memory_space<vmem>>, vector<128x384xf32>
    %cst_49 = arith.constant dense<0.000000e+00> : vector<8x384xf32>
    %97 = tpu.matmul %65, %96, %cst_49 {dimension_numbers = #tpu.dot_dimension_numbers<[1], [0], [0], [1], [0, 0, 1, 1], [], []>} : vector<8x128xf32>, vector<128x384xf32>, vector<8x384xf32> -> vector<8x384xf32>
    %c0_50 = arith.constant 0 : index
    %c0_51 = arith.constant 0 : index
    %98 = vector.load %arg5[%c0_50, %c0_51] : memref<1x384xf32, #tpu.memory_space<vmem>>, vector<1x384xf32>
    %99 = vector.broadcast %98 : vector<1x384xf32> to vector<8x384xf32>
    %100 = arith.addf %97, %99 : vector<8x384xf32>
    %101 = arith.addf %95, %100 : vector<8x384xf32>
    %102 = vector.extract_strided_slice %101 {offsets = [0, 0], sizes = [8, 256], strides = [1, 1]} : vector<8x384xf32> to vector<8x256xf32>
    %103 = arith.negf %102 : vector<8x256xf32>
    %104 = math.exp %103 : vector<8x256xf32>
    %cst_52 = arith.constant 1.000000e+00 : f32
    %105 = vector.broadcast %cst_52 : f32 to vector<8x256xf32>
    %106 = arith.addf %105, %104 : vector<8x256xf32>
    %107 = arith.divf %105, %106 : vector<8x256xf32>
    %108 = vector.extract_strided_slice %107 {offsets = [0, 0], sizes = [8, 128], strides = [1, 1]} : vector<8x256xf32> to vector<8x128xf32>
    %109 = vector.extract_strided_slice %107 {offsets = [0, 128], sizes = [8, 128], strides = [1, 1]} : vector<8x256xf32> to vector<8x128xf32>
    %110 = vector.extract_strided_slice %95 {offsets = [0, 256], sizes = [8, 128], strides = [1, 1]} : vector<8x384xf32> to vector<8x128xf32>
    %111 = vector.extract_strided_slice %100 {offsets = [0, 256], sizes = [8, 128], strides = [1, 1]} : vector<8x384xf32> to vector<8x128xf32>
    %112 = arith.mulf %108, %111 : vector<8x128xf32>
    %113 = arith.addf %110, %112 : vector<8x128xf32>
    %114 = math.tanh %113 : vector<8x128xf32>
    %cst_53 = arith.constant 1.000000e+00 : f32
    %115 = vector.broadcast %cst_53 : f32 to vector<8x128xf32>
    %116 = arith.subf %115, %109 : vector<8x128xf32>
    %117 = arith.mulf %116, %114 : vector<8x128xf32>
    %118 = arith.mulf %109, %65 : vector<8x128xf32>
    %119 = arith.addf %117, %118 : vector<8x128xf32>
    %c0_54 = arith.constant 0 : index
    %c0_55 = arith.constant 0 : index
    %120 = vector.load %arg7[%c0_54, %c0_55] : memref<128x384xf32, #tpu.memory_space<vmem>>, vector<128x384xf32>
    %cst_56 = arith.constant dense<0.000000e+00> : vector<8x384xf32>
    %121 = tpu.matmul %89, %120, %cst_56 {dimension_numbers = #tpu.dot_dimension_numbers<[1], [0], [0], [1], [0, 0, 1, 1], [], []>} : vector<8x128xf32>, vector<128x384xf32>, vector<8x384xf32> -> vector<8x384xf32>
    %c0_57 = arith.constant 0 : index
    %c0_58 = arith.constant 0 : index
    %122 = vector.load %arg9[%c0_57, %c0_58] : memref<1x384xf32, #tpu.memory_space<vmem>>, vector<1x384xf32>
    %123 = vector.broadcast %122 : vector<1x384xf32> to vector<8x384xf32>
    %124 = arith.addf %121, %123 : vector<8x384xf32>
    %125 = arith.addf %94, %124 : vector<8x384xf32>
    %126 = vector.extract_strided_slice %125 {offsets = [0, 0], sizes = [8, 256], strides = [1, 1]} : vector<8x384xf32> to vector<8x256xf32>
    %127 = arith.negf %126 : vector<8x256xf32>
    %128 = math.exp %127 : vector<8x256xf32>
    %cst_59 = arith.constant 1.000000e+00 : f32
    %129 = vector.broadcast %cst_59 : f32 to vector<8x256xf32>
    %130 = arith.addf %129, %128 : vector<8x256xf32>
    %131 = arith.divf %129, %130 : vector<8x256xf32>
    %132 = vector.extract_strided_slice %131 {offsets = [0, 0], sizes = [8, 128], strides = [1, 1]} : vector<8x256xf32> to vector<8x128xf32>
    %133 = vector.extract_strided_slice %131 {offsets = [0, 128], sizes = [8, 128], strides = [1, 1]} : vector<8x256xf32> to vector<8x128xf32>
    %134 = vector.extract_strided_slice %94 {offsets = [0, 256], sizes = [8, 128], strides = [1, 1]} : vector<8x384xf32> to vector<8x128xf32>
    %135 = vector.extract_strided_slice %124 {offsets = [0, 256], sizes = [8, 128], strides = [1, 1]} : vector<8x384xf32> to vector<8x128xf32>
    %136 = arith.mulf %132, %135 : vector<8x128xf32>
    %137 = arith.addf %134, %136 : vector<8x128xf32>
    %138 = math.tanh %137 : vector<8x128xf32>
    %cst_60 = arith.constant 1.000000e+00 : f32
    %139 = vector.broadcast %cst_60 : f32 to vector<8x128xf32>
    %140 = arith.subf %139, %133 : vector<8x128xf32>
    %141 = arith.mulf %140, %138 : vector<8x128xf32>
    %142 = arith.mulf %133, %89 : vector<8x128xf32>
    %143 = arith.addf %141, %142 : vector<8x128xf32>
    %c0_61 = arith.constant 0 : index
    %c0_62 = arith.constant 0 : index
    %144 = vector.load %arg6[%c0_61, %c0_62] : memref<128x384xf32, #tpu.memory_space<vmem>>, vector<128x384xf32>
    %cst_63 = arith.constant dense<0.000000e+00> : vector<8x384xf32>
    %145 = tpu.matmul %119, %144, %cst_63 {dimension_numbers = #tpu.dot_dimension_numbers<[1], [0], [0], [1], [0, 0, 1, 1], [], []>} : vector<8x128xf32>, vector<128x384xf32>, vector<8x384xf32> -> vector<8x384xf32>
    %c0_64 = arith.constant 0 : index
    %c0_65 = arith.constant 0 : index
    %146 = vector.load %arg8[%c0_64, %c0_65] : memref<1x384xf32, #tpu.memory_space<vmem>>, vector<1x384xf32>
    %147 = vector.broadcast %146 : vector<1x384xf32> to vector<8x384xf32>
    %148 = arith.addf %145, %147 : vector<8x384xf32>
    %c24 = arith.constant 24 : index
    %c0_66 = arith.constant 0 : index
    %149 = vector.load %arg15[%c24, %c0_66] : memref<128x384xf32, #tpu.memory_space<vmem>>, vector<8x384xf32>
    %c0_67 = arith.constant 0 : index
    %c0_68 = arith.constant 0 : index
    %150 = vector.load %arg3[%c0_67, %c0_68] : memref<128x384xf32, #tpu.memory_space<vmem>>, vector<128x384xf32>
    %cst_69 = arith.constant dense<0.000000e+00> : vector<8x384xf32>
    %151 = tpu.matmul %119, %150, %cst_69 {dimension_numbers = #tpu.dot_dimension_numbers<[1], [0], [0], [1], [0, 0, 1, 1], [], []>} : vector<8x128xf32>, vector<128x384xf32>, vector<8x384xf32> -> vector<8x384xf32>
    %c0_70 = arith.constant 0 : index
    %c0_71 = arith.constant 0 : index
    %152 = vector.load %arg5[%c0_70, %c0_71] : memref<1x384xf32, #tpu.memory_space<vmem>>, vector<1x384xf32>
    %153 = vector.broadcast %152 : vector<1x384xf32> to vector<8x384xf32>
    %154 = arith.addf %151, %153 : vector<8x384xf32>
    %155 = arith.addf %149, %154 : vector<8x384xf32>
    %156 = vector.extract_strided_slice %155 {offsets = [0, 0], sizes = [8, 256], strides = [1, 1]} : vector<8x384xf32> to vector<8x256xf32>
    %157 = arith.negf %156 : vector<8x256xf32>
    %158 = math.exp %157 : vector<8x256xf32>
    %cst_72 = arith.constant 1.000000e+00 : f32
    %159 = vector.broadcast %cst_72 : f32 to vector<8x256xf32>
    %160 = arith.addf %159, %158 : vector<8x256xf32>
    %161 = arith.divf %159, %160 : vector<8x256xf32>
    %162 = vector.extract_strided_slice %161 {offsets = [0, 0], sizes = [8, 128], strides = [1, 1]} : vector<8x256xf32> to vector<8x128xf32>
    %163 = vector.extract_strided_slice %161 {offsets = [0, 128], sizes = [8, 128], strides = [1, 1]} : vector<8x256xf32> to vector<8x128xf32>
    %164 = vector.extract_strided_slice %149 {offsets = [0, 256], sizes = [8, 128], strides = [1, 1]} : vector<8x384xf32> to vector<8x128xf32>
    %165 = vector.extract_strided_slice %154 {offsets = [0, 256], sizes = [8, 128], strides = [1, 1]} : vector<8x384xf32> to vector<8x128xf32>
    %166 = arith.mulf %162, %165 : vector<8x128xf32>
    %167 = arith.addf %164, %166 : vector<8x128xf32>
    %168 = math.tanh %167 : vector<8x128xf32>
    %cst_73 = arith.constant 1.000000e+00 : f32
    %169 = vector.broadcast %cst_73 : f32 to vector<8x128xf32>
    %170 = arith.subf %169, %163 : vector<8x128xf32>
    %171 = arith.mulf %170, %168 : vector<8x128xf32>
    %172 = arith.mulf %163, %119 : vector<8x128xf32>
    %173 = arith.addf %171, %172 : vector<8x128xf32>
    %c0_74 = arith.constant 0 : index
    %c0_75 = arith.constant 0 : index
    %174 = vector.load %arg7[%c0_74, %c0_75] : memref<128x384xf32, #tpu.memory_space<vmem>>, vector<128x384xf32>
    %cst_76 = arith.constant dense<0.000000e+00> : vector<8x384xf32>
    %175 = tpu.matmul %143, %174, %cst_76 {dimension_numbers = #tpu.dot_dimension_numbers<[1], [0], [0], [1], [0, 0, 1, 1], [], []>} : vector<8x128xf32>, vector<128x384xf32>, vector<8x384xf32> -> vector<8x384xf32>
    %c0_77 = arith.constant 0 : index
    %c0_78 = arith.constant 0 : index
    %176 = vector.load %arg9[%c0_77, %c0_78] : memref<1x384xf32, #tpu.memory_space<vmem>>, vector<1x384xf32>
    %177 = vector.broadcast %176 : vector<1x384xf32> to vector<8x384xf32>
    %178 = arith.addf %175, %177 : vector<8x384xf32>
    %179 = arith.addf %148, %178 : vector<8x384xf32>
    %180 = vector.extract_strided_slice %179 {offsets = [0, 0], sizes = [8, 256], strides = [1, 1]} : vector<8x384xf32> to vector<8x256xf32>
    %181 = arith.negf %180 : vector<8x256xf32>
    %182 = math.exp %181 : vector<8x256xf32>
    %cst_79 = arith.constant 1.000000e+00 : f32
    %183 = vector.broadcast %cst_79 : f32 to vector<8x256xf32>
    %184 = arith.addf %183, %182 : vector<8x256xf32>
    %185 = arith.divf %183, %184 : vector<8x256xf32>
    %186 = vector.extract_strided_slice %185 {offsets = [0, 0], sizes = [8, 128], strides = [1, 1]} : vector<8x256xf32> to vector<8x128xf32>
    %187 = vector.extract_strided_slice %185 {offsets = [0, 128], sizes = [8, 128], strides = [1, 1]} : vector<8x256xf32> to vector<8x128xf32>
    %188 = vector.extract_strided_slice %148 {offsets = [0, 256], sizes = [8, 128], strides = [1, 1]} : vector<8x384xf32> to vector<8x128xf32>
    %189 = vector.extract_strided_slice %178 {offsets = [0, 256], sizes = [8, 128], strides = [1, 1]} : vector<8x384xf32> to vector<8x128xf32>
    %190 = arith.mulf %186, %189 : vector<8x128xf32>
    %191 = arith.addf %188, %190 : vector<8x128xf32>
    %192 = math.tanh %191 : vector<8x128xf32>
    %cst_80 = arith.constant 1.000000e+00 : f32
    %193 = vector.broadcast %cst_80 : f32 to vector<8x128xf32>
    %194 = arith.subf %193, %187 : vector<8x128xf32>
    %195 = arith.mulf %194, %192 : vector<8x128xf32>
    %196 = arith.mulf %187, %143 : vector<8x128xf32>
    %197 = arith.addf %195, %196 : vector<8x128xf32>
    %c0_81 = arith.constant 0 : index
    %c0_82 = arith.constant 0 : index
    %198 = vector.load %arg6[%c0_81, %c0_82] : memref<128x384xf32, #tpu.memory_space<vmem>>, vector<128x384xf32>
    %cst_83 = arith.constant dense<0.000000e+00> : vector<8x384xf32>
    %199 = tpu.matmul %173, %198, %cst_83 {dimension_numbers = #tpu.dot_dimension_numbers<[1], [0], [0], [1], [0, 0, 1, 1], [], []>} : vector<8x128xf32>, vector<128x384xf32>, vector<8x384xf32> -> vector<8x384xf32>
    %c0_84 = arith.constant 0 : index
    %c0_85 = arith.constant 0 : index
    %200 = vector.load %arg8[%c0_84, %c0_85] : memref<1x384xf32, #tpu.memory_space<vmem>>, vector<1x384xf32>
    %201 = vector.broadcast %200 : vector<1x384xf32> to vector<8x384xf32>
    %202 = arith.addf %199, %201 : vector<8x384xf32>
    %c32 = arith.constant 32 : index
    %c0_86 = arith.constant 0 : index
    %203 = vector.load %arg15[%c32, %c0_86] : memref<128x384xf32, #tpu.memory_space<vmem>>, vector<8x384xf32>
    %c0_87 = arith.constant 0 : index
    %c0_88 = arith.constant 0 : index
    %204 = vector.load %arg3[%c0_87, %c0_88] : memref<128x384xf32, #tpu.memory_space<vmem>>, vector<128x384xf32>
    %cst_89 = arith.constant dense<0.000000e+00> : vector<8x384xf32>
    %205 = tpu.matmul %173, %204, %cst_89 {dimension_numbers = #tpu.dot_dimension_numbers<[1], [0], [0], [1], [0, 0, 1, 1], [], []>} : vector<8x128xf32>, vector<128x384xf32>, vector<8x384xf32> -> vector<8x384xf32>
    %c0_90 = arith.constant 0 : index
    %c0_91 = arith.constant 0 : index
    %206 = vector.load %arg5[%c0_90, %c0_91] : memref<1x384xf32, #tpu.memory_space<vmem>>, vector<1x384xf32>
    %207 = vector.broadcast %206 : vector<1x384xf32> to vector<8x384xf32>
    %208 = arith.addf %205, %207 : vector<8x384xf32>
    %209 = arith.addf %203, %208 : vector<8x384xf32>
    %210 = vector.extract_strided_slice %209 {offsets = [0, 0], sizes = [8, 256], strides = [1, 1]} : vector<8x384xf32> to vector<8x256xf32>
    %211 = arith.negf %210 : vector<8x256xf32>
    %212 = math.exp %211 : vector<8x256xf32>
    %cst_92 = arith.constant 1.000000e+00 : f32
    %213 = vector.broadcast %cst_92 : f32 to vector<8x256xf32>
    %214 = arith.addf %213, %212 : vector<8x256xf32>
    %215 = arith.divf %213, %214 : vector<8x256xf32>
    %216 = vector.extract_strided_slice %215 {offsets = [0, 0], sizes = [8, 128], strides = [1, 1]} : vector<8x256xf32> to vector<8x128xf32>
    %217 = vector.extract_strided_slice %215 {offsets = [0, 128], sizes = [8, 128], strides = [1, 1]} : vector<8x256xf32> to vector<8x128xf32>
    %218 = vector.extract_strided_slice %203 {offsets = [0, 256], sizes = [8, 128], strides = [1, 1]} : vector<8x384xf32> to vector<8x128xf32>
    %219 = vector.extract_strided_slice %208 {offsets = [0, 256], sizes = [8, 128], strides = [1, 1]} : vector<8x384xf32> to vector<8x128xf32>
    %220 = arith.mulf %216, %219 : vector<8x128xf32>
    %221 = arith.addf %218, %220 : vector<8x128xf32>
    %222 = math.tanh %221 : vector<8x128xf32>
    %cst_93 = arith.constant 1.000000e+00 : f32
    %223 = vector.broadcast %cst_93 : f32 to vector<8x128xf32>
    %224 = arith.subf %223, %217 : vector<8x128xf32>
    %225 = arith.mulf %224, %222 : vector<8x128xf32>
    %226 = arith.mulf %217, %173 : vector<8x128xf32>
    %227 = arith.addf %225, %226 : vector<8x128xf32>
    %c0_94 = arith.constant 0 : index
    %c0_95 = arith.constant 0 : index
    %228 = vector.load %arg7[%c0_94, %c0_95] : memref<128x384xf32, #tpu.memory_space<vmem>>, vector<128x384xf32>
    %cst_96 = arith.constant dense<0.000000e+00> : vector<8x384xf32>
    %229 = tpu.matmul %197, %228, %cst_96 {dimension_numbers = #tpu.dot_dimension_numbers<[1], [0], [0], [1], [0, 0, 1, 1], [], []>} : vector<8x128xf32>, vector<128x384xf32>, vector<8x384xf32> -> vector<8x384xf32>
    %c0_97 = arith.constant 0 : index
    %c0_98 = arith.constant 0 : index
    %230 = vector.load %arg9[%c0_97, %c0_98] : memref<1x384xf32, #tpu.memory_space<vmem>>, vector<1x384xf32>
    %231 = vector.broadcast %230 : vector<1x384xf32> to vector<8x384xf32>
    %232 = arith.addf %229, %231 : vector<8x384xf32>
    %233 = arith.addf %202, %232 : vector<8x384xf32>
    %234 = vector.extract_strided_slice %233 {offsets = [0, 0], sizes = [8, 256], strides = [1, 1]} : vector<8x384xf32> to vector<8x256xf32>
    %235 = arith.negf %234 : vector<8x256xf32>
    %236 = math.exp %235 : vector<8x256xf32>
    %cst_99 = arith.constant 1.000000e+00 : f32
    %237 = vector.broadcast %cst_99 : f32 to vector<8x256xf32>
    %238 = arith.addf %237, %236 : vector<8x256xf32>
    %239 = arith.divf %237, %238 : vector<8x256xf32>
    %240 = vector.extract_strided_slice %239 {offsets = [0, 0], sizes = [8, 128], strides = [1, 1]} : vector<8x256xf32> to vector<8x128xf32>
    %241 = vector.extract_strided_slice %239 {offsets = [0, 128], sizes = [8, 128], strides = [1, 1]} : vector<8x256xf32> to vector<8x128xf32>
    %242 = vector.extract_strided_slice %202 {offsets = [0, 256], sizes = [8, 128], strides = [1, 1]} : vector<8x384xf32> to vector<8x128xf32>
    %243 = vector.extract_strided_slice %232 {offsets = [0, 256], sizes = [8, 128], strides = [1, 1]} : vector<8x384xf32> to vector<8x128xf32>
    %244 = arith.mulf %240, %243 : vector<8x128xf32>
    %245 = arith.addf %242, %244 : vector<8x128xf32>
    %246 = math.tanh %245 : vector<8x128xf32>
    %cst_100 = arith.constant 1.000000e+00 : f32
    %247 = vector.broadcast %cst_100 : f32 to vector<8x128xf32>
    %248 = arith.subf %247, %241 : vector<8x128xf32>
    %249 = arith.mulf %248, %246 : vector<8x128xf32>
    %250 = arith.mulf %241, %197 : vector<8x128xf32>
    %251 = arith.addf %249, %250 : vector<8x128xf32>
    %c0_101 = arith.constant 0 : index
    %c0_102 = arith.constant 0 : index
    %252 = vector.load %arg6[%c0_101, %c0_102] : memref<128x384xf32, #tpu.memory_space<vmem>>, vector<128x384xf32>
    %cst_103 = arith.constant dense<0.000000e+00> : vector<8x384xf32>
    %253 = tpu.matmul %227, %252, %cst_103 {dimension_numbers = #tpu.dot_dimension_numbers<[1], [0], [0], [1], [0, 0, 1, 1], [], []>} : vector<8x128xf32>, vector<128x384xf32>, vector<8x384xf32> -> vector<8x384xf32>
    %c0_104 = arith.constant 0 : index
    %c0_105 = arith.constant 0 : index
    %254 = vector.load %arg8[%c0_104, %c0_105] : memref<1x384xf32, #tpu.memory_space<vmem>>, vector<1x384xf32>
    %255 = vector.broadcast %254 : vector<1x384xf32> to vector<8x384xf32>
    %256 = arith.addf %253, %255 : vector<8x384xf32>
    %c40 = arith.constant 40 : index
    %c0_106 = arith.constant 0 : index
    %257 = vector.load %arg15[%c40, %c0_106] : memref<128x384xf32, #tpu.memory_space<vmem>>, vector<8x384xf32>
    %c0_107 = arith.constant 0 : index
    %c0_108 = arith.constant 0 : index
    %258 = vector.load %arg3[%c0_107, %c0_108] : memref<128x384xf32, #tpu.memory_space<vmem>>, vector<128x384xf32>
    %cst_109 = arith.constant dense<0.000000e+00> : vector<8x384xf32>
    %259 = tpu.matmul %227, %258, %cst_109 {dimension_numbers = #tpu.dot_dimension_numbers<[1], [0], [0], [1], [0, 0, 1, 1], [], []>} : vector<8x128xf32>, vector<128x384xf32>, vector<8x384xf32> -> vector<8x384xf32>
    %c0_110 = arith.constant 0 : index
    %c0_111 = arith.constant 0 : index
    %260 = vector.load %arg5[%c0_110, %c0_111] : memref<1x384xf32, #tpu.memory_space<vmem>>, vector<1x384xf32>
    %261 = vector.broadcast %260 : vector<1x384xf32> to vector<8x384xf32>
    %262 = arith.addf %259, %261 : vector<8x384xf32>
    %263 = arith.addf %257, %262 : vector<8x384xf32>
    %264 = vector.extract_strided_slice %263 {offsets = [0, 0], sizes = [8, 256], strides = [1, 1]} : vector<8x384xf32> to vector<8x256xf32>
    %265 = arith.negf %264 : vector<8x256xf32>
    %266 = math.exp %265 : vector<8x256xf32>
    %cst_112 = arith.constant 1.000000e+00 : f32
    %267 = vector.broadcast %cst_112 : f32 to vector<8x256xf32>
    %268 = arith.addf %267, %266 : vector<8x256xf32>
    %269 = arith.divf %267, %268 : vector<8x256xf32>
    %270 = vector.extract_strided_slice %269 {offsets = [0, 0], sizes = [8, 128], strides = [1, 1]} : vector<8x256xf32> to vector<8x128xf32>
    %271 = vector.extract_strided_slice %269 {offsets = [0, 128], sizes = [8, 128], strides = [1, 1]} : vector<8x256xf32> to vector<8x128xf32>
    %272 = vector.extract_strided_slice %257 {offsets = [0, 256], sizes = [8, 128], strides = [1, 1]} : vector<8x384xf32> to vector<8x128xf32>
    %273 = vector.extract_strided_slice %262 {offsets = [0, 256], sizes = [8, 128], strides = [1, 1]} : vector<8x384xf32> to vector<8x128xf32>
    %274 = arith.mulf %270, %273 : vector<8x128xf32>
    %275 = arith.addf %272, %274 : vector<8x128xf32>
    %276 = math.tanh %275 : vector<8x128xf32>
    %cst_113 = arith.constant 1.000000e+00 : f32
    %277 = vector.broadcast %cst_113 : f32 to vector<8x128xf32>
    %278 = arith.subf %277, %271 : vector<8x128xf32>
    %279 = arith.mulf %278, %276 : vector<8x128xf32>
    %280 = arith.mulf %271, %227 : vector<8x128xf32>
    %281 = arith.addf %279, %280 : vector<8x128xf32>
    %c0_114 = arith.constant 0 : index
    %c0_115 = arith.constant 0 : index
    %282 = vector.load %arg7[%c0_114, %c0_115] : memref<128x384xf32, #tpu.memory_space<vmem>>, vector<128x384xf32>
    %cst_116 = arith.constant dense<0.000000e+00> : vector<8x384xf32>
    %283 = tpu.matmul %251, %282, %cst_116 {dimension_numbers = #tpu.dot_dimension_numbers<[1], [0], [0], [1], [0, 0, 1, 1], [], []>} : vector<8x128xf32>, vector<128x384xf32>, vector<8x384xf32> -> vector<8x384xf32>
    %c0_117 = arith.constant 0 : index
    %c0_118 = arith.constant 0 : index
    %284 = vector.load %arg9[%c0_117, %c0_118] : memref<1x384xf32, #tpu.memory_space<vmem>>, vector<1x384xf32>
    %285 = vector.broadcast %284 : vector<1x384xf32> to vector<8x384xf32>
    %286 = arith.addf %283, %285 : vector<8x384xf32>
    %287 = arith.addf %256, %286 : vector<8x384xf32>
    %288 = vector.extract_strided_slice %287 {offsets = [0, 0], sizes = [8, 256], strides = [1, 1]} : vector<8x384xf32> to vector<8x256xf32>
    %289 = arith.negf %288 : vector<8x256xf32>
    %290 = math.exp %289 : vector<8x256xf32>
    %cst_119 = arith.constant 1.000000e+00 : f32
    %291 = vector.broadcast %cst_119 : f32 to vector<8x256xf32>
    %292 = arith.addf %291, %290 : vector<8x256xf32>
    %293 = arith.divf %291, %292 : vector<8x256xf32>
    %294 = vector.extract_strided_slice %293 {offsets = [0, 0], sizes = [8, 128], strides = [1, 1]} : vector<8x256xf32> to vector<8x128xf32>
    %295 = vector.extract_strided_slice %293 {offsets = [0, 128], sizes = [8, 128], strides = [1, 1]} : vector<8x256xf32> to vector<8x128xf32>
    %296 = vector.extract_strided_slice %256 {offsets = [0, 256], sizes = [8, 128], strides = [1, 1]} : vector<8x384xf32> to vector<8x128xf32>
    %297 = vector.extract_strided_slice %286 {offsets = [0, 256], sizes = [8, 128], strides = [1, 1]} : vector<8x384xf32> to vector<8x128xf32>
    %298 = arith.mulf %294, %297 : vector<8x128xf32>
    %299 = arith.addf %296, %298 : vector<8x128xf32>
    %300 = math.tanh %299 : vector<8x128xf32>
    %cst_120 = arith.constant 1.000000e+00 : f32
    %301 = vector.broadcast %cst_120 : f32 to vector<8x128xf32>
    %302 = arith.subf %301, %295 : vector<8x128xf32>
    %303 = arith.mulf %302, %300 : vector<8x128xf32>
    %304 = arith.mulf %295, %251 : vector<8x128xf32>
    %305 = arith.addf %303, %304 : vector<8x128xf32>
    %c0_121 = arith.constant 0 : index
    %c0_122 = arith.constant 0 : index
    %306 = vector.load %arg6[%c0_121, %c0_122] : memref<128x384xf32, #tpu.memory_space<vmem>>, vector<128x384xf32>
    %cst_123 = arith.constant dense<0.000000e+00> : vector<8x384xf32>
    %307 = tpu.matmul %281, %306, %cst_123 {dimension_numbers = #tpu.dot_dimension_numbers<[1], [0], [0], [1], [0, 0, 1, 1], [], []>} : vector<8x128xf32>, vector<128x384xf32>, vector<8x384xf32> -> vector<8x384xf32>
    %c0_124 = arith.constant 0 : index
    %c0_125 = arith.constant 0 : index
    %308 = vector.load %arg8[%c0_124, %c0_125] : memref<1x384xf32, #tpu.memory_space<vmem>>, vector<1x384xf32>
    %309 = vector.broadcast %308 : vector<1x384xf32> to vector<8x384xf32>
    %310 = arith.addf %307, %309 : vector<8x384xf32>
    %c48 = arith.constant 48 : index
    %c0_126 = arith.constant 0 : index
    %311 = vector.load %arg15[%c48, %c0_126] : memref<128x384xf32, #tpu.memory_space<vmem>>, vector<8x384xf32>
    %c0_127 = arith.constant 0 : index
    %c0_128 = arith.constant 0 : index
    %312 = vector.load %arg3[%c0_127, %c0_128] : memref<128x384xf32, #tpu.memory_space<vmem>>, vector<128x384xf32>
    %cst_129 = arith.constant dense<0.000000e+00> : vector<8x384xf32>
    %313 = tpu.matmul %281, %312, %cst_129 {dimension_numbers = #tpu.dot_dimension_numbers<[1], [0], [0], [1], [0, 0, 1, 1], [], []>} : vector<8x128xf32>, vector<128x384xf32>, vector<8x384xf32> -> vector<8x384xf32>
    %c0_130 = arith.constant 0 : index
    %c0_131 = arith.constant 0 : index
    %314 = vector.load %arg5[%c0_130, %c0_131] : memref<1x384xf32, #tpu.memory_space<vmem>>, vector<1x384xf32>
    %315 = vector.broadcast %314 : vector<1x384xf32> to vector<8x384xf32>
    %316 = arith.addf %313, %315 : vector<8x384xf32>
    %317 = arith.addf %311, %316 : vector<8x384xf32>
    %318 = vector.extract_strided_slice %317 {offsets = [0, 0], sizes = [8, 256], strides = [1, 1]} : vector<8x384xf32> to vector<8x256xf32>
    %319 = arith.negf %318 : vector<8x256xf32>
    %320 = math.exp %319 : vector<8x256xf32>
    %cst_132 = arith.constant 1.000000e+00 : f32
    %321 = vector.broadcast %cst_132 : f32 to vector<8x256xf32>
    %322 = arith.addf %321, %320 : vector<8x256xf32>
    %323 = arith.divf %321, %322 : vector<8x256xf32>
    %324 = vector.extract_strided_slice %323 {offsets = [0, 0], sizes = [8, 128], strides = [1, 1]} : vector<8x256xf32> to vector<8x128xf32>
    %325 = vector.extract_strided_slice %323 {offsets = [0, 128], sizes = [8, 128], strides = [1, 1]} : vector<8x256xf32> to vector<8x128xf32>
    %326 = vector.extract_strided_slice %311 {offsets = [0, 256], sizes = [8, 128], strides = [1, 1]} : vector<8x384xf32> to vector<8x128xf32>
    %327 = vector.extract_strided_slice %316 {offsets = [0, 256], sizes = [8, 128], strides = [1, 1]} : vector<8x384xf32> to vector<8x128xf32>
    %328 = arith.mulf %324, %327 : vector<8x128xf32>
    %329 = arith.addf %326, %328 : vector<8x128xf32>
    %330 = math.tanh %329 : vector<8x128xf32>
    %cst_133 = arith.constant 1.000000e+00 : f32
    %331 = vector.broadcast %cst_133 : f32 to vector<8x128xf32>
    %332 = arith.subf %331, %325 : vector<8x128xf32>
    %333 = arith.mulf %332, %330 : vector<8x128xf32>
    %334 = arith.mulf %325, %281 : vector<8x128xf32>
    %335 = arith.addf %333, %334 : vector<8x128xf32>
    %c0_134 = arith.constant 0 : index
    %c0_135 = arith.constant 0 : index
    %336 = vector.load %arg7[%c0_134, %c0_135] : memref<128x384xf32, #tpu.memory_space<vmem>>, vector<128x384xf32>
    %cst_136 = arith.constant dense<0.000000e+00> : vector<8x384xf32>
    %337 = tpu.matmul %305, %336, %cst_136 {dimension_numbers = #tpu.dot_dimension_numbers<[1], [0], [0], [1], [0, 0, 1, 1], [], []>} : vector<8x128xf32>, vector<128x384xf32>, vector<8x384xf32> -> vector<8x384xf32>
    %c0_137 = arith.constant 0 : index
    %c0_138 = arith.constant 0 : index
    %338 = vector.load %arg9[%c0_137, %c0_138] : memref<1x384xf32, #tpu.memory_space<vmem>>, vector<1x384xf32>
    %339 = vector.broadcast %338 : vector<1x384xf32> to vector<8x384xf32>
    %340 = arith.addf %337, %339 : vector<8x384xf32>
    %341 = arith.addf %310, %340 : vector<8x384xf32>
    %342 = vector.extract_strided_slice %341 {offsets = [0, 0], sizes = [8, 256], strides = [1, 1]} : vector<8x384xf32> to vector<8x256xf32>
    %343 = arith.negf %342 : vector<8x256xf32>
    %344 = math.exp %343 : vector<8x256xf32>
    %cst_139 = arith.constant 1.000000e+00 : f32
    %345 = vector.broadcast %cst_139 : f32 to vector<8x256xf32>
    %346 = arith.addf %345, %344 : vector<8x256xf32>
    %347 = arith.divf %345, %346 : vector<8x256xf32>
    %348 = vector.extract_strided_slice %347 {offsets = [0, 0], sizes = [8, 128], strides = [1, 1]} : vector<8x256xf32> to vector<8x128xf32>
    %349 = vector.extract_strided_slice %347 {offsets = [0, 128], sizes = [8, 128], strides = [1, 1]} : vector<8x256xf32> to vector<8x128xf32>
    %350 = vector.extract_strided_slice %310 {offsets = [0, 256], sizes = [8, 128], strides = [1, 1]} : vector<8x384xf32> to vector<8x128xf32>
    %351 = vector.extract_strided_slice %340 {offsets = [0, 256], sizes = [8, 128], strides = [1, 1]} : vector<8x384xf32> to vector<8x128xf32>
    %352 = arith.mulf %348, %351 : vector<8x128xf32>
    %353 = arith.addf %350, %352 : vector<8x128xf32>
    %354 = math.tanh %353 : vector<8x128xf32>
    %cst_140 = arith.constant 1.000000e+00 : f32
    %355 = vector.broadcast %cst_140 : f32 to vector<8x128xf32>
    %356 = arith.subf %355, %349 : vector<8x128xf32>
    %357 = arith.mulf %356, %354 : vector<8x128xf32>
    %358 = arith.mulf %349, %305 : vector<8x128xf32>
    %359 = arith.addf %357, %358 : vector<8x128xf32>
    %c0_141 = arith.constant 0 : index
    %c0_142 = arith.constant 0 : index
    %360 = vector.load %arg6[%c0_141, %c0_142] : memref<128x384xf32, #tpu.memory_space<vmem>>, vector<128x384xf32>
    %cst_143 = arith.constant dense<0.000000e+00> : vector<8x384xf32>
    %361 = tpu.matmul %335, %360, %cst_143 {dimension_numbers = #tpu.dot_dimension_numbers<[1], [0], [0], [1], [0, 0, 1, 1], [], []>} : vector<8x128xf32>, vector<128x384xf32>, vector<8x384xf32> -> vector<8x384xf32>
    %c0_144 = arith.constant 0 : index
    %c0_145 = arith.constant 0 : index
    %362 = vector.load %arg8[%c0_144, %c0_145] : memref<1x384xf32, #tpu.memory_space<vmem>>, vector<1x384xf32>
    %363 = vector.broadcast %362 : vector<1x384xf32> to vector<8x384xf32>
    %364 = arith.addf %361, %363 : vector<8x384xf32>
    %c56 = arith.constant 56 : index
    %c0_146 = arith.constant 0 : index
    %365 = vector.load %arg15[%c56, %c0_146] : memref<128x384xf32, #tpu.memory_space<vmem>>, vector<8x384xf32>
    %c0_147 = arith.constant 0 : index
    %c0_148 = arith.constant 0 : index
    %366 = vector.load %arg3[%c0_147, %c0_148] : memref<128x384xf32, #tpu.memory_space<vmem>>, vector<128x384xf32>
    %cst_149 = arith.constant dense<0.000000e+00> : vector<8x384xf32>
    %367 = tpu.matmul %335, %366, %cst_149 {dimension_numbers = #tpu.dot_dimension_numbers<[1], [0], [0], [1], [0, 0, 1, 1], [], []>} : vector<8x128xf32>, vector<128x384xf32>, vector<8x384xf32> -> vector<8x384xf32>
    %c0_150 = arith.constant 0 : index
    %c0_151 = arith.constant 0 : index
    %368 = vector.load %arg5[%c0_150, %c0_151] : memref<1x384xf32, #tpu.memory_space<vmem>>, vector<1x384xf32>
    %369 = vector.broadcast %368 : vector<1x384xf32> to vector<8x384xf32>
    %370 = arith.addf %367, %369 : vector<8x384xf32>
    %371 = arith.addf %365, %370 : vector<8x384xf32>
    %372 = vector.extract_strided_slice %371 {offsets = [0, 0], sizes = [8, 256], strides = [1, 1]} : vector<8x384xf32> to vector<8x256xf32>
    %373 = arith.negf %372 : vector<8x256xf32>
    %374 = math.exp %373 : vector<8x256xf32>
    %cst_152 = arith.constant 1.000000e+00 : f32
    %375 = vector.broadcast %cst_152 : f32 to vector<8x256xf32>
    %376 = arith.addf %375, %374 : vector<8x256xf32>
    %377 = arith.divf %375, %376 : vector<8x256xf32>
    %378 = vector.extract_strided_slice %377 {offsets = [0, 0], sizes = [8, 128], strides = [1, 1]} : vector<8x256xf32> to vector<8x128xf32>
    %379 = vector.extract_strided_slice %377 {offsets = [0, 128], sizes = [8, 128], strides = [1, 1]} : vector<8x256xf32> to vector<8x128xf32>
    %380 = vector.extract_strided_slice %365 {offsets = [0, 256], sizes = [8, 128], strides = [1, 1]} : vector<8x384xf32> to vector<8x128xf32>
    %381 = vector.extract_strided_slice %370 {offsets = [0, 256], sizes = [8, 128], strides = [1, 1]} : vector<8x384xf32> to vector<8x128xf32>
    %382 = arith.mulf %378, %381 : vector<8x128xf32>
    %383 = arith.addf %380, %382 : vector<8x128xf32>
    %384 = math.tanh %383 : vector<8x128xf32>
    %cst_153 = arith.constant 1.000000e+00 : f32
    %385 = vector.broadcast %cst_153 : f32 to vector<8x128xf32>
    %386 = arith.subf %385, %379 : vector<8x128xf32>
    %387 = arith.mulf %386, %384 : vector<8x128xf32>
    %388 = arith.mulf %379, %335 : vector<8x128xf32>
    %389 = arith.addf %387, %388 : vector<8x128xf32>
    %c0_154 = arith.constant 0 : index
    %c0_155 = arith.constant 0 : index
    %390 = vector.load %arg7[%c0_154, %c0_155] : memref<128x384xf32, #tpu.memory_space<vmem>>, vector<128x384xf32>
    %cst_156 = arith.constant dense<0.000000e+00> : vector<8x384xf32>
    %391 = tpu.matmul %359, %390, %cst_156 {dimension_numbers = #tpu.dot_dimension_numbers<[1], [0], [0], [1], [0, 0, 1, 1], [], []>} : vector<8x128xf32>, vector<128x384xf32>, vector<8x384xf32> -> vector<8x384xf32>
    %c0_157 = arith.constant 0 : index
    %c0_158 = arith.constant 0 : index
    %392 = vector.load %arg9[%c0_157, %c0_158] : memref<1x384xf32, #tpu.memory_space<vmem>>, vector<1x384xf32>
    %393 = vector.broadcast %392 : vector<1x384xf32> to vector<8x384xf32>
    %394 = arith.addf %391, %393 : vector<8x384xf32>
    %395 = arith.addf %364, %394 : vector<8x384xf32>
    %396 = vector.extract_strided_slice %395 {offsets = [0, 0], sizes = [8, 256], strides = [1, 1]} : vector<8x384xf32> to vector<8x256xf32>
    %397 = arith.negf %396 : vector<8x256xf32>
    %398 = math.exp %397 : vector<8x256xf32>
    %cst_159 = arith.constant 1.000000e+00 : f32
    %399 = vector.broadcast %cst_159 : f32 to vector<8x256xf32>
    %400 = arith.addf %399, %398 : vector<8x256xf32>
    %401 = arith.divf %399, %400 : vector<8x256xf32>
    %402 = vector.extract_strided_slice %401 {offsets = [0, 0], sizes = [8, 128], strides = [1, 1]} : vector<8x256xf32> to vector<8x128xf32>
    %403 = vector.extract_strided_slice %401 {offsets = [0, 128], sizes = [8, 128], strides = [1, 1]} : vector<8x256xf32> to vector<8x128xf32>
    %404 = vector.extract_strided_slice %364 {offsets = [0, 256], sizes = [8, 128], strides = [1, 1]} : vector<8x384xf32> to vector<8x128xf32>
    %405 = vector.extract_strided_slice %394 {offsets = [0, 256], sizes = [8, 128], strides = [1, 1]} : vector<8x384xf32> to vector<8x128xf32>
    %406 = arith.mulf %402, %405 : vector<8x128xf32>
    %407 = arith.addf %404, %406 : vector<8x128xf32>
    %408 = math.tanh %407 : vector<8x128xf32>
    %cst_160 = arith.constant 1.000000e+00 : f32
    %409 = vector.broadcast %cst_160 : f32 to vector<8x128xf32>
    %410 = arith.subf %409, %403 : vector<8x128xf32>
    %411 = arith.mulf %410, %408 : vector<8x128xf32>
    %412 = arith.mulf %403, %359 : vector<8x128xf32>
    %413 = arith.addf %411, %412 : vector<8x128xf32>
    %c0_161 = arith.constant 0 : index
    %c0_162 = arith.constant 0 : index
    %414 = vector.load %arg6[%c0_161, %c0_162] : memref<128x384xf32, #tpu.memory_space<vmem>>, vector<128x384xf32>
    %cst_163 = arith.constant dense<0.000000e+00> : vector<8x384xf32>
    %415 = tpu.matmul %389, %414, %cst_163 {dimension_numbers = #tpu.dot_dimension_numbers<[1], [0], [0], [1], [0, 0, 1, 1], [], []>} : vector<8x128xf32>, vector<128x384xf32>, vector<8x384xf32> -> vector<8x384xf32>
    %c0_164 = arith.constant 0 : index
    %c0_165 = arith.constant 0 : index
    %416 = vector.load %arg8[%c0_164, %c0_165] : memref<1x384xf32, #tpu.memory_space<vmem>>, vector<1x384xf32>
    %417 = vector.broadcast %416 : vector<1x384xf32> to vector<8x384xf32>
    %418 = arith.addf %415, %417 : vector<8x384xf32>
    %c64 = arith.constant 64 : index
    %c0_166 = arith.constant 0 : index
    %419 = vector.load %arg15[%c64, %c0_166] : memref<128x384xf32, #tpu.memory_space<vmem>>, vector<8x384xf32>
    %c0_167 = arith.constant 0 : index
    %c0_168 = arith.constant 0 : index
    %420 = vector.load %arg3[%c0_167, %c0_168] : memref<128x384xf32, #tpu.memory_space<vmem>>, vector<128x384xf32>
    %cst_169 = arith.constant dense<0.000000e+00> : vector<8x384xf32>
    %421 = tpu.matmul %389, %420, %cst_169 {dimension_numbers = #tpu.dot_dimension_numbers<[1], [0], [0], [1], [0, 0, 1, 1], [], []>} : vector<8x128xf32>, vector<128x384xf32>, vector<8x384xf32> -> vector<8x384xf32>
    %c0_170 = arith.constant 0 : index
    %c0_171 = arith.constant 0 : index
    %422 = vector.load %arg5[%c0_170, %c0_171] : memref<1x384xf32, #tpu.memory_space<vmem>>, vector<1x384xf32>
    %423 = vector.broadcast %422 : vector<1x384xf32> to vector<8x384xf32>
    %424 = arith.addf %421, %423 : vector<8x384xf32>
    %425 = arith.addf %419, %424 : vector<8x384xf32>
    %426 = vector.extract_strided_slice %425 {offsets = [0, 0], sizes = [8, 256], strides = [1, 1]} : vector<8x384xf32> to vector<8x256xf32>
    %427 = arith.negf %426 : vector<8x256xf32>
    %428 = math.exp %427 : vector<8x256xf32>
    %cst_172 = arith.constant 1.000000e+00 : f32
    %429 = vector.broadcast %cst_172 : f32 to vector<8x256xf32>
    %430 = arith.addf %429, %428 : vector<8x256xf32>
    %431 = arith.divf %429, %430 : vector<8x256xf32>
    %432 = vector.extract_strided_slice %431 {offsets = [0, 0], sizes = [8, 128], strides = [1, 1]} : vector<8x256xf32> to vector<8x128xf32>
    %433 = vector.extract_strided_slice %431 {offsets = [0, 128], sizes = [8, 128], strides = [1, 1]} : vector<8x256xf32> to vector<8x128xf32>
    %434 = vector.extract_strided_slice %419 {offsets = [0, 256], sizes = [8, 128], strides = [1, 1]} : vector<8x384xf32> to vector<8x128xf32>
    %435 = vector.extract_strided_slice %424 {offsets = [0, 256], sizes = [8, 128], strides = [1, 1]} : vector<8x384xf32> to vector<8x128xf32>
    %436 = arith.mulf %432, %435 : vector<8x128xf32>
    %437 = arith.addf %434, %436 : vector<8x128xf32>
    %438 = math.tanh %437 : vector<8x128xf32>
    %cst_173 = arith.constant 1.000000e+00 : f32
    %439 = vector.broadcast %cst_173 : f32 to vector<8x128xf32>
    %440 = arith.subf %439, %433 : vector<8x128xf32>
    %441 = arith.mulf %440, %438 : vector<8x128xf32>
    %442 = arith.mulf %433, %389 : vector<8x128xf32>
    %443 = arith.addf %441, %442 : vector<8x128xf32>
    %c0_174 = arith.constant 0 : index
    %c0_175 = arith.constant 0 : index
    %444 = vector.load %arg7[%c0_174, %c0_175] : memref<128x384xf32, #tpu.memory_space<vmem>>, vector<128x384xf32>
    %cst_176 = arith.constant dense<0.000000e+00> : vector<8x384xf32>
    %445 = tpu.matmul %413, %444, %cst_176 {dimension_numbers = #tpu.dot_dimension_numbers<[1], [0], [0], [1], [0, 0, 1, 1], [], []>} : vector<8x128xf32>, vector<128x384xf32>, vector<8x384xf32> -> vector<8x384xf32>
    %c0_177 = arith.constant 0 : index
    %c0_178 = arith.constant 0 : index
    %446 = vector.load %arg9[%c0_177, %c0_178] : memref<1x384xf32, #tpu.memory_space<vmem>>, vector<1x384xf32>
    %447 = vector.broadcast %446 : vector<1x384xf32> to vector<8x384xf32>
    %448 = arith.addf %445, %447 : vector<8x384xf32>
    %449 = arith.addf %418, %448 : vector<8x384xf32>
    %450 = vector.extract_strided_slice %449 {offsets = [0, 0], sizes = [8, 256], strides = [1, 1]} : vector<8x384xf32> to vector<8x256xf32>
    %451 = arith.negf %450 : vector<8x256xf32>
    %452 = math.exp %451 : vector<8x256xf32>
    %cst_179 = arith.constant 1.000000e+00 : f32
    %453 = vector.broadcast %cst_179 : f32 to vector<8x256xf32>
    %454 = arith.addf %453, %452 : vector<8x256xf32>
    %455 = arith.divf %453, %454 : vector<8x256xf32>
    %456 = vector.extract_strided_slice %455 {offsets = [0, 0], sizes = [8, 128], strides = [1, 1]} : vector<8x256xf32> to vector<8x128xf32>
    %457 = vector.extract_strided_slice %455 {offsets = [0, 128], sizes = [8, 128], strides = [1, 1]} : vector<8x256xf32> to vector<8x128xf32>
    %458 = vector.extract_strided_slice %418 {offsets = [0, 256], sizes = [8, 128], strides = [1, 1]} : vector<8x384xf32> to vector<8x128xf32>
    %459 = vector.extract_strided_slice %448 {offsets = [0, 256], sizes = [8, 128], strides = [1, 1]} : vector<8x384xf32> to vector<8x128xf32>
    %460 = arith.mulf %456, %459 : vector<8x128xf32>
    %461 = arith.addf %458, %460 : vector<8x128xf32>
    %462 = math.tanh %461 : vector<8x128xf32>
    %cst_180 = arith.constant 1.000000e+00 : f32
    %463 = vector.broadcast %cst_180 : f32 to vector<8x128xf32>
    %464 = arith.subf %463, %457 : vector<8x128xf32>
    %465 = arith.mulf %464, %462 : vector<8x128xf32>
    %466 = arith.mulf %457, %413 : vector<8x128xf32>
    %467 = arith.addf %465, %466 : vector<8x128xf32>
    %c0_181 = arith.constant 0 : index
    %c0_182 = arith.constant 0 : index
    %468 = vector.load %arg6[%c0_181, %c0_182] : memref<128x384xf32, #tpu.memory_space<vmem>>, vector<128x384xf32>
    %cst_183 = arith.constant dense<0.000000e+00> : vector<8x384xf32>
    %469 = tpu.matmul %443, %468, %cst_183 {dimension_numbers = #tpu.dot_dimension_numbers<[1], [0], [0], [1], [0, 0, 1, 1], [], []>} : vector<8x128xf32>, vector<128x384xf32>, vector<8x384xf32> -> vector<8x384xf32>
    %c0_184 = arith.constant 0 : index
    %c0_185 = arith.constant 0 : index
    %470 = vector.load %arg8[%c0_184, %c0_185] : memref<1x384xf32, #tpu.memory_space<vmem>>, vector<1x384xf32>
    %471 = vector.broadcast %470 : vector<1x384xf32> to vector<8x384xf32>
    %472 = arith.addf %469, %471 : vector<8x384xf32>
    %c72 = arith.constant 72 : index
    %c0_186 = arith.constant 0 : index
    %473 = vector.load %arg15[%c72, %c0_186] : memref<128x384xf32, #tpu.memory_space<vmem>>, vector<8x384xf32>
    %c0_187 = arith.constant 0 : index
    %c0_188 = arith.constant 0 : index
    %474 = vector.load %arg3[%c0_187, %c0_188] : memref<128x384xf32, #tpu.memory_space<vmem>>, vector<128x384xf32>
    %cst_189 = arith.constant dense<0.000000e+00> : vector<8x384xf32>
    %475 = tpu.matmul %443, %474, %cst_189 {dimension_numbers = #tpu.dot_dimension_numbers<[1], [0], [0], [1], [0, 0, 1, 1], [], []>} : vector<8x128xf32>, vector<128x384xf32>, vector<8x384xf32> -> vector<8x384xf32>
    %c0_190 = arith.constant 0 : index
    %c0_191 = arith.constant 0 : index
    %476 = vector.load %arg5[%c0_190, %c0_191] : memref<1x384xf32, #tpu.memory_space<vmem>>, vector<1x384xf32>
    %477 = vector.broadcast %476 : vector<1x384xf32> to vector<8x384xf32>
    %478 = arith.addf %475, %477 : vector<8x384xf32>
    %479 = arith.addf %473, %478 : vector<8x384xf32>
    %480 = vector.extract_strided_slice %479 {offsets = [0, 0], sizes = [8, 256], strides = [1, 1]} : vector<8x384xf32> to vector<8x256xf32>
    %481 = arith.negf %480 : vector<8x256xf32>
    %482 = math.exp %481 : vector<8x256xf32>
    %cst_192 = arith.constant 1.000000e+00 : f32
    %483 = vector.broadcast %cst_192 : f32 to vector<8x256xf32>
    %484 = arith.addf %483, %482 : vector<8x256xf32>
    %485 = arith.divf %483, %484 : vector<8x256xf32>
    %486 = vector.extract_strided_slice %485 {offsets = [0, 0], sizes = [8, 128], strides = [1, 1]} : vector<8x256xf32> to vector<8x128xf32>
    %487 = vector.extract_strided_slice %485 {offsets = [0, 128], sizes = [8, 128], strides = [1, 1]} : vector<8x256xf32> to vector<8x128xf32>
    %488 = vector.extract_strided_slice %473 {offsets = [0, 256], sizes = [8, 128], strides = [1, 1]} : vector<8x384xf32> to vector<8x128xf32>
    %489 = vector.extract_strided_slice %478 {offsets = [0, 256], sizes = [8, 128], strides = [1, 1]} : vector<8x384xf32> to vector<8x128xf32>
    %490 = arith.mulf %486, %489 : vector<8x128xf32>
    %491 = arith.addf %488, %490 : vector<8x128xf32>
    %492 = math.tanh %491 : vector<8x128xf32>
    %cst_193 = arith.constant 1.000000e+00 : f32
    %493 = vector.broadcast %cst_193 : f32 to vector<8x128xf32>
    %494 = arith.subf %493, %487 : vector<8x128xf32>
    %495 = arith.mulf %494, %492 : vector<8x128xf32>
    %496 = arith.mulf %487, %443 : vector<8x128xf32>
    %497 = arith.addf %495, %496 : vector<8x128xf32>
    %c0_194 = arith.constant 0 : index
    %c0_195 = arith.constant 0 : index
    %498 = vector.load %arg7[%c0_194, %c0_195] : memref<128x384xf32, #tpu.memory_space<vmem>>, vector<128x384xf32>
    %cst_196 = arith.constant dense<0.000000e+00> : vector<8x384xf32>
    %499 = tpu.matmul %467, %498, %cst_196 {dimension_numbers = #tpu.dot_dimension_numbers<[1], [0], [0], [1], [0, 0, 1, 1], [], []>} : vector<8x128xf32>, vector<128x384xf32>, vector<8x384xf32> -> vector<8x384xf32>
    %c0_197 = arith.constant 0 : index
    %c0_198 = arith.constant 0 : index
    %500 = vector.load %arg9[%c0_197, %c0_198] : memref<1x384xf32, #tpu.memory_space<vmem>>, vector<1x384xf32>
    %501 = vector.broadcast %500 : vector<1x384xf32> to vector<8x384xf32>
    %502 = arith.addf %499, %501 : vector<8x384xf32>
    %503 = arith.addf %472, %502 : vector<8x384xf32>
    %504 = vector.extract_strided_slice %503 {offsets = [0, 0], sizes = [8, 256], strides = [1, 1]} : vector<8x384xf32> to vector<8x256xf32>
    %505 = arith.negf %504 : vector<8x256xf32>
    %506 = math.exp %505 : vector<8x256xf32>
    %cst_199 = arith.constant 1.000000e+00 : f32
    %507 = vector.broadcast %cst_199 : f32 to vector<8x256xf32>
    %508 = arith.addf %507, %506 : vector<8x256xf32>
    %509 = arith.divf %507, %508 : vector<8x256xf32>
    %510 = vector.extract_strided_slice %509 {offsets = [0, 0], sizes = [8, 128], strides = [1, 1]} : vector<8x256xf32> to vector<8x128xf32>
    %511 = vector.extract_strided_slice %509 {offsets = [0, 128], sizes = [8, 128], strides = [1, 1]} : vector<8x256xf32> to vector<8x128xf32>
    %512 = vector.extract_strided_slice %472 {offsets = [0, 256], sizes = [8, 128], strides = [1, 1]} : vector<8x384xf32> to vector<8x128xf32>
    %513 = vector.extract_strided_slice %502 {offsets = [0, 256], sizes = [8, 128], strides = [1, 1]} : vector<8x384xf32> to vector<8x128xf32>
    %514 = arith.mulf %510, %513 : vector<8x128xf32>
    %515 = arith.addf %512, %514 : vector<8x128xf32>
    %516 = math.tanh %515 : vector<8x128xf32>
    %cst_200 = arith.constant 1.000000e+00 : f32
    %517 = vector.broadcast %cst_200 : f32 to vector<8x128xf32>
    %518 = arith.subf %517, %511 : vector<8x128xf32>
    %519 = arith.mulf %518, %516 : vector<8x128xf32>
    %520 = arith.mulf %511, %467 : vector<8x128xf32>
    %521 = arith.addf %519, %520 : vector<8x128xf32>
    %c0_201 = arith.constant 0 : index
    %c0_202 = arith.constant 0 : index
    %522 = vector.load %arg6[%c0_201, %c0_202] : memref<128x384xf32, #tpu.memory_space<vmem>>, vector<128x384xf32>
    %cst_203 = arith.constant dense<0.000000e+00> : vector<8x384xf32>
    %523 = tpu.matmul %497, %522, %cst_203 {dimension_numbers = #tpu.dot_dimension_numbers<[1], [0], [0], [1], [0, 0, 1, 1], [], []>} : vector<8x128xf32>, vector<128x384xf32>, vector<8x384xf32> -> vector<8x384xf32>
    %c0_204 = arith.constant 0 : index
    %c0_205 = arith.constant 0 : index
    %524 = vector.load %arg8[%c0_204, %c0_205] : memref<1x384xf32, #tpu.memory_space<vmem>>, vector<1x384xf32>
    %525 = vector.broadcast %524 : vector<1x384xf32> to vector<8x384xf32>
    %526 = arith.addf %523, %525 : vector<8x384xf32>
    %c80 = arith.constant 80 : index
    %c0_206 = arith.constant 0 : index
    %527 = vector.load %arg15[%c80, %c0_206] : memref<128x384xf32, #tpu.memory_space<vmem>>, vector<8x384xf32>
    %c0_207 = arith.constant 0 : index
    %c0_208 = arith.constant 0 : index
    %528 = vector.load %arg3[%c0_207, %c0_208] : memref<128x384xf32, #tpu.memory_space<vmem>>, vector<128x384xf32>
    %cst_209 = arith.constant dense<0.000000e+00> : vector<8x384xf32>
    %529 = tpu.matmul %497, %528, %cst_209 {dimension_numbers = #tpu.dot_dimension_numbers<[1], [0], [0], [1], [0, 0, 1, 1], [], []>} : vector<8x128xf32>, vector<128x384xf32>, vector<8x384xf32> -> vector<8x384xf32>
    %c0_210 = arith.constant 0 : index
    %c0_211 = arith.constant 0 : index
    %530 = vector.load %arg5[%c0_210, %c0_211] : memref<1x384xf32, #tpu.memory_space<vmem>>, vector<1x384xf32>
    %531 = vector.broadcast %530 : vector<1x384xf32> to vector<8x384xf32>
    %532 = arith.addf %529, %531 : vector<8x384xf32>
    %533 = arith.addf %527, %532 : vector<8x384xf32>
    %534 = vector.extract_strided_slice %533 {offsets = [0, 0], sizes = [8, 256], strides = [1, 1]} : vector<8x384xf32> to vector<8x256xf32>
    %535 = arith.negf %534 : vector<8x256xf32>
    %536 = math.exp %535 : vector<8x256xf32>
    %cst_212 = arith.constant 1.000000e+00 : f32
    %537 = vector.broadcast %cst_212 : f32 to vector<8x256xf32>
    %538 = arith.addf %537, %536 : vector<8x256xf32>
    %539 = arith.divf %537, %538 : vector<8x256xf32>
    %540 = vector.extract_strided_slice %539 {offsets = [0, 0], sizes = [8, 128], strides = [1, 1]} : vector<8x256xf32> to vector<8x128xf32>
    %541 = vector.extract_strided_slice %539 {offsets = [0, 128], sizes = [8, 128], strides = [1, 1]} : vector<8x256xf32> to vector<8x128xf32>
    %542 = vector.extract_strided_slice %527 {offsets = [0, 256], sizes = [8, 128], strides = [1, 1]} : vector<8x384xf32> to vector<8x128xf32>
    %543 = vector.extract_strided_slice %532 {offsets = [0, 256], sizes = [8, 128], strides = [1, 1]} : vector<8x384xf32> to vector<8x128xf32>
    %544 = arith.mulf %540, %543 : vector<8x128xf32>
    %545 = arith.addf %542, %544 : vector<8x128xf32>
    %546 = math.tanh %545 : vector<8x128xf32>
    %cst_213 = arith.constant 1.000000e+00 : f32
    %547 = vector.broadcast %cst_213 : f32 to vector<8x128xf32>
    %548 = arith.subf %547, %541 : vector<8x128xf32>
    %549 = arith.mulf %548, %546 : vector<8x128xf32>
    %550 = arith.mulf %541, %497 : vector<8x128xf32>
    %551 = arith.addf %549, %550 : vector<8x128xf32>
    %c0_214 = arith.constant 0 : index
    %c0_215 = arith.constant 0 : index
    %552 = vector.load %arg7[%c0_214, %c0_215] : memref<128x384xf32, #tpu.memory_space<vmem>>, vector<128x384xf32>
    %cst_216 = arith.constant dense<0.000000e+00> : vector<8x384xf32>
    %553 = tpu.matmul %521, %552, %cst_216 {dimension_numbers = #tpu.dot_dimension_numbers<[1], [0], [0], [1], [0, 0, 1, 1], [], []>} : vector<8x128xf32>, vector<128x384xf32>, vector<8x384xf32> -> vector<8x384xf32>
    %c0_217 = arith.constant 0 : index
    %c0_218 = arith.constant 0 : index
    %554 = vector.load %arg9[%c0_217, %c0_218] : memref<1x384xf32, #tpu.memory_space<vmem>>, vector<1x384xf32>
    %555 = vector.broadcast %554 : vector<1x384xf32> to vector<8x384xf32>
    %556 = arith.addf %553, %555 : vector<8x384xf32>
    %557 = arith.addf %526, %556 : vector<8x384xf32>
    %558 = vector.extract_strided_slice %557 {offsets = [0, 0], sizes = [8, 256], strides = [1, 1]} : vector<8x384xf32> to vector<8x256xf32>
    %559 = arith.negf %558 : vector<8x256xf32>
    %560 = math.exp %559 : vector<8x256xf32>
    %cst_219 = arith.constant 1.000000e+00 : f32
    %561 = vector.broadcast %cst_219 : f32 to vector<8x256xf32>
    %562 = arith.addf %561, %560 : vector<8x256xf32>
    %563 = arith.divf %561, %562 : vector<8x256xf32>
    %564 = vector.extract_strided_slice %563 {offsets = [0, 0], sizes = [8, 128], strides = [1, 1]} : vector<8x256xf32> to vector<8x128xf32>
    %565 = vector.extract_strided_slice %563 {offsets = [0, 128], sizes = [8, 128], strides = [1, 1]} : vector<8x256xf32> to vector<8x128xf32>
    %566 = vector.extract_strided_slice %526 {offsets = [0, 256], sizes = [8, 128], strides = [1, 1]} : vector<8x384xf32> to vector<8x128xf32>
    %567 = vector.extract_strided_slice %556 {offsets = [0, 256], sizes = [8, 128], strides = [1, 1]} : vector<8x384xf32> to vector<8x128xf32>
    %568 = arith.mulf %564, %567 : vector<8x128xf32>
    %569 = arith.addf %566, %568 : vector<8x128xf32>
    %570 = math.tanh %569 : vector<8x128xf32>
    %cst_220 = arith.constant 1.000000e+00 : f32
    %571 = vector.broadcast %cst_220 : f32 to vector<8x128xf32>
    %572 = arith.subf %571, %565 : vector<8x128xf32>
    %573 = arith.mulf %572, %570 : vector<8x128xf32>
    %574 = arith.mulf %565, %521 : vector<8x128xf32>
    %575 = arith.addf %573, %574 : vector<8x128xf32>
    %c0_221 = arith.constant 0 : index
    %c0_222 = arith.constant 0 : index
    %576 = vector.load %arg6[%c0_221, %c0_222] : memref<128x384xf32, #tpu.memory_space<vmem>>, vector<128x384xf32>
    %cst_223 = arith.constant dense<0.000000e+00> : vector<8x384xf32>
    %577 = tpu.matmul %551, %576, %cst_223 {dimension_numbers = #tpu.dot_dimension_numbers<[1], [0], [0], [1], [0, 0, 1, 1], [], []>} : vector<8x128xf32>, vector<128x384xf32>, vector<8x384xf32> -> vector<8x384xf32>
    %c0_224 = arith.constant 0 : index
    %c0_225 = arith.constant 0 : index
    %578 = vector.load %arg8[%c0_224, %c0_225] : memref<1x384xf32, #tpu.memory_space<vmem>>, vector<1x384xf32>
    %579 = vector.broadcast %578 : vector<1x384xf32> to vector<8x384xf32>
    %580 = arith.addf %577, %579 : vector<8x384xf32>
    %c88 = arith.constant 88 : index
    %c0_226 = arith.constant 0 : index
    %581 = vector.load %arg15[%c88, %c0_226] : memref<128x384xf32, #tpu.memory_space<vmem>>, vector<8x384xf32>
    %c0_227 = arith.constant 0 : index
    %c0_228 = arith.constant 0 : index
    %582 = vector.load %arg3[%c0_227, %c0_228] : memref<128x384xf32, #tpu.memory_space<vmem>>, vector<128x384xf32>
    %cst_229 = arith.constant dense<0.000000e+00> : vector<8x384xf32>
    %583 = tpu.matmul %551, %582, %cst_229 {dimension_numbers = #tpu.dot_dimension_numbers<[1], [0], [0], [1], [0, 0, 1, 1], [], []>} : vector<8x128xf32>, vector<128x384xf32>, vector<8x384xf32> -> vector<8x384xf32>
    %c0_230 = arith.constant 0 : index
    %c0_231 = arith.constant 0 : index
    %584 = vector.load %arg5[%c0_230, %c0_231] : memref<1x384xf32, #tpu.memory_space<vmem>>, vector<1x384xf32>
    %585 = vector.broadcast %584 : vector<1x384xf32> to vector<8x384xf32>
    %586 = arith.addf %583, %585 : vector<8x384xf32>
    %587 = arith.addf %581, %586 : vector<8x384xf32>
    %588 = vector.extract_strided_slice %587 {offsets = [0, 0], sizes = [8, 256], strides = [1, 1]} : vector<8x384xf32> to vector<8x256xf32>
    %589 = arith.negf %588 : vector<8x256xf32>
    %590 = math.exp %589 : vector<8x256xf32>
    %cst_232 = arith.constant 1.000000e+00 : f32
    %591 = vector.broadcast %cst_232 : f32 to vector<8x256xf32>
    %592 = arith.addf %591, %590 : vector<8x256xf32>
    %593 = arith.divf %591, %592 : vector<8x256xf32>
    %594 = vector.extract_strided_slice %593 {offsets = [0, 0], sizes = [8, 128], strides = [1, 1]} : vector<8x256xf32> to vector<8x128xf32>
    %595 = vector.extract_strided_slice %593 {offsets = [0, 128], sizes = [8, 128], strides = [1, 1]} : vector<8x256xf32> to vector<8x128xf32>
    %596 = vector.extract_strided_slice %581 {offsets = [0, 256], sizes = [8, 128], strides = [1, 1]} : vector<8x384xf32> to vector<8x128xf32>
    %597 = vector.extract_strided_slice %586 {offsets = [0, 256], sizes = [8, 128], strides = [1, 1]} : vector<8x384xf32> to vector<8x128xf32>
    %598 = arith.mulf %594, %597 : vector<8x128xf32>
    %599 = arith.addf %596, %598 : vector<8x128xf32>
    %600 = math.tanh %599 : vector<8x128xf32>
    %cst_233 = arith.constant 1.000000e+00 : f32
    %601 = vector.broadcast %cst_233 : f32 to vector<8x128xf32>
    %602 = arith.subf %601, %595 : vector<8x128xf32>
    %603 = arith.mulf %602, %600 : vector<8x128xf32>
    %604 = arith.mulf %595, %551 : vector<8x128xf32>
    %605 = arith.addf %603, %604 : vector<8x128xf32>
    %c0_234 = arith.constant 0 : index
    %c0_235 = arith.constant 0 : index
    %606 = vector.load %arg7[%c0_234, %c0_235] : memref<128x384xf32, #tpu.memory_space<vmem>>, vector<128x384xf32>
    %cst_236 = arith.constant dense<0.000000e+00> : vector<8x384xf32>
    %607 = tpu.matmul %575, %606, %cst_236 {dimension_numbers = #tpu.dot_dimension_numbers<[1], [0], [0], [1], [0, 0, 1, 1], [], []>} : vector<8x128xf32>, vector<128x384xf32>, vector<8x384xf32> -> vector<8x384xf32>
    %c0_237 = arith.constant 0 : index
    %c0_238 = arith.constant 0 : index
    %608 = vector.load %arg9[%c0_237, %c0_238] : memref<1x384xf32, #tpu.memory_space<vmem>>, vector<1x384xf32>
    %609 = vector.broadcast %608 : vector<1x384xf32> to vector<8x384xf32>
    %610 = arith.addf %607, %609 : vector<8x384xf32>
    %611 = arith.addf %580, %610 : vector<8x384xf32>
    %612 = vector.extract_strided_slice %611 {offsets = [0, 0], sizes = [8, 256], strides = [1, 1]} : vector<8x384xf32> to vector<8x256xf32>
    %613 = arith.negf %612 : vector<8x256xf32>
    %614 = math.exp %613 : vector<8x256xf32>
    %cst_239 = arith.constant 1.000000e+00 : f32
    %615 = vector.broadcast %cst_239 : f32 to vector<8x256xf32>
    %616 = arith.addf %615, %614 : vector<8x256xf32>
    %617 = arith.divf %615, %616 : vector<8x256xf32>
    %618 = vector.extract_strided_slice %617 {offsets = [0, 0], sizes = [8, 128], strides = [1, 1]} : vector<8x256xf32> to vector<8x128xf32>
    %619 = vector.extract_strided_slice %617 {offsets = [0, 128], sizes = [8, 128], strides = [1, 1]} : vector<8x256xf32> to vector<8x128xf32>
    %620 = vector.extract_strided_slice %580 {offsets = [0, 256], sizes = [8, 128], strides = [1, 1]} : vector<8x384xf32> to vector<8x128xf32>
    %621 = vector.extract_strided_slice %610 {offsets = [0, 256], sizes = [8, 128], strides = [1, 1]} : vector<8x384xf32> to vector<8x128xf32>
    %622 = arith.mulf %618, %621 : vector<8x128xf32>
    %623 = arith.addf %620, %622 : vector<8x128xf32>
    %624 = math.tanh %623 : vector<8x128xf32>
    %cst_240 = arith.constant 1.000000e+00 : f32
    %625 = vector.broadcast %cst_240 : f32 to vector<8x128xf32>
    %626 = arith.subf %625, %619 : vector<8x128xf32>
    %627 = arith.mulf %626, %624 : vector<8x128xf32>
    %628 = arith.mulf %619, %575 : vector<8x128xf32>
    %629 = arith.addf %627, %628 : vector<8x128xf32>
    %c0_241 = arith.constant 0 : index
    %c0_242 = arith.constant 0 : index
    %630 = vector.load %arg6[%c0_241, %c0_242] : memref<128x384xf32, #tpu.memory_space<vmem>>, vector<128x384xf32>
    %cst_243 = arith.constant dense<0.000000e+00> : vector<8x384xf32>
    %631 = tpu.matmul %605, %630, %cst_243 {dimension_numbers = #tpu.dot_dimension_numbers<[1], [0], [0], [1], [0, 0, 1, 1], [], []>} : vector<8x128xf32>, vector<128x384xf32>, vector<8x384xf32> -> vector<8x384xf32>
    %c0_244 = arith.constant 0 : index
    %c0_245 = arith.constant 0 : index
    %632 = vector.load %arg8[%c0_244, %c0_245] : memref<1x384xf32, #tpu.memory_space<vmem>>, vector<1x384xf32>
    %633 = vector.broadcast %632 : vector<1x384xf32> to vector<8x384xf32>
    %634 = arith.addf %631, %633 : vector<8x384xf32>
    %c96 = arith.constant 96 : index
    %c0_246 = arith.constant 0 : index
    %635 = vector.load %arg15[%c96, %c0_246] : memref<128x384xf32, #tpu.memory_space<vmem>>, vector<8x384xf32>
    %c0_247 = arith.constant 0 : index
    %c0_248 = arith.constant 0 : index
    %636 = vector.load %arg3[%c0_247, %c0_248] : memref<128x384xf32, #tpu.memory_space<vmem>>, vector<128x384xf32>
    %cst_249 = arith.constant dense<0.000000e+00> : vector<8x384xf32>
    %637 = tpu.matmul %605, %636, %cst_249 {dimension_numbers = #tpu.dot_dimension_numbers<[1], [0], [0], [1], [0, 0, 1, 1], [], []>} : vector<8x128xf32>, vector<128x384xf32>, vector<8x384xf32> -> vector<8x384xf32>
    %c0_250 = arith.constant 0 : index
    %c0_251 = arith.constant 0 : index
    %638 = vector.load %arg5[%c0_250, %c0_251] : memref<1x384xf32, #tpu.memory_space<vmem>>, vector<1x384xf32>
    %639 = vector.broadcast %638 : vector<1x384xf32> to vector<8x384xf32>
    %640 = arith.addf %637, %639 : vector<8x384xf32>
    %641 = arith.addf %635, %640 : vector<8x384xf32>
    %642 = vector.extract_strided_slice %641 {offsets = [0, 0], sizes = [8, 256], strides = [1, 1]} : vector<8x384xf32> to vector<8x256xf32>
    %643 = arith.negf %642 : vector<8x256xf32>
    %644 = math.exp %643 : vector<8x256xf32>
    %cst_252 = arith.constant 1.000000e+00 : f32
    %645 = vector.broadcast %cst_252 : f32 to vector<8x256xf32>
    %646 = arith.addf %645, %644 : vector<8x256xf32>
    %647 = arith.divf %645, %646 : vector<8x256xf32>
    %648 = vector.extract_strided_slice %647 {offsets = [0, 0], sizes = [8, 128], strides = [1, 1]} : vector<8x256xf32> to vector<8x128xf32>
    %649 = vector.extract_strided_slice %647 {offsets = [0, 128], sizes = [8, 128], strides = [1, 1]} : vector<8x256xf32> to vector<8x128xf32>
    %650 = vector.extract_strided_slice %635 {offsets = [0, 256], sizes = [8, 128], strides = [1, 1]} : vector<8x384xf32> to vector<8x128xf32>
    %651 = vector.extract_strided_slice %640 {offsets = [0, 256], sizes = [8, 128], strides = [1, 1]} : vector<8x384xf32> to vector<8x128xf32>
    %652 = arith.mulf %648, %651 : vector<8x128xf32>
    %653 = arith.addf %650, %652 : vector<8x128xf32>
    %654 = math.tanh %653 : vector<8x128xf32>
    %cst_253 = arith.constant 1.000000e+00 : f32
    %655 = vector.broadcast %cst_253 : f32 to vector<8x128xf32>
    %656 = arith.subf %655, %649 : vector<8x128xf32>
    %657 = arith.mulf %656, %654 : vector<8x128xf32>
    %658 = arith.mulf %649, %605 : vector<8x128xf32>
    %659 = arith.addf %657, %658 : vector<8x128xf32>
    %c0_254 = arith.constant 0 : index
    %c0_255 = arith.constant 0 : index
    %660 = vector.load %arg7[%c0_254, %c0_255] : memref<128x384xf32, #tpu.memory_space<vmem>>, vector<128x384xf32>
    %cst_256 = arith.constant dense<0.000000e+00> : vector<8x384xf32>
    %661 = tpu.matmul %629, %660, %cst_256 {dimension_numbers = #tpu.dot_dimension_numbers<[1], [0], [0], [1], [0, 0, 1, 1], [], []>} : vector<8x128xf32>, vector<128x384xf32>, vector<8x384xf32> -> vector<8x384xf32>
    %c0_257 = arith.constant 0 : index
    %c0_258 = arith.constant 0 : index
    %662 = vector.load %arg9[%c0_257, %c0_258] : memref<1x384xf32, #tpu.memory_space<vmem>>, vector<1x384xf32>
    %663 = vector.broadcast %662 : vector<1x384xf32> to vector<8x384xf32>
    %664 = arith.addf %661, %663 : vector<8x384xf32>
    %665 = arith.addf %634, %664 : vector<8x384xf32>
    %666 = vector.extract_strided_slice %665 {offsets = [0, 0], sizes = [8, 256], strides = [1, 1]} : vector<8x384xf32> to vector<8x256xf32>
    %667 = arith.negf %666 : vector<8x256xf32>
    %668 = math.exp %667 : vector<8x256xf32>
    %cst_259 = arith.constant 1.000000e+00 : f32
    %669 = vector.broadcast %cst_259 : f32 to vector<8x256xf32>
    %670 = arith.addf %669, %668 : vector<8x256xf32>
    %671 = arith.divf %669, %670 : vector<8x256xf32>
    %672 = vector.extract_strided_slice %671 {offsets = [0, 0], sizes = [8, 128], strides = [1, 1]} : vector<8x256xf32> to vector<8x128xf32>
    %673 = vector.extract_strided_slice %671 {offsets = [0, 128], sizes = [8, 128], strides = [1, 1]} : vector<8x256xf32> to vector<8x128xf32>
    %674 = vector.extract_strided_slice %634 {offsets = [0, 256], sizes = [8, 128], strides = [1, 1]} : vector<8x384xf32> to vector<8x128xf32>
    %675 = vector.extract_strided_slice %664 {offsets = [0, 256], sizes = [8, 128], strides = [1, 1]} : vector<8x384xf32> to vector<8x128xf32>
    %676 = arith.mulf %672, %675 : vector<8x128xf32>
    %677 = arith.addf %674, %676 : vector<8x128xf32>
    %678 = math.tanh %677 : vector<8x128xf32>
    %cst_260 = arith.constant 1.000000e+00 : f32
    %679 = vector.broadcast %cst_260 : f32 to vector<8x128xf32>
    %680 = arith.subf %679, %673 : vector<8x128xf32>
    %681 = arith.mulf %680, %678 : vector<8x128xf32>
    %682 = arith.mulf %673, %629 : vector<8x128xf32>
    %683 = arith.addf %681, %682 : vector<8x128xf32>
    %c0_261 = arith.constant 0 : index
    %c0_262 = arith.constant 0 : index
    %684 = vector.load %arg6[%c0_261, %c0_262] : memref<128x384xf32, #tpu.memory_space<vmem>>, vector<128x384xf32>
    %cst_263 = arith.constant dense<0.000000e+00> : vector<8x384xf32>
    %685 = tpu.matmul %659, %684, %cst_263 {dimension_numbers = #tpu.dot_dimension_numbers<[1], [0], [0], [1], [0, 0, 1, 1], [], []>} : vector<8x128xf32>, vector<128x384xf32>, vector<8x384xf32> -> vector<8x384xf32>
    %c0_264 = arith.constant 0 : index
    %c0_265 = arith.constant 0 : index
    %686 = vector.load %arg8[%c0_264, %c0_265] : memref<1x384xf32, #tpu.memory_space<vmem>>, vector<1x384xf32>
    %687 = vector.broadcast %686 : vector<1x384xf32> to vector<8x384xf32>
    %688 = arith.addf %685, %687 : vector<8x384xf32>
    %c104 = arith.constant 104 : index
    %c0_266 = arith.constant 0 : index
    %689 = vector.load %arg15[%c104, %c0_266] : memref<128x384xf32, #tpu.memory_space<vmem>>, vector<8x384xf32>
    %c0_267 = arith.constant 0 : index
    %c0_268 = arith.constant 0 : index
    %690 = vector.load %arg3[%c0_267, %c0_268] : memref<128x384xf32, #tpu.memory_space<vmem>>, vector<128x384xf32>
    %cst_269 = arith.constant dense<0.000000e+00> : vector<8x384xf32>
    %691 = tpu.matmul %659, %690, %cst_269 {dimension_numbers = #tpu.dot_dimension_numbers<[1], [0], [0], [1], [0, 0, 1, 1], [], []>} : vector<8x128xf32>, vector<128x384xf32>, vector<8x384xf32> -> vector<8x384xf32>
    %c0_270 = arith.constant 0 : index
    %c0_271 = arith.constant 0 : index
    %692 = vector.load %arg5[%c0_270, %c0_271] : memref<1x384xf32, #tpu.memory_space<vmem>>, vector<1x384xf32>
    %693 = vector.broadcast %692 : vector<1x384xf32> to vector<8x384xf32>
    %694 = arith.addf %691, %693 : vector<8x384xf32>
    %695 = arith.addf %689, %694 : vector<8x384xf32>
    %696 = vector.extract_strided_slice %695 {offsets = [0, 0], sizes = [8, 256], strides = [1, 1]} : vector<8x384xf32> to vector<8x256xf32>
    %697 = arith.negf %696 : vector<8x256xf32>
    %698 = math.exp %697 : vector<8x256xf32>
    %cst_272 = arith.constant 1.000000e+00 : f32
    %699 = vector.broadcast %cst_272 : f32 to vector<8x256xf32>
    %700 = arith.addf %699, %698 : vector<8x256xf32>
    %701 = arith.divf %699, %700 : vector<8x256xf32>
    %702 = vector.extract_strided_slice %701 {offsets = [0, 0], sizes = [8, 128], strides = [1, 1]} : vector<8x256xf32> to vector<8x128xf32>
    %703 = vector.extract_strided_slice %701 {offsets = [0, 128], sizes = [8, 128], strides = [1, 1]} : vector<8x256xf32> to vector<8x128xf32>
    %704 = vector.extract_strided_slice %689 {offsets = [0, 256], sizes = [8, 128], strides = [1, 1]} : vector<8x384xf32> to vector<8x128xf32>
    %705 = vector.extract_strided_slice %694 {offsets = [0, 256], sizes = [8, 128], strides = [1, 1]} : vector<8x384xf32> to vector<8x128xf32>
    %706 = arith.mulf %702, %705 : vector<8x128xf32>
    %707 = arith.addf %704, %706 : vector<8x128xf32>
    %708 = math.tanh %707 : vector<8x128xf32>
    %cst_273 = arith.constant 1.000000e+00 : f32
    %709 = vector.broadcast %cst_273 : f32 to vector<8x128xf32>
    %710 = arith.subf %709, %703 : vector<8x128xf32>
    %711 = arith.mulf %710, %708 : vector<8x128xf32>
    %712 = arith.mulf %703, %659 : vector<8x128xf32>
    %713 = arith.addf %711, %712 : vector<8x128xf32>
    %c0_274 = arith.constant 0 : index
    %c0_275 = arith.constant 0 : index
    %714 = vector.load %arg7[%c0_274, %c0_275] : memref<128x384xf32, #tpu.memory_space<vmem>>, vector<128x384xf32>
    %cst_276 = arith.constant dense<0.000000e+00> : vector<8x384xf32>
    %715 = tpu.matmul %683, %714, %cst_276 {dimension_numbers = #tpu.dot_dimension_numbers<[1], [0], [0], [1], [0, 0, 1, 1], [], []>} : vector<8x128xf32>, vector<128x384xf32>, vector<8x384xf32> -> vector<8x384xf32>
    %c0_277 = arith.constant 0 : index
    %c0_278 = arith.constant 0 : index
    %716 = vector.load %arg9[%c0_277, %c0_278] : memref<1x384xf32, #tpu.memory_space<vmem>>, vector<1x384xf32>
    %717 = vector.broadcast %716 : vector<1x384xf32> to vector<8x384xf32>
    %718 = arith.addf %715, %717 : vector<8x384xf32>
    %719 = arith.addf %688, %718 : vector<8x384xf32>
    %720 = vector.extract_strided_slice %719 {offsets = [0, 0], sizes = [8, 256], strides = [1, 1]} : vector<8x384xf32> to vector<8x256xf32>
    %721 = arith.negf %720 : vector<8x256xf32>
    %722 = math.exp %721 : vector<8x256xf32>
    %cst_279 = arith.constant 1.000000e+00 : f32
    %723 = vector.broadcast %cst_279 : f32 to vector<8x256xf32>
    %724 = arith.addf %723, %722 : vector<8x256xf32>
    %725 = arith.divf %723, %724 : vector<8x256xf32>
    %726 = vector.extract_strided_slice %725 {offsets = [0, 0], sizes = [8, 128], strides = [1, 1]} : vector<8x256xf32> to vector<8x128xf32>
    %727 = vector.extract_strided_slice %725 {offsets = [0, 128], sizes = [8, 128], strides = [1, 1]} : vector<8x256xf32> to vector<8x128xf32>
    %728 = vector.extract_strided_slice %688 {offsets = [0, 256], sizes = [8, 128], strides = [1, 1]} : vector<8x384xf32> to vector<8x128xf32>
    %729 = vector.extract_strided_slice %718 {offsets = [0, 256], sizes = [8, 128], strides = [1, 1]} : vector<8x384xf32> to vector<8x128xf32>
    %730 = arith.mulf %726, %729 : vector<8x128xf32>
    %731 = arith.addf %728, %730 : vector<8x128xf32>
    %732 = math.tanh %731 : vector<8x128xf32>
    %cst_280 = arith.constant 1.000000e+00 : f32
    %733 = vector.broadcast %cst_280 : f32 to vector<8x128xf32>
    %734 = arith.subf %733, %727 : vector<8x128xf32>
    %735 = arith.mulf %734, %732 : vector<8x128xf32>
    %736 = arith.mulf %727, %683 : vector<8x128xf32>
    %737 = arith.addf %735, %736 : vector<8x128xf32>
    %c0_281 = arith.constant 0 : index
    %c0_282 = arith.constant 0 : index
    %738 = vector.load %arg6[%c0_281, %c0_282] : memref<128x384xf32, #tpu.memory_space<vmem>>, vector<128x384xf32>
    %cst_283 = arith.constant dense<0.000000e+00> : vector<8x384xf32>
    %739 = tpu.matmul %713, %738, %cst_283 {dimension_numbers = #tpu.dot_dimension_numbers<[1], [0], [0], [1], [0, 0, 1, 1], [], []>} : vector<8x128xf32>, vector<128x384xf32>, vector<8x384xf32> -> vector<8x384xf32>
    %c0_284 = arith.constant 0 : index
    %c0_285 = arith.constant 0 : index
    %740 = vector.load %arg8[%c0_284, %c0_285] : memref<1x384xf32, #tpu.memory_space<vmem>>, vector<1x384xf32>
    %741 = vector.broadcast %740 : vector<1x384xf32> to vector<8x384xf32>
    %742 = arith.addf %739, %741 : vector<8x384xf32>
    %c112 = arith.constant 112 : index
    %c0_286 = arith.constant 0 : index
    %743 = vector.load %arg15[%c112, %c0_286] : memref<128x384xf32, #tpu.memory_space<vmem>>, vector<8x384xf32>
    %c0_287 = arith.constant 0 : index
    %c0_288 = arith.constant 0 : index
    %744 = vector.load %arg3[%c0_287, %c0_288] : memref<128x384xf32, #tpu.memory_space<vmem>>, vector<128x384xf32>
    %cst_289 = arith.constant dense<0.000000e+00> : vector<8x384xf32>
    %745 = tpu.matmul %713, %744, %cst_289 {dimension_numbers = #tpu.dot_dimension_numbers<[1], [0], [0], [1], [0, 0, 1, 1], [], []>} : vector<8x128xf32>, vector<128x384xf32>, vector<8x384xf32> -> vector<8x384xf32>
    %c0_290 = arith.constant 0 : index
    %c0_291 = arith.constant 0 : index
    %746 = vector.load %arg5[%c0_290, %c0_291] : memref<1x384xf32, #tpu.memory_space<vmem>>, vector<1x384xf32>
    %747 = vector.broadcast %746 : vector<1x384xf32> to vector<8x384xf32>
    %748 = arith.addf %745, %747 : vector<8x384xf32>
    %749 = arith.addf %743, %748 : vector<8x384xf32>
    %750 = vector.extract_strided_slice %749 {offsets = [0, 0], sizes = [8, 256], strides = [1, 1]} : vector<8x384xf32> to vector<8x256xf32>
    %751 = arith.negf %750 : vector<8x256xf32>
    %752 = math.exp %751 : vector<8x256xf32>
    %cst_292 = arith.constant 1.000000e+00 : f32
    %753 = vector.broadcast %cst_292 : f32 to vector<8x256xf32>
    %754 = arith.addf %753, %752 : vector<8x256xf32>
    %755 = arith.divf %753, %754 : vector<8x256xf32>
    %756 = vector.extract_strided_slice %755 {offsets = [0, 0], sizes = [8, 128], strides = [1, 1]} : vector<8x256xf32> to vector<8x128xf32>
    %757 = vector.extract_strided_slice %755 {offsets = [0, 128], sizes = [8, 128], strides = [1, 1]} : vector<8x256xf32> to vector<8x128xf32>
    %758 = vector.extract_strided_slice %743 {offsets = [0, 256], sizes = [8, 128], strides = [1, 1]} : vector<8x384xf32> to vector<8x128xf32>
    %759 = vector.extract_strided_slice %748 {offsets = [0, 256], sizes = [8, 128], strides = [1, 1]} : vector<8x384xf32> to vector<8x128xf32>
    %760 = arith.mulf %756, %759 : vector<8x128xf32>
    %761 = arith.addf %758, %760 : vector<8x128xf32>
    %762 = math.tanh %761 : vector<8x128xf32>
    %cst_293 = arith.constant 1.000000e+00 : f32
    %763 = vector.broadcast %cst_293 : f32 to vector<8x128xf32>
    %764 = arith.subf %763, %757 : vector<8x128xf32>
    %765 = arith.mulf %764, %762 : vector<8x128xf32>
    %766 = arith.mulf %757, %713 : vector<8x128xf32>
    %767 = arith.addf %765, %766 : vector<8x128xf32>
    %c0_294 = arith.constant 0 : index
    %c0_295 = arith.constant 0 : index
    %768 = vector.load %arg7[%c0_294, %c0_295] : memref<128x384xf32, #tpu.memory_space<vmem>>, vector<128x384xf32>
    %cst_296 = arith.constant dense<0.000000e+00> : vector<8x384xf32>
    %769 = tpu.matmul %737, %768, %cst_296 {dimension_numbers = #tpu.dot_dimension_numbers<[1], [0], [0], [1], [0, 0, 1, 1], [], []>} : vector<8x128xf32>, vector<128x384xf32>, vector<8x384xf32> -> vector<8x384xf32>
    %c0_297 = arith.constant 0 : index
    %c0_298 = arith.constant 0 : index
    %770 = vector.load %arg9[%c0_297, %c0_298] : memref<1x384xf32, #tpu.memory_space<vmem>>, vector<1x384xf32>
    %771 = vector.broadcast %770 : vector<1x384xf32> to vector<8x384xf32>
    %772 = arith.addf %769, %771 : vector<8x384xf32>
    %773 = arith.addf %742, %772 : vector<8x384xf32>
    %774 = vector.extract_strided_slice %773 {offsets = [0, 0], sizes = [8, 256], strides = [1, 1]} : vector<8x384xf32> to vector<8x256xf32>
    %775 = arith.negf %774 : vector<8x256xf32>
    %776 = math.exp %775 : vector<8x256xf32>
    %cst_299 = arith.constant 1.000000e+00 : f32
    %777 = vector.broadcast %cst_299 : f32 to vector<8x256xf32>
    %778 = arith.addf %777, %776 : vector<8x256xf32>
    %779 = arith.divf %777, %778 : vector<8x256xf32>
    %780 = vector.extract_strided_slice %779 {offsets = [0, 0], sizes = [8, 128], strides = [1, 1]} : vector<8x256xf32> to vector<8x128xf32>
    %781 = vector.extract_strided_slice %779 {offsets = [0, 128], sizes = [8, 128], strides = [1, 1]} : vector<8x256xf32> to vector<8x128xf32>
    %782 = vector.extract_strided_slice %742 {offsets = [0, 256], sizes = [8, 128], strides = [1, 1]} : vector<8x384xf32> to vector<8x128xf32>
    %783 = vector.extract_strided_slice %772 {offsets = [0, 256], sizes = [8, 128], strides = [1, 1]} : vector<8x384xf32> to vector<8x128xf32>
    %784 = arith.mulf %780, %783 : vector<8x128xf32>
    %785 = arith.addf %782, %784 : vector<8x128xf32>
    %786 = math.tanh %785 : vector<8x128xf32>
    %cst_300 = arith.constant 1.000000e+00 : f32
    %787 = vector.broadcast %cst_300 : f32 to vector<8x128xf32>
    %788 = arith.subf %787, %781 : vector<8x128xf32>
    %789 = arith.mulf %788, %786 : vector<8x128xf32>
    %790 = arith.mulf %781, %737 : vector<8x128xf32>
    %791 = arith.addf %789, %790 : vector<8x128xf32>
    %c0_301 = arith.constant 0 : index
    %c0_302 = arith.constant 0 : index
    %792 = vector.load %arg6[%c0_301, %c0_302] : memref<128x384xf32, #tpu.memory_space<vmem>>, vector<128x384xf32>
    %cst_303 = arith.constant dense<0.000000e+00> : vector<8x384xf32>
    %793 = tpu.matmul %767, %792, %cst_303 {dimension_numbers = #tpu.dot_dimension_numbers<[1], [0], [0], [1], [0, 0, 1, 1], [], []>} : vector<8x128xf32>, vector<128x384xf32>, vector<8x384xf32> -> vector<8x384xf32>
    %c0_304 = arith.constant 0 : index
    %c0_305 = arith.constant 0 : index
    %794 = vector.load %arg8[%c0_304, %c0_305] : memref<1x384xf32, #tpu.memory_space<vmem>>, vector<1x384xf32>
    %795 = vector.broadcast %794 : vector<1x384xf32> to vector<8x384xf32>
    %796 = arith.addf %793, %795 : vector<8x384xf32>
    %c120 = arith.constant 120 : index
    %c0_306 = arith.constant 0 : index
    %797 = vector.load %arg15[%c120, %c0_306] : memref<128x384xf32, #tpu.memory_space<vmem>>, vector<8x384xf32>
    %c0_307 = arith.constant 0 : index
    %c0_308 = arith.constant 0 : index
    %798 = vector.load %arg3[%c0_307, %c0_308] : memref<128x384xf32, #tpu.memory_space<vmem>>, vector<128x384xf32>
    %cst_309 = arith.constant dense<0.000000e+00> : vector<8x384xf32>
    %799 = tpu.matmul %767, %798, %cst_309 {dimension_numbers = #tpu.dot_dimension_numbers<[1], [0], [0], [1], [0, 0, 1, 1], [], []>} : vector<8x128xf32>, vector<128x384xf32>, vector<8x384xf32> -> vector<8x384xf32>
    %c0_310 = arith.constant 0 : index
    %c0_311 = arith.constant 0 : index
    %800 = vector.load %arg5[%c0_310, %c0_311] : memref<1x384xf32, #tpu.memory_space<vmem>>, vector<1x384xf32>
    %801 = vector.broadcast %800 : vector<1x384xf32> to vector<8x384xf32>
    %802 = arith.addf %799, %801 : vector<8x384xf32>
    %803 = arith.addf %797, %802 : vector<8x384xf32>
    %804 = vector.extract_strided_slice %803 {offsets = [0, 0], sizes = [8, 256], strides = [1, 1]} : vector<8x384xf32> to vector<8x256xf32>
    %805 = arith.negf %804 : vector<8x256xf32>
    %806 = math.exp %805 : vector<8x256xf32>
    %cst_312 = arith.constant 1.000000e+00 : f32
    %807 = vector.broadcast %cst_312 : f32 to vector<8x256xf32>
    %808 = arith.addf %807, %806 : vector<8x256xf32>
    %809 = arith.divf %807, %808 : vector<8x256xf32>
    %810 = vector.extract_strided_slice %809 {offsets = [0, 0], sizes = [8, 128], strides = [1, 1]} : vector<8x256xf32> to vector<8x128xf32>
    %811 = vector.extract_strided_slice %809 {offsets = [0, 128], sizes = [8, 128], strides = [1, 1]} : vector<8x256xf32> to vector<8x128xf32>
    %812 = vector.extract_strided_slice %797 {offsets = [0, 256], sizes = [8, 128], strides = [1, 1]} : vector<8x384xf32> to vector<8x128xf32>
    %813 = vector.extract_strided_slice %802 {offsets = [0, 256], sizes = [8, 128], strides = [1, 1]} : vector<8x384xf32> to vector<8x128xf32>
    %814 = arith.mulf %810, %813 : vector<8x128xf32>
    %815 = arith.addf %812, %814 : vector<8x128xf32>
    %816 = math.tanh %815 : vector<8x128xf32>
    %cst_313 = arith.constant 1.000000e+00 : f32
    %817 = vector.broadcast %cst_313 : f32 to vector<8x128xf32>
    %818 = arith.subf %817, %811 : vector<8x128xf32>
    %819 = arith.mulf %818, %816 : vector<8x128xf32>
    %820 = arith.mulf %811, %767 : vector<8x128xf32>
    %821 = arith.addf %819, %820 : vector<8x128xf32>
    %c0_314 = arith.constant 0 : index
    %c0_315 = arith.constant 0 : index
    %822 = vector.load %arg7[%c0_314, %c0_315] : memref<128x384xf32, #tpu.memory_space<vmem>>, vector<128x384xf32>
    %cst_316 = arith.constant dense<0.000000e+00> : vector<8x384xf32>
    %823 = tpu.matmul %791, %822, %cst_316 {dimension_numbers = #tpu.dot_dimension_numbers<[1], [0], [0], [1], [0, 0, 1, 1], [], []>} : vector<8x128xf32>, vector<128x384xf32>, vector<8x384xf32> -> vector<8x384xf32>
    %c0_317 = arith.constant 0 : index
    %c0_318 = arith.constant 0 : index
    %824 = vector.load %arg9[%c0_317, %c0_318] : memref<1x384xf32, #tpu.memory_space<vmem>>, vector<1x384xf32>
    %825 = vector.broadcast %824 : vector<1x384xf32> to vector<8x384xf32>
    %826 = arith.addf %823, %825 : vector<8x384xf32>
    %827 = arith.addf %796, %826 : vector<8x384xf32>
    %828 = vector.extract_strided_slice %827 {offsets = [0, 0], sizes = [8, 256], strides = [1, 1]} : vector<8x384xf32> to vector<8x256xf32>
    %829 = arith.negf %828 : vector<8x256xf32>
    %830 = math.exp %829 : vector<8x256xf32>
    %cst_319 = arith.constant 1.000000e+00 : f32
    %831 = vector.broadcast %cst_319 : f32 to vector<8x256xf32>
    %832 = arith.addf %831, %830 : vector<8x256xf32>
    %833 = arith.divf %831, %832 : vector<8x256xf32>
    %834 = vector.extract_strided_slice %833 {offsets = [0, 0], sizes = [8, 128], strides = [1, 1]} : vector<8x256xf32> to vector<8x128xf32>
    %835 = vector.extract_strided_slice %833 {offsets = [0, 128], sizes = [8, 128], strides = [1, 1]} : vector<8x256xf32> to vector<8x128xf32>
    %836 = vector.extract_strided_slice %796 {offsets = [0, 256], sizes = [8, 128], strides = [1, 1]} : vector<8x384xf32> to vector<8x128xf32>
    %837 = vector.extract_strided_slice %826 {offsets = [0, 256], sizes = [8, 128], strides = [1, 1]} : vector<8x384xf32> to vector<8x128xf32>
    %838 = arith.mulf %834, %837 : vector<8x128xf32>
    %839 = arith.addf %836, %838 : vector<8x128xf32>
    %840 = math.tanh %839 : vector<8x128xf32>
    %cst_320 = arith.constant 1.000000e+00 : f32
    %841 = vector.broadcast %cst_320 : f32 to vector<8x128xf32>
    %842 = arith.subf %841, %835 : vector<8x128xf32>
    %843 = arith.mulf %842, %840 : vector<8x128xf32>
    %844 = arith.mulf %835, %791 : vector<8x128xf32>
    %845 = arith.addf %843, %844 : vector<8x128xf32>
    %c0_321 = arith.constant 0 : index
    %c0_322 = arith.constant 0 : index
    %846 = vector.load %arg6[%c0_321, %c0_322] : memref<128x384xf32, #tpu.memory_space<vmem>>, vector<128x384xf32>
    %cst_323 = arith.constant dense<0.000000e+00> : vector<8x384xf32>
    %847 = tpu.matmul %821, %846, %cst_323 {dimension_numbers = #tpu.dot_dimension_numbers<[1], [0], [0], [1], [0, 0, 1, 1], [], []>} : vector<8x128xf32>, vector<128x384xf32>, vector<8x384xf32> -> vector<8x384xf32>
    %c0_324 = arith.constant 0 : index
    %c0_325 = arith.constant 0 : index
    %848 = vector.load %arg8[%c0_324, %c0_325] : memref<1x384xf32, #tpu.memory_space<vmem>>, vector<1x384xf32>
    %849 = vector.broadcast %848 : vector<1x384xf32> to vector<8x384xf32>
    %850 = arith.addf %847, %849 : vector<8x384xf32>
    %c0_326 = arith.constant 0 : index
    %c0_327 = arith.constant 0 : index
    %851 = vector.load %arg7[%c0_326, %c0_327] : memref<128x384xf32, #tpu.memory_space<vmem>>, vector<128x384xf32>
    %cst_328 = arith.constant dense<0.000000e+00> : vector<8x384xf32>
    %852 = tpu.matmul %845, %851, %cst_328 {dimension_numbers = #tpu.dot_dimension_numbers<[1], [0], [0], [1], [0, 0, 1, 1], [], []>} : vector<8x128xf32>, vector<128x384xf32>, vector<8x384xf32> -> vector<8x384xf32>
    %c0_329 = arith.constant 0 : index
    %c0_330 = arith.constant 0 : index
    %853 = vector.load %arg9[%c0_329, %c0_330] : memref<1x384xf32, #tpu.memory_space<vmem>>, vector<1x384xf32>
    %854 = vector.broadcast %853 : vector<1x384xf32> to vector<8x384xf32>
    %855 = arith.addf %852, %854 : vector<8x384xf32>
    %856 = arith.addf %850, %855 : vector<8x384xf32>
    %857 = vector.extract_strided_slice %856 {offsets = [0, 0], sizes = [8, 256], strides = [1, 1]} : vector<8x384xf32> to vector<8x256xf32>
    %858 = arith.negf %857 : vector<8x256xf32>
    %859 = math.exp %858 : vector<8x256xf32>
    %cst_331 = arith.constant 1.000000e+00 : f32
    %860 = vector.broadcast %cst_331 : f32 to vector<8x256xf32>
    %861 = arith.addf %860, %859 : vector<8x256xf32>
    %862 = arith.divf %860, %861 : vector<8x256xf32>
    %863 = vector.extract_strided_slice %862 {offsets = [0, 0], sizes = [8, 128], strides = [1, 1]} : vector<8x256xf32> to vector<8x128xf32>
    %864 = vector.extract_strided_slice %862 {offsets = [0, 128], sizes = [8, 128], strides = [1, 1]} : vector<8x256xf32> to vector<8x128xf32>
    %865 = vector.extract_strided_slice %850 {offsets = [0, 256], sizes = [8, 128], strides = [1, 1]} : vector<8x384xf32> to vector<8x128xf32>
    %866 = vector.extract_strided_slice %855 {offsets = [0, 256], sizes = [8, 128], strides = [1, 1]} : vector<8x384xf32> to vector<8x128xf32>
    %867 = arith.mulf %863, %866 : vector<8x128xf32>
    %868 = arith.addf %865, %867 : vector<8x128xf32>
    %869 = math.tanh %868 : vector<8x128xf32>
    %cst_332 = arith.constant 1.000000e+00 : f32
    %870 = vector.broadcast %cst_332 : f32 to vector<8x128xf32>
    %871 = arith.subf %870, %864 : vector<8x128xf32>
    %872 = arith.mulf %871, %869 : vector<8x128xf32>
    %873 = arith.mulf %864, %845 : vector<8x128xf32>
    %874 = arith.addf %872, %873 : vector<8x128xf32>
    %c0_333 = arith.constant 0 : index
    %c0_334 = arith.constant 0 : index
    %875 = vector.load %arg10[%c0_333, %c0_334] : memref<128x30xf32, #tpu.memory_space<vmem>>, vector<128x30xf32>
    %cst_335 = arith.constant dense<0.000000e+00> : vector<8x30xf32>
    %876 = tpu.matmul %874, %875, %cst_335 {dimension_numbers = #tpu.dot_dimension_numbers<[1], [0], [0], [1], [0, 0, 1, 1], [], []>} : vector<8x128xf32>, vector<128x30xf32>, vector<8x30xf32> -> vector<8x30xf32>
    %c0_336 = arith.constant 0 : index
    %c0_337 = arith.constant 0 : index
    %877 = vector.load %arg11[%c0_336, %c0_337] : memref<1x30xf32, #tpu.memory_space<vmem>>, vector<1x30xf32>
    %878 = vector.broadcast %877 : vector<1x30xf32> to vector<8x30xf32>
    %879 = arith.addf %876, %878 : vector<8x30xf32>
    %880 = math.tanh %879 : vector<8x30xf32>
    %c0_338 = arith.constant 0 : index
    %c0_339 = arith.constant 0 : index
    %881 = vector.load %arg12[%c0_338, %c0_339] : memref<30x15xf32, #tpu.memory_space<vmem>>, vector<30x15xf32>
    %cst_340 = arith.constant dense<0.000000e+00> : vector<8x15xf32>
    %882 = tpu.matmul %880, %881, %cst_340 {dimension_numbers = #tpu.dot_dimension_numbers<[1], [0], [0], [1], [0, 0, 1, 1], [], []>} : vector<8x30xf32>, vector<30x15xf32>, vector<8x15xf32> -> vector<8x15xf32>
    %c0_341 = arith.constant 0 : index
    %c0_342 = arith.constant 0 : index
    %883 = vector.load %arg13[%c0_341, %c0_342] : memref<1x15xf32, #tpu.memory_space<vmem>>, vector<1x15xf32>
    %884 = vector.broadcast %883 : vector<1x15xf32> to vector<8x15xf32>
    %885 = arith.addf %882, %884 : vector<8x15xf32>
    %c0_343 = arith.constant 0 : index
    %c0_344 = arith.constant 0 : index
    %886 = vector.load %arg14[%c0_343, %c0_344] : memref<8x15xf32, #tpu.memory_space<vmem>>, vector<8x15xf32>
    tpu.vector_store %arg14[%c0_343, %c0_344], %885 {strides = array<i32>} : memref<8x15xf32, #tpu.memory_space<vmem>>, vector<8x15xf32>,
    return
  }
}

</mosaic_0001>

<llo_original>
// kernel: tpu_custom_call.1
$region0: #{tpu_custom_call.1}
  #allocation0 [shape = 'u32[]', space=smem, size = 0x4, offset = 0x4, fixed_abs, tag = 'smem constant byte address 0x4 - core index']
  #allocation1 [shape = 'u32[144,128]{1,0:T(1,128)}', space=vmem, size = 0x12000, scoped, tag = 'internal scratch']
  #allocation2 [shape = 'f32[128,384]{1,0:T(8,128)}', space=vmem, size = 0x30000, scoped, tag = 'scratch operand']
  %s0 = inlined_call_operand.vmem [shape: f32[128,48], index: 0, kind: input, shape index: {}]
  %s1 = inlined_call_operand.hbm [shape: f32[2,8,128], index: 1, kind: input, shape index: {}]
  %s2 = inlined_call_operand.hbm [shape: f32[48,384], index: 2, kind: input, shape index: {}]
  %s3 = inlined_call_operand.vmem [shape: f32[128,384], index: 3, kind: input, shape index: {}]
  %s4 = inlined_call_operand.hbm [shape: f32[1,384], index: 4, kind: input, shape index: {}]
  %s5 = inlined_call_operand.hbm [shape: f32[1,384], index: 5, kind: input, shape index: {}]
  %s6 = inlined_call_operand.hbm [shape: f32[128,384], index: 6, kind: input, shape index: {}]
  %s7 = inlined_call_operand.hbm [shape: f32[128,384], index: 7, kind: input, shape index: {}]
  %s8 = inlined_call_operand.hbm [shape: f32[1,384], index: 8, kind: input, shape index: {}]
  %s9 = inlined_call_operand.hbm [shape: f32[1,384], index: 9, kind: input, shape index: {}]
  %s10 = inlined_call_operand.vmem [shape: f32[128,30], index: 10, kind: input, shape index: {}]
  %s11 = inlined_call_operand.vmem [shape: f32[1,30], index: 11, kind: input, shape index: {}]
  %s12 = inlined_call_operand.vmem [shape: f32[30,15], index: 12, kind: input, shape index: {}]
  %s13 = inlined_call_operand.vmem [shape: f32[1,15], index: 13, kind: input, shape index: {}]
  %s14 = inlined_call_operand.hbm [shape: f32[8,15], index: 14, kind: output, shape index: {}]
  %s15 = sld [smem:[#allocation0]]
  $region98: #{tpu_custom_call.1} parent=0
    _
  %s17 = ssub.s32 1, %s15
  %s18 = scalar_select 0, %s17, %s15
  $region1: #{tpu_custom_call.1} parent=0
    #allocation3 [shape = 'u8[8192]{0}', space=vmem, size = 0x2000, scoped, tag = 'input window, operand 1, single buffered']
    #allocation4 [shape = 's32[1]{0}', space=sflag, size = 0x4, scoped, tag = 'scoped memory for tpu_custom_call.1']
    #allocation5 [shape = 's32[1]{0}', space=sflag, size = 0x4, scoped, tag = 'scoped memory for tpu_custom_call.1']
    #allocation6 [shape = 'u8[73728]{0}', space=vmem, size = 0x12000, scoped, tag = 'input window, operand 2, single buffered']
    #allocation7 [shape = 's32[1]{0}', space=sflag, size = 0x4, scoped, tag = 'scoped memory for tpu_custom_call.1']
    #allocation8 [shape = 'u8[1536]{0}', space=vmem, size = 0x800, scoped, tag = 'input window, operand 4, single buffered']
    #allocation9 [shape = 'u8[1536]{0}', space=vmem, size = 0x800, scoped, tag = 'input window, operand 5, single buffered']
    #allocation10 [shape = 's32[1]{0}', space=sflag, size = 0x4, scoped, tag = 'scoped memory for tpu_custom_call.1']
    #allocation11 [shape = 'u8[196608]{0}', space=vmem, size = 0x30000, scoped, tag = 'input window, operand 6, single buffered']
    #allocation12 [shape = 'u8[196608]{0}', space=vmem, size = 0x30000, scoped, tag = 'input window, operand 7, single buffered']
    #allocation13 [shape = 's32[1]{0}', space=sflag, size = 0x4, scoped, tag = 'scoped memory for tpu_custom_call.1']
    #allocation14 [shape = 'u8[1536]{0}', space=vmem, size = 0x800, scoped, tag = 'input window, operand 8, single buffered']
    #allocation15 [shape = 'u8[1536]{0}', space=vmem, size = 0x800, scoped, tag = 'input window, operand 9, single buffered']
    #allocation16 [shape = 's32[1]{0}', space=sflag, size = 0x4, scoped, tag = 'scoped memory for tpu_custom_call.1']
    #allocation17 [shape = 'u8[4096]{0}', space=vmem, size = 0x1000, scoped, tag = 'output window, operand 0, single buffered']
    %19 = vsyncpa [#allocation4], 0
    %20 = vsyncpa [#allocation7], 0
    %21 = vsyncpa [#allocation10], 0
    %22 = vsyncpa [#allocation13], 0
    %23 = vsyncpa [#allocation16], 0
    %24 = vsyncpa [#allocation5], 0
    // Predicated region
    $region2: #{tpu_custom_call.1} parent=1 // pred_check
      _
    $region3: #{tpu_custom_call.1} parent=1 // pred_check_branch
      %26 = sbr.rel (0) target = $region5
    $region4: #{tpu_custom_call.1} parent=1 // pred_region
      _
    $region5: #{tpu_custom_call.1} parent=1 // pred_fallthru
      _
    // Predicated region
    $region6: #{tpu_custom_call.1} parent=1 // pred_check
      _
    $region7: #{tpu_custom_call.1} parent=1 // pred_check_branch
      %28 = sbr.rel (0) target = $region9
    $region8: #{tpu_custom_call.1} parent=1 // pred_region
      %s30 = ssub.s32 256, 256
      %31 = vsyncadd [#allocation4], %s30
      %s32 = sshll.u32 [#allocation3], 4
      %s33 = int_to_ptr.vmem [resolvable:$true] %s32
      %38 = dma.hbm_to_vmem [thread:$0]  %s1, 256, %s33, [#allocation4], 128, 128, 8
    $region9: #{tpu_custom_call.1} parent=1 // pred_fallthru
      _
    // Predicated region
    $region10: #{tpu_custom_call.1} parent=1 // pred_check
      _
    $region11: #{tpu_custom_call.1} parent=1 // pred_check_branch
      %40 = sbr.rel (0) target = $region13
    $region12: #{tpu_custom_call.1} parent=1 // pred_region
      %s42 = ssub.s32 2304, 2304
      %43 = vsyncadd [#allocation7], %s42
      %s44 = sshll.u32 [#allocation6], 4
      %s45 = int_to_ptr.vmem [resolvable:$true] %s44
      %50 = dma.hbm_to_vmem [thread:$0]  %s2, 2304, %s45, [#allocation7], 384, 384, 24
    $region13: #{tpu_custom_call.1} parent=1 // pred_fallthru
      _
    // Predicated region
    $region14: #{tpu_custom_call.1} parent=1 // pred_check
      _
    $region15: #{tpu_custom_call.1} parent=1 // pred_check_branch
      %52 = sbr.rel (0) target = $region17
    $region16: #{tpu_custom_call.1} parent=1 // pred_region
      _
    $region17: #{tpu_custom_call.1} parent=1 // pred_fallthru
      _
    // Predicated region
    $region18: #{tpu_custom_call.1} parent=1 // pred_check
      _
    $region19: #{tpu_custom_call.1} parent=1 // pred_check_branch
      %54 = sbr.rel (0) target = $region21
    $region20: #{tpu_custom_call.1} parent=1 // pred_region
      %s56 = ssub.s32 48, 48
      %57 = vsyncadd [#allocation7], %s56
      %s59 = sshll.u32 [#allocation8], 4
      %s60 = int_to_ptr.vmem [resolvable:$true] %s59
      %62 = dma.hbm_to_vmem [thread:$0]  %s4, 48, %s60, [#allocation7]
    $region21: #{tpu_custom_call.1} parent=1 // pred_fallthru
      _
    // Predicated region
    $region22: #{tpu_custom_call.1} parent=1 // pred_check
      _
    $region23: #{tpu_custom_call.1} parent=1 // pred_check_branch
      %64 = sbr.rel (0) target = $region25
    $region24: #{tpu_custom_call.1} parent=1 // pred_region
      %s66 = ssub.s32 48, 48
      %67 = vsyncadd [#allocation10], %s66
      %s69 = sshll.u32 [#allocation9], 4
      %s70 = int_to_ptr.vmem [resolvable:$true] %s69
      %72 = dma.hbm_to_vmem [thread:$0]  %s5, 48, %s70, [#allocation10]
    $region25: #{tpu_custom_call.1} parent=1 // pred_fallthru
      _
    // Predicated region
    $region26: #{tpu_custom_call.1} parent=1 // pred_check
      _
    $region27: #{tpu_custom_call.1} parent=1 // pred_check_branch
      %74 = sbr.rel (0) target = $region29
    $region28: #{tpu_custom_call.1} parent=1 // pred_region
      %s76 = ssub.s32 6144, 6144
      %77 = vsyncadd [#allocation10], %s76
      %s78 = sshll.u32 [#allocation11], 4
      %s79 = int_to_ptr.vmem [resolvable:$true] %s78
      %84 = dma.hbm_to_vmem [thread:$0]  %s6, 6144, %s79, [#allocation10], 384, 384, 24
    $region29: #{tpu_custom_call.1} parent=1 // pred_fallthru
      _
    // Predicated region
    $region30: #{tpu_custom_call.1} parent=1 // pred_check
      _
    $region31: #{tpu_custom_call.1} parent=1 // pred_check_branch
      %86 = sbr.rel (0) target = $region33
    $region32: #{tpu_custom_call.1} parent=1 // pred_region
      %s88 = ssub.s32 6144, 6144
      %89 = vsyncadd [#allocation13], %s88
      %s90 = sshll.u32 [#allocation12], 4
      %s91 = int_to_ptr.vmem [resolvable:$true] %s90
      %96 = dma.hbm_to_vmem [thread:$0]  %s7, 6144, %s91, [#allocation13], 384, 384, 24
    $region33: #{tpu_custom_call.1} parent=1 // pred_fallthru
      _
    // Predicated region
    $region34: #{tpu_custom_call.1} parent=1 // pred_check
      _
    $region35: #{tpu_custom_call.1} parent=1 // pred_check_branch
      %98 = sbr.rel (0) target = $region37
    $region36: #{tpu_custom_call.1} parent=1 // pred_region
      %s100 = ssub.s32 48, 48
      %101 = vsyncadd [#allocation13], %s100
      %s103 = sshll.u32 [#allocation14], 4
      %s104 = int_to_ptr.vmem [resolvable:$true] %s103
      %106 = dma.hbm_to_vmem [thread:$0]  %s8, 48, %s104, [#allocation13]
    $region37: #{tpu_custom_call.1} parent=1 // pred_fallthru
      _
    // Predicated region
    $region38: #{tpu_custom_call.1} parent=1 // pred_check
      _
    $region39: #{tpu_custom_call.1} parent=1 // pred_check_branch
      %108 = sbr.rel (0) target = $region41
    $region40: #{tpu_custom_call.1} parent=1 // pred_region
      %s110 = ssub.s32 48, 48
      %111 = vsyncadd [#allocation16], %s110
      %s113 = sshll.u32 [#allocation15], 4
      %s114 = int_to_ptr.vmem [resolvable:$true] %s113
      %116 = dma.hbm_to_vmem [thread:$0]  %s9, 48, %s114, [#allocation16]
    $region41: #{tpu_custom_call.1} parent=1 // pred_fallthru
      _
    // Predicated region
    $region42: #{tpu_custom_call.1} parent=1 // pred_check
      _
    $region43: #{tpu_custom_call.1} parent=1 // pred_check_branch
      %118 = sbr.rel (0) target = $region45
    $region44: #{tpu_custom_call.1} parent=1 // pred_region
      _
    $region45: #{tpu_custom_call.1} parent=1 // pred_fallthru
      _
    // Predicated region
    $region46: #{tpu_custom_call.1} parent=1 // pred_check
      _
    $region47: #{tpu_custom_call.1} parent=1 // pred_check_branch
      %120 = sbr.rel (0) target = $region49
    $region48: #{tpu_custom_call.1} parent=1 // pred_region
      _
    $region49: #{tpu_custom_call.1} parent=1 // pred_fallthru
      _
    // Predicated region
    $region50: #{tpu_custom_call.1} parent=1 // pred_check
      _
    $region51: #{tpu_custom_call.1} parent=1 // pred_check_branch
      %122 = sbr.rel (0) target = $region53
    $region52: #{tpu_custom_call.1} parent=1 // pred_region
      _
    $region53: #{tpu_custom_call.1} parent=1 // pred_fallthru
      _
    // Predicated region
    $region54: #{tpu_custom_call.1} parent=1 // pred_check
      _
    $region55: #{tpu_custom_call.1} parent=1 // pred_check_branch
      %124 = sbr.rel (0) target = $region57
    $region56: #{tpu_custom_call.1} parent=1 // pred_region
      _
    $region57: #{tpu_custom_call.1} parent=1 // pred_fallthru
      _
    // Predicated region
    $region58: #{tpu_custom_call.1} parent=1 // pred_check
      _
    $region59: #{tpu_custom_call.1} parent=1 // pred_check_branch
      %126 = sbr.rel (0) target = $region61
    $region60: #{tpu_custom_call.1} parent=1 // pred_region
      %127 = dma.done [#allocation4], 256
    $region61: #{tpu_custom_call.1} parent=1 // pred_fallthru
      _
    // Predicated region
    $region62: #{tpu_custom_call.1} parent=1 // pred_check
      _
    $region63: #{tpu_custom_call.1} parent=1 // pred_check_branch
      %129 = sbr.rel (0) target = $region65
    $region64: #{tpu_custom_call.1} parent=1 // pred_region
      %130 = dma.done [#allocation7], 2304
    $region65: #{tpu_custom_call.1} parent=1 // pred_fallthru
      _
    // Predicated region
    $region66: #{tpu_custom_call.1} parent=1 // pred_check
      _
    $region67: #{tpu_custom_call.1} parent=1 // pred_check_branch
      %132 = sbr.rel (0) target = $region69
    $region68: #{tpu_custom_call.1} parent=1 // pred_region
      %133 = dma.done [#allocation7], 48
    $region69: #{tpu_custom_call.1} parent=1 // pred_fallthru
      _
    // Predicated region
    $region70: #{tpu_custom_call.1} parent=1 // pred_check
      _
    $region71: #{tpu_custom_call.1} parent=1 // pred_check_branch
      %135 = sbr.rel (0) target = $region73
    $region72: #{tpu_custom_call.1} parent=1 // pred_region
      %136 = dma.done [#allocation10], 48
    $region73: #{tpu_custom_call.1} parent=1 // pred_fallthru
      _
    // Predicated region
    $region74: #{tpu_custom_call.1} parent=1 // pred_check
      _
    $region75: #{tpu_custom_call.1} parent=1 // pred_check_branch
      %138 = sbr.rel (0) target = $region77
    $region76: #{tpu_custom_call.1} parent=1 // pred_region
      %139 = dma.done [#allocation10], 6144
    $region77: #{tpu_custom_call.1} parent=1 // pred_fallthru
      _
    // Predicated region
    $region78: #{tpu_custom_call.1} parent=1 // pred_check
      _
    $region79: #{tpu_custom_call.1} parent=1 // pred_check_branch
      %141 = sbr.rel (0) target = $region81
    $region80: #{tpu_custom_call.1} parent=1 // pred_region
      %142 = dma.done [#allocation13], 6144
    $region81: #{tpu_custom_call.1} parent=1 // pred_fallthru
      _
    // Predicated region
    $region82: #{tpu_custom_call.1} parent=1 // pred_check
      _
    $region83: #{tpu_custom_call.1} parent=1 // pred_check_branch
      %144 = sbr.rel (0) target = $region85
    $region84: #{tpu_custom_call.1} parent=1 // pred_region
      %145 = dma.done [#allocation13], 48
    $region85: #{tpu_custom_call.1} parent=1 // pred_fallthru
      _
    // Predicated region
    $region86: #{tpu_custom_call.1} parent=1 // pred_check
      _
    $region87: #{tpu_custom_call.1} parent=1 // pred_check_branch
      %147 = sbr.rel (0) target = $region89
    $region88: #{tpu_custom_call.1} parent=1 // pred_region
      %148 = dma.done [#allocation16], 48
    $region89: #{tpu_custom_call.1} parent=1 // pred_fallthru
      _
    %v149 = vld [vmem:[%s0] sm:$0xff]
    %v150 = vld [vmem:[%s0 + $0x8] sm:$0xff]
    %v151 = vld [vmem:[%s0 + $0x10] sm:$0xff]
    %v152 = vld [vmem:[%s0 + $0x18] sm:$0xff]
    %v153 = vld [vmem:[%s0 + $0x20] sm:$0xff]
    %v154 = vld [vmem:[%s0 + $0x28] sm:$0xff]
    %v155 = vld [vmem:[%s0 + $0x30] sm:$0xff]
    %v156 = vld [vmem:[%s0 + $0x38] sm:$0xff]
    %v157 = vld [vmem:[%s0 + $0x40] sm:$0xff]
    %v158 = vld [vmem:[%s0 + $0x48] sm:$0xff]
    %v159 = vld [vmem:[%s0 + $0x50] sm:$0xff]
    %v160 = vld [vmem:[%s0 + $0x58] sm:$0xff]
    %v161 = vld [vmem:[%s0 + $0x60] sm:$0xff]
    %v162 = vld [vmem:[%s0 + $0x68] sm:$0xff]
    %v163 = vld [vmem:[%s0 + $0x70] sm:$0xff]
    %v164 = vld [vmem:[%s0 + $0x78] sm:$0xff]
    %v165 = vld [vmem:[#allocation6] sm:$0xff]
    %v166 = vld [vmem:[#allocation6 + $0x8] sm:$0xff]
    %v167 = vld [vmem:[#allocation6 + $0x10] sm:$0xff]
    %v168 = vld [vmem:[#allocation6 + $0x18] sm:$0xff]
    %v169 = vld [vmem:[#allocation6 + $0x20] sm:$0xff]
    %v170 = vld [vmem:[#allocation6 + $0x28] sm:$0xff]
    %v171 = vld [vmem:[#allocation6 + $0x30] sm:$0xff]
    %v172 = vld [vmem:[#allocation6 + $0x38] sm:$0xff]
    %v173 = vld [vmem:[#allocation6 + $0x40] sm:$0xff]
    %v174 = vld [vmem:[#allocation6 + $0x48] sm:$0xff]
    %v175 = vld [vmem:[#allocation6 + $0x50] sm:$0xff]
    %v176 = vld [vmem:[#allocation6 + $0x58] sm:$0xff]
    %v177 = vld [vmem:[#allocation6 + $0x60] sm:$0xff]
    %v178 = vld [vmem:[#allocation6 + $0x68] sm:$0xff]
    %v179 = vld [vmem:[#allocation6 + $0x70] sm:$0xff]
    %v180 = vld [vmem:[#allocation6 + $0x78] sm:$0xff]
    %v181 = vld [vmem:[#allocation6 + $0x80] sm:$0xff]
    %v182 = vld [vmem:[#allocation6 + $0x88] sm:$0xff]
    %v183 = vld [vmem:[#allocation8] sm:$0x7]
    %v185 = vlaneseq
    %v186 = vshrl.u32 %v185, 7
    %v187 = vsub.s32 0, %v186
    %v188 = vrot.slane %v183, %v187
    %v189 = vlaneseq
    %v190 = vshrl.u32 %v189, 7
    %v191 = vsub.s32 1, %v190
    %v192 = vrot.slane %v183, %v191
    %v193 = vlaneseq
    %v194 = vshrl.u32 %v193, 7
    %v195 = vsub.s32 2, %v194
    %v196 = vrot.slane %v183, %v195
    %vm200 = vcmask 392192
    %v202 = vsel %vm200, %v149, 0
    %v205 = vsel %vm200, %v150, 0
    %v208 = vsel %vm200, %v151, 0
    %v211 = vsel %vm200, %v152, 0
    %v214 = vsel %vm200, %v153, 0
    %v217 = vsel %vm200, %v154, 0
    %v220 = vsel %vm200, %v155, 0
    %v223 = vsel %vm200, %v156, 0
    %v226 = vsel %vm200, %v157, 0
    %v229 = vsel %vm200, %v158, 0
    %v232 = vsel %vm200, %v159, 0
    %v235 = vsel %vm200, %v160, 0
    %v238 = vsel %vm200, %v161, 0
    %v241 = vsel %vm200, %v162, 0
    %v244 = vsel %vm200, %v163, 0
    %v247 = vsel %vm200, %v164, 0
    %249 = vmatprep.subr.mxu0 %v166
    %250 = vmatpush1.msra.mxu0 %v165
    %251 = vmatprep.subr.mxu0 %v169
    %252 = vmatpush1.msra.mxu0 %v168
    %253 = vmatprep.subr.mxu0 %v172
    %254 = vmatpush1.msra.mxu0 %v171
    %255 = vmatprep.subr.mxu0 %v175
    %256 = vmatpush1.msra.mxu0 %v174
    %257 = vmatprep.subr.mxu0 %v178
    %258 = vmatpush1.msra.mxu0 %v177
    %259 = vmatprep.subr.mxu0 %v181
    %260 = vmatpush1.msra.mxu0 %v180
    %261 = vmatprep.subr.mxu0 0.0
    %262 = vmatpush1.msra.mxu0 0.0
    %263 = vmatprep.subr.mxu0 0.0
    %264 = vmatpush1.msra.mxu0 0.0
    %265 = vmatprep.subr.mxu0 0.0
    %266 = vmatpush1.msra.mxu0 0.0
    %267 = vmatprep.subr.mxu0 0.0
    %268 = vmatpush1.msra.mxu0 0.0
    %269 = vmatprep.subr.mxu0 0.0
    %270 = vmatpush1.msra.mxu0 0.0
    %271 = vmatprep.subr.mxu0 0.0
    %272 = vmatpush1.msra.mxu0 0.0
    %273 = vmatprep.subr.mxu0 0.0
    %274 = vmatpush1.msra.mxu0 0.0
    %275 = vmatprep.subr.mxu0 0.0
    %276 = vmatpush1.msra.mxu0 0.0
    %277 = vmatprep.subr.mxu0 0.0
    %278 = vmatpush1.msra.mxu0 0.0
    %279 = vmatprep.subr.mxu0 0.0
    %280 = vmatpush1.msra.mxu0 0.0
    %281 = vmatprep.subr.mxu0 0.0
    %282 = vmatpush1.msra.mxu0 0.0
    %283 = vmatprep.subr.mxu0 0.0
    %284 = vmatpush1.msra.mxu0 0.0
    %285 = vmatprep.subr.mxu0 0.0
    %286 = vmatpush1.msra.mxu0 0.0
    %287 = vmatprep.subr.mxu0 0.0
    %288 = vmatpush1.msra.mxu0 0.0
    %289 = vmatprep.subr.mxu0 0.0
    %290 = vmatpush1.msra.mxu0 0.0
    %291 = vmatprep.subr.mxu0 0.0
    %292 = vmatpush1.msra.mxu0 0.0
    %293 = vmatprep.subr.mxu0 0.0
    %294 = vmatpush1.msra.mxu0 0.0
    %295 = vmatprep.subr.mxu0 0.0
    %296 = vmatpush1.msra.mxu0 0.0
    %297 = vmatprep.subr.mxu0 0.0
    %298 = vmatpush1.msra.mxu0 0.0
    %299 = vmatprep.subr.mxu0 0.0
    %300 = vmatpush1.msra.mxu0 0.0
    %301 = vmatprep.subr.mxu0 0.0
    %302 = vmatpush1.msra.mxu0 0.0
    %303 = vmatprep.subr.mxu0 0.0
    %304 = vmatpush1.msra.mxu0 0.0
    %305 = vmatprep.subr.mxu0 0.0
    %306 = vmatpush1.msra.mxu0 0.0
    %307 = vmatprep.subr.mxu0 0.0
    %308 = vmatpush1.msra.mxu0 0.0
    %309 = vmatprep.subr.mxu0 0.0
    %310 = vmatpush1.msra.mxu0 0.0
    %311 = vmatprep.subr.mxu0 0.0
    %312 = vmatpush1.msra.mxu0 0.0
    %313 = vmatprep.mubr.f32.mxu0 0.0
    %314 = vmatmul.mubr.f32.gmra.mrb[0].mxu0 %v202
    %v315 = vpop.f32.mrb[0].mxu0
    %v316 = vadd.f32 %v188, %v315
    %v317 = vpop.f32.mrb[0].mxu0
    %v318 = vadd.f32 %v192, %v317
    %319 = vmatprep.mubr.f32.mxu0 0.0
    %320 = vmatmul.mubr.f32.gmra.mrb[0].mxu0 %v205
    %v321 = vpop.f32.mrb[0].mxu0
    %v322 = vadd.f32 %v188, %v321
    %v323 = vpop.f32.mrb[0].mxu0
    %v324 = vadd.f32 %v192, %v323
    %325 = vmatprep.mubr.f32.mxu0 0.0
    %326 = vmatmul.mubr.f32.gmra.mrb[0].mxu0 %v208
    %v327 = vpop.f32.mrb[0].mxu0
    %v328 = vadd.f32 %v188, %v327
    %v329 = vpop.f32.mrb[0].mxu0
    %v330 = vadd.f32 %v192, %v329
    %331 = vmatprep.mubr.f32.mxu0 0.0
    %332 = vmatmul.mubr.f32.gmra.mrb[0].mxu0 %v211
    %v333 = vpop.f32.mrb[0].mxu0
    %v334 = vadd.f32 %v188, %v333
    %v335 = vpop.f32.mrb[0].mxu0
    %v336 = vadd.f32 %v192, %v335
    %337 = vmatprep.mubr.f32.mxu0 0.0
    %338 = vmatmul.mubr.f32.gmra.mrb[0].mxu0 %v214
    %v339 = vpop.f32.mrb[0].mxu0
    %v340 = vadd.f32 %v188, %v339
    %v341 = vpop.f32.mrb[0].mxu0
    %v342 = vadd.f32 %v192, %v341
    %343 = vmatprep.mubr.f32.mxu0 0.0
    %344 = vmatmul.mubr.f32.gmra.mrb[0].mxu0 %v217
    %v345 = vpop.f32.mrb[0].mxu0
    %v346 = vadd.f32 %v188, %v345
    %v347 = vpop.f32.mrb[0].mxu0
    %v348 = vadd.f32 %v192, %v347
    %349 = vmatprep.mubr.f32.mxu0 0.0
    %350 = vmatmul.mubr.f32.gmra.mrb[0].mxu0 %v220
    %v351 = vpop.f32.mrb[0].mxu0
    %v352 = vadd.f32 %v188, %v351
    %v353 = vpop.f32.mrb[0].mxu0
    %v354 = vadd.f32 %v192, %v353
    %355 = vmatprep.mubr.f32.mxu0 0.0
    %356 = vmatmul.mubr.f32.gmra.mrb[0].mxu0 %v223
    %v357 = vpop.f32.mrb[0].mxu0
    %v358 = vadd.f32 %v188, %v357
    %v359 = vpop.f32.mrb[0].mxu0
    %v360 = vadd.f32 %v192, %v359
    %361 = vmatprep.mubr.f32.mxu0 0.0
    %362 = vmatmul.mubr.f32.gmra.mrb[0].mxu0 %v226
    %v363 = vpop.f32.mrb[0].mxu0
    %v364 = vadd.f32 %v188, %v363
    %v365 = vpop.f32.mrb[0].mxu0
    %v366 = vadd.f32 %v192, %v365
    %367 = vmatprep.mubr.f32.mxu0 0.0
    %368 = vmatmul.mubr.f32.gmra.mrb[0].mxu0 %v229
    %v369 = vpop.f32.mrb[0].mxu0
    %v370 = vadd.f32 %v188, %v369
    %v371 = vpop.f32.mrb[0].mxu0
    %v372 = vadd.f32 %v192, %v371
    %373 = vmatprep.mubr.f32.mxu0 0.0
    %374 = vmatmul.mubr.f32.gmra.mrb[0].mxu0 %v232
    %v375 = vpop.f32.mrb[0].mxu0
    %v376 = vadd.f32 %v188, %v375
    %v377 = vpop.f32.mrb[0].mxu0
    %v378 = vadd.f32 %v192, %v377
    %379 = vmatprep.mubr.f32.mxu0 0.0
    %380 = vmatmul.mubr.f32.gmra.mrb[0].mxu0 %v235
    %v381 = vpop.f32.mrb[0].mxu0
    %v382 = vadd.f32 %v188, %v381
    %v383 = vpop.f32.mrb[0].mxu0
    %v384 = vadd.f32 %v192, %v383
    %385 = vmatprep.mubr.f32.mxu0 0.0
    %386 = vmatmul.mubr.f32.gmra.mrb[0].mxu0 %v238
    %v387 = vpop.f32.mrb[0].mxu0
    %v388 = vadd.f32 %v188, %v387
    %v389 = vpop.f32.mrb[0].mxu0
    %v390 = vadd.f32 %v192, %v389
    %391 = vmatprep.mubr.f32.mxu0 0.0
    %392 = vmatmul.mubr.f32.gmra.mrb[0].mxu0 %v241
    %v393 = vpop.f32.mrb[0].mxu0
    %v394 = vadd.f32 %v188, %v393
    %v395 = vpop.f32.mrb[0].mxu0
    %v396 = vadd.f32 %v192, %v395
    %397 = vmatprep.mubr.f32.mxu0 0.0
    %398 = vmatmul.mubr.f32.gmra.mrb[0].mxu0 %v244
    %v399 = vpop.f32.mrb[0].mxu0
    %v400 = vadd.f32 %v188, %v399
    %v401 = vpop.f32.mrb[0].mxu0
    %v402 = vadd.f32 %v192, %v401
    %403 = vmatprep.mubr.f32.mxu0 0.0
    %404 = vmatmul.mubr.f32.gmra.mrb[0].mxu0 %v247
    %v405 = vpop.f32.mrb[0].mxu0
    %v406 = vadd.f32 %v188, %v405
    %v407 = vpop.f32.mrb[0].mxu0
    %v408 = vadd.f32 %v192, %v407
    %409 = vdwg.mxu0
    %410 = vmatprep.subr.mxu0 0.0
    %411 = vmatpush1.msra.mxu0 %v167
    %412 = vmatprep.subr.mxu0 0.0
    %413 = vmatpush1.msra.mxu0 %v170
    %414 = vmatprep.subr.mxu0 0.0
    %415 = vmatpush1.msra.mxu0 %v173
    %416 = vmatprep.subr.mxu0 0.0
    %417 = vmatpush1.msra.mxu0 %v176
    %418 = vmatprep.subr.mxu0 0.0
    %419 = vmatpush1.msra.mxu0 %v179
    %420 = vmatprep.subr.mxu0 0.0
    %421 = vmatpush1.msra.mxu0 %v182
    %422 = vmatprep.subr.mxu0 0.0
    %423 = vmatpush1.msra.mxu0 0.0
    %424 = vmatprep.subr.mxu0 0.0
    %425 = vmatpush1.msra.mxu0 0.0
    %426 = vmatprep.subr.mxu0 0.0
    %427 = vmatpush1.msra.mxu0 0.0
    %428 = vmatprep.subr.mxu0 0.0
    %429 = vmatpush1.msra.mxu0 0.0
    %430 = vmatprep.subr.mxu0 0.0
    %431 = vmatpush1.msra.mxu0 0.0
    %432 = vmatprep.subr.mxu0 0.0
    %433 = vmatpush1.msra.mxu0 0.0
    %434 = vmatprep.subr.mxu0 0.0
    %435 = vmatpush1.msra.mxu0 0.0
    %436 = vmatprep.subr.mxu0 0.0
    %437 = vmatpush1.msra.mxu0 0.0
    %438 = vmatprep.subr.mxu0 0.0
    %439 = vmatpush1.msra.mxu0 0.0
    %440 = vmatprep.subr.mxu0 0.0
    %441 = vmatpush1.msra.mxu0 0.0
    %442 = vmatprep.subr.mxu0 0.0
    %443 = vmatpush1.msra.mxu0 0.0
    %444 = vmatprep.subr.mxu0 0.0
    %445 = vmatpush1.msra.mxu0 0.0
    %446 = vmatprep.subr.mxu0 0.0
    %447 = vmatpush1.msra.mxu0 0.0
    %448 = vmatprep.subr.mxu0 0.0
    %449 = vmatpush1.msra.mxu0 0.0
    %450 = vmatprep.subr.mxu0 0.0
    %451 = vmatpush1.msra.mxu0 0.0
    %452 = vmatprep.subr.mxu0 0.0
    %453 = vmatpush1.msra.mxu0 0.0
    %454 = vmatprep.subr.mxu0 0.0
    %455 = vmatpush1.msra.mxu0 0.0
    %456 = vmatprep.subr.mxu0 0.0
    %457 = vmatpush1.msra.mxu0 0.0
    %458 = vmatprep.subr.mxu0 0.0
    %459 = vmatpush1.msra.mxu0 0.0
    %460 = vmatprep.subr.mxu0 0.0
    %461 = vmatpush1.msra.mxu0 0.0
    %462 = vmatprep.subr.mxu0 0.0
    %463 = vmatpush1.msra.mxu0 0.0
    %464 = vmatprep.subr.mxu0 0.0
    %465 = vmatpush1.msra.mxu0 0.0
    %466 = vmatprep.subr.mxu0 0.0
    %467 = vmatpush1.msra.mxu0 0.0
    %468 = vmatprep.subr.mxu0 0.0
    %469 = vmatpush1.msra.mxu0 0.0
    %470 = vmatprep.subr.mxu0 0.0
    %471 = vmatpush1.msra.mxu0 0.0
    %472 = vmatprep.subr.mxu0 0.0
    %473 = vmatpush1.msra.mxu0 0.0
    %474 = vmatprep.mubr.f32.mxu0 0.0
    %475 = vmatmul.mubr.f32.gmra.mrb[0].mxu0 %v202
    %v476 = vpop.f32.mrb[0].mxu0
    %v477 = vadd.f32 %v196, %v476
    %v478 = vpop.f32.mrb[0].mxu0
    %479 = vmatprep.mubr.f32.mxu0 0.0
    %480 = vmatmul.mubr.f32.gmra.mrb[0].mxu0 %v205
    %v481 = vpop.f32.mrb[0].mxu0
    %v482 = vadd.f32 %v196, %v481
    %v483 = vpop.f32.mrb[0].mxu0
    %484 = vmatprep.mubr.f32.mxu0 0.0
    %485 = vmatmul.mubr.f32.gmra.mrb[0].mxu0 %v208
    %v486 = vpop.f32.mrb[0].mxu0
    %v487 = vadd.f32 %v196, %v486
    %v488 = vpop.f32.mrb[0].mxu0
    %489 = vmatprep.mubr.f32.mxu0 0.0
    %490 = vmatmul.mubr.f32.gmra.mrb[0].mxu0 %v211
    %v491 = vpop.f32.mrb[0].mxu0
    %v492 = vadd.f32 %v196, %v491
    %v493 = vpop.f32.mrb[0].mxu0
    %494 = vmatprep.mubr.f32.mxu0 0.0
    %495 = vmatmul.mubr.f32.gmra.mrb[0].mxu0 %v214
    %v496 = vpop.f32.mrb[0].mxu0
    %v497 = vadd.f32 %v196, %v496
    %v498 = vpop.f32.mrb[0].mxu0
    %499 = vmatprep.mubr.f32.mxu0 0.0
    %500 = vmatmul.mubr.f32.gmra.mrb[0].mxu0 %v217
    %v501 = vpop.f32.mrb[0].mxu0
    %v502 = vadd.f32 %v196, %v501
    %v503 = vpop.f32.mrb[0].mxu0
    %504 = vmatprep.mubr.f32.mxu0 0.0
    %505 = vmatmul.mubr.f32.gmra.mrb[0].mxu0 %v220
    %v506 = vpop.f32.mrb[0].mxu0
    %v507 = vadd.f32 %v196, %v506
    %v508 = vpop.f32.mrb[0].mxu0
    %509 = vmatprep.mubr.f32.mxu0 0.0
    %510 = vmatmul.mubr.f32.gmra.mrb[0].mxu0 %v223
    %v511 = vpop.f32.mrb[0].mxu0
    %v512 = vadd.f32 %v196, %v511
    %v513 = vpop.f32.mrb[0].mxu0
    %514 = vmatprep.mubr.f32.mxu0 0.0
    %515 = vmatmul.mubr.f32.gmra.mrb[0].mxu0 %v226
    %v516 = vpop.f32.mrb[0].mxu0
    %v517 = vadd.f32 %v196, %v516
    %v518 = vpop.f32.mrb[0].mxu0
    %519 = vmatprep.mubr.f32.mxu0 0.0
    %520 = vmatmul.mubr.f32.gmra.mrb[0].mxu0 %v229
    %v521 = vpop.f32.mrb[0].mxu0
    %v522 = vadd.f32 %v196, %v521
    %v523 = vpop.f32.mrb[0].mxu0
    %524 = vmatprep.mubr.f32.mxu0 0.0
    %525 = vmatmul.mubr.f32.gmra.mrb[0].mxu0 %v232
    %v526 = vpop.f32.mrb[0].mxu0
    %v527 = vadd.f32 %v196, %v526
    %v528 = vpop.f32.mrb[0].mxu0
    %529 = vmatprep.mubr.f32.mxu0 0.0
    %530 = vmatmul.mubr.f32.gmra.mrb[0].mxu0 %v235
    %v531 = vpop.f32.mrb[0].mxu0
    %v532 = vadd.f32 %v196, %v531
    %v533 = vpop.f32.mrb[0].mxu0
    %534 = vmatprep.mubr.f32.mxu0 0.0
    %535 = vmatmul.mubr.f32.gmra.mrb[0].mxu0 %v238
    %v536 = vpop.f32.mrb[0].mxu0
    %v537 = vadd.f32 %v196, %v536
    %v538 = vpop.f32.mrb[0].mxu0
    %539 = vmatprep.mubr.f32.mxu0 0.0
    %540 = vmatmul.mubr.f32.gmra.mrb[0].mxu0 %v241
    %v541 = vpop.f32.mrb[0].mxu0
    %v542 = vadd.f32 %v196, %v541
    %v543 = vpop.f32.mrb[0].mxu0
    %544 = vmatprep.mubr.f32.mxu0 0.0
    %545 = vmatmul.mubr.f32.gmra.mrb[0].mxu0 %v244
    %v546 = vpop.f32.mrb[0].mxu0
    %v547 = vadd.f32 %v196, %v546
    %v548 = vpop.f32.mrb[0].mxu0
    %549 = vmatprep.mubr.f32.mxu0 0.0
    %550 = vmatmul.mubr.f32.gmra.mrb[0].mxu0 %v247
    %v551 = vpop.f32.mrb[0].mxu0
    %v552 = vadd.f32 %v196, %v551
    %v553 = vpop.f32.mrb[0].mxu0
    %554 = vdwg.mxu0
    %555 = vst [vmem:[#allocation2] sm:$0xff] %v316
    %556 = vst [vmem:[#allocation2 + $0x8] sm:$0xff] %v318
    %557 = vst [vmem:[#allocation2 + $0x10] sm:$0xff] %v477
    %558 = vst [vmem:[#allocation2 + $0x18] sm:$0xff] %v322
    %559 = vst [vmem:[#allocation2 + $0x20] sm:$0xff] %v324
    %560 = vst [vmem:[#allocation2 + $0x28] sm:$0xff] %v482
    %561 = vst [vmem:[#allocation2 + $0x30] sm:$0xff] %v328
    %562 = vst [vmem:[#allocation2 + $0x38] sm:$0xff] %v330
    %563 = vst [vmem:[#allocation2 + $0x40] sm:$0xff] %v487
    %564 = vst [vmem:[#allocation2 + $0x48] sm:$0xff] %v334
    %565 = vst [vmem:[#allocation2 + $0x50] sm:$0xff] %v336
    %566 = vst [vmem:[#allocation2 + $0x58] sm:$0xff] %v492
    %567 = vst [vmem:[#allocation2 + $0x60] sm:$0xff] %v340
    %568 = vst [vmem:[#allocation2 + $0x68] sm:$0xff] %v342
    %569 = vst [vmem:[#allocation2 + $0x70] sm:$0xff] %v497
    %570 = vst [vmem:[#allocation2 + $0x78] sm:$0xff] %v346
    %571 = vst [vmem:[#allocation2 + $0x80] sm:$0xff] %v348
    %572 = vst [vmem:[#allocation2 + $0x88] sm:$0xff] %v502
    %573 = vst [vmem:[#allocation2 + $0x90] sm:$0xff] %v352
    %574 = vst [vmem:[#allocation2 + $0x98] sm:$0xff] %v354
    %575 = vst [vmem:[#allocation2 + $0xa0] sm:$0xff] %v507
    %576 = vst [vmem:[#allocation2 + $0xa8] sm:$0xff] %v358
    %577 = vst [vmem:[#allocation2 + $0xb0] sm:$0xff] %v360
    %578 = vst [vmem:[#allocation2 + $0xb8] sm:$0xff] %v512
    %579 = vst [vmem:[#allocation2 + $0xc0] sm:$0xff] %v364
    %580 = vst [vmem:[#allocation2 + $0xc8] sm:$0xff] %v366
    %581 = vst [vmem:[#allocation2 + $0xd0] sm:$0xff] %v517
    %582 = vst [vmem:[#allocation2 + $0xd8] sm:$0xff] %v370
    %583 = vst [vmem:[#allocation2 + $0xe0] sm:$0xff] %v372
    %584 = vst [vmem:[#allocation2 + $0xe8] sm:$0xff] %v522
    %585 = vst [vmem:[#allocation2 + $0xf0] sm:$0xff] %v376
    %586 = vst [vmem:[#allocation2 + $0xf8] sm:$0xff] %v378
    %587 = vst [vmem:[#allocation2 + $0x100] sm:$0xff] %v527
    %588 = vst [vmem:[#allocation2 + $0x108] sm:$0xff] %v382
    %589 = vst [vmem:[#allocation2 + $0x110] sm:$0xff] %v384
    %590 = vst [vmem:[#allocation2 + $0x118] sm:$0xff] %v532
    %591 = vst [vmem:[#allocation2 + $0x120] sm:$0xff] %v388
    %592 = vst [vmem:[#allocation2 + $0x128] sm:$0xff] %v390
    %593 = vst [vmem:[#allocation2 + $0x130] sm:$0xff] %v537
    %594 = vst [vmem:[#allocation2 + $0x138] sm:$0xff] %v394
    %595 = vst [vmem:[#allocation2 + $0x140] sm:$0xff] %v396
    %596 = vst [vmem:[#allocation2 + $0x148] sm:$0xff] %v542
    %597 = vst [vmem:[#allocation2 + $0x150] sm:$0xff] %v400
    %598 = vst [vmem:[#allocation2 + $0x158] sm:$0xff] %v402
    %599 = vst [vmem:[#allocation2 + $0x160] sm:$0xff] %v547
    %600 = vst [vmem:[#allocation2 + $0x168] sm:$0xff] %v406
    %601 = vst [vmem:[#allocation2 + $0x170] sm:$0xff] %v408
    %602 = vst [vmem:[#allocation2 + $0x178] sm:$0xff] %v552
    %v603 = vld [vmem:[#allocation3] sm:$0xff]
    %s604 = scalar_lea.vmem [#allocation3], 8
    %v605 = vld [vmem:[%s604] sm:$0xff]
    %v606 = vld [vmem:[#allocation2] sm:$0xff]
    %v607 = vld [vmem:[#allocation2 + $0x8] sm:$0xff]
    %v608 = vld [vmem:[#allocation2 + $0x10] sm:$0xff]
    %v609 = vld [vmem:[%s3] sm:$0xff]
    %v610 = vld [vmem:[%s3 + $0x8] sm:$0xff]
    %v611 = vld [vmem:[%s3 + $0x10] sm:$0xff]
    %v612 = vld [vmem:[%s3 + $0x18] sm:$0xff]
    %v613 = vld [vmem:[%s3 + $0x20] sm:$0xff]
    %v614 = vld [vmem:[%s3 + $0x28] sm:$0xff]
    %v615 = vld [vmem:[%s3 + $0x30] sm:$0xff]
    %v616 = vld [vmem:[%s3 + $0x38] sm:$0xff]
    %v617 = vld [vmem:[%s3 + $0x40] sm:$0xff]
    %v618 = vld [vmem:[%s3 + $0x48] sm:$0xff]
    %v619 = vld [vmem:[%s3 + $0x50] sm:$0xff]
    %v620 = vld [vmem:[%s3 + $0x58] sm:$0xff]
    %v621 = vld [vmem:[%s3 + $0x60] sm:$0xff]
    %v622 = vld [vmem:[%s3 + $0x68] sm:$0xff]
    %v623 = vld [vmem:[%s3 + $0x70] sm:$0xff]
    %v624 = vld [vmem:[%s3 + $0x78] sm:$0xff]
    %v625 = vld [vmem:[%s3 + $0x80] sm:$0xff]
    %v626 = vld [vmem:[%s3 + $0x88] sm:$0xff]
    %v627 = vld [vmem:[%s3 + $0x90] sm:$0xff]
    %v628 = vld [vmem:[%s3 + $0x98] sm:$0xff]
    %v629 = vld [vmem:[%s3 + $0xa0] sm:$0xff]
    %v630 = vld [vmem:[%s3 + $0xa8] sm:$0xff]
    %v631 = vld [vmem:[%s3 + $0xb0] sm:$0xff]
    %v632 = vld [vmem:[%s3 + $0xb8] sm:$0xff]
    %v633 = vld [vmem:[%s3 + $0xc0] sm:$0xff]
    %v634 = vld [vmem:[%s3 + $0xc8] sm:$0xff]
    %v635 = vld [vmem:[%s3 + $0xd0] sm:$0xff]
    %v636 = vld [vmem:[%s3 + $0xd8] sm:$0xff]
    %v637 = vld [vmem:[%s3 + $0xe0] sm:$0xff]
    %v638 = vld [vmem:[%s3 + $0xe8] sm:$0xff]
    %v639 = vld [vmem:[%s3 + $0xf0] sm:$0xff]
    %v640 = vld [vmem:[%s3 + $0xf8] sm:$0xff]
    %v641 = vld [vmem:[%s3 + $0x100] sm:$0xff]
    %v642 = vld [vmem:[%s3 + $0x108] sm:$0xff]
    %v643 = vld [vmem:[%s3 + $0x110] sm:$0xff]
    %v644 = vld [vmem:[%s3 + $0x118] sm:$0xff]
    %v645 = vld [vmem:[%s3 + $0x120] sm:$0xff]
    %v646 = vld [vmem:[%s3 + $0x128] sm:$0xff]
    %v647 = vld [vmem:[%s3 + $0x130] sm:$0xff]
    %v648 = vld [vmem:[%s3 + $0x138] sm:$0xff]
    %v649 = vld [vmem:[%s3 + $0x140] sm:$0xff]
    %v650 = vld [vmem:[%s3 + $0x148] sm:$0xff]
    %v651 = vld [vmem:[%s3 + $0x150] sm:$0xff]
    %v652 = vld [vmem:[%s3 + $0x158] sm:$0xff]
    %v653 = vld [vmem:[%s3 + $0x160] sm:$0xff]
    %v654 = vld [vmem:[%s3 + $0x168] sm:$0xff]
    %v655 = vld [vmem:[%s3 + $0x170] sm:$0xff]
    %v656 = vld [vmem:[%s3 + $0x178] sm:$0xff]
    %v657 = vld [vmem:[#allocation9] sm:$0x7]
    %v659 = vlaneseq
    %v660 = vshrl.u32 %v659, 7
    %v661 = vsub.s32 0, %v660
    %v662 = vrot.slane %v657, %v661
    %v663 = vlaneseq
    %v664 = vshrl.u32 %v663, 7
    %v665 = vsub.s32 1, %v664
    %v666 = vrot.slane %v657, %v665
    %v667 = vlaneseq
    %v668 = vshrl.u32 %v667, 7
    %v669 = vsub.s32 2, %v668
    %v670 = vrot.slane %v657, %v669
    %674 = vmatprep.subr.mxu0 %v610
    %675 = vmatpush1.msra.mxu0 %v609
    %676 = vmatprep.subr.mxu0 %v613
    %677 = vmatpush1.msra.mxu0 %v612
    %678 = vmatprep.subr.mxu0 %v616
    %679 = vmatpush1.msra.mxu0 %v615
    %680 = vmatprep.subr.mxu0 %v619
    %681 = vmatpush1.msra.mxu0 %v618
    %682 = vmatprep.subr.mxu0 %v622
    %683 = vmatpush1.msra.mxu0 %v621
    %684 = vmatprep.subr.mxu0 %v625
    %685 = vmatpush1.msra.mxu0 %v624
    %686 = vmatprep.subr.mxu0 %v628
    %687 = vmatpush1.msra.mxu0 %v627
    %688 = vmatprep.subr.mxu0 %v631
    %689 = vmatpush1.msra.mxu0 %v630
    %690 = vmatprep.subr.mxu0 %v634
    %691 = vmatpush1.msra.mxu0 %v633
    %692 = vmatprep.subr.mxu0 %v637
    %693 = vmatpush1.msra.mxu0 %v636
    %694 = vmatprep.subr.mxu0 %v640
    %695 = vmatpush1.msra.mxu0 %v639
    %696 = vmatprep.subr.mxu0 %v643
    %697 = vmatpush1.msra.mxu0 %v642
    %698 = vmatprep.subr.mxu0 %v646
    %699 = vmatpush1.msra.mxu0 %v645
    %700 = vmatprep.subr.mxu0 %v649
    %701 = vmatpush1.msra.mxu0 %v648
    %702 = vmatprep.subr.mxu0 %v652
    %703 = vmatpush1.msra.mxu0 %v651
    %704 = vmatprep.subr.mxu0 %v655
    %705 = vmatpush1.msra.mxu0 %v654
    %706 = vmatprep.subr.mxu0 0.0
    %707 = vmatpush1.msra.mxu0 0.0
    %708 = vmatprep.subr.mxu0 0.0
    %709 = vmatpush1.msra.mxu0 0.0
    %710 = vmatprep.subr.mxu0 0.0
    %711 = vmatpush1.msra.mxu0 0.0
    %712 = vmatprep.subr.mxu0 0.0
    %713 = vmatpush1.msra.mxu0 0.0
    %714 = vmatprep.subr.mxu0 0.0
    %715 = vmatpush1.msra.mxu0 0.0
    %716 = vmatprep.subr.mxu0 0.0
    %717 = vmatpush1.msra.mxu0 0.0
    %718 = vmatprep.subr.mxu0 0.0
    %719 = vmatpush1.msra.mxu0 0.0
    %720 = vmatprep.subr.mxu0 0.0
    %721 = vmatpush1.msra.mxu0 0.0
    %722 = vmatprep.subr.mxu0 0.0
    %723 = vmatpush1.msra.mxu0 0.0
    %724 = vmatprep.subr.mxu0 0.0
    %725 = vmatpush1.msra.mxu0 0.0
    %726 = vmatprep.subr.mxu0 0.0
    %727 = vmatpush1.msra.mxu0 0.0
    %728 = vmatprep.subr.mxu0 0.0
    %729 = vmatpush1.msra.mxu0 0.0
    %730 = vmatprep.subr.mxu0 0.0
    %731 = vmatpush1.msra.mxu0 0.0
    %732 = vmatprep.subr.mxu0 0.0
    %733 = vmatpush1.msra.mxu0 0.0
    %734 = vmatprep.subr.mxu0 0.0
    %735 = vmatpush1.msra.mxu0 0.0
    %736 = vmatprep.subr.mxu0 0.0
    %737 = vmatpush1.msra.mxu0 0.0
    %738 = vmatprep.mubr.f32.mxu0 0.0
    %739 = vmatmul.mubr.f32.gmra.mrb[0].mxu0 %v603
    %v740 = vpop.f32.mrb[0].mxu0
    %v741 = vadd.f32 %v662, %v740
    %v742 = vpop.f32.mrb[0].mxu0
    %v743 = vadd.f32 %v666, %v742
    %744 = vdwg.mxu0
    %745 = vmatprep.subr.mxu0 0.0
    %746 = vmatpush1.msra.mxu0 %v611
    %747 = vmatprep.subr.mxu0 0.0
    %748 = vmatpush1.msra.mxu0 %v614
    %749 = vmatprep.subr.mxu0 0.0
    %750 = vmatpush1.msra.mxu0 %v617
    %751 = vmatprep.subr.mxu0 0.0
    %752 = vmatpush1.msra.mxu0 %v620
    %753 = vmatprep.subr.mxu0 0.0
    %754 = vmatpush1.msra.mxu0 %v623
    %755 = vmatprep.subr.mxu0 0.0
    %756 = vmatpush1.msra.mxu0 %v626
    %757 = vmatprep.subr.mxu0 0.0
    %758 = vmatpush1.msra.mxu0 %v629
    %759 = vmatprep.subr.mxu0 0.0
    %760 = vmatpush1.msra.mxu0 %v632
    %761 = vmatprep.subr.mxu0 0.0
    %762 = vmatpush1.msra.mxu0 %v635
    %763 = vmatprep.subr.mxu0 0.0
    %764 = vmatpush1.msra.mxu0 %v638
    %765 = vmatprep.subr.mxu0 0.0
    %766 = vmatpush1.msra.mxu0 %v641
    %767 = vmatprep.subr.mxu0 0.0
    %768 = vmatpush1.msra.mxu0 %v644
    %769 = vmatprep.subr.mxu0 0.0
    %770 = vmatpush1.msra.mxu0 %v647
    %771 = vmatprep.subr.mxu0 0.0
    %772 = vmatpush1.msra.mxu0 %v650
    %773 = vmatprep.subr.mxu0 0.0
    %774 = vmatpush1.msra.mxu0 %v653
    %775 = vmatprep.subr.mxu0 0.0
    %776 = vmatpush1.msra.mxu0 %v656
    %777 = vmatprep.subr.mxu0 0.0
    %778 = vmatpush1.msra.mxu0 0.0
    %779 = vmatprep.subr.mxu0 0.0
    %780 = vmatpush1.msra.mxu0 0.0
    %781 = vmatprep.subr.mxu0 0.0
    %782 = vmatpush1.msra.mxu0 0.0
    %783 = vmatprep.subr.mxu0 0.0
    %784 = vmatpush1.msra.mxu0 0.0
    %785 = vmatprep.subr.mxu0 0.0
    %786 = vmatpush1.msra.mxu0 0.0
    %787 = vmatprep.subr.mxu0 0.0
    %788 = vmatpush1.msra.mxu0 0.0
    %789 = vmatprep.subr.mxu0 0.0
    %790 = vmatpush1.msra.mxu0 0.0
    %791 = vmatprep.subr.mxu0 0.0
    %792 = vmatpush1.msra.mxu0 0.0
    %793 = vmatprep.subr.mxu0 0.0
    %794 = vmatpush1.msra.mxu0 0.0
    %795 = vmatprep.subr.mxu0 0.0
    %796 = vmatpush1.msra.mxu0 0.0
    %797 = vmatprep.subr.mxu0 0.0
    %798 = vmatpush1.msra.mxu0 0.0
    %799 = vmatprep.subr.mxu0 0.0
    %800 = vmatpush1.msra.mxu0 0.0
    %801 = vmatprep.subr.mxu0 0.0
    %802 = vmatpush1.msra.mxu0 0.0
    %803 = vmatprep.subr.mxu0 0.0
    %804 = vmatpush1.msra.mxu0 0.0
    %805 = vmatprep.subr.mxu0 0.0
    %806 = vmatpush1.msra.mxu0 0.0
    %807 = vmatprep.subr.mxu0 0.0
    %808 = vmatpush1.msra.mxu0 0.0
    %809 = vmatprep.mubr.f32.mxu0 0.0
    %810 = vmatmul.mubr.f32.gmra.mrb[0].mxu0 %v603
    %v811 = vpop.f32.mrb[0].mxu0
    %v812 = vadd.f32 %v670, %v811
    %v813 = vpop.f32.mrb[0].mxu0
    %814 = vdwg.mxu0
    %v815 = vadd.f32 %v606, %v741
    %v816 = vadd.f32 %v607, %v743
    %v817 = vxor.u32 %v815, 2147483648
    %v818 = vxor.u32 %v816, 2147483648
    %v819 = vmul.f32 %v817, 1.442695
    %v820 = vpow.pop %v819
    %v821 = vmul.f32 %v818, 1.442695
    %v822 = vpow.pop %v821
    %v823 = vadd.f32 %v820, 1.0
    %v824 = vadd.f32 %v822, 1.0
    %v825 = vrcp.pop %v823
    %v826 = vmul.f32 1.0, %v825
    %v827 = vrcp.pop %v824
    %v828 = vmul.f32 1.0, %v827
    %v829 = vmul.f32 %v826, %v812
    %v830 = vadd.f32 %v608, %v829
    %v831 = vtanh.pop %v830
    %v832 = vsub.f32 1.0, %v828
    %v833 = vmul.f32 %v832, %v831
    %v834 = vmul.f32 %v828, %v603
    %v835 = vadd.f32 %v833, %v834
    %v836 = vld [vmem:[#allocation11] sm:$0xff]
    %v837 = vld [vmem:[#allocation11 + $0x8] sm:$0xff]
    %v838 = vld [vmem:[#allocation11 + $0x10] sm:$0xff]
    %v839 = vld [vmem:[#allocation11 + $0x18] sm:$0xff]
    %v840 = vld [vmem:[#allocation11 + $0x20] sm:$0xff]
    %v841 = vld [vmem:[#allocation11 + $0x28] sm:$0xff]
    %v842 = vld [vmem:[#allocation11 + $0x30] sm:$0xff]
    %v843 = vld [vmem:[#allocation11 + $0x38] sm:$0xff]
    %v844 = vld [vmem:[#allocation11 + $0x40] sm:$0xff]
    %v845 = vld [vmem:[#allocation11 + $0x48] sm:$0xff]
    %v846 = vld [vmem:[#allocation11 + $0x50] sm:$0xff]
    %v847 = vld [vmem:[#allocation11 + $0x58] sm:$0xff]
    %v848 = vld [vmem:[#allocation11 + $0x60] sm:$0xff]
    %v849 = vld [vmem:[#allocation11 + $0x68] sm:$0xff]
    %v850 = vld [vmem:[#allocation11 + $0x70] sm:$0xff]
    %v851 = vld [vmem:[#allocation11 + $0x78] sm:$0xff]
    %v852 = vld [vmem:[#allocation11 + $0x80] sm:$0xff]
    %v853 = vld [vmem:[#allocation11 + $0x88] sm:$0xff]
    %v854 = vld [vmem:[#allocation11 + $0x90] sm:$0xff]
    %v855 = vld [vmem:[#allocation11 + $0x98] sm:$0xff]
    %v856 = vld [vmem:[#allocation11 + $0xa0] sm:$0xff]
    %v857 = vld [vmem:[#allocation11 + $0xa8] sm:$0xff]
    %v858 = vld [vmem:[#allocation11 + $0xb0] sm:$0xff]
    %v859 = vld [vmem:[#allocation11 + $0xb8] sm:$0xff]
    %v860 = vld [vmem:[#allocation11 + $0xc0] sm:$0xff]
    %v861 = vld [vmem:[#allocation11 + $0xc8] sm:$0xff]
    %v862 = vld [vmem:[#allocation11 + $0xd0] sm:$0xff]
    %v863 = vld [vmem:[#allocation11 + $0xd8] sm:$0xff]
    %v864 = vld [vmem:[#allocation11 + $0xe0] sm:$0xff]
    %v865 = vld [vmem:[#allocation11 + $0xe8] sm:$0xff]
    %v866 = vld [vmem:[#allocation11 + $0xf0] sm:$0xff]
    %v867 = vld [vmem:[#allocation11 + $0xf8] sm:$0xff]
    %v868 = vld [vmem:[#allocation11 + $0x100] sm:$0xff]
    %v869 = vld [vmem:[#allocation11 + $0x108] sm:$0xff]
    %v870 = vld [vmem:[#allocation11 + $0x110] sm:$0xff]
    %v871 = vld [vmem:[#allocation11 + $0x118] sm:$0xff]
    %v872 = vld [vmem:[#allocation11 + $0x120] sm:$0xff]
    %v873 = vld [vmem:[#allocation11 + $0x128] sm:$0xff]
    %v874 = vld [vmem:[#allocation11 + $0x130] sm:$0xff]
    %v875 = vld [vmem:[#allocation11 + $0x138] sm:$0xff]
    %v876 = vld [vmem:[#allocation11 + $0x140] sm:$0xff]
    %v877 = vld [vmem:[#allocation11 + $0x148] sm:$0xff]
    %v878 = vld [vmem:[#allocation11 + $0x150] sm:$0xff]
    %v879 = vld [vmem:[#allocation11 + $0x158] sm:$0xff]
    %v880 = vld [vmem:[#allocation11 + $0x160] sm:$0xff]
    %v881 = vld [vmem:[#allocation11 + $0x168] sm:$0xff]
    %v882 = vld [vmem:[#allocation11 + $0x170] sm:$0xff]
    %v883 = vld [vmem:[#allocation11 + $0x178] sm:$0xff]
    %v884 = vld [vmem:[#allocation14] sm:$0x7]
    %v886 = vlaneseq
    %v887 = vshrl.u32 %v886, 7
    %v888 = vsub.s32 0, %v887
    %v889 = vrot.slane %v884, %v888
    %v890 = vlaneseq
    %v891 = vshrl.u32 %v890, 7
    %v892 = vsub.s32 1, %v891
    %v893 = vrot.slane %v884, %v892
    %v894 = vlaneseq
    %v895 = vshrl.u32 %v894, 7
    %v896 = vsub.s32 2, %v895
    %v897 = vrot.slane %v884, %v896
    %901 = vmatprep.subr.mxu0 %v837
    %902 = vmatpush1.msra.mxu0 %v836
    %903 = vmatprep.subr.mxu0 %v840
    %904 = vmatpush1.msra.mxu0 %v839
    %905 = vmatprep.subr.mxu0 %v843
    %906 = vmatpush1.msra.mxu0 %v842
    %907 = vmatprep.subr.mxu0 %v846
    %908 = vmatpush1.msra.mxu0 %v845
    %909 = vmatprep.subr.mxu0 %v849
    %910 = vmatpush1.msra.mxu0 %v848
    %911 = vmatprep.subr.mxu0 %v852
    %912 = vmatpush1.msra.mxu0 %v851
    %913 = vmatprep.subr.mxu0 %v855
    %914 = vmatpush1.msra.mxu0 %v854
    %915 = vmatprep.subr.mxu0 %v858
    %916 = vmatpush1.msra.mxu0 %v857
    %917 = vmatprep.subr.mxu0 %v861
    %918 = vmatpush1.msra.mxu0 %v860
    %919 = vmatprep.subr.mxu0 %v864
    %920 = vmatpush1.msra.mxu0 %v863
    %921 = vmatprep.subr.mxu0 %v867
    %922 = vmatpush1.msra.mxu0 %v866
    %923 = vmatprep.subr.mxu0 %v870
    %924 = vmatpush1.msra.mxu0 %v869
    %925 = vmatprep.subr.mxu0 %v873
    %926 = vmatpush1.msra.mxu0 %v872
    %927 = vmatprep.subr.mxu0 %v876
    %928 = vmatpush1.msra.mxu0 %v875
    %929 = vmatprep.subr.mxu0 %v879
    %930 = vmatpush1.msra.mxu0 %v878
    %931 = vmatprep.subr.mxu0 %v882
    %932 = vmatpush1.msra.mxu0 %v881
    %933 = vmatprep.subr.mxu0 0.0
    %934 = vmatpush1.msra.mxu0 0.0
    %935 = vmatprep.subr.mxu0 0.0
    %936 = vmatpush1.msra.mxu0 0.0
    %937 = vmatprep.subr.mxu0 0.0
    %938 = vmatpush1.msra.mxu0 0.0
    %939 = vmatprep.subr.mxu0 0.0
    %940 = vmatpush1.msra.mxu0 0.0
    %941 = vmatprep.subr.mxu0 0.0
    %942 = vmatpush1.msra.mxu0 0.0
    %943 = vmatprep.subr.mxu0 0.0
    %944 = vmatpush1.msra.mxu0 0.0
    %945 = vmatprep.subr.mxu0 0.0
    %946 = vmatpush1.msra.mxu0 0.0
    %947 = vmatprep.subr.mxu0 0.0
    %948 = vmatpush1.msra.mxu0 0.0
    %949 = vmatprep.subr.mxu0 0.0
    %950 = vmatpush1.msra.mxu0 0.0
    %951 = vmatprep.subr.mxu0 0.0
    %952 = vmatpush1.msra.mxu0 0.0
    %953 = vmatprep.subr.mxu0 0.0
    %954 = vmatpush1.msra.mxu0 0.0
    %955 = vmatprep.subr.mxu0 0.0
    %956 = vmatpush1.msra.mxu0 0.0
    %957 = vmatprep.subr.mxu0 0.0
    %958 = vmatpush1.msra.mxu0 0.0
    %959 = vmatprep.subr.mxu0 0.0
    %960 = vmatpush1.msra.mxu0 0.0
    %961 = vmatprep.subr.mxu0 0.0
    %962 = vmatpush1.msra.mxu0 0.0
    %963 = vmatprep.subr.mxu0 0.0
    %964 = vmatpush1.msra.mxu0 0.0
    %965 = vmatprep.mubr.f32.mxu0 0.0
    %966 = vmatmul.mubr.f32.gmra.mrb[0].mxu0 %v835
    %v967 = vpop.f32.mrb[0].mxu0
    %v968 = vadd.f32 %v889, %v967
    %v969 = vpop.f32.mrb[0].mxu0
    %v970 = vadd.f32 %v893, %v969
    %971 = vdwg.mxu0
    %972 = vmatprep.subr.mxu0 0.0
    %973 = vmatpush1.msra.mxu0 %v838
    %974 = vmatprep.subr.mxu0 0.0
    %975 = vmatpush1.msra.mxu0 %v841
    %976 = vmatprep.subr.mxu0 0.0
    %977 = vmatpush1.msra.mxu0 %v844
    %978 = vmatprep.subr.mxu0 0.0
    %979 = vmatpush1.msra.mxu0 %v847
    %980 = vmatprep.subr.mxu0 0.0
    %981 = vmatpush1.msra.mxu0 %v850
    %982 = vmatprep.subr.mxu0 0.0
    %983 = vmatpush1.msra.mxu0 %v853
    %984 = vmatprep.subr.mxu0 0.0
    %985 = vmatpush1.msra.mxu0 %v856
    %986 = vmatprep.subr.mxu0 0.0
    %987 = vmatpush1.msra.mxu0 %v859
    %988 = vmatprep.subr.mxu0 0.0
    %989 = vmatpush1.msra.mxu0 %v862
    %990 = vmatprep.subr.mxu0 0.0
    %991 = vmatpush1.msra.mxu0 %v865
    %992 = vmatprep.subr.mxu0 0.0
    %993 = vmatpush1.msra.mxu0 %v868
    %994 = vmatprep.subr.mxu0 0.0
    %995 = vmatpush1.msra.mxu0 %v871
    %996 = vmatprep.subr.mxu0 0.0
    %997 = vmatpush1.msra.mxu0 %v874
    %998 = vmatprep.subr.mxu0 0.0
    %999 = vmatpush1.msra.mxu0 %v877
    %1000 = vmatprep.subr.mxu0 0.0
    %1001 = vmatpush1.msra.mxu0 %v880
    %1002 = vmatprep.subr.mxu0 0.0
    %1003 = vmatpush1.msra.mxu0 %v883
    %1004 = vmatprep.subr.mxu0 0.0
    %1005 = vmatpush1.msra.mxu0 0.0
    %1006 = vmatprep.subr.mxu0 0.0
    %1007 = vmatpush1.msra.mxu0 0.0
    %1008 = vmatprep.subr.mxu0 0.0
    %1009 = vmatpush1.msra.mxu0 0.0
    %1010 = vmatprep.subr.mxu0 0.0
    %1011 = vmatpush1.msra.mxu0 0.0
    %1012 = vmatprep.subr.mxu0 0.0
    %1013 = vmatpush1.msra.mxu0 0.0
    %1014 = vmatprep.subr.mxu0 0.0
    %1015 = vmatpush1.msra.mxu0 0.0
    %1016 = vmatprep.subr.mxu0 0.0
    %1017 = vmatpush1.msra.mxu0 0.0
    %1018 = vmatprep.subr.mxu0 0.0
    %1019 = vmatpush1.msra.mxu0 0.0
    %1020 = vmatprep.subr.mxu0 0.0
    %1021 = vmatpush1.msra.mxu0 0.0
    %1022 = vmatprep.subr.mxu0 0.0
    %1023 = vmatpush1.msra.mxu0 0.0
    %1024 = vmatprep.subr.mxu0 0.0
    %1025 = vmatpush1.msra.mxu0 0.0
    %1026 = vmatprep.subr.mxu0 0.0
    %1027 = vmatpush1.msra.mxu0 0.0
    %1028 = vmatprep.subr.mxu0 0.0
    %1029 = vmatpush1.msra.mxu0 0.0
    %1030 = vmatprep.subr.mxu0 0.0
    %1031 = vmatpush1.msra.mxu0 0.0
    %1032 = vmatprep.subr.mxu0 0.0
    %1033 = vmatpush1.msra.mxu0 0.0
    %1034 = vmatprep.subr.mxu0 0.0
    %1035 = vmatpush1.msra.mxu0 0.0
    %1036 = vmatprep.mubr.f32.mxu0 0.0
    %1037 = vmatmul.mubr.f32.gmra.mrb[0].mxu0 %v835
    %v1038 = vpop.f32.mrb[0].mxu0
    %v1039 = vadd.f32 %v897, %v1038
    %v1040 = vpop.f32.mrb[0].mxu0
    %1041 = vdwg.mxu0
    %v1042 = vld [vmem:[#allocation2 + $0x18] sm:$0xff]
    %v1043 = vld [vmem:[#allocation2 + $0x20] sm:$0xff]
    %v1044 = vld [vmem:[#allocation2 + $0x28] sm:$0xff]
    %1045 = vmatprep.subr.mxu0 %v610
    %1046 = vmatpush1.msra.mxu0 %v609
    %1047 = vmatprep.subr.mxu0 %v613
    %1048 = vmatpush1.msra.mxu0 %v612
    %1049 = vmatprep.subr.mxu0 %v616
    %1050 = vmatpush1.msra.mxu0 %v615
    %1051 = vmatprep.subr.mxu0 %v619
    %1052 = vmatpush1.msra.mxu0 %v618
    %1053 = vmatprep.subr.mxu0 %v622
    %1054 = vmatpush1.msra.mxu0 %v621
    %1055 = vmatprep.subr.mxu0 %v625
    %1056 = vmatpush1.msra.mxu0 %v624
    %1057 = vmatprep.subr.mxu0 %v628
    %1058 = vmatpush1.msra.mxu0 %v627
    %1059 = vmatprep.subr.mxu0 %v631
    %1060 = vmatpush1.msra.mxu0 %v630
    %1061 = vmatprep.subr.mxu0 %v634
    %1062 = vmatpush1.msra.mxu0 %v633
    %1063 = vmatprep.subr.mxu0 %v637
    %1064 = vmatpush1.msra.mxu0 %v636
    %1065 = vmatprep.subr.mxu0 %v640
    %1066 = vmatpush1.msra.mxu0 %v639
    %1067 = vmatprep.subr.mxu0 %v643
    %1068 = vmatpush1.msra.mxu0 %v642
    %1069 = vmatprep.subr.mxu0 %v646
    %1070 = vmatpush1.msra.mxu0 %v645
    %1071 = vmatprep.subr.mxu0 %v649
    %1072 = vmatpush1.msra.mxu0 %v648
    %1073 = vmatprep.subr.mxu0 %v652
    %1074 = vmatpush1.msra.mxu0 %v651
    %1075 = vmatprep.subr.mxu0 %v655
    %1076 = vmatpush1.msra.mxu0 %v654
    %1077 = vmatprep.subr.mxu0 0.0
    %1078 = vmatpush1.msra.mxu0 0.0
    %1079 = vmatprep.subr.mxu0 0.0
    %1080 = vmatpush1.msra.mxu0 0.0
    %1081 = vmatprep.subr.mxu0 0.0
    %1082 = vmatpush1.msra.mxu0 0.0
    %1083 = vmatprep.subr.mxu0 0.0
    %1084 = vmatpush1.msra.mxu0 0.0
    %1085 = vmatprep.subr.mxu0 0.0
    %1086 = vmatpush1.msra.mxu0 0.0
    %1087 = vmatprep.subr.mxu0 0.0
    %1088 = vmatpush1.msra.mxu0 0.0
    %1089 = vmatprep.subr.mxu0 0.0
    %1090 = vmatpush1.msra.mxu0 0.0
    %1091 = vmatprep.subr.mxu0 0.0
    %1092 = vmatpush1.msra.mxu0 0.0
    %1093 = vmatprep.subr.mxu0 0.0
    %1094 = vmatpush1.msra.mxu0 0.0
    %1095 = vmatprep.subr.mxu0 0.0
    %1096 = vmatpush1.msra.mxu0 0.0
    %1097 = vmatprep.subr.mxu0 0.0
    %1098 = vmatpush1.msra.mxu0 0.0
    %1099 = vmatprep.subr.mxu0 0.0
    %1100 = vmatpush1.msra.mxu0 0.0
    %1101 = vmatprep.subr.mxu0 0.0
    %1102 = vmatpush1.msra.mxu0 0.0
    %1103 = vmatprep.subr.mxu0 0.0
    %1104 = vmatpush1.msra.mxu0 0.0
    %1105 = vmatprep.subr.mxu0 0.0
    %1106 = vmatpush1.msra.mxu0 0.0
    %1107 = vmatprep.subr.mxu0 0.0
    %1108 = vmatpush1.msra.mxu0 0.0
    %1109 = vmatprep.mubr.f32.mxu0 0.0
    %1110 = vmatmul.mubr.f32.gmra.mrb[0].mxu0 %v835
    %v1111 = vpop.f32.mrb[0].mxu0
    %v1112 = vadd.f32 %v662, %v1111
    %v1113 = vpop.f32.mrb[0].mxu0
    %v1114 = vadd.f32 %v666, %v1113
    %1115 = vdwg.mxu0
    %1116 = vmatprep.subr.mxu0 0.0
    %1117 = vmatpush1.msra.mxu0 %v611
    %1118 = vmatprep.subr.mxu0 0.0
    %1119 = vmatpush1.msra.mxu0 %v614
    %1120 = vmatprep.subr.mxu0 0.0
    %1121 = vmatpush1.msra.mxu0 %v617
    %1122 = vmatprep.subr.mxu0 0.0
    %1123 = vmatpush1.msra.mxu0 %v620
    %1124 = vmatprep.subr.mxu0 0.0
    %1125 = vmatpush1.msra.mxu0 %v623
    %1126 = vmatprep.subr.mxu0 0.0
    %1127 = vmatpush1.msra.mxu0 %v626
    %1128 = vmatprep.subr.mxu0 0.0
    %1129 = vmatpush1.msra.mxu0 %v629
    %1130 = vmatprep.subr.mxu0 0.0
    %1131 = vmatpush1.msra.mxu0 %v632
    %1132 = vmatprep.subr.mxu0 0.0
    %1133 = vmatpush1.msra.mxu0 %v635
    %1134 = vmatprep.subr.mxu0 0.0
    %1135 = vmatpush1.msra.mxu0 %v638
    %1136 = vmatprep.subr.mxu0 0.0
    %1137 = vmatpush1.msra.mxu0 %v641
    %1138 = vmatprep.subr.mxu0 0.0
    %1139 = vmatpush1.msra.mxu0 %v644
    %1140 = vmatprep.subr.mxu0 0.0
    %1141 = vmatpush1.msra.mxu0 %v647
    %1142 = vmatprep.subr.mxu0 0.0
    %1143 = vmatpush1.msra.mxu0 %v650
    %1144 = vmatprep.subr.mxu0 0.0
    %1145 = vmatpush1.msra.mxu0 %v653
    %1146 = vmatprep.subr.mxu0 0.0
    %1147 = vmatpush1.msra.mxu0 %v656
    %1148 = vmatprep.subr.mxu0 0.0
    %1149 = vmatpush1.msra.mxu0 0.0
    %1150 = vmatprep.subr.mxu0 0.0
    %1151 = vmatpush1.msra.mxu0 0.0
    %1152 = vmatprep.subr.mxu0 0.0
    %1153 = vmatpush1.msra.mxu0 0.0
    %1154 = vmatprep.subr.mxu0 0.0
    %1155 = vmatpush1.msra.mxu0 0.0
    %1156 = vmatprep.subr.mxu0 0.0
    %1157 = vmatpush1.msra.mxu0 0.0
    %1158 = vmatprep.subr.mxu0 0.0
    %1159 = vmatpush1.msra.mxu0 0.0
    %1160 = vmatprep.subr.mxu0 0.0
    %1161 = vmatpush1.msra.mxu0 0.0
    %1162 = vmatprep.subr.mxu0 0.0
    %1163 = vmatpush1.msra.mxu0 0.0
    %1164 = vmatprep.subr.mxu0 0.0
    %1165 = vmatpush1.msra.mxu0 0.0
    %1166 = vmatprep.subr.mxu0 0.0
    %1167 = vmatpush1.msra.mxu0 0.0
    %1168 = vmatprep.subr.mxu0 0.0
    %1169 = vmatpush1.msra.mxu0 0.0
    %1170 = vmatprep.subr.mxu0 0.0
    %1171 = vmatpush1.msra.mxu0 0.0
    %1172 = vmatprep.subr.mxu0 0.0
    %1173 = vmatpush1.msra.mxu0 0.0
    %1174 = vmatprep.subr.mxu0 0.0
    %1175 = vmatpush1.msra.mxu0 0.0
    %1176 = vmatprep.subr.mxu0 0.0
    %1177 = vmatpush1.msra.mxu0 0.0
    %1178 = vmatprep.subr.mxu0 0.0
    %1179 = vmatpush1.msra.mxu0 0.0
    %1180 = vmatprep.mubr.f32.mxu0 0.0
    %1181 = vmatmul.mubr.f32.gmra.mrb[0].mxu0 %v835
    %v1182 = vpop.f32.mrb[0].mxu0
    %v1183 = vadd.f32 %v670, %v1182
    %v1184 = vpop.f32.mrb[0].mxu0
    %1185 = vdwg.mxu0
    %v1186 = vadd.f32 %v1042, %v1112
    %v1187 = vadd.f32 %v1043, %v1114
    %v1188 = vxor.u32 %v1186, 2147483648
    %v1189 = vxor.u32 %v1187, 2147483648
    %v1190 = vmul.f32 %v1188, 1.442695
    %v1191 = vpow.pop %v1190
    %v1192 = vmul.f32 %v1189, 1.442695
    %v1193 = vpow.pop %v1192
    %v1194 = vadd.f32 %v1191, 1.0
    %v1195 = vadd.f32 %v1193, 1.0
    %v1196 = vrcp.pop %v1194
    %v1197 = vmul.f32 1.0, %v1196
    %v1198 = vrcp.pop %v1195
    %v1199 = vmul.f32 1.0, %v1198
    %v1200 = vmul.f32 %v1197, %v1183
    %v1201 = vadd.f32 %v1044, %v1200
    %v1202 = vtanh.pop %v1201
    %v1203 = vsub.f32 1.0, %v1199
    %v1204 = vmul.f32 %v1203, %v1202
    %v1205 = vmul.f32 %v1199, %v835
    %v1206 = vadd.f32 %v1204, %v1205
    %v1207 = vld [vmem:[#allocation12] sm:$0xff]
    %v1208 = vld [vmem:[#allocation12 + $0x8] sm:$0xff]
    %v1209 = vld [vmem:[#allocation12 + $0x10] sm:$0xff]
    %v1210 = vld [vmem:[#allocation12 + $0x18] sm:$0xff]
    %v1211 = vld [vmem:[#allocation12 + $0x20] sm:$0xff]
    %v1212 = vld [vmem:[#allocation12 + $0x28] sm:$0xff]
    %v1213 = vld [vmem:[#allocation12 + $0x30] sm:$0xff]
    %v1214 = vld [vmem:[#allocation12 + $0x38] sm:$0xff]
    %v1215 = vld [vmem:[#allocation12 + $0x40] sm:$0xff]
    %v1216 = vld [vmem:[#allocation12 + $0x48] sm:$0xff]
    %v1217 = vld [vmem:[#allocation12 + $0x50] sm:$0xff]
    %v1218 = vld [vmem:[#allocation12 + $0x58] sm:$0xff]
    %v1219 = vld [vmem:[#allocation12 + $0x60] sm:$0xff]
    %v1220 = vld [vmem:[#allocation12 + $0x68] sm:$0xff]
    %v1221 = vld [vmem:[#allocation12 + $0x70] sm:$0xff]
    %v1222 = vld [vmem:[#allocation12 + $0x78] sm:$0xff]
    %v1223 = vld [vmem:[#allocation12 + $0x80] sm:$0xff]
    %v1224 = vld [vmem:[#allocation12 + $0x88] sm:$0xff]
    %v1225 = vld [vmem:[#allocation12 + $0x90] sm:$0xff]
    %v1226 = vld [vmem:[#allocation12 + $0x98] sm:$0xff]
    %v1227 = vld [vmem:[#allocation12 + $0xa0] sm:$0xff]
    %v1228 = vld [vmem:[#allocation12 + $0xa8] sm:$0xff]
    %v1229 = vld [vmem:[#allocation12 + $0xb0] sm:$0xff]
    %v1230 = vld [vmem:[#allocation12 + $0xb8] sm:$0xff]
    %v1231 = vld [vmem:[#allocation12 + $0xc0] sm:$0xff]
    %v1232 = vld [vmem:[#allocation12 + $0xc8] sm:$0xff]
    %v1233 = vld [vmem:[#allocation12 + $0xd0] sm:$0xff]
    %v1234 = vld [vmem:[#allocation12 + $0xd8] sm:$0xff]
    %v1235 = vld [vmem:[#allocation12 + $0xe0] sm:$0xff]
    %v1236 = vld [vmem:[#allocation12 + $0xe8] sm:$0xff]
    %v1237 = vld [vmem:[#allocation12 + $0xf0] sm:$0xff]
    %v1238 = vld [vmem:[#allocation12 + $0xf8] sm:$0xff]
    %v1239 = vld [vmem:[#allocation12 + $0x100] sm:$0xff]
    %v1240 = vld [vmem:[#allocation12 + $0x108] sm:$0xff]
    %v1241 = vld [vmem:[#allocation12 + $0x110] sm:$0xff]
    %v1242 = vld [vmem:[#allocation12 + $0x118] sm:$0xff]
    %v1243 = vld [vmem:[#allocation12 + $0x120] sm:$0xff]
    %v1244 = vld [vmem:[#allocation12 + $0x128] sm:$0xff]
    %v1245 = vld [vmem:[#allocation12 + $0x130] sm:$0xff]
    %v1246 = vld [vmem:[#allocation12 + $0x138] sm:$0xff]
    %v1247 = vld [vmem:[#allocation12 + $0x140] sm:$0xff]
    %v1248 = vld [vmem:[#allocation12 + $0x148] sm:$0xff]
    %v1249 = vld [vmem:[#allocation12 + $0x150] sm:$0xff]
    %v1250 = vld [vmem:[#allocation12 + $0x158] sm:$0xff]
    %v1251 = vld [vmem:[#allocation12 + $0x160] sm:$0xff]
    %v1252 = vld [vmem:[#allocation12 + $0x168] sm:$0xff]
    %v1253 = vld [vmem:[#allocation12 + $0x170] sm:$0xff]
    %v1254 = vld [vmem:[#allocation12 + $0x178] sm:$0xff]
    %v1255 = vld [vmem:[#allocation15] sm:$0x7]
    %v1257 = vlaneseq
    %v1258 = vshrl.u32 %v1257, 7
    %v1259 = vsub.s32 0, %v1258
    %v1260 = vrot.slane %v1255, %v1259
    %v1261 = vlaneseq
    %v1262 = vshrl.u32 %v1261, 7
    %v1263 = vsub.s32 1, %v1262
    %v1264 = vrot.slane %v1255, %v1263
    %v1265 = vlaneseq
    %v1266 = vshrl.u32 %v1265, 7
    %v1267 = vsub.s32 2, %v1266
    %v1268 = vrot.slane %v1255, %v1267
    %1272 = vmatprep.subr.mxu0 %v1208
    %1273 = vmatpush1.msra.mxu0 %v1207
    %1274 = vmatprep.subr.mxu0 %v1211
    %1275 = vmatpush1.msra.mxu0 %v1210
    %1276 = vmatprep.subr.mxu0 %v1214
    %1277 = vmatpush1.msra.mxu0 %v1213
    %1278 = vmatprep.subr.mxu0 %v1217
    %1279 = vmatpush1.msra.mxu0 %v1216
    %1280 = vmatprep.subr.mxu0 %v1220
    %1281 = vmatpush1.msra.mxu0 %v1219
    %1282 = vmatprep.subr.mxu0 %v1223
    %1283 = vmatpush1.msra.mxu0 %v1222
    %1284 = vmatprep.subr.mxu0 %v1226
    %1285 = vmatpush1.msra.mxu0 %v1225
    %1286 = vmatprep.subr.mxu0 %v1229
    %1287 = vmatpush1.msra.mxu0 %v1228
    %1288 = vmatprep.subr.mxu0 %v1232
    %1289 = vmatpush1.msra.mxu0 %v1231
    %1290 = vmatprep.subr.mxu0 %v1235
    %1291 = vmatpush1.msra.mxu0 %v1234
    %1292 = vmatprep.subr.mxu0 %v1238
    %1293 = vmatpush1.msra.mxu0 %v1237
    %1294 = vmatprep.subr.mxu0 %v1241
    %1295 = vmatpush1.msra.mxu0 %v1240
    %1296 = vmatprep.subr.mxu0 %v1244
    %1297 = vmatpush1.msra.mxu0 %v1243
    %1298 = vmatprep.subr.mxu0 %v1247
    %1299 = vmatpush1.msra.mxu0 %v1246
    %1300 = vmatprep.subr.mxu0 %v1250
    %1301 = vmatpush1.msra.mxu0 %v1249
    %1302 = vmatprep.subr.mxu0 %v1253
    %1303 = vmatpush1.msra.mxu0 %v1252
    %1304 = vmatprep.subr.mxu0 0.0
    %1305 = vmatpush1.msra.mxu0 0.0
    %1306 = vmatprep.subr.mxu0 0.0
    %1307 = vmatpush1.msra.mxu0 0.0
    %1308 = vmatprep.subr.mxu0 0.0
    %1309 = vmatpush1.msra.mxu0 0.0
    %1310 = vmatprep.subr.mxu0 0.0
    %1311 = vmatpush1.msra.mxu0 0.0
    %1312 = vmatprep.subr.mxu0 0.0
    %1313 = vmatpush1.msra.mxu0 0.0
    %1314 = vmatprep.subr.mxu0 0.0
    %1315 = vmatpush1.msra.mxu0 0.0
    %1316 = vmatprep.subr.mxu0 0.0
    %1317 = vmatpush1.msra.mxu0 0.0
    %1318 = vmatprep.subr.mxu0 0.0
    %1319 = vmatpush1.msra.mxu0 0.0
    %1320 = vmatprep.subr.mxu0 0.0
    %1321 = vmatpush1.msra.mxu0 0.0
    %1322 = vmatprep.subr.mxu0 0.0
    %1323 = vmatpush1.msra.mxu0 0.0
    %1324 = vmatprep.subr.mxu0 0.0
    %1325 = vmatpush1.msra.mxu0 0.0
    %1326 = vmatprep.subr.mxu0 0.0
    %1327 = vmatpush1.msra.mxu0 0.0
    %1328 = vmatprep.subr.mxu0 0.0
    %1329 = vmatpush1.msra.mxu0 0.0
    %1330 = vmatprep.subr.mxu0 0.0
    %1331 = vmatpush1.msra.mxu0 0.0
    %1332 = vmatprep.subr.mxu0 0.0
    %1333 = vmatpush1.msra.mxu0 0.0
    %1334 = vmatprep.subr.mxu0 0.0
    %1335 = vmatpush1.msra.mxu0 0.0
    %1336 = vmatprep.mubr.f32.mxu0 0.0
    %1337 = vmatmul.mubr.f32.gmra.mrb[0].mxu0 %v605
    %v1338 = vpop.f32.mrb[0].mxu0
    %v1339 = vadd.f32 %v1260, %v1338
    %v1340 = vpop.f32.mrb[0].mxu0
    %v1341 = vadd.f32 %v1264, %v1340
    %1342 = vdwg.mxu0
    %1343 = vmatprep.subr.mxu0 0.0
    %1344 = vmatpush1.msra.mxu0 %v1209
    %1345 = vmatprep.subr.mxu0 0.0
    %1346 = vmatpush1.msra.mxu0 %v1212
    %1347 = vmatprep.subr.mxu0 0.0
    %1348 = vmatpush1.msra.mxu0 %v1215
    %1349 = vmatprep.subr.mxu0 0.0
    %1350 = vmatpush1.msra.mxu0 %v1218
    %1351 = vmatprep.subr.mxu0 0.0
    %1352 = vmatpush1.msra.mxu0 %v1221
    %1353 = vmatprep.subr.mxu0 0.0
    %1354 = vmatpush1.msra.mxu0 %v1224
    %1355 = vmatprep.subr.mxu0 0.0
    %1356 = vmatpush1.msra.mxu0 %v1227
    %1357 = vmatprep.subr.mxu0 0.0
    %1358 = vmatpush1.msra.mxu0 %v1230
    %1359 = vmatprep.subr.mxu0 0.0
    %1360 = vmatpush1.msra.mxu0 %v1233
    %1361 = vmatprep.subr.mxu0 0.0
    %1362 = vmatpush1.msra.mxu0 %v1236
    %1363 = vmatprep.subr.mxu0 0.0
    %1364 = vmatpush1.msra.mxu0 %v1239
    %1365 = vmatprep.subr.mxu0 0.0
    %1366 = vmatpush1.msra.mxu0 %v1242
    %1367 = vmatprep.subr.mxu0 0.0
    %1368 = vmatpush1.msra.mxu0 %v1245
    %1369 = vmatprep.subr.mxu0 0.0
    %1370 = vmatpush1.msra.mxu0 %v1248
    %1371 = vmatprep.subr.mxu0 0.0
    %1372 = vmatpush1.msra.mxu0 %v1251
    %1373 = vmatprep.subr.mxu0 0.0
    %1374 = vmatpush1.msra.mxu0 %v1254
    %1375 = vmatprep.subr.mxu0 0.0
    %1376 = vmatpush1.msra.mxu0 0.0
    %1377 = vmatprep.subr.mxu0 0.0
    %1378 = vmatpush1.msra.mxu0 0.0
    %1379 = vmatprep.subr.mxu0 0.0
    %1380 = vmatpush1.msra.mxu0 0.0
    %1381 = vmatprep.subr.mxu0 0.0
    %1382 = vmatpush1.msra.mxu0 0.0
    %1383 = vmatprep.subr.mxu0 0.0
    %1384 = vmatpush1.msra.mxu0 0.0
    %1385 = vmatprep.subr.mxu0 0.0
    %1386 = vmatpush1.msra.mxu0 0.0
    %1387 = vmatprep.subr.mxu0 0.0
    %1388 = vmatpush1.msra.mxu0 0.0
    %1389 = vmatprep.subr.mxu0 0.0
    %1390 = vmatpush1.msra.mxu0 0.0
    %1391 = vmatprep.subr.mxu0 0.0
    %1392 = vmatpush1.msra.mxu0 0.0
    %1393 = vmatprep.subr.mxu0 0.0
    %1394 = vmatpush1.msra.mxu0 0.0
    %1395 = vmatprep.subr.mxu0 0.0
    %1396 = vmatpush1.msra.mxu0 0.0
    %1397 = vmatprep.subr.mxu0 0.0
    %1398 = vmatpush1.msra.mxu0 0.0
    %1399 = vmatprep.subr.mxu0 0.0
    %1400 = vmatpush1.msra.mxu0 0.0
    %1401 = vmatprep.subr.mxu0 0.0
    %1402 = vmatpush1.msra.mxu0 0.0
    %1403 = vmatprep.subr.mxu0 0.0
    %1404 = vmatpush1.msra.mxu0 0.0
    %1405 = vmatprep.subr.mxu0 0.0
    %1406 = vmatpush1.msra.mxu0 0.0
    %1407 = vmatprep.mubr.f32.mxu0 0.0
    %1408 = vmatmul.mubr.f32.gmra.mrb[0].mxu0 %v605
    %v1409 = vpop.f32.mrb[0].mxu0
    %v1410 = vadd.f32 %v1268, %v1409
    %v1411 = vpop.f32.mrb[0].mxu0
    %1412 = vdwg.mxu0
    %v1413 = vadd.f32 %v968, %v1339
    %v1414 = vadd.f32 %v970, %v1341
    %v1415 = vxor.u32 %v1413, 2147483648
    %v1416 = vxor.u32 %v1414, 2147483648
    %v1417 = vmul.f32 %v1415, 1.442695
    %v1418 = vpow.pop %v1417
    %v1419 = vmul.f32 %v1416, 1.442695
    %v1420 = vpow.pop %v1419
    %v1421 = vadd.f32 %v1418, 1.0
    %v1422 = vadd.f32 %v1420, 1.0
    %v1423 = vrcp.pop %v1421
    %v1424 = vmul.f32 1.0, %v1423
    %v1425 = vrcp.pop %v1422
    %v1426 = vmul.f32 1.0, %v1425
    %v1427 = vmul.f32 %v1424, %v1410
    %v1428 = vadd.f32 %v1039, %v1427
    %v1429 = vtanh.pop %v1428
    %v1430 = vsub.f32 1.0, %v1426
    %v1431 = vmul.f32 %v1430, %v1429
    %v1432 = vmul.f32 %v1426, %v605
    %v1433 = vadd.f32 %v1431, %v1432
    %1434 = vmatprep.subr.mxu0 %v837
    %1435 = vmatpush1.msra.mxu0 %v836
    %1436 = vmatprep.subr.mxu0 %v840
    %1437 = vmatpush1.msra.mxu0 %v839
    %1438 = vmatprep.subr.mxu0 %v843
    %1439 = vmatpush1.msra.mxu0 %v842
    %1440 = vmatprep.subr.mxu0 %v846
    %1441 = vmatpush1.msra.mxu0 %v845
    %1442 = vmatprep.subr.mxu0 %v849
    %1443 = vmatpush1.msra.mxu0 %v848
    %1444 = vmatprep.subr.mxu0 %v852
    %1445 = vmatpush1.msra.mxu0 %v851
    %1446 = vmatprep.subr.mxu0 %v855
    %1447 = vmatpush1.msra.mxu0 %v854
    %1448 = vmatprep.subr.mxu0 %v858
    %1449 = vmatpush1.msra.mxu0 %v857
    %1450 = vmatprep.subr.mxu0 %v861
    %1451 = vmatpush1.msra.mxu0 %v860
    %1452 = vmatprep.subr.mxu0 %v864
    %1453 = vmatpush1.msra.mxu0 %v863
    %1454 = vmatprep.subr.mxu0 %v867
    %1455 = vmatpush1.msra.mxu0 %v866
    %1456 = vmatprep.subr.mxu0 %v870
    %1457 = vmatpush1.msra.mxu0 %v869
    %1458 = vmatprep.subr.mxu0 %v873
    %1459 = vmatpush1.msra.mxu0 %v872
    %1460 = vmatprep.subr.mxu0 %v876
    %1461 = vmatpush1.msra.mxu0 %v875
    %1462 = vmatprep.subr.mxu0 %v879
    %1463 = vmatpush1.msra.mxu0 %v878
    %1464 = vmatprep.subr.mxu0 %v882
    %1465 = vmatpush1.msra.mxu0 %v881
    %1466 = vmatprep.subr.mxu0 0.0
    %1467 = vmatpush1.msra.mxu0 0.0
    %1468 = vmatprep.subr.mxu0 0.0
    %1469 = vmatpush1.msra.mxu0 0.0
    %1470 = vmatprep.subr.mxu0 0.0
    %1471 = vmatpush1.msra.mxu0 0.0
    %1472 = vmatprep.subr.mxu0 0.0
    %1473 = vmatpush1.msra.mxu0 0.0
    %1474 = vmatprep.subr.mxu0 0.0
    %1475 = vmatpush1.msra.mxu0 0.0
    %1476 = vmatprep.subr.mxu0 0.0
    %1477 = vmatpush1.msra.mxu0 0.0
    %1478 = vmatprep.subr.mxu0 0.0
    %1479 = vmatpush1.msra.mxu0 0.0
    %1480 = vmatprep.subr.mxu0 0.0
    %1481 = vmatpush1.msra.mxu0 0.0
    %1482 = vmatprep.subr.mxu0 0.0
    %1483 = vmatpush1.msra.mxu0 0.0
    %1484 = vmatprep.subr.mxu0 0.0
    %1485 = vmatpush1.msra.mxu0 0.0
    %1486 = vmatprep.subr.mxu0 0.0
    %1487 = vmatpush1.msra.mxu0 0.0
    %1488 = vmatprep.subr.mxu0 0.0
    %1489 = vmatpush1.msra.mxu0 0.0
    %1490 = vmatprep.subr.mxu0 0.0
    %1491 = vmatpush1.msra.mxu0 0.0
    %1492 = vmatprep.subr.mxu0 0.0
    %1493 = vmatpush1.msra.mxu0 0.0
    %1494 = vmatprep.subr.mxu0 0.0
    %1495 = vmatpush1.msra.mxu0 0.0
    %1496 = vmatprep.subr.mxu0 0.0
    %1497 = vmatpush1.msra.mxu0 0.0
    %1498 = vmatprep.mubr.f32.mxu0 0.0
    %1499 = vmatmul.mubr.f32.gmra.mrb[0].mxu0 %v1206
    %v1500 = vpop.f32.mrb[0].mxu0
    %v1501 = vadd.f32 %v889, %v1500
    %v1502 = vpop.f32.mrb[0].mxu0
    %v1503 = vadd.f32 %v893, %v1502
    %1504 = vdwg.mxu0
    %1505 = vmatprep.subr.mxu0 0.0
    %1506 = vmatpush1.msra.mxu0 %v838
    %1507 = vmatprep.subr.mxu0 0.0
    %1508 = vmatpush1.msra.mxu0 %v841
    %1509 = vmatprep.subr.mxu0 0.0
    %1510 = vmatpush1.msra.mxu0 %v844
    %1511 = vmatprep.subr.mxu0 0.0
    %1512 = vmatpush1.msra.mxu0 %v847
    %1513 = vmatprep.subr.mxu0 0.0
    %1514 = vmatpush1.msra.mxu0 %v850
    %1515 = vmatprep.subr.mxu0 0.0
    %1516 = vmatpush1.msra.mxu0 %v853
    %1517 = vmatprep.subr.mxu0 0.0
    %1518 = vmatpush1.msra.mxu0 %v856
    %1519 = vmatprep.subr.mxu0 0.0
    %1520 = vmatpush1.msra.mxu0 %v859
    %1521 = vmatprep.subr.mxu0 0.0
    %1522 = vmatpush1.msra.mxu0 %v862
    %1523 = vmatprep.subr.mxu0 0.0
    %1524 = vmatpush1.msra.mxu0 %v865
    %1525 = vmatprep.subr.mxu0 0.0
    %1526 = vmatpush1.msra.mxu0 %v868
    %1527 = vmatprep.subr.mxu0 0.0
    %1528 = vmatpush1.msra.mxu0 %v871
    %1529 = vmatprep.subr.mxu0 0.0
    %1530 = vmatpush1.msra.mxu0 %v874
    %1531 = vmatprep.subr.mxu0 0.0
    %1532 = vmatpush1.msra.mxu0 %v877
    %1533 = vmatprep.subr.mxu0 0.0
    %1534 = vmatpush1.msra.mxu0 %v880
    %1535 = vmatprep.subr.mxu0 0.0
    %1536 = vmatpush1.msra.mxu0 %v883
    %1537 = vmatprep.subr.mxu0 0.0
    %1538 = vmatpush1.msra.mxu0 0.0
    %1539 = vmatprep.subr.mxu0 0.0
    %1540 = vmatpush1.msra.mxu0 0.0
    %1541 = vmatprep.subr.mxu0 0.0
    %1542 = vmatpush1.msra.mxu0 0.0
    %1543 = vmatprep.subr.mxu0 0.0
    %1544 = vmatpush1.msra.mxu0 0.0
    %1545 = vmatprep.subr.mxu0 0.0
    %1546 = vmatpush1.msra.mxu0 0.0
    %1547 = vmatprep.subr.mxu0 0.0
    %1548 = vmatpush1.msra.mxu0 0.0
    %1549 = vmatprep.subr.mxu0 0.0
    %1550 = vmatpush1.msra.mxu0 0.0
    %1551 = vmatprep.subr.mxu0 0.0
    %1552 = vmatpush1.msra.mxu0 0.0
    %1553 = vmatprep.subr.mxu0 0.0
    %1554 = vmatpush1.msra.mxu0 0.0
    %1555 = vmatprep.subr.mxu0 0.0
    %1556 = vmatpush1.msra.mxu0 0.0
    %1557 = vmatprep.subr.mxu0 0.0
    %1558 = vmatpush1.msra.mxu0 0.0
    %1559 = vmatprep.subr.mxu0 0.0
    %1560 = vmatpush1.msra.mxu0 0.0
    %1561 = vmatprep.subr.mxu0 0.0
    %1562 = vmatpush1.msra.mxu0 0.0
    %1563 = vmatprep.subr.mxu0 0.0
    %1564 = vmatpush1.msra.mxu0 0.0
    %1565 = vmatprep.subr.mxu0 0.0
    %1566 = vmatpush1.msra.mxu0 0.0
    %1567 = vmatprep.subr.mxu0 0.0
    %1568 = vmatpush1.msra.mxu0 0.0
    %1569 = vmatprep.mubr.f32.mxu0 0.0
    %1570 = vmatmul.mubr.f32.gmra.mrb[0].mxu0 %v1206
    %v1571 = vpop.f32.mrb[0].mxu0
    %v1572 = vadd.f32 %v897, %v1571
    %v1573 = vpop.f32.mrb[0].mxu0
    %1574 = vdwg.mxu0
    %v1575 = vld [vmem:[#allocation2 + $0x30] sm:$0xff]
    %v1576 = vld [vmem:[#allocation2 + $0x38] sm:$0xff]
    %v1577 = vld [vmem:[#allocation2 + $0x40] sm:$0xff]
    %1578 = vmatprep.subr.mxu0 %v610
    %1579 = vmatpush1.msra.mxu0 %v609
    %1580 = vmatprep.subr.mxu0 %v613
    %1581 = vmatpush1.msra.mxu0 %v612
    %1582 = vmatprep.subr.mxu0 %v616
    %1583 = vmatpush1.msra.mxu0 %v615
    %1584 = vmatprep.subr.mxu0 %v619
    %1585 = vmatpush1.msra.mxu0 %v618
    %1586 = vmatprep.subr.mxu0 %v622
    %1587 = vmatpush1.msra.mxu0 %v621
    %1588 = vmatprep.subr.mxu0 %v625
    %1589 = vmatpush1.msra.mxu0 %v624
    %1590 = vmatprep.subr.mxu0 %v628
    %1591 = vmatpush1.msra.mxu0 %v627
    %1592 = vmatprep.subr.mxu0 %v631
    %1593 = vmatpush1.msra.mxu0 %v630
    %1594 = vmatprep.subr.mxu0 %v634
    %1595 = vmatpush1.msra.mxu0 %v633
    %1596 = vmatprep.subr.mxu0 %v637
    %1597 = vmatpush1.msra.mxu0 %v636
    %1598 = vmatprep.subr.mxu0 %v640
    %1599 = vmatpush1.msra.mxu0 %v639
    %1600 = vmatprep.subr.mxu0 %v643
    %1601 = vmatpush1.msra.mxu0 %v642
    %1602 = vmatprep.subr.mxu0 %v646
    %1603 = vmatpush1.msra.mxu0 %v645
    %1604 = vmatprep.subr.mxu0 %v649
    %1605 = vmatpush1.msra.mxu0 %v648
    %1606 = vmatprep.subr.mxu0 %v652
    %1607 = vmatpush1.msra.mxu0 %v651
    %1608 = vmatprep.subr.mxu0 %v655
    %1609 = vmatpush1.msra.mxu0 %v654
    %1610 = vmatprep.subr.mxu0 0.0
    %1611 = vmatpush1.msra.mxu0 0.0
    %1612 = vmatprep.subr.mxu0 0.0
    %1613 = vmatpush1.msra.mxu0 0.0
    %1614 = vmatprep.subr.mxu0 0.0
    %1615 = vmatpush1.msra.mxu0 0.0
    %1616 = vmatprep.subr.mxu0 0.0
    %1617 = vmatpush1.msra.mxu0 0.0
    %1618 = vmatprep.subr.mxu0 0.0
    %1619 = vmatpush1.msra.mxu0 0.0
    %1620 = vmatprep.subr.mxu0 0.0
    %1621 = vmatpush1.msra.mxu0 0.0
    %1622 = vmatprep.subr.mxu0 0.0
    %1623 = vmatpush1.msra.mxu0 0.0
    %1624 = vmatprep.subr.mxu0 0.0
    %1625 = vmatpush1.msra.mxu0 0.0
    %1626 = vmatprep.subr.mxu0 0.0
    %1627 = vmatpush1.msra.mxu0 0.0
    %1628 = vmatprep.subr.mxu0 0.0
    %1629 = vmatpush1.msra.mxu0 0.0
    %1630 = vmatprep.subr.mxu0 0.0
    %1631 = vmatpush1.msra.mxu0 0.0
    %1632 = vmatprep.subr.mxu0 0.0
    %1633 = vmatpush1.msra.mxu0 0.0
    %1634 = vmatprep.subr.mxu0 0.0
    %1635 = vmatpush1.msra.mxu0 0.0
    %1636 = vmatprep.subr.mxu0 0.0
    %1637 = vmatpush1.msra.mxu0 0.0
    %1638 = vmatprep.subr.mxu0 0.0
    %1639 = vmatpush1.msra.mxu0 0.0
    %1640 = vmatprep.subr.mxu0 0.0
    %1641 = vmatpush1.msra.mxu0 0.0
    %1642 = vmatprep.mubr.f32.mxu0 0.0
    %1643 = vmatmul.mubr.f32.gmra.mrb[0].mxu0 %v1206
    %v1644 = vpop.f32.mrb[0].mxu0
    %v1645 = vadd.f32 %v662, %v1644
    %v1646 = vpop.f32.mrb[0].mxu0
    %v1647 = vadd.f32 %v666, %v1646
    %1648 = vdwg.mxu0
    %1649 = vmatprep.subr.mxu0 0.0
    %1650 = vmatpush1.msra.mxu0 %v611
    %1651 = vmatprep.subr.mxu0 0.0
    %1652 = vmatpush1.msra.mxu0 %v614
    %1653 = vmatprep.subr.mxu0 0.0
    %1654 = vmatpush1.msra.mxu0 %v617
    %1655 = vmatprep.subr.mxu0 0.0
    %1656 = vmatpush1.msra.mxu0 %v620
    %1657 = vmatprep.subr.mxu0 0.0
    %1658 = vmatpush1.msra.mxu0 %v623
    %1659 = vmatprep.subr.mxu0 0.0
    %1660 = vmatpush1.msra.mxu0 %v626
    %1661 = vmatprep.subr.mxu0 0.0
    %1662 = vmatpush1.msra.mxu0 %v629
    %1663 = vmatprep.subr.mxu0 0.0
    %1664 = vmatpush1.msra.mxu0 %v632
    %1665 = vmatprep.subr.mxu0 0.0
    %1666 = vmatpush1.msra.mxu0 %v635
    %1667 = vmatprep.subr.mxu0 0.0
    %1668 = vmatpush1.msra.mxu0 %v638
    %1669 = vmatprep.subr.mxu0 0.0
    %1670 = vmatpush1.msra.mxu0 %v641
    %1671 = vmatprep.subr.mxu0 0.0
    %1672 = vmatpush1.msra.mxu0 %v644
    %1673 = vmatprep.subr.mxu0 0.0
    %1674 = vmatpush1.msra.mxu0 %v647
    %1675 = vmatprep.subr.mxu0 0.0
    %1676 = vmatpush1.msra.mxu0 %v650
    %1677 = vmatprep.subr.mxu0 0.0
    %1678 = vmatpush1.msra.mxu0 %v653
    %1679 = vmatprep.subr.mxu0 0.0
    %1680 = vmatpush1.msra.mxu0 %v656
    %1681 = vmatprep.subr.mxu0 0.0
    %1682 = vmatpush1.msra.mxu0 0.0
    %1683 = vmatprep.subr.mxu0 0.0
    %1684 = vmatpush1.msra.mxu0 0.0
    %1685 = vmatprep.subr.mxu0 0.0
    %1686 = vmatpush1.msra.mxu0 0.0
    %1687 = vmatprep.subr.mxu0 0.0
    %1688 = vmatpush1.msra.mxu0 0.0
    %1689 = vmatprep.subr.mxu0 0.0
    %1690 = vmatpush1.msra.mxu0 0.0
    %1691 = vmatprep.subr.mxu0 0.0
    %1692 = vmatpush1.msra.mxu0 0.0
    %1693 = vmatprep.subr.mxu0 0.0
    %1694 = vmatpush1.msra.mxu0 0.0
    %1695 = vmatprep.subr.mxu0 0.0
    %1696 = vmatpush1.msra.mxu0 0.0
    %1697 = vmatprep.subr.mxu0 0.0
    %1698 = vmatpush1.msra.mxu0 0.0
    %1699 = vmatprep.subr.mxu0 0.0
    %1700 = vmatpush1.msra.mxu0 0.0
    %1701 = vmatprep.subr.mxu0 0.0
    %1702 = vmatpush1.msra.mxu0 0.0
    %1703 = vmatprep.subr.mxu0 0.0
    %1704 = vmatpush1.msra.mxu0 0.0
    %1705 = vmatprep.subr.mxu0 0.0
    %1706 = vmatpush1.msra.mxu0 0.0
    %1707 = vmatprep.subr.mxu0 0.0
    %1708 = vmatpush1.msra.mxu0 0.0
    %1709 = vmatprep.subr.mxu0 0.0
    %1710 = vmatpush1.msra.mxu0 0.0
    %1711 = vmatprep.subr.mxu0 0.0
    %1712 = vmatpush1.msra.mxu0 0.0
    %1713 = vmatprep.mubr.f32.mxu0 0.0
    %1714 = vmatmul.mubr.f32.gmra.mrb[0].mxu0 %v1206
    %v1715 = vpop.f32.mrb[0].mxu0
    %v1716 = vadd.f32 %v670, %v1715
    %v1717 = vpop.f32.mrb[0].mxu0
    %1718 = vdwg.mxu0
    %v1719 = vadd.f32 %v1575, %v1645
    %v1720 = vadd.f32 %v1576, %v1647
    %v1721 = vxor.u32 %v1719, 2147483648
    %v1722 = vxor.u32 %v1720, 2147483648
    %v1723 = vmul.f32 %v1721, 1.442695
    %v1724 = vpow.pop %v1723
    %v1725 = vmul.f32 %v1722, 1.442695
    %v1726 = vpow.pop %v1725
    %v1727 = vadd.f32 %v1724, 1.0
    %v1728 = vadd.f32 %v1726, 1.0
    %v1729 = vrcp.pop %v1727
    %v1730 = vmul.f32 1.0, %v1729
    %v1731 = vrcp.pop %v1728
    %v1732 = vmul.f32 1.0, %v1731
    %v1733 = vmul.f32 %v1730, %v1716
    %v1734 = vadd.f32 %v1577, %v1733
    %v1735 = vtanh.pop %v1734
    %v1736 = vsub.f32 1.0, %v1732
    %v1737 = vmul.f32 %v1736, %v1735
    %v1738 = vmul.f32 %v1732, %v1206
    %v1739 = vadd.f32 %v1737, %v1738
    %1740 = vmatprep.subr.mxu0 %v1208
    %1741 = vmatpush1.msra.mxu0 %v1207
    %1742 = vmatprep.subr.mxu0 %v1211
    %1743 = vmatpush1.msra.mxu0 %v1210
    %1744 = vmatprep.subr.mxu0 %v1214
    %1745 = vmatpush1.msra.mxu0 %v1213
    %1746 = vmatprep.subr.mxu0 %v1217
    %1747 = vmatpush1.msra.mxu0 %v1216
    %1748 = vmatprep.subr.mxu0 %v1220
    %1749 = vmatpush1.msra.mxu0 %v1219
    %1750 = vmatprep.subr.mxu0 %v1223
    %1751 = vmatpush1.msra.mxu0 %v1222
    %1752 = vmatprep.subr.mxu0 %v1226
    %1753 = vmatpush1.msra.mxu0 %v1225
    %1754 = vmatprep.subr.mxu0 %v1229
    %1755 = vmatpush1.msra.mxu0 %v1228
    %1756 = vmatprep.subr.mxu0 %v1232
    %1757 = vmatpush1.msra.mxu0 %v1231
    %1758 = vmatprep.subr.mxu0 %v1235
    %1759 = vmatpush1.msra.mxu0 %v1234
    %1760 = vmatprep.subr.mxu0 %v1238
    %1761 = vmatpush1.msra.mxu0 %v1237
    %1762 = vmatprep.subr.mxu0 %v1241
    %1763 = vmatpush1.msra.mxu0 %v1240
    %1764 = vmatprep.subr.mxu0 %v1244
    %1765 = vmatpush1.msra.mxu0 %v1243
    %1766 = vmatprep.subr.mxu0 %v1247
    %1767 = vmatpush1.msra.mxu0 %v1246
    %1768 = vmatprep.subr.mxu0 %v1250
    %1769 = vmatpush1.msra.mxu0 %v1249
    %1770 = vmatprep.subr.mxu0 %v1253
    %1771 = vmatpush1.msra.mxu0 %v1252
    %1772 = vmatprep.subr.mxu0 0.0
    %1773 = vmatpush1.msra.mxu0 0.0
    %1774 = vmatprep.subr.mxu0 0.0
    %1775 = vmatpush1.msra.mxu0 0.0
    %1776 = vmatprep.subr.mxu0 0.0
    %1777 = vmatpush1.msra.mxu0 0.0
    %1778 = vmatprep.subr.mxu0 0.0
    %1779 = vmatpush1.msra.mxu0 0.0
    %1780 = vmatprep.subr.mxu0 0.0
    %1781 = vmatpush1.msra.mxu0 0.0
    %1782 = vmatprep.subr.mxu0 0.0
    %1783 = vmatpush1.msra.mxu0 0.0
    %1784 = vmatprep.subr.mxu0 0.0
    %1785 = vmatpush1.msra.mxu0 0.0
    %1786 = vmatprep.subr.mxu0 0.0
    %1787 = vmatpush1.msra.mxu0 0.0
    %1788 = vmatprep.subr.mxu0 0.0
    %1789 = vmatpush1.msra.mxu0 0.0
    %1790 = vmatprep.subr.mxu0 0.0
    %1791 = vmatpush1.msra.mxu0 0.0
    %1792 = vmatprep.subr.mxu0 0.0
    %1793 = vmatpush1.msra.mxu0 0.0
    %1794 = vmatprep.subr.mxu0 0.0
    %1795 = vmatpush1.msra.mxu0 0.0
    %1796 = vmatprep.subr.mxu0 0.0
    %1797 = vmatpush1.msra.mxu0 0.0
    %1798 = vmatprep.subr.mxu0 0.0
    %1799 = vmatpush1.msra.mxu0 0.0
    %1800 = vmatprep.subr.mxu0 0.0
    %1801 = vmatpush1.msra.mxu0 0.0
    %1802 = vmatprep.subr.mxu0 0.0
    %1803 = vmatpush1.msra.mxu0 0.0
    %1804 = vmatprep.mubr.f32.mxu0 0.0
    %1805 = vmatmul.mubr.f32.gmra.mrb[0].mxu0 %v1433
    %v1806 = vpop.f32.mrb[0].mxu0
    %v1807 = vadd.f32 %v1260, %v1806
    %v1808 = vpop.f32.mrb[0].mxu0
    %v1809 = vadd.f32 %v1264, %v1808
    %1810 = vdwg.mxu0
    %1811 = vmatprep.subr.mxu0 0.0
    %1812 = vmatpush1.msra.mxu0 %v1209
    %1813 = vmatprep.subr.mxu0 0.0
    %1814 = vmatpush1.msra.mxu0 %v1212
    %1815 = vmatprep.subr.mxu0 0.0
    %1816 = vmatpush1.msra.mxu0 %v1215
    %1817 = vmatprep.subr.mxu0 0.0
    %1818 = vmatpush1.msra.mxu0 %v1218
    %1819 = vmatprep.subr.mxu0 0.0
    %1820 = vmatpush1.msra.mxu0 %v1221
    %1821 = vmatprep.subr.mxu0 0.0
    %1822 = vmatpush1.msra.mxu0 %v1224
    %1823 = vmatprep.subr.mxu0 0.0
    %1824 = vmatpush1.msra.mxu0 %v1227
    %1825 = vmatprep.subr.mxu0 0.0
    %1826 = vmatpush1.msra.mxu0 %v1230
    %1827 = vmatprep.subr.mxu0 0.0
    %1828 = vmatpush1.msra.mxu0 %v1233
    %1829 = vmatprep.subr.mxu0 0.0
    %1830 = vmatpush1.msra.mxu0 %v1236
    %1831 = vmatprep.subr.mxu0 0.0
    %1832 = vmatpush1.msra.mxu0 %v1239
    %1833 = vmatprep.subr.mxu0 0.0
    %1834 = vmatpush1.msra.mxu0 %v1242
    %1835 = vmatprep.subr.mxu0 0.0
    %1836 = vmatpush1.msra.mxu0 %v1245
    %1837 = vmatprep.subr.mxu0 0.0
    %1838 = vmatpush1.msra.mxu0 %v1248
    %1839 = vmatprep.subr.mxu0 0.0
    %1840 = vmatpush1.msra.mxu0 %v1251
    %1841 = vmatprep.subr.mxu0 0.0
    %1842 = vmatpush1.msra.mxu0 %v1254
    %1843 = vmatprep.subr.mxu0 0.0
    %1844 = vmatpush1.msra.mxu0 0.0
    %1845 = vmatprep.subr.mxu0 0.0
    %1846 = vmatpush1.msra.mxu0 0.0
    %1847 = vmatprep.subr.mxu0 0.0
    %1848 = vmatpush1.msra.mxu0 0.0
    %1849 = vmatprep.subr.mxu0 0.0
    %1850 = vmatpush1.msra.mxu0 0.0
    %1851 = vmatprep.subr.mxu0 0.0
    %1852 = vmatpush1.msra.mxu0 0.0
    %1853 = vmatprep.subr.mxu0 0.0
    %1854 = vmatpush1.msra.mxu0 0.0
    %1855 = vmatprep.subr.mxu0 0.0
    %1856 = vmatpush1.msra.mxu0 0.0
    %1857 = vmatprep.subr.mxu0 0.0
    %1858 = vmatpush1.msra.mxu0 0.0
    %1859 = vmatprep.subr.mxu0 0.0
    %1860 = vmatpush1.msra.mxu0 0.0
    %1861 = vmatprep.subr.mxu0 0.0
    %1862 = vmatpush1.msra.mxu0 0.0
    %1863 = vmatprep.subr.mxu0 0.0
    %1864 = vmatpush1.msra.mxu0 0.0
    %1865 = vmatprep.subr.mxu0 0.0
    %1866 = vmatpush1.msra.mxu0 0.0
    %1867 = vmatprep.subr.mxu0 0.0
    %1868 = vmatpush1.msra.mxu0 0.0
    %1869 = vmatprep.subr.mxu0 0.0
    %1870 = vmatpush1.msra.mxu0 0.0
    %1871 = vmatprep.subr.mxu0 0.0
    %1872 = vmatpush1.msra.mxu0 0.0
    %1873 = vmatprep.subr.mxu0 0.0
    %1874 = vmatpush1.msra.mxu0 0.0
    %1875 = vmatprep.mubr.f32.mxu0 0.0
    %1876 = vmatmul.mubr.f32.gmra.mrb[0].mxu0 %v1433
    %v1877 = vpop.f32.mrb[0].mxu0
    %v1878 = vadd.f32 %v1268, %v1877
    %v1879 = vpop.f32.mrb[0].mxu0
    %1880 = vdwg.mxu0
    %v1881 = vadd.f32 %v1501, %v1807
    %v1882 = vadd.f32 %v1503, %v1809
    %v1883 = vxor.u32 %v1881, 2147483648
    %v1884 = vxor.u32 %v1882, 2147483648
    %v1885 = vmul.f32 %v1883, 1.442695
    %v1886 = vpow.pop %v1885
    %v1887 = vmul.f32 %v1884, 1.442695
    %v1888 = vpow.pop %v1887
    %v1889 = vadd.f32 %v1886, 1.0
    %v1890 = vadd.f32 %v1888, 1.0
    %v1891 = vrcp.pop %v1889
    %v1892 = vmul.f32 1.0, %v1891
    %v1893 = vrcp.pop %v1890
    %v1894 = vmul.f32 1.0, %v1893
    %v1895 = vmul.f32 %v1892, %v1878
    %v1896 = vadd.f32 %v1572, %v1895
    %v1897 = vtanh.pop %v1896
    %v1898 = vsub.f32 1.0, %v1894
    %v1899 = vmul.f32 %v1898, %v1897
    %v1900 = vmul.f32 %v1894, %v1433
    %v1901 = vadd.f32 %v1899, %v1900
    %1902 = vmatprep.subr.mxu0 %v837
    %1903 = vmatpush1.msra.mxu0 %v836
    %1904 = vmatprep.subr.mxu0 %v840
    %1905 = vmatpush1.msra.mxu0 %v839
    %1906 = vmatprep.subr.mxu0 %v843
    %1907 = vmatpush1.msra.mxu0 %v842
    %1908 = vmatprep.subr.mxu0 %v846
    %1909 = vmatpush1.msra.mxu0 %v845
    %1910 = vmatprep.subr.mxu0 %v849
    %1911 = vmatpush1.msra.mxu0 %v848
    %1912 = vmatprep.subr.mxu0 %v852
    %1913 = vmatpush1.msra.mxu0 %v851
    %1914 = vmatprep.subr.mxu0 %v855
    %1915 = vmatpush1.msra.mxu0 %v854
    %1916 = vmatprep.subr.mxu0 %v858
    %1917 = vmatpush1.msra.mxu0 %v857
    %1918 = vmatprep.subr.mxu0 %v861
    %1919 = vmatpush1.msra.mxu0 %v860
    %1920 = vmatprep.subr.mxu0 %v864
    %1921 = vmatpush1.msra.mxu0 %v863
    %1922 = vmatprep.subr.mxu0 %v867
    %1923 = vmatpush1.msra.mxu0 %v866
    %1924 = vmatprep.subr.mxu0 %v870
    %1925 = vmatpush1.msra.mxu0 %v869
    %1926 = vmatprep.subr.mxu0 %v873
    %1927 = vmatpush1.msra.mxu0 %v872
    %1928 = vmatprep.subr.mxu0 %v876
    %1929 = vmatpush1.msra.mxu0 %v875
    %1930 = vmatprep.subr.mxu0 %v879
    %1931 = vmatpush1.msra.mxu0 %v878
    %1932 = vmatprep.subr.mxu0 %v882
    %1933 = vmatpush1.msra.mxu0 %v881
    %1934 = vmatprep.subr.mxu0 0.0
    %1935 = vmatpush1.msra.mxu0 0.0
    %1936 = vmatprep.subr.mxu0 0.0
    %1937 = vmatpush1.msra.mxu0 0.0
    %1938 = vmatprep.subr.mxu0 0.0
    %1939 = vmatpush1.msra.mxu0 0.0
    %1940 = vmatprep.subr.mxu0 0.0
    %1941 = vmatpush1.msra.mxu0 0.0
    %1942 = vmatprep.subr.mxu0 0.0
    %1943 = vmatpush1.msra.mxu0 0.0
    %1944 = vmatprep.subr.mxu0 0.0
    %1945 = vmatpush1.msra.mxu0 0.0
    %1946 = vmatprep.subr.mxu0 0.0
    %1947 = vmatpush1.msra.mxu0 0.0
    %1948 = vmatprep.subr.mxu0 0.0
    %1949 = vmatpush1.msra.mxu0 0.0
    %1950 = vmatprep.subr.mxu0 0.0
    %1951 = vmatpush1.msra.mxu0 0.0
    %1952 = vmatprep.subr.mxu0 0.0
    %1953 = vmatpush1.msra.mxu0 0.0
    %1954 = vmatprep.subr.mxu0 0.0
    %1955 = vmatpush1.msra.mxu0 0.0
    %1956 = vmatprep.subr.mxu0 0.0
    %1957 = vmatpush1.msra.mxu0 0.0
    %1958 = vmatprep.subr.mxu0 0.0
    %1959 = vmatpush1.msra.mxu0 0.0
    %1960 = vmatprep.subr.mxu0 0.0
    %1961 = vmatpush1.msra.mxu0 0.0
    %1962 = vmatprep.subr.mxu0 0.0
    %1963 = vmatpush1.msra.mxu0 0.0
    %1964 = vmatprep.subr.mxu0 0.0
    %1965 = vmatpush1.msra.mxu0 0.0
    %1966 = vmatprep.mubr.f32.mxu0 0.0
    %1967 = vmatmul.mubr.f32.gmra.mrb[0].mxu0 %v1739
    %v1968 = vpop.f32.mrb[0].mxu0
    %v1969 = vadd.f32 %v889, %v1968
    %v1970 = vpop.f32.mrb[0].mxu0
    %v1971 = vadd.f32 %v893, %v1970
    %1972 = vdwg.mxu0
    %1973 = vmatprep.subr.mxu0 0.0
    %1974 = vmatpush1.msra.mxu0 %v838
    %1975 = vmatprep.subr.mxu0 0.0
    %1976 = vmatpush1.msra.mxu0 %v841
    %1977 = vmatprep.subr.mxu0 0.0
    %1978 = vmatpush1.msra.mxu0 %v844
    %1979 = vmatprep.subr.mxu0 0.0
    %1980 = vmatpush1.msra.mxu0 %v847
    %1981 = vmatprep.subr.mxu0 0.0
    %1982 = vmatpush1.msra.mxu0 %v850
    %1983 = vmatprep.subr.mxu0 0.0
    %1984 = vmatpush1.msra.mxu0 %v853
    %1985 = vmatprep.subr.mxu0 0.0
    %1986 = vmatpush1.msra.mxu0 %v856
    %1987 = vmatprep.subr.mxu0 0.0
    %1988 = vmatpush1.msra.mxu0 %v859
    %1989 = vmatprep.subr.mxu0 0.0
    %1990 = vmatpush1.msra.mxu0 %v862
    %1991 = vmatprep.subr.mxu0 0.0
    %1992 = vmatpush1.msra.mxu0 %v865
    %1993 = vmatprep.subr.mxu0 0.0
    %1994 = vmatpush1.msra.mxu0 %v868
    %1995 = vmatprep.subr.mxu0 0.0
    %1996 = vmatpush1.msra.mxu0 %v871
    %1997 = vmatprep.subr.mxu0 0.0
    %1998 = vmatpush1.msra.mxu0 %v874
    %1999 = vmatprep.subr.mxu0 0.0
    %2000 = vmatpush1.msra.mxu0 %v877
    %2001 = vmatprep.subr.mxu0 0.0
    %2002 = vmatpush1.msra.mxu0 %v880
    %2003 = vmatprep.subr.mxu0 0.0
    %2004 = vmatpush1.msra.mxu0 %v883
    %2005 = vmatprep.subr.mxu0 0.0
    %2006 = vmatpush1.msra.mxu0 0.0
    %2007 = vmatprep.subr.mxu0 0.0
    %2008 = vmatpush1.msra.mxu0 0.0
    %2009 = vmatprep.subr.mxu0 0.0
    %2010 = vmatpush1.msra.mxu0 0.0
    %2011 = vmatprep.subr.mxu0 0.0
    %2012 = vmatpush1.msra.mxu0 0.0
    %2013 = vmatprep.subr.mxu0 0.0
    %2014 = vmatpush1.msra.mxu0 0.0
    %2015 = vmatprep.subr.mxu0 0.0
    %2016 = vmatpush1.msra.mxu0 0.0
    %2017 = vmatprep.subr.mxu0 0.0
    %2018 = vmatpush1.msra.mxu0 0.0
    %2019 = vmatprep.subr.mxu0 0.0
    %2020 = vmatpush1.msra.mxu0 0.0
    %2021 = vmatprep.subr.mxu0 0.0
    %2022 = vmatpush1.msra.mxu0 0.0
    %2023 = vmatprep.subr.mxu0 0.0
    %2024 = vmatpush1.msra.mxu0 0.0
    %2025 = vmatprep.subr.mxu0 0.0
    %2026 = vmatpush1.msra.mxu0 0.0
    %2027 = vmatprep.subr.mxu0 0.0
    %2028 = vmatpush1.msra.mxu0 0.0
    %2029 = vmatprep.subr.mxu0 0.0
    %2030 = vmatpush1.msra.mxu0 0.0
    %2031 = vmatprep.subr.mxu0 0.0
    %2032 = vmatpush1.msra.mxu0 0.0
    %2033 = vmatprep.subr.mxu0 0.0
    %2034 = vmatpush1.msra.mxu0 0.0
    %2035 = vmatprep.subr.mxu0 0.0
    %2036 = vmatpush1.msra.mxu0 0.0
    %2037 = vmatprep.mubr.f32.mxu0 0.0
    %2038 = vmatmul.mubr.f32.gmra.mrb[0].mxu0 %v1739
    %v2039 = vpop.f32.mrb[0].mxu0
    %v2040 = vadd.f32 %v897, %v2039
    %v2041 = vpop.f32.mrb[0].mxu0
    %2042 = vdwg.mxu0
    %v2043 = vld [vmem:[#allocation2 + $0x48] sm:$0xff]
    %v2044 = vld [vmem:[#allocation2 + $0x50] sm:$0xff]
    %v2045 = vld [vmem:[#allocation2 + $0x58] sm:$0xff]
    %2046 = vmatprep.subr.mxu0 %v610
    %2047 = vmatpush1.msra.mxu0 %v609
    %2048 = vmatprep.subr.mxu0 %v613
    %2049 = vmatpush1.msra.mxu0 %v612
    %2050 = vmatprep.subr.mxu0 %v616
    %2051 = vmatpush1.msra.mxu0 %v615
    %2052 = vmatprep.subr.mxu0 %v619
    %2053 = vmatpush1.msra.mxu0 %v618
    %2054 = vmatprep.subr.mxu0 %v622
    %2055 = vmatpush1.msra.mxu0 %v621
    %2056 = vmatprep.subr.mxu0 %v625
    %2057 = vmatpush1.msra.mxu0 %v624
    %2058 = vmatprep.subr.mxu0 %v628
    %2059 = vmatpush1.msra.mxu0 %v627
    %2060 = vmatprep.subr.mxu0 %v631
    %2061 = vmatpush1.msra.mxu0 %v630
    %2062 = vmatprep.subr.mxu0 %v634
    %2063 = vmatpush1.msra.mxu0 %v633
    %2064 = vmatprep.subr.mxu0 %v637
    %2065 = vmatpush1.msra.mxu0 %v636
    %2066 = vmatprep.subr.mxu0 %v640
    %2067 = vmatpush1.msra.mxu0 %v639
    %2068 = vmatprep.subr.mxu0 %v643
    %2069 = vmatpush1.msra.mxu0 %v642
    %2070 = vmatprep.subr.mxu0 %v646
    %2071 = vmatpush1.msra.mxu0 %v645
    %2072 = vmatprep.subr.mxu0 %v649
    %2073 = vmatpush1.msra.mxu0 %v648
    %2074 = vmatprep.subr.mxu0 %v652
    %2075 = vmatpush1.msra.mxu0 %v651
    %2076 = vmatprep.subr.mxu0 %v655
    %2077 = vmatpush1.msra.mxu0 %v654
    %2078 = vmatprep.subr.mxu0 0.0
    %2079 = vmatpush1.msra.mxu0 0.0
    %2080 = vmatprep.subr.mxu0 0.0
    %2081 = vmatpush1.msra.mxu0 0.0
    %2082 = vmatprep.subr.mxu0 0.0
    %2083 = vmatpush1.msra.mxu0 0.0
    %2084 = vmatprep.subr.mxu0 0.0
    %2085 = vmatpush1.msra.mxu0 0.0
    %2086 = vmatprep.subr.mxu0 0.0
    %2087 = vmatpush1.msra.mxu0 0.0
    %2088 = vmatprep.subr.mxu0 0.0
    %2089 = vmatpush1.msra.mxu0 0.0
    %2090 = vmatprep.subr.mxu0 0.0
    %2091 = vmatpush1.msra.mxu0 0.0
    %2092 = vmatprep.subr.mxu0 0.0
    %2093 = vmatpush1.msra.mxu0 0.0
    %2094 = vmatprep.subr.mxu0 0.0
    %2095 = vmatpush1.msra.mxu0 0.0
    %2096 = vmatprep.subr.mxu0 0.0
    %2097 = vmatpush1.msra.mxu0 0.0
    %2098 = vmatprep.subr.mxu0 0.0
    %2099 = vmatpush1.msra.mxu0 0.0
    %2100 = vmatprep.subr.mxu0 0.0
    %2101 = vmatpush1.msra.mxu0 0.0
    %2102 = vmatprep.subr.mxu0 0.0
    %2103 = vmatpush1.msra.mxu0 0.0
    %2104 = vmatprep.subr.mxu0 0.0
    %2105 = vmatpush1.msra.mxu0 0.0
    %2106 = vmatprep.subr.mxu0 0.0
    %2107 = vmatpush1.msra.mxu0 0.0
    %2108 = vmatprep.subr.mxu0 0.0
    %2109 = vmatpush1.msra.mxu0 0.0
    %2110 = vmatprep.mubr.f32.mxu0 0.0
    %2111 = vmatmul.mubr.f32.gmra.mrb[0].mxu0 %v1739
    %v2112 = vpop.f32.mrb[0].mxu0
    %v2113 = vadd.f32 %v662, %v2112
    %v2114 = vpop.f32.mrb[0].mxu0
    %v2115 = vadd.f32 %v666, %v2114
    %2116 = vdwg.mxu0
    %2117 = vmatprep.subr.mxu0 0.0
    %2118 = vmatpush1.msra.mxu0 %v611
    %2119 = vmatprep.subr.mxu0 0.0
    %2120 = vmatpush1.msra.mxu0 %v614
    %2121 = vmatprep.subr.mxu0 0.0
    %2122 = vmatpush1.msra.mxu0 %v617
    %2123 = vmatprep.subr.mxu0 0.0
    %2124 = vmatpush1.msra.mxu0 %v620
    %2125 = vmatprep.subr.mxu0 0.0
    %2126 = vmatpush1.msra.mxu0 %v623
    %2127 = vmatprep.subr.mxu0 0.0
    %2128 = vmatpush1.msra.mxu0 %v626
    %2129 = vmatprep.subr.mxu0 0.0
    %2130 = vmatpush1.msra.mxu0 %v629
    %2131 = vmatprep.subr.mxu0 0.0
    %2132 = vmatpush1.msra.mxu0 %v632
    %2133 = vmatprep.subr.mxu0 0.0
    %2134 = vmatpush1.msra.mxu0 %v635
    %2135 = vmatprep.subr.mxu0 0.0
    %2136 = vmatpush1.msra.mxu0 %v638
    %2137 = vmatprep.subr.mxu0 0.0
    %2138 = vmatpush1.msra.mxu0 %v641
    %2139 = vmatprep.subr.mxu0 0.0
    %2140 = vmatpush1.msra.mxu0 %v644
    %2141 = vmatprep.subr.mxu0 0.0
    %2142 = vmatpush1.msra.mxu0 %v647
    %2143 = vmatprep.subr.mxu0 0.0
    %2144 = vmatpush1.msra.mxu0 %v650
    %2145 = vmatprep.subr.mxu0 0.0
    %2146 = vmatpush1.msra.mxu0 %v653
    %2147 = vmatprep.subr.mxu0 0.0
    %2148 = vmatpush1.msra.mxu0 %v656
    %2149 = vmatprep.subr.mxu0 0.0
    %2150 = vmatpush1.msra.mxu0 0.0
    %2151 = vmatprep.subr.mxu0 0.0
    %2152 = vmatpush1.msra.mxu0 0.0
    %2153 = vmatprep.subr.mxu0 0.0
    %2154 = vmatpush1.msra.mxu0 0.0
    %2155 = vmatprep.subr.mxu0 0.0
    %2156 = vmatpush1.msra.mxu0 0.0
    %2157 = vmatprep.subr.mxu0 0.0
    %2158 = vmatpush1.msra.mxu0 0.0
    %2159 = vmatprep.subr.mxu0 0.0
    %2160 = vmatpush1.msra.mxu0 0.0
    %2161 = vmatprep.subr.mxu0 0.0
    %2162 = vmatpush1.msra.mxu0 0.0
    %2163 = vmatprep.subr.mxu0 0.0
    %2164 = vmatpush1.msra.mxu0 0.0
    %2165 = vmatprep.subr.mxu0 0.0
    %2166 = vmatpush1.msra.mxu0 0.0
    %2167 = vmatprep.subr.mxu0 0.0
    %2168 = vmatpush1.msra.mxu0 0.0
    %2169 = vmatprep.subr.mxu0 0.0
    %2170 = vmatpush1.msra.mxu0 0.0
    %2171 = vmatprep.subr.mxu0 0.0
    %2172 = vmatpush1.msra.mxu0 0.0
    %2173 = vmatprep.subr.mxu0 0.0
    %2174 = vmatpush1.msra.mxu0 0.0
    %2175 = vmatprep.subr.mxu0 0.0
    %2176 = vmatpush1.msra.mxu0 0.0
    %2177 = vmatprep.subr.mxu0 0.0
    %2178 = vmatpush1.msra.mxu0 0.0
    %2179 = vmatprep.subr.mxu0 0.0
    %2180 = vmatpush1.msra.mxu0 0.0
    %2181 = vmatprep.mubr.f32.mxu0 0.0
    %2182 = vmatmul.mubr.f32.gmra.mrb[0].mxu0 %v1739
    %v2183 = vpop.f32.mrb[0].mxu0
    %v2184 = vadd.f32 %v670, %v2183
    %v2185 = vpop.f32.mrb[0].mxu0
    %2186 = vdwg.mxu0
    %v2187 = vadd.f32 %v2043, %v2113
    %v2188 = vadd.f32 %v2044, %v2115
    %v2189 = vxor.u32 %v2187, 2147483648
    %v2190 = vxor.u32 %v2188, 2147483648
    %v2191 = vmul.f32 %v2189, 1.442695
    %v2192 = vpow.pop %v2191
    %v2193 = vmul.f32 %v2190, 1.442695
    %v2194 = vpow.pop %v2193
    %v2195 = vadd.f32 %v2192, 1.0
    %v2196 = vadd.f32 %v2194, 1.0
    %v2197 = vrcp.pop %v2195
    %v2198 = vmul.f32 1.0, %v2197
    %v2199 = vrcp.pop %v2196
    %v2200 = vmul.f32 1.0, %v2199
    %v2201 = vmul.f32 %v2198, %v2184
    %v2202 = vadd.f32 %v2045, %v2201
    %v2203 = vtanh.pop %v2202
    %v2204 = vsub.f32 1.0, %v2200
    %v2205 = vmul.f32 %v2204, %v2203
    %v2206 = vmul.f32 %v2200, %v1739
    %v2207 = vadd.f32 %v2205, %v2206
    %2208 = vmatprep.subr.mxu0 %v1208
    %2209 = vmatpush1.msra.mxu0 %v1207
    %2210 = vmatprep.subr.mxu0 %v1211
    %2211 = vmatpush1.msra.mxu0 %v1210
    %2212 = vmatprep.subr.mxu0 %v1214
    %2213 = vmatpush1.msra.mxu0 %v1213
    %2214 = vmatprep.subr.mxu0 %v1217
    %2215 = vmatpush1.msra.mxu0 %v1216
    %2216 = vmatprep.subr.mxu0 %v1220
    %2217 = vmatpush1.msra.mxu0 %v1219
    %2218 = vmatprep.subr.mxu0 %v1223
    %2219 = vmatpush1.msra.mxu0 %v1222
    %2220 = vmatprep.subr.mxu0 %v1226
    %2221 = vmatpush1.msra.mxu0 %v1225
    %2222 = vmatprep.subr.mxu0 %v1229
    %2223 = vmatpush1.msra.mxu0 %v1228
    %2224 = vmatprep.subr.mxu0 %v1232
    %2225 = vmatpush1.msra.mxu0 %v1231
    %2226 = vmatprep.subr.mxu0 %v1235
    %2227 = vmatpush1.msra.mxu0 %v1234
    %2228 = vmatprep.subr.mxu0 %v1238
    %2229 = vmatpush1.msra.mxu0 %v1237
    %2230 = vmatprep.subr.mxu0 %v1241
    %2231 = vmatpush1.msra.mxu0 %v1240
    %2232 = vmatprep.subr.mxu0 %v1244
    %2233 = vmatpush1.msra.mxu0 %v1243
    %2234 = vmatprep.subr.mxu0 %v1247
    %2235 = vmatpush1.msra.mxu0 %v1246
    %2236 = vmatprep.subr.mxu0 %v1250
    %2237 = vmatpush1.msra.mxu0 %v1249
    %2238 = vmatprep.subr.mxu0 %v1253
    %2239 = vmatpush1.msra.mxu0 %v1252
    %2240 = vmatprep.subr.mxu0 0.0
    %2241 = vmatpush1.msra.mxu0 0.0
    %2242 = vmatprep.subr.mxu0 0.0
    %2243 = vmatpush1.msra.mxu0 0.0
    %2244 = vmatprep.subr.mxu0 0.0
    %2245 = vmatpush1.msra.mxu0 0.0
    %2246 = vmatprep.subr.mxu0 0.0
    %2247 = vmatpush1.msra.mxu0 0.0
    %2248 = vmatprep.subr.mxu0 0.0
    %2249 = vmatpush1.msra.mxu0 0.0
    %2250 = vmatprep.subr.mxu0 0.0
    %2251 = vmatpush1.msra.mxu0 0.0
    %2252 = vmatprep.subr.mxu0 0.0
    %2253 = vmatpush1.msra.mxu0 0.0
    %2254 = vmatprep.subr.mxu0 0.0
    %2255 = vmatpush1.msra.mxu0 0.0
    %2256 = vmatprep.subr.mxu0 0.0
    %2257 = vmatpush1.msra.mxu0 0.0
    %2258 = vmatprep.subr.mxu0 0.0
    %2259 = vmatpush1.msra.mxu0 0.0
    %2260 = vmatprep.subr.mxu0 0.0
    %2261 = vmatpush1.msra.mxu0 0.0
    %2262 = vmatprep.subr.mxu0 0.0
    %2263 = vmatpush1.msra.mxu0 0.0
    %2264 = vmatprep.subr.mxu0 0.0
    %2265 = vmatpush1.msra.mxu0 0.0
    %2266 = vmatprep.subr.mxu0 0.0
    %2267 = vmatpush1.msra.mxu0 0.0
    %2268 = vmatprep.subr.mxu0 0.0
    %2269 = vmatpush1.msra.mxu0 0.0
    %2270 = vmatprep.subr.mxu0 0.0
    %2271 = vmatpush1.msra.mxu0 0.0
    %2272 = vmatprep.mubr.f32.mxu0 0.0
    %2273 = vmatmul.mubr.f32.gmra.mrb[0].mxu0 %v1901
    %v2274 = vpop.f32.mrb[0].mxu0
    %v2275 = vadd.f32 %v1260, %v2274
    %v2276 = vpop.f32.mrb[0].mxu0
    %v2277 = vadd.f32 %v1264, %v2276
    %2278 = vdwg.mxu0
    %2279 = vmatprep.subr.mxu0 0.0
    %2280 = vmatpush1.msra.mxu0 %v1209
    %2281 = vmatprep.subr.mxu0 0.0
    %2282 = vmatpush1.msra.mxu0 %v1212
    %2283 = vmatprep.subr.mxu0 0.0
    %2284 = vmatpush1.msra.mxu0 %v1215
    %2285 = vmatprep.subr.mxu0 0.0
    %2286 = vmatpush1.msra.mxu0 %v1218
    %2287 = vmatprep.subr.mxu0 0.0
    %2288 = vmatpush1.msra.mxu0 %v1221
    %2289 = vmatprep.subr.mxu0 0.0
    %2290 = vmatpush1.msra.mxu0 %v1224
    %2291 = vmatprep.subr.mxu0 0.0
    %2292 = vmatpush1.msra.mxu0 %v1227
    %2293 = vmatprep.subr.mxu0 0.0
    %2294 = vmatpush1.msra.mxu0 %v1230
    %2295 = vmatprep.subr.mxu0 0.0
    %2296 = vmatpush1.msra.mxu0 %v1233
    %2297 = vmatprep.subr.mxu0 0.0
    %2298 = vmatpush1.msra.mxu0 %v1236
    %2299 = vmatprep.subr.mxu0 0.0
    %2300 = vmatpush1.msra.mxu0 %v1239
    %2301 = vmatprep.subr.mxu0 0.0
    %2302 = vmatpush1.msra.mxu0 %v1242
    %2303 = vmatprep.subr.mxu0 0.0
    %2304 = vmatpush1.msra.mxu0 %v1245
    %2305 = vmatprep.subr.mxu0 0.0
    %2306 = vmatpush1.msra.mxu0 %v1248
    %2307 = vmatprep.subr.mxu0 0.0
    %2308 = vmatpush1.msra.mxu0 %v1251
    %2309 = vmatprep.subr.mxu0 0.0
    %2310 = vmatpush1.msra.mxu0 %v1254
    %2311 = vmatprep.subr.mxu0 0.0
    %2312 = vmatpush1.msra.mxu0 0.0
    %2313 = vmatprep.subr.mxu0 0.0
    %2314 = vmatpush1.msra.mxu0 0.0
    %2315 = vmatprep.subr.mxu0 0.0
    %2316 = vmatpush1.msra.mxu0 0.0
    %2317 = vmatprep.subr.mxu0 0.0
    %2318 = vmatpush1.msra.mxu0 0.0
    %2319 = vmatprep.subr.mxu0 0.0
    %2320 = vmatpush1.msra.mxu0 0.0
    %2321 = vmatprep.subr.mxu0 0.0
    %2322 = vmatpush1.msra.mxu0 0.0
    %2323 = vmatprep.subr.mxu0 0.0
    %2324 = vmatpush1.msra.mxu0 0.0
    %2325 = vmatprep.subr.mxu0 0.0
    %2326 = vmatpush1.msra.mxu0 0.0
    %2327 = vmatprep.subr.mxu0 0.0
    %2328 = vmatpush1.msra.mxu0 0.0
    %2329 = vmatprep.subr.mxu0 0.0
    %2330 = vmatpush1.msra.mxu0 0.0
    %2331 = vmatprep.subr.mxu0 0.0
    %2332 = vmatpush1.msra.mxu0 0.0
    %2333 = vmatprep.subr.mxu0 0.0
    %2334 = vmatpush1.msra.mxu0 0.0
    %2335 = vmatprep.subr.mxu0 0.0
    %2336 = vmatpush1.msra.mxu0 0.0
    %2337 = vmatprep.subr.mxu0 0.0
    %2338 = vmatpush1.msra.mxu0 0.0
    %2339 = vmatprep.subr.mxu0 0.0
    %2340 = vmatpush1.msra.mxu0 0.0
    %2341 = vmatprep.subr.mxu0 0.0
    %2342 = vmatpush1.msra.mxu0 0.0
    %2343 = vmatprep.mubr.f32.mxu0 0.0
    %2344 = vmatmul.mubr.f32.gmra.mrb[0].mxu0 %v1901
    %v2345 = vpop.f32.mrb[0].mxu0
    %v2346 = vadd.f32 %v1268, %v2345
    %v2347 = vpop.f32.mrb[0].mxu0
    %2348 = vdwg.mxu0
    %v2349 = vadd.f32 %v1969, %v2275
    %v2350 = vadd.f32 %v1971, %v2277
    %v2351 = vxor.u32 %v2349, 2147483648
    %v2352 = vxor.u32 %v2350, 2147483648
    %v2353 = vmul.f32 %v2351, 1.442695
    %v2354 = vpow.pop %v2353
    %v2355 = vmul.f32 %v2352, 1.442695
    %v2356 = vpow.pop %v2355
    %v2357 = vadd.f32 %v2354, 1.0
    %v2358 = vadd.f32 %v2356, 1.0
    %v2359 = vrcp.pop %v2357
    %v2360 = vmul.f32 1.0, %v2359
    %v2361 = vrcp.pop %v2358
    %v2362 = vmul.f32 1.0, %v2361
    %v2363 = vmul.f32 %v2360, %v2346
    %v2364 = vadd.f32 %v2040, %v2363
    %v2365 = vtanh.pop %v2364
    %v2366 = vsub.f32 1.0, %v2362
    %v2367 = vmul.f32 %v2366, %v2365
    %v2368 = vmul.f32 %v2362, %v1901
    %v2369 = vadd.f32 %v2367, %v2368
    %2370 = vmatprep.subr.mxu0 %v837
    %2371 = vmatpush1.msra.mxu0 %v836
    %2372 = vmatprep.subr.mxu0 %v840
    %2373 = vmatpush1.msra.mxu0 %v839
    %2374 = vmatprep.subr.mxu0 %v843
    %2375 = vmatpush1.msra.mxu0 %v842
    %2376 = vmatprep.subr.mxu0 %v846
    %2377 = vmatpush1.msra.mxu0 %v845
    %2378 = vmatprep.subr.mxu0 %v849
    %2379 = vmatpush1.msra.mxu0 %v848
    %2380 = vmatprep.subr.mxu0 %v852
    %2381 = vmatpush1.msra.mxu0 %v851
    %2382 = vmatprep.subr.mxu0 %v855
    %2383 = vmatpush1.msra.mxu0 %v854
    %2384 = vmatprep.subr.mxu0 %v858
    %2385 = vmatpush1.msra.mxu0 %v857
    %2386 = vmatprep.subr.mxu0 %v861
    %2387 = vmatpush1.msra.mxu0 %v860
    %2388 = vmatprep.subr.mxu0 %v864
    %2389 = vmatpush1.msra.mxu0 %v863
    %2390 = vmatprep.subr.mxu0 %v867
    %2391 = vmatpush1.msra.mxu0 %v866
    %2392 = vmatprep.subr.mxu0 %v870
    %2393 = vmatpush1.msra.mxu0 %v869
    %2394 = vmatprep.subr.mxu0 %v873
    %2395 = vmatpush1.msra.mxu0 %v872
    %2396 = vmatprep.subr.mxu0 %v876
    %2397 = vmatpush1.msra.mxu0 %v875
    %2398 = vmatprep.subr.mxu0 %v879
    %2399 = vmatpush1.msra.mxu0 %v878
    %2400 = vmatprep.subr.mxu0 %v882
    %2401 = vmatpush1.msra.mxu0 %v881
    %2402 = vmatprep.subr.mxu0 0.0
    %2403 = vmatpush1.msra.mxu0 0.0
    %2404 = vmatprep.subr.mxu0 0.0
    %2405 = vmatpush1.msra.mxu0 0.0
    %2406 = vmatprep.subr.mxu0 0.0
    %2407 = vmatpush1.msra.mxu0 0.0
    %2408 = vmatprep.subr.mxu0 0.0
    %2409 = vmatpush1.msra.mxu0 0.0
    %2410 = vmatprep.subr.mxu0 0.0
    %2411 = vmatpush1.msra.mxu0 0.0
    %2412 = vmatprep.subr.mxu0 0.0
    %2413 = vmatpush1.msra.mxu0 0.0
    %2414 = vmatprep.subr.mxu0 0.0
    %2415 = vmatpush1.msra.mxu0 0.0
    %2416 = vmatprep.subr.mxu0 0.0
    %2417 = vmatpush1.msra.mxu0 0.0
    %2418 = vmatprep.subr.mxu0 0.0
    %2419 = vmatpush1.msra.mxu0 0.0
    %2420 = vmatprep.subr.mxu0 0.0
    %2421 = vmatpush1.msra.mxu0 0.0
    %2422 = vmatprep.subr.mxu0 0.0
    %2423 = vmatpush1.msra.mxu0 0.0
    %2424 = vmatprep.subr.mxu0 0.0
    %2425 = vmatpush1.msra.mxu0 0.0
    %2426 = vmatprep.subr.mxu0 0.0
    %2427 = vmatpush1.msra.mxu0 0.0
    %2428 = vmatprep.subr.mxu0 0.0
    %2429 = vmatpush1.msra.mxu0 0.0
    %2430 = vmatprep.subr.mxu0 0.0
    %2431 = vmatpush1.msra.mxu0 0.0
    %2432 = vmatprep.subr.mxu0 0.0
    %2433 = vmatpush1.msra.mxu0 0.0
    %2434 = vmatprep.mubr.f32.mxu0 0.0
    %2435 = vmatmul.mubr.f32.gmra.mrb[0].mxu0 %v2207
    %v2436 = vpop.f32.mrb[0].mxu0
    %v2437 = vadd.f32 %v889, %v2436
    %v2438 = vpop.f32.mrb[0].mxu0
    %v2439 = vadd.f32 %v893, %v2438
    %2440 = vdwg.mxu0
    %2441 = vmatprep.subr.mxu0 0.0
    %2442 = vmatpush1.msra.mxu0 %v838
    %2443 = vmatprep.subr.mxu0 0.0
    %2444 = vmatpush1.msra.mxu0 %v841
    %2445 = vmatprep.subr.mxu0 0.0
    %2446 = vmatpush1.msra.mxu0 %v844
    %2447 = vmatprep.subr.mxu0 0.0
    %2448 = vmatpush1.msra.mxu0 %v847
    %2449 = vmatprep.subr.mxu0 0.0
    %2450 = vmatpush1.msra.mxu0 %v850
    %2451 = vmatprep.subr.mxu0 0.0
    %2452 = vmatpush1.msra.mxu0 %v853
    %2453 = vmatprep.subr.mxu0 0.0
    %2454 = vmatpush1.msra.mxu0 %v856
    %2455 = vmatprep.subr.mxu0 0.0
    %2456 = vmatpush1.msra.mxu0 %v859
    %2457 = vmatprep.subr.mxu0 0.0
    %2458 = vmatpush1.msra.mxu0 %v862
    %2459 = vmatprep.subr.mxu0 0.0
    %2460 = vmatpush1.msra.mxu0 %v865
    %2461 = vmatprep.subr.mxu0 0.0
    %2462 = vmatpush1.msra.mxu0 %v868
    %2463 = vmatprep.subr.mxu0 0.0
    %2464 = vmatpush1.msra.mxu0 %v871
    %2465 = vmatprep.subr.mxu0 0.0
    %2466 = vmatpush1.msra.mxu0 %v874
    %2467 = vmatprep.subr.mxu0 0.0
    %2468 = vmatpush1.msra.mxu0 %v877
    %2469 = vmatprep.subr.mxu0 0.0
    %2470 = vmatpush1.msra.mxu0 %v880
    %2471 = vmatprep.subr.mxu0 0.0
    %2472 = vmatpush1.msra.mxu0 %v883
    %2473 = vmatprep.subr.mxu0 0.0
    %2474 = vmatpush1.msra.mxu0 0.0
    %2475 = vmatprep.subr.mxu0 0.0
    %2476 = vmatpush1.msra.mxu0 0.0
    %2477 = vmatprep.subr.mxu0 0.0
    %2478 = vmatpush1.msra.mxu0 0.0
    %2479 = vmatprep.subr.mxu0 0.0
    %2480 = vmatpush1.msra.mxu0 0.0
    %2481 = vmatprep.subr.mxu0 0.0
    %2482 = vmatpush1.msra.mxu0 0.0
    %2483 = vmatprep.subr.mxu0 0.0
    %2484 = vmatpush1.msra.mxu0 0.0
    %2485 = vmatprep.subr.mxu0 0.0
    %2486 = vmatpush1.msra.mxu0 0.0
    %2487 = vmatprep.subr.mxu0 0.0
    %2488 = vmatpush1.msra.mxu0 0.0
    %2489 = vmatprep.subr.mxu0 0.0
    %2490 = vmatpush1.msra.mxu0 0.0
    %2491 = vmatprep.subr.mxu0 0.0
    %2492 = vmatpush1.msra.mxu0 0.0
    %2493 = vmatprep.subr.mxu0 0.0
    %2494 = vmatpush1.msra.mxu0 0.0
    %2495 = vmatprep.subr.mxu0 0.0
    %2496 = vmatpush1.msra.mxu0 0.0
    %2497 = vmatprep.subr.mxu0 0.0
    %2498 = vmatpush1.msra.mxu0 0.0
    %2499 = vmatprep.subr.mxu0 0.0
    %2500 = vmatpush1.msra.mxu0 0.0
    %2501 = vmatprep.subr.mxu0 0.0
    %2502 = vmatpush1.msra.mxu0 0.0
    %2503 = vmatprep.subr.mxu0 0.0
    %2504 = vmatpush1.msra.mxu0 0.0
    %2505 = vmatprep.mubr.f32.mxu0 0.0
    %2506 = vmatmul.mubr.f32.gmra.mrb[0].mxu0 %v2207
    %v2507 = vpop.f32.mrb[0].mxu0
    %v2508 = vadd.f32 %v897, %v2507
    %v2509 = vpop.f32.mrb[0].mxu0
    %2510 = vdwg.mxu0
    %v2511 = vld [vmem:[#allocation2 + $0x60] sm:$0xff]
    %v2512 = vld [vmem:[#allocation2 + $0x68] sm:$0xff]
    %v2513 = vld [vmem:[#allocation2 + $0x70] sm:$0xff]
    %2514 = vmatprep.subr.mxu0 %v610
    %2515 = vmatpush1.msra.mxu0 %v609
    %2516 = vmatprep.subr.mxu0 %v613
    %2517 = vmatpush1.msra.mxu0 %v612
    %2518 = vmatprep.subr.mxu0 %v616
    %2519 = vmatpush1.msra.mxu0 %v615
    %2520 = vmatprep.subr.mxu0 %v619
    %2521 = vmatpush1.msra.mxu0 %v618
    %2522 = vmatprep.subr.mxu0 %v622
    %2523 = vmatpush1.msra.mxu0 %v621
    %2524 = vmatprep.subr.mxu0 %v625
    %2525 = vmatpush1.msra.mxu0 %v624
    %2526 = vmatprep.subr.mxu0 %v628
    %2527 = vmatpush1.msra.mxu0 %v627
    %2528 = vmatprep.subr.mxu0 %v631
    %2529 = vmatpush1.msra.mxu0 %v630
    %2530 = vmatprep.subr.mxu0 %v634
    %2531 = vmatpush1.msra.mxu0 %v633
    %2532 = vmatprep.subr.mxu0 %v637
    %2533 = vmatpush1.msra.mxu0 %v636
    %2534 = vmatprep.subr.mxu0 %v640
    %2535 = vmatpush1.msra.mxu0 %v639
    %2536 = vmatprep.subr.mxu0 %v643
    %2537 = vmatpush1.msra.mxu0 %v642
    %2538 = vmatprep.subr.mxu0 %v646
    %2539 = vmatpush1.msra.mxu0 %v645
    %2540 = vmatprep.subr.mxu0 %v649
    %2541 = vmatpush1.msra.mxu0 %v648
    %2542 = vmatprep.subr.mxu0 %v652
    %2543 = vmatpush1.msra.mxu0 %v651
    %2544 = vmatprep.subr.mxu0 %v655
    %2545 = vmatpush1.msra.mxu0 %v654
    %2546 = vmatprep.subr.mxu0 0.0
    %2547 = vmatpush1.msra.mxu0 0.0
    %2548 = vmatprep.subr.mxu0 0.0
    %2549 = vmatpush1.msra.mxu0 0.0
    %2550 = vmatprep.subr.mxu0 0.0
    %2551 = vmatpush1.msra.mxu0 0.0
    %2552 = vmatprep.subr.mxu0 0.0
    %2553 = vmatpush1.msra.mxu0 0.0
    %2554 = vmatprep.subr.mxu0 0.0
    %2555 = vmatpush1.msra.mxu0 0.0
    %2556 = vmatprep.subr.mxu0 0.0
    %2557 = vmatpush1.msra.mxu0 0.0
    %2558 = vmatprep.subr.mxu0 0.0
    %2559 = vmatpush1.msra.mxu0 0.0
    %2560 = vmatprep.subr.mxu0 0.0
    %2561 = vmatpush1.msra.mxu0 0.0
    %2562 = vmatprep.subr.mxu0 0.0
    %2563 = vmatpush1.msra.mxu0 0.0
    %2564 = vmatprep.subr.mxu0 0.0
    %2565 = vmatpush1.msra.mxu0 0.0
    %2566 = vmatprep.subr.mxu0 0.0
    %2567 = vmatpush1.msra.mxu0 0.0
    %2568 = vmatprep.subr.mxu0 0.0
    %2569 = vmatpush1.msra.mxu0 0.0
    %2570 = vmatprep.subr.mxu0 0.0
    %2571 = vmatpush1.msra.mxu0 0.0
    %2572 = vmatprep.subr.mxu0 0.0
    %2573 = vmatpush1.msra.mxu0 0.0
    %2574 = vmatprep.subr.mxu0 0.0
    %2575 = vmatpush1.msra.mxu0 0.0
    %2576 = vmatprep.subr.mxu0 0.0
    %2577 = vmatpush1.msra.mxu0 0.0
    %2578 = vmatprep.mubr.f32.mxu0 0.0
    %2579 = vmatmul.mubr.f32.gmra.mrb[0].mxu0 %v2207
    %v2580 = vpop.f32.mrb[0].mxu0
    %v2581 = vadd.f32 %v662, %v2580
    %v2582 = vpop.f32.mrb[0].mxu0
    %v2583 = vadd.f32 %v666, %v2582
    %2584 = vdwg.mxu0
    %2585 = vmatprep.subr.mxu0 0.0
    %2586 = vmatpush1.msra.mxu0 %v611
    %2587 = vmatprep.subr.mxu0 0.0
    %2588 = vmatpush1.msra.mxu0 %v614
    %2589 = vmatprep.subr.mxu0 0.0
    %2590 = vmatpush1.msra.mxu0 %v617
    %2591 = vmatprep.subr.mxu0 0.0
    %2592 = vmatpush1.msra.mxu0 %v620
    %2593 = vmatprep.subr.mxu0 0.0
    %2594 = vmatpush1.msra.mxu0 %v623
    %2595 = vmatprep.subr.mxu0 0.0
    %2596 = vmatpush1.msra.mxu0 %v626
    %2597 = vmatprep.subr.mxu0 0.0
    %2598 = vmatpush1.msra.mxu0 %v629
    %2599 = vmatprep.subr.mxu0 0.0
    %2600 = vmatpush1.msra.mxu0 %v632
    %2601 = vmatprep.subr.mxu0 0.0
    %2602 = vmatpush1.msra.mxu0 %v635
    %2603 = vmatprep.subr.mxu0 0.0
    %2604 = vmatpush1.msra.mxu0 %v638
    %2605 = vmatprep.subr.mxu0 0.0
    %2606 = vmatpush1.msra.mxu0 %v641
    %2607 = vmatprep.subr.mxu0 0.0
    %2608 = vmatpush1.msra.mxu0 %v644
    %2609 = vmatprep.subr.mxu0 0.0
    %2610 = vmatpush1.msra.mxu0 %v647
    %2611 = vmatprep.subr.mxu0 0.0
    %2612 = vmatpush1.msra.mxu0 %v650
    %2613 = vmatprep.subr.mxu0 0.0
    %2614 = vmatpush1.msra.mxu0 %v653
    %2615 = vmatprep.subr.mxu0 0.0
    %2616 = vmatpush1.msra.mxu0 %v656
    %2617 = vmatprep.subr.mxu0 0.0
    %2618 = vmatpush1.msra.mxu0 0.0
    %2619 = vmatprep.subr.mxu0 0.0
    %2620 = vmatpush1.msra.mxu0 0.0
    %2621 = vmatprep.subr.mxu0 0.0
    %2622 = vmatpush1.msra.mxu0 0.0
    %2623 = vmatprep.subr.mxu0 0.0
    %2624 = vmatpush1.msra.mxu0 0.0
    %2625 = vmatprep.subr.mxu0 0.0
    %2626 = vmatpush1.msra.mxu0 0.0
    %2627 = vmatprep.subr.mxu0 0.0
    %2628 = vmatpush1.msra.mxu0 0.0
    %2629 = vmatprep.subr.mxu0 0.0
    %2630 = vmatpush1.msra.mxu0 0.0
    %2631 = vmatprep.subr.mxu0 0.0
    %2632 = vmatpush1.msra.mxu0 0.0
    %2633 = vmatprep.subr.mxu0 0.0
    %2634 = vmatpush1.msra.mxu0 0.0
    %2635 = vmatprep.subr.mxu0 0.0
    %2636 = vmatpush1.msra.mxu0 0.0
    %2637 = vmatprep.subr.mxu0 0.0
    %2638 = vmatpush1.msra.mxu0 0.0
    %2639 = vmatprep.subr.mxu0 0.0
    %2640 = vmatpush1.msra.mxu0 0.0
    %2641 = vmatprep.subr.mxu0 0.0
    %2642 = vmatpush1.msra.mxu0 0.0
    %2643 = vmatprep.subr.mxu0 0.0
    %2644 = vmatpush1.msra.mxu0 0.0
    %2645 = vmatprep.subr.mxu0 0.0
    %2646 = vmatpush1.msra.mxu0 0.0
    %2647 = vmatprep.subr.mxu0 0.0
    %2648 = vmatpush1.msra.mxu0 0.0
    %2649 = vmatprep.mubr.f32.mxu0 0.0
    %2650 = vmatmul.mubr.f32.gmra.mrb[0].mxu0 %v2207
    %v2651 = vpop.f32.mrb[0].mxu0
    %v2652 = vadd.f32 %v670, %v2651
    %v2653 = vpop.f32.mrb[0].mxu0
    %2654 = vdwg.mxu0
    %v2655 = vadd.f32 %v2511, %v2581
    %v2656 = vadd.f32 %v2512, %v2583
    %v2657 = vxor.u32 %v2655, 2147483648
    %v2658 = vxor.u32 %v2656, 2147483648
    %v2659 = vmul.f32 %v2657, 1.442695
    %v2660 = vpow.pop %v2659
    %v2661 = vmul.f32 %v2658, 1.442695
    %v2662 = vpow.pop %v2661
    %v2663 = vadd.f32 %v2660, 1.0
    %v2664 = vadd.f32 %v2662, 1.0
    %v2665 = vrcp.pop %v2663
    %v2666 = vmul.f32 1.0, %v2665
    %v2667 = vrcp.pop %v2664
    %v2668 = vmul.f32 1.0, %v2667
    %v2669 = vmul.f32 %v2666, %v2652
    %v2670 = vadd.f32 %v2513, %v2669
    %v2671 = vtanh.pop %v2670
    %v2672 = vsub.f32 1.0, %v2668
    %v2673 = vmul.f32 %v2672, %v2671
    %v2674 = vmul.f32 %v2668, %v2207
    %v2675 = vadd.f32 %v2673, %v2674
    %2676 = vmatprep.subr.mxu0 %v1208
    %2677 = vmatpush1.msra.mxu0 %v1207
    %2678 = vmatprep.subr.mxu0 %v1211
    %2679 = vmatpush1.msra.mxu0 %v1210
    %2680 = vmatprep.subr.mxu0 %v1214
    %2681 = vmatpush1.msra.mxu0 %v1213
    %2682 = vmatprep.subr.mxu0 %v1217
    %2683 = vmatpush1.msra.mxu0 %v1216
    %2684 = vmatprep.subr.mxu0 %v1220
    %2685 = vmatpush1.msra.mxu0 %v1219
    %2686 = vmatprep.subr.mxu0 %v1223
    %2687 = vmatpush1.msra.mxu0 %v1222
    %2688 = vmatprep.subr.mxu0 %v1226
    %2689 = vmatpush1.msra.mxu0 %v1225
    %2690 = vmatprep.subr.mxu0 %v1229
    %2691 = vmatpush1.msra.mxu0 %v1228
    %2692 = vmatprep.subr.mxu0 %v1232
    %2693 = vmatpush1.msra.mxu0 %v1231
    %2694 = vmatprep.subr.mxu0 %v1235
    %2695 = vmatpush1.msra.mxu0 %v1234
    %2696 = vmatprep.subr.mxu0 %v1238
    %2697 = vmatpush1.msra.mxu0 %v1237
    %2698 = vmatprep.subr.mxu0 %v1241
    %2699 = vmatpush1.msra.mxu0 %v1240
    %2700 = vmatprep.subr.mxu0 %v1244
    %2701 = vmatpush1.msra.mxu0 %v1243
    %2702 = vmatprep.subr.mxu0 %v1247
    %2703 = vmatpush1.msra.mxu0 %v1246
    %2704 = vmatprep.subr.mxu0 %v1250
    %2705 = vmatpush1.msra.mxu0 %v1249
    %2706 = vmatprep.subr.mxu0 %v1253
    %2707 = vmatpush1.msra.mxu0 %v1252
    %2708 = vmatprep.subr.mxu0 0.0
    %2709 = vmatpush1.msra.mxu0 0.0
    %2710 = vmatprep.subr.mxu0 0.0
    %2711 = vmatpush1.msra.mxu0 0.0
    %2712 = vmatprep.subr.mxu0 0.0
    %2713 = vmatpush1.msra.mxu0 0.0
    %2714 = vmatprep.subr.mxu0 0.0
    %2715 = vmatpush1.msra.mxu0 0.0
    %2716 = vmatprep.subr.mxu0 0.0
    %2717 = vmatpush1.msra.mxu0 0.0
    %2718 = vmatprep.subr.mxu0 0.0
    %2719 = vmatpush1.msra.mxu0 0.0
    %2720 = vmatprep.subr.mxu0 0.0
    %2721 = vmatpush1.msra.mxu0 0.0
    %2722 = vmatprep.subr.mxu0 0.0
    %2723 = vmatpush1.msra.mxu0 0.0
    %2724 = vmatprep.subr.mxu0 0.0
    %2725 = vmatpush1.msra.mxu0 0.0
    %2726 = vmatprep.subr.mxu0 0.0
    %2727 = vmatpush1.msra.mxu0 0.0
    %2728 = vmatprep.subr.mxu0 0.0
    %2729 = vmatpush1.msra.mxu0 0.0
    %2730 = vmatprep.subr.mxu0 0.0
    %2731 = vmatpush1.msra.mxu0 0.0
    %2732 = vmatprep.subr.mxu0 0.0
    %2733 = vmatpush1.msra.mxu0 0.0
    %2734 = vmatprep.subr.mxu0 0.0
    %2735 = vmatpush1.msra.mxu0 0.0
    %2736 = vmatprep.subr.mxu0 0.0
    %2737 = vmatpush1.msra.mxu0 0.0
    %2738 = vmatprep.subr.mxu0 0.0
    %2739 = vmatpush1.msra.mxu0 0.0
    %2740 = vmatprep.mubr.f32.mxu0 0.0
    %2741 = vmatmul.mubr.f32.gmra.mrb[0].mxu0 %v2369
    %v2742 = vpop.f32.mrb[0].mxu0
    %v2743 = vadd.f32 %v1260, %v2742
    %v2744 = vpop.f32.mrb[0].mxu0
    %v2745 = vadd.f32 %v1264, %v2744
    %2746 = vdwg.mxu0
    %2747 = vmatprep.subr.mxu0 0.0
    %2748 = vmatpush1.msra.mxu0 %v1209
    %2749 = vmatprep.subr.mxu0 0.0
    %2750 = vmatpush1.msra.mxu0 %v1212
    %2751 = vmatprep.subr.mxu0 0.0
    %2752 = vmatpush1.msra.mxu0 %v1215
    %2753 = vmatprep.subr.mxu0 0.0
    %2754 = vmatpush1.msra.mxu0 %v1218
    %2755 = vmatprep.subr.mxu0 0.0
    %2756 = vmatpush1.msra.mxu0 %v1221
    %2757 = vmatprep.subr.mxu0 0.0
    %2758 = vmatpush1.msra.mxu0 %v1224
    %2759 = vmatprep.subr.mxu0 0.0
    %2760 = vmatpush1.msra.mxu0 %v1227
    %2761 = vmatprep.subr.mxu0 0.0
    %2762 = vmatpush1.msra.mxu0 %v1230
    %2763 = vmatprep.subr.mxu0 0.0
    %2764 = vmatpush1.msra.mxu0 %v1233
    %2765 = vmatprep.subr.mxu0 0.0
    %2766 = vmatpush1.msra.mxu0 %v1236
    %2767 = vmatprep.subr.mxu0 0.0
    %2768 = vmatpush1.msra.mxu0 %v1239
    %2769 = vmatprep.subr.mxu0 0.0
    %2770 = vmatpush1.msra.mxu0 %v1242
    %2771 = vmatprep.subr.mxu0 0.0
    %2772 = vmatpush1.msra.mxu0 %v1245
    %2773 = vmatprep.subr.mxu0 0.0
    %2774 = vmatpush1.msra.mxu0 %v1248
    %2775 = vmatprep.subr.mxu0 0.0
    %2776 = vmatpush1.msra.mxu0 %v1251
    %2777 = vmatprep.subr.mxu0 0.0
    %2778 = vmatpush1.msra.mxu0 %v1254
    %2779 = vmatprep.subr.mxu0 0.0
    %2780 = vmatpush1.msra.mxu0 0.0
    %2781 = vmatprep.subr.mxu0 0.0
    %2782 = vmatpush1.msra.mxu0 0.0
    %2783 = vmatprep.subr.mxu0 0.0
    %2784 = vmatpush1.msra.mxu0 0.0
    %2785 = vmatprep.subr.mxu0 0.0
    %2786 = vmatpush1.msra.mxu0 0.0
    %2787 = vmatprep.subr.mxu0 0.0
    %2788 = vmatpush1.msra.mxu0 0.0
    %2789 = vmatprep.subr.mxu0 0.0
    %2790 = vmatpush1.msra.mxu0 0.0
    %2791 = vmatprep.subr.mxu0 0.0
    %2792 = vmatpush1.msra.mxu0 0.0
    %2793 = vmatprep.subr.mxu0 0.0
    %2794 = vmatpush1.msra.mxu0 0.0
    %2795 = vmatprep.subr.mxu0 0.0
    %2796 = vmatpush1.msra.mxu0 0.0
    %2797 = vmatprep.subr.mxu0 0.0
    %2798 = vmatpush1.msra.mxu0 0.0
    %2799 = vmatprep.subr.mxu0 0.0
    %2800 = vmatpush1.msra.mxu0 0.0
    %2801 = vmatprep.subr.mxu0 0.0
    %2802 = vmatpush1.msra.mxu0 0.0
    %2803 = vmatprep.subr.mxu0 0.0
    %2804 = vmatpush1.msra.mxu0 0.0
    %2805 = vmatprep.subr.mxu0 0.0
    %2806 = vmatpush1.msra.mxu0 0.0
    %2807 = vmatprep.subr.mxu0 0.0
    %2808 = vmatpush1.msra.mxu0 0.0
    %2809 = vmatprep.subr.mxu0 0.0
    %2810 = vmatpush1.msra.mxu0 0.0
    %2811 = vmatprep.mubr.f32.mxu0 0.0
    %2812 = vmatmul.mubr.f32.gmra.mrb[0].mxu0 %v2369
    %v2813 = vpop.f32.mrb[0].mxu0
    %v2814 = vadd.f32 %v1268, %v2813
    %v2815 = vpop.f32.mrb[0].mxu0
    %2816 = vdwg.mxu0
    %v2817 = vadd.f32 %v2437, %v2743
    %v2818 = vadd.f32 %v2439, %v2745
    %v2819 = vxor.u32 %v2817, 2147483648
    %v2820 = vxor.u32 %v2818, 2147483648
    %v2821 = vmul.f32 %v2819, 1.442695
    %v2822 = vpow.pop %v2821
    %v2823 = vmul.f32 %v2820, 1.442695
    %v2824 = vpow.pop %v2823
    %v2825 = vadd.f32 %v2822, 1.0
    %v2826 = vadd.f32 %v2824, 1.0
    %v2827 = vrcp.pop %v2825
    %v2828 = vmul.f32 1.0, %v2827
    %v2829 = vrcp.pop %v2826
    %v2830 = vmul.f32 1.0, %v2829
    %v2831 = vmul.f32 %v2828, %v2814
    %v2832 = vadd.f32 %v2508, %v2831
    %v2833 = vtanh.pop %v2832
    %v2834 = vsub.f32 1.0, %v2830
    %v2835 = vmul.f32 %v2834, %v2833
    %v2836 = vmul.f32 %v2830, %v2369
    %v2837 = vadd.f32 %v2835, %v2836
    %2838 = vmatprep.subr.mxu0 %v837
    %2839 = vmatpush1.msra.mxu0 %v836
    %2840 = vmatprep.subr.mxu0 %v840
    %2841 = vmatpush1.msra.mxu0 %v839
    %2842 = vmatprep.subr.mxu0 %v843
    %2843 = vmatpush1.msra.mxu0 %v842
    %2844 = vmatprep.subr.mxu0 %v846
    %2845 = vmatpush1.msra.mxu0 %v845
    %2846 = vmatprep.subr.mxu0 %v849
    %2847 = vmatpush1.msra.mxu0 %v848
    %2848 = vmatprep.subr.mxu0 %v852
    %2849 = vmatpush1.msra.mxu0 %v851
    %2850 = vmatprep.subr.mxu0 %v855
    %2851 = vmatpush1.msra.mxu0 %v854
    %2852 = vmatprep.subr.mxu0 %v858
    %2853 = vmatpush1.msra.mxu0 %v857
    %2854 = vmatprep.subr.mxu0 %v861
    %2855 = vmatpush1.msra.mxu0 %v860
    %2856 = vmatprep.subr.mxu0 %v864
    %2857 = vmatpush1.msra.mxu0 %v863
    %2858 = vmatprep.subr.mxu0 %v867
    %2859 = vmatpush1.msra.mxu0 %v866
    %2860 = vmatprep.subr.mxu0 %v870
    %2861 = vmatpush1.msra.mxu0 %v869
    %2862 = vmatprep.subr.mxu0 %v873
    %2863 = vmatpush1.msra.mxu0 %v872
    %2864 = vmatprep.subr.mxu0 %v876
    %2865 = vmatpush1.msra.mxu0 %v875
    %2866 = vmatprep.subr.mxu0 %v879
    %2867 = vmatpush1.msra.mxu0 %v878
    %2868 = vmatprep.subr.mxu0 %v882
    %2869 = vmatpush1.msra.mxu0 %v881
    %2870 = vmatprep.subr.mxu0 0.0
    %2871 = vmatpush1.msra.mxu0 0.0
    %2872 = vmatprep.subr.mxu0 0.0
    %2873 = vmatpush1.msra.mxu0 0.0
    %2874 = vmatprep.subr.mxu0 0.0
    %2875 = vmatpush1.msra.mxu0 0.0
    %2876 = vmatprep.subr.mxu0 0.0
    %2877 = vmatpush1.msra.mxu0 0.0
    %2878 = vmatprep.subr.mxu0 0.0
    %2879 = vmatpush1.msra.mxu0 0.0
    %2880 = vmatprep.subr.mxu0 0.0
    %2881 = vmatpush1.msra.mxu0 0.0
    %2882 = vmatprep.subr.mxu0 0.0
    %2883 = vmatpush1.msra.mxu0 0.0
    %2884 = vmatprep.subr.mxu0 0.0
    %2885 = vmatpush1.msra.mxu0 0.0
    %2886 = vmatprep.subr.mxu0 0.0
    %2887 = vmatpush1.msra.mxu0 0.0
    %2888 = vmatprep.subr.mxu0 0.0
    %2889 = vmatpush1.msra.mxu0 0.0
    %2890 = vmatprep.subr.mxu0 0.0
    %2891 = vmatpush1.msra.mxu0 0.0
    %2892 = vmatprep.subr.mxu0 0.0
    %2893 = vmatpush1.msra.mxu0 0.0
    %2894 = vmatprep.subr.mxu0 0.0
    %2895 = vmatpush1.msra.mxu0 0.0
    %2896 = vmatprep.subr.mxu0 0.0
    %2897 = vmatpush1.msra.mxu0 0.0
    %2898 = vmatprep.subr.mxu0 0.0
    %2899 = vmatpush1.msra.mxu0 0.0
    %2900 = vmatprep.subr.mxu0 0.0
    %2901 = vmatpush1.msra.mxu0 0.0
    %2902 = vmatprep.mubr.f32.mxu0 0.0
    %2903 = vmatmul.mubr.f32.gmra.mrb[0].mxu0 %v2675
    %v2904 = vpop.f32.mrb[0].mxu0
    %v2905 = vadd.f32 %v889, %v2904
    %v2906 = vpop.f32.mrb[0].mxu0
    %v2907 = vadd.f32 %v893, %v2906
    %2908 = vdwg.mxu0
    %2909 = vmatprep.subr.mxu0 0.0
    %2910 = vmatpush1.msra.mxu0 %v838
    %2911 = vmatprep.subr.mxu0 0.0
    %2912 = vmatpush1.msra.mxu0 %v841
    %2913 = vmatprep.subr.mxu0 0.0
    %2914 = vmatpush1.msra.mxu0 %v844
    %2915 = vmatprep.subr.mxu0 0.0
    %2916 = vmatpush1.msra.mxu0 %v847
    %2917 = vmatprep.subr.mxu0 0.0
    %2918 = vmatpush1.msra.mxu0 %v850
    %2919 = vmatprep.subr.mxu0 0.0
    %2920 = vmatpush1.msra.mxu0 %v853
    %2921 = vmatprep.subr.mxu0 0.0
    %2922 = vmatpush1.msra.mxu0 %v856
    %2923 = vmatprep.subr.mxu0 0.0
    %2924 = vmatpush1.msra.mxu0 %v859
    %2925 = vmatprep.subr.mxu0 0.0
    %2926 = vmatpush1.msra.mxu0 %v862
    %2927 = vmatprep.subr.mxu0 0.0
    %2928 = vmatpush1.msra.mxu0 %v865
    %2929 = vmatprep.subr.mxu0 0.0
    %2930 = vmatpush1.msra.mxu0 %v868
    %2931 = vmatprep.subr.mxu0 0.0
    %2932 = vmatpush1.msra.mxu0 %v871
    %2933 = vmatprep.subr.mxu0 0.0
    %2934 = vmatpush1.msra.mxu0 %v874
    %2935 = vmatprep.subr.mxu0 0.0
    %2936 = vmatpush1.msra.mxu0 %v877
    %2937 = vmatprep.subr.mxu0 0.0
    %2938 = vmatpush1.msra.mxu0 %v880
    %2939 = vmatprep.subr.mxu0 0.0
    %2940 = vmatpush1.msra.mxu0 %v883
    %2941 = vmatprep.subr.mxu0 0.0
    %2942 = vmatpush1.msra.mxu0 0.0
    %2943 = vmatprep.subr.mxu0 0.0
    %2944 = vmatpush1.msra.mxu0 0.0
    %2945 = vmatprep.subr.mxu0 0.0
    %2946 = vmatpush1.msra.mxu0 0.0
    %2947 = vmatprep.subr.mxu0 0.0
    %2948 = vmatpush1.msra.mxu0 0.0
    %2949 = vmatprep.subr.mxu0 0.0
    %2950 = vmatpush1.msra.mxu0 0.0
    %2951 = vmatprep.subr.mxu0 0.0
    %2952 = vmatpush1.msra.mxu0 0.0
    %2953 = vmatprep.subr.mxu0 0.0
    %2954 = vmatpush1.msra.mxu0 0.0
    %2955 = vmatprep.subr.mxu0 0.0
    %2956 = vmatpush1.msra.mxu0 0.0
    %2957 = vmatprep.subr.mxu0 0.0
    %2958 = vmatpush1.msra.mxu0 0.0
    %2959 = vmatprep.subr.mxu0 0.0
    %2960 = vmatpush1.msra.mxu0 0.0
    %2961 = vmatprep.subr.mxu0 0.0
    %2962 = vmatpush1.msra.mxu0 0.0
    %2963 = vmatprep.subr.mxu0 0.0
    %2964 = vmatpush1.msra.mxu0 0.0
    %2965 = vmatprep.subr.mxu0 0.0
    %2966 = vmatpush1.msra.mxu0 0.0
    %2967 = vmatprep.subr.mxu0 0.0
    %2968 = vmatpush1.msra.mxu0 0.0
    %2969 = vmatprep.subr.mxu0 0.0
    %2970 = vmatpush1.msra.mxu0 0.0
    %2971 = vmatprep.subr.mxu0 0.0
    %2972 = vmatpush1.msra.mxu0 0.0
    %2973 = vmatprep.mubr.f32.mxu0 0.0
    %2974 = vmatmul.mubr.f32.gmra.mrb[0].mxu0 %v2675
    %v2975 = vpop.f32.mrb[0].mxu0
    %v2976 = vadd.f32 %v897, %v2975
    %v2977 = vpop.f32.mrb[0].mxu0
    %2978 = vdwg.mxu0
    %v2979 = vld [vmem:[#allocation2 + $0x78] sm:$0xff]
    %v2980 = vld [vmem:[#allocation2 + $0x80] sm:$0xff]
    %v2981 = vld [vmem:[#allocation2 + $0x88] sm:$0xff]
    %2982 = vmatprep.subr.mxu0 %v610
    %2983 = vmatpush1.msra.mxu0 %v609
    %2984 = vmatprep.subr.mxu0 %v613
    %2985 = vmatpush1.msra.mxu0 %v612
    %2986 = vmatprep.subr.mxu0 %v616
    %2987 = vmatpush1.msra.mxu0 %v615
    %2988 = vmatprep.subr.mxu0 %v619
    %2989 = vmatpush1.msra.mxu0 %v618
    %2990 = vmatprep.subr.mxu0 %v622
    %2991 = vmatpush1.msra.mxu0 %v621
    %2992 = vmatprep.subr.mxu0 %v625
    %2993 = vmatpush1.msra.mxu0 %v624
    %2994 = vmatprep.subr.mxu0 %v628
    %2995 = vmatpush1.msra.mxu0 %v627
    %2996 = vmatprep.subr.mxu0 %v631
    %2997 = vmatpush1.msra.mxu0 %v630
    %2998 = vmatprep.subr.mxu0 %v634
    %2999 = vmatpush1.msra.mxu0 %v633
    %3000 = vmatprep.subr.mxu0 %v637
    %3001 = vmatpush1.msra.mxu0 %v636
    %3002 = vmatprep.subr.mxu0 %v640
    %3003 = vmatpush1.msra.mxu0 %v639
    %3004 = vmatprep.subr.mxu0 %v643
    %3005 = vmatpush1.msra.mxu0 %v642
    %3006 = vmatprep.subr.mxu0 %v646
    %3007 = vmatpush1.msra.mxu0 %v645
    %3008 = vmatprep.subr.mxu0 %v649
    %3009 = vmatpush1.msra.mxu0 %v648
    %3010 = vmatprep.subr.mxu0 %v652
    %3011 = vmatpush1.msra.mxu0 %v651
    %3012 = vmatprep.subr.mxu0 %v655
    %3013 = vmatpush1.msra.mxu0 %v654
    %3014 = vmatprep.subr.mxu0 0.0
    %3015 = vmatpush1.msra.mxu0 0.0
    %3016 = vmatprep.subr.mxu0 0.0
    %3017 = vmatpush1.msra.mxu0 0.0
    %3018 = vmatprep.subr.mxu0 0.0
    %3019 = vmatpush1.msra.mxu0 0.0
    %3020 = vmatprep.subr.mxu0 0.0
    %3021 = vmatpush1.msra.mxu0 0.0
    %3022 = vmatprep.subr.mxu0 0.0
    %3023 = vmatpush1.msra.mxu0 0.0
    %3024 = vmatprep.subr.mxu0 0.0
    %3025 = vmatpush1.msra.mxu0 0.0
    %3026 = vmatprep.subr.mxu0 0.0
    %3027 = vmatpush1.msra.mxu0 0.0
    %3028 = vmatprep.subr.mxu0 0.0
    %3029 = vmatpush1.msra.mxu0 0.0
    %3030 = vmatprep.subr.mxu0 0.0
    %3031 = vmatpush1.msra.mxu0 0.0
    %3032 = vmatprep.subr.mxu0 0.0
    %3033 = vmatpush1.msra.mxu0 0.0
    %3034 = vmatprep.subr.mxu0 0.0
    %3035 = vmatpush1.msra.mxu0 0.0
    %3036 = vmatprep.subr.mxu0 0.0
    %3037 = vmatpush1.msra.mxu0 0.0
    %3038 = vmatprep.subr.mxu0 0.0
    %3039 = vmatpush1.msra.mxu0 0.0
    %3040 = vmatprep.subr.mxu0 0.0
    %3041 = vmatpush1.msra.mxu0 0.0
    %3042 = vmatprep.subr.mxu0 0.0
    %3043 = vmatpush1.msra.mxu0 0.0
    %3044 = vmatprep.subr.mxu0 0.0
    %3045 = vmatpush1.msra.mxu0 0.0
    %3046 = vmatprep.mubr.f32.mxu0 0.0
    %3047 = vmatmul.mubr.f32.gmra.mrb[0].mxu0 %v2675
    %v3048 = vpop.f32.mrb[0].mxu0
    %v3049 = vadd.f32 %v662, %v3048
    %v3050 = vpop.f32.mrb[0].mxu0
    %v3051 = vadd.f32 %v666, %v3050
    %3052 = vdwg.mxu0
    %3053 = vmatprep.subr.mxu0 0.0
    %3054 = vmatpush1.msra.mxu0 %v611
    %3055 = vmatprep.subr.mxu0 0.0
    %3056 = vmatpush1.msra.mxu0 %v614
    %3057 = vmatprep.subr.mxu0 0.0
    %3058 = vmatpush1.msra.mxu0 %v617
    %3059 = vmatprep.subr.mxu0 0.0
    %3060 = vmatpush1.msra.mxu0 %v620
    %3061 = vmatprep.subr.mxu0 0.0
    %3062 = vmatpush1.msra.mxu0 %v623
    %3063 = vmatprep.subr.mxu0 0.0
    %3064 = vmatpush1.msra.mxu0 %v626
    %3065 = vmatprep.subr.mxu0 0.0
    %3066 = vmatpush1.msra.mxu0 %v629
    %3067 = vmatprep.subr.mxu0 0.0
    %3068 = vmatpush1.msra.mxu0 %v632
    %3069 = vmatprep.subr.mxu0 0.0
    %3070 = vmatpush1.msra.mxu0 %v635
    %3071 = vmatprep.subr.mxu0 0.0
    %3072 = vmatpush1.msra.mxu0 %v638
    %3073 = vmatprep.subr.mxu0 0.0
    %3074 = vmatpush1.msra.mxu0 %v641
    %3075 = vmatprep.subr.mxu0 0.0
    %3076 = vmatpush1.msra.mxu0 %v644
    %3077 = vmatprep.subr.mxu0 0.0
    %3078 = vmatpush1.msra.mxu0 %v647
    %3079 = vmatprep.subr.mxu0 0.0
    %3080 = vmatpush1.msra.mxu0 %v650
    %3081 = vmatprep.subr.mxu0 0.0
    %3082 = vmatpush1.msra.mxu0 %v653
    %3083 = vmatprep.subr.mxu0 0.0
    %3084 = vmatpush1.msra.mxu0 %v656
    %3085 = vmatprep.subr.mxu0 0.0
    %3086 = vmatpush1.msra.mxu0 0.0
    %3087 = vmatprep.subr.mxu0 0.0
    %3088 = vmatpush1.msra.mxu0 0.0
    %3089 = vmatprep.subr.mxu0 0.0
    %3090 = vmatpush1.msra.mxu0 0.0
    %3091 = vmatprep.subr.mxu0 0.0
    %3092 = vmatpush1.msra.mxu0 0.0
    %3093 = vmatprep.subr.mxu0 0.0
    %3094 = vmatpush1.msra.mxu0 0.0
    %3095 = vmatprep.subr.mxu0 0.0
    %3096 = vmatpush1.msra.mxu0 0.0
    %3097 = vmatprep.subr.mxu0 0.0
    %3098 = vmatpush1.msra.mxu0 0.0
    %3099 = vmatprep.subr.mxu0 0.0
    %3100 = vmatpush1.msra.mxu0 0.0
    %3101 = vmatprep.subr.mxu0 0.0
    %3102 = vmatpush1.msra.mxu0 0.0
    %3103 = vmatprep.subr.mxu0 0.0
    %3104 = vmatpush1.msra.mxu0 0.0
    %3105 = vmatprep.subr.mxu0 0.0
    %3106 = vmatpush1.msra.mxu0 0.0
    %3107 = vmatprep.subr.mxu0 0.0
    %3108 = vmatpush1.msra.mxu0 0.0
    %3109 = vmatprep.subr.mxu0 0.0
    %3110 = vmatpush1.msra.mxu0 0.0
    %3111 = vmatprep.subr.mxu0 0.0
    %3112 = vmatpush1.msra.mxu0 0.0
    %3113 = vmatprep.subr.mxu0 0.0
    %3114 = vmatpush1.msra.mxu0 0.0
    %3115 = vmatprep.subr.mxu0 0.0
    %3116 = vmatpush1.msra.mxu0 0.0
    %3117 = vmatprep.mubr.f32.mxu0 0.0
    %3118 = vmatmul.mubr.f32.gmra.mrb[0].mxu0 %v2675
    %v3119 = vpop.f32.mrb[0].mxu0
    %v3120 = vadd.f32 %v670, %v3119
    %v3121 = vpop.f32.mrb[0].mxu0
    %3122 = vdwg.mxu0
    %v3123 = vadd.f32 %v2979, %v3049
    %v3124 = vadd.f32 %v2980, %v3051
    %v3125 = vxor.u32 %v3123, 2147483648
    %v3126 = vxor.u32 %v3124, 2147483648
    %v3127 = vmul.f32 %v3125, 1.442695
    %v3128 = vpow.pop %v3127
    %v3129 = vmul.f32 %v3126, 1.442695
    %v3130 = vpow.pop %v3129
    %v3131 = vadd.f32 %v3128, 1.0
    %v3132 = vadd.f32 %v3130, 1.0
    %v3133 = vrcp.pop %v3131
    %v3134 = vmul.f32 1.0, %v3133
    %v3135 = vrcp.pop %v3132
    %v3136 = vmul.f32 1.0, %v3135
    %v3137 = vmul.f32 %v3134, %v3120
    %v3138 = vadd.f32 %v2981, %v3137
    %v3139 = vtanh.pop %v3138
    %v3140 = vsub.f32 1.0, %v3136
    %v3141 = vmul.f32 %v3140, %v3139
    %v3142 = vmul.f32 %v3136, %v2675
    %v3143 = vadd.f32 %v3141, %v3142
    %3144 = vmatprep.subr.mxu0 %v1208
    %3145 = vmatpush1.msra.mxu0 %v1207
    %3146 = vmatprep.subr.mxu0 %v1211
    %3147 = vmatpush1.msra.mxu0 %v1210
    %3148 = vmatprep.subr.mxu0 %v1214
    %3149 = vmatpush1.msra.mxu0 %v1213
    %3150 = vmatprep.subr.mxu0 %v1217
    %3151 = vmatpush1.msra.mxu0 %v1216
    %3152 = vmatprep.subr.mxu0 %v1220
    %3153 = vmatpush1.msra.mxu0 %v1219
    %3154 = vmatprep.subr.mxu0 %v1223
    %3155 = vmatpush1.msra.mxu0 %v1222
    %3156 = vmatprep.subr.mxu0 %v1226
    %3157 = vmatpush1.msra.mxu0 %v1225
    %3158 = vmatprep.subr.mxu0 %v1229
    %3159 = vmatpush1.msra.mxu0 %v1228
    %3160 = vmatprep.subr.mxu0 %v1232
    %3161 = vmatpush1.msra.mxu0 %v1231
    %3162 = vmatprep.subr.mxu0 %v1235
    %3163 = vmatpush1.msra.mxu0 %v1234
    %3164 = vmatprep.subr.mxu0 %v1238
    %3165 = vmatpush1.msra.mxu0 %v1237
    %3166 = vmatprep.subr.mxu0 %v1241
    %3167 = vmatpush1.msra.mxu0 %v1240
    %3168 = vmatprep.subr.mxu0 %v1244
    %3169 = vmatpush1.msra.mxu0 %v1243
    %3170 = vmatprep.subr.mxu0 %v1247
    %3171 = vmatpush1.msra.mxu0 %v1246
    %3172 = vmatprep.subr.mxu0 %v1250
    %3173 = vmatpush1.msra.mxu0 %v1249
    %3174 = vmatprep.subr.mxu0 %v1253
    %3175 = vmatpush1.msra.mxu0 %v1252
    %3176 = vmatprep.subr.mxu0 0.0
    %3177 = vmatpush1.msra.mxu0 0.0
    %3178 = vmatprep.subr.mxu0 0.0
    %3179 = vmatpush1.msra.mxu0 0.0
    %3180 = vmatprep.subr.mxu0 0.0
    %3181 = vmatpush1.msra.mxu0 0.0
    %3182 = vmatprep.subr.mxu0 0.0
    %3183 = vmatpush1.msra.mxu0 0.0
    %3184 = vmatprep.subr.mxu0 0.0
    %3185 = vmatpush1.msra.mxu0 0.0
    %3186 = vmatprep.subr.mxu0 0.0
    %3187 = vmatpush1.msra.mxu0 0.0
    %3188 = vmatprep.subr.mxu0 0.0
    %3189 = vmatpush1.msra.mxu0 0.0
    %3190 = vmatprep.subr.mxu0 0.0
    %3191 = vmatpush1.msra.mxu0 0.0
    %3192 = vmatprep.subr.mxu0 0.0
    %3193 = vmatpush1.msra.mxu0 0.0
    %3194 = vmatprep.subr.mxu0 0.0
    %3195 = vmatpush1.msra.mxu0 0.0
    %3196 = vmatprep.subr.mxu0 0.0
    %3197 = vmatpush1.msra.mxu0 0.0
    %3198 = vmatprep.subr.mxu0 0.0
    %3199 = vmatpush1.msra.mxu0 0.0
    %3200 = vmatprep.subr.mxu0 0.0
    %3201 = vmatpush1.msra.mxu0 0.0
    %3202 = vmatprep.subr.mxu0 0.0
    %3203 = vmatpush1.msra.mxu0 0.0
    %3204 = vmatprep.subr.mxu0 0.0
    %3205 = vmatpush1.msra.mxu0 0.0
    %3206 = vmatprep.subr.mxu0 0.0
    %3207 = vmatpush1.msra.mxu0 0.0
    %3208 = vmatprep.mubr.f32.mxu0 0.0
    %3209 = vmatmul.mubr.f32.gmra.mrb[0].mxu0 %v2837
    %v3210 = vpop.f32.mrb[0].mxu0
    %v3211 = vadd.f32 %v1260, %v3210
    %v3212 = vpop.f32.mrb[0].mxu0
    %v3213 = vadd.f32 %v1264, %v3212
    %3214 = vdwg.mxu0
    %3215 = vmatprep.subr.mxu0 0.0
    %3216 = vmatpush1.msra.mxu0 %v1209
    %3217 = vmatprep.subr.mxu0 0.0
    %3218 = vmatpush1.msra.mxu0 %v1212
    %3219 = vmatprep.subr.mxu0 0.0
    %3220 = vmatpush1.msra.mxu0 %v1215
    %3221 = vmatprep.subr.mxu0 0.0
    %3222 = vmatpush1.msra.mxu0 %v1218
    %3223 = vmatprep.subr.mxu0 0.0
    %3224 = vmatpush1.msra.mxu0 %v1221
    %3225 = vmatprep.subr.mxu0 0.0
    %3226 = vmatpush1.msra.mxu0 %v1224
    %3227 = vmatprep.subr.mxu0 0.0
    %3228 = vmatpush1.msra.mxu0 %v1227
    %3229 = vmatprep.subr.mxu0 0.0
    %3230 = vmatpush1.msra.mxu0 %v1230
    %3231 = vmatprep.subr.mxu0 0.0
    %3232 = vmatpush1.msra.mxu0 %v1233
    %3233 = vmatprep.subr.mxu0 0.0
    %3234 = vmatpush1.msra.mxu0 %v1236
    %3235 = vmatprep.subr.mxu0 0.0
    %3236 = vmatpush1.msra.mxu0 %v1239
    %3237 = vmatprep.subr.mxu0 0.0
    %3238 = vmatpush1.msra.mxu0 %v1242
    %3239 = vmatprep.subr.mxu0 0.0
    %3240 = vmatpush1.msra.mxu0 %v1245
    %3241 = vmatprep.subr.mxu0 0.0
    %3242 = vmatpush1.msra.mxu0 %v1248
    %3243 = vmatprep.subr.mxu0 0.0
    %3244 = vmatpush1.msra.mxu0 %v1251
    %3245 = vmatprep.subr.mxu0 0.0
    %3246 = vmatpush1.msra.mxu0 %v1254
    %3247 = vmatprep.subr.mxu0 0.0
    %3248 = vmatpush1.msra.mxu0 0.0
    %3249 = vmatprep.subr.mxu0 0.0
    %3250 = vmatpush1.msra.mxu0 0.0
    %3251 = vmatprep.subr.mxu0 0.0
    %3252 = vmatpush1.msra.mxu0 0.0
    %3253 = vmatprep.subr.mxu0 0.0
    %3254 = vmatpush1.msra.mxu0 0.0
    %3255 = vmatprep.subr.mxu0 0.0
    %3256 = vmatpush1.msra.mxu0 0.0
    %3257 = vmatprep.subr.mxu0 0.0
    %3258 = vmatpush1.msra.mxu0 0.0
    %3259 = vmatprep.subr.mxu0 0.0
    %3260 = vmatpush1.msra.mxu0 0.0
    %3261 = vmatprep.subr.mxu0 0.0
    %3262 = vmatpush1.msra.mxu0 0.0
    %3263 = vmatprep.subr.mxu0 0.0
    %3264 = vmatpush1.msra.mxu0 0.0
    %3265 = vmatprep.subr.mxu0 0.0
    %3266 = vmatpush1.msra.mxu0 0.0
    %3267 = vmatprep.subr.mxu0 0.0
    %3268 = vmatpush1.msra.mxu0 0.0
    %3269 = vmatprep.subr.mxu0 0.0
    %3270 = vmatpush1.msra.mxu0 0.0
    %3271 = vmatprep.subr.mxu0 0.0
    %3272 = vmatpush1.msra.mxu0 0.0
    %3273 = vmatprep.subr.mxu0 0.0
    %3274 = vmatpush1.msra.mxu0 0.0
    %3275 = vmatprep.subr.mxu0 0.0
    %3276 = vmatpush1.msra.mxu0 0.0
    %3277 = vmatprep.subr.mxu0 0.0
    %3278 = vmatpush1.msra.mxu0 0.0
    %3279 = vmatprep.mubr.f32.mxu0 0.0
    %3280 = vmatmul.mubr.f32.gmra.mrb[0].mxu0 %v2837
    %v3281 = vpop.f32.mrb[0].mxu0
    %v3282 = vadd.f32 %v1268, %v3281
    %v3283 = vpop.f32.mrb[0].mxu0
    %3284 = vdwg.mxu0
    %v3285 = vadd.f32 %v2905, %v3211
    %v3286 = vadd.f32 %v2907, %v3213
    %v3287 = vxor.u32 %v3285, 2147483648
    %v3288 = vxor.u32 %v3286, 2147483648
    %v3289 = vmul.f32 %v3287, 1.442695
    %v3290 = vpow.pop %v3289
    %v3291 = vmul.f32 %v3288, 1.442695
    %v3292 = vpow.pop %v3291
    %v3293 = vadd.f32 %v3290, 1.0
    %v3294 = vadd.f32 %v3292, 1.0
    %v3295 = vrcp.pop %v3293
    %v3296 = vmul.f32 1.0, %v3295
    %v3297 = vrcp.pop %v3294
    %v3298 = vmul.f32 1.0, %v3297
    %v3299 = vmul.f32 %v3296, %v3282
    %v3300 = vadd.f32 %v2976, %v3299
    %v3301 = vtanh.pop %v3300
    %v3302 = vsub.f32 1.0, %v3298
    %v3303 = vmul.f32 %v3302, %v3301
    %v3304 = vmul.f32 %v3298, %v2837
    %v3305 = vadd.f32 %v3303, %v3304
    %3306 = vmatprep.subr.mxu0 %v837
    %3307 = vmatpush1.msra.mxu0 %v836
    %3308 = vmatprep.subr.mxu0 %v840
    %3309 = vmatpush1.msra.mxu0 %v839
    %3310 = vmatprep.subr.mxu0 %v843
    %3311 = vmatpush1.msra.mxu0 %v842
    %3312 = vmatprep.subr.mxu0 %v846
    %3313 = vmatpush1.msra.mxu0 %v845
    %3314 = vmatprep.subr.mxu0 %v849
    %3315 = vmatpush1.msra.mxu0 %v848
    %3316 = vmatprep.subr.mxu0 %v852
    %3317 = vmatpush1.msra.mxu0 %v851
    %3318 = vmatprep.subr.mxu0 %v855
    %3319 = vmatpush1.msra.mxu0 %v854
    %3320 = vmatprep.subr.mxu0 %v858
    %3321 = vmatpush1.msra.mxu0 %v857
    %3322 = vmatprep.subr.mxu0 %v861
    %3323 = vmatpush1.msra.mxu0 %v860
    %3324 = vmatprep.subr.mxu0 %v864
    %3325 = vmatpush1.msra.mxu0 %v863
    %3326 = vmatprep.subr.mxu0 %v867
    %3327 = vmatpush1.msra.mxu0 %v866
    %3328 = vmatprep.subr.mxu0 %v870
    %3329 = vmatpush1.msra.mxu0 %v869
    %3330 = vmatprep.subr.mxu0 %v873
    %3331 = vmatpush1.msra.mxu0 %v872
    %3332 = vmatprep.subr.mxu0 %v876
    %3333 = vmatpush1.msra.mxu0 %v875
    %3334 = vmatprep.subr.mxu0 %v879
    %3335 = vmatpush1.msra.mxu0 %v878
    %3336 = vmatprep.subr.mxu0 %v882
    %3337 = vmatpush1.msra.mxu0 %v881
    %3338 = vmatprep.subr.mxu0 0.0
    %3339 = vmatpush1.msra.mxu0 0.0
    %3340 = vmatprep.subr.mxu0 0.0
    %3341 = vmatpush1.msra.mxu0 0.0
    %3342 = vmatprep.subr.mxu0 0.0
    %3343 = vmatpush1.msra.mxu0 0.0
    %3344 = vmatprep.subr.mxu0 0.0
    %3345 = vmatpush1.msra.mxu0 0.0
    %3346 = vmatprep.subr.mxu0 0.0
    %3347 = vmatpush1.msra.mxu0 0.0
    %3348 = vmatprep.subr.mxu0 0.0
    %3349 = vmatpush1.msra.mxu0 0.0
    %3350 = vmatprep.subr.mxu0 0.0
    %3351 = vmatpush1.msra.mxu0 0.0
    %3352 = vmatprep.subr.mxu0 0.0
    %3353 = vmatpush1.msra.mxu0 0.0
    %3354 = vmatprep.subr.mxu0 0.0
    %3355 = vmatpush1.msra.mxu0 0.0
    %3356 = vmatprep.subr.mxu0 0.0
    %3357 = vmatpush1.msra.mxu0 0.0
    %3358 = vmatprep.subr.mxu0 0.0
    %3359 = vmatpush1.msra.mxu0 0.0
    %3360 = vmatprep.subr.mxu0 0.0
    %3361 = vmatpush1.msra.mxu0 0.0
    %3362 = vmatprep.subr.mxu0 0.0
    %3363 = vmatpush1.msra.mxu0 0.0
    %3364 = vmatprep.subr.mxu0 0.0
    %3365 = vmatpush1.msra.mxu0 0.0
    %3366 = vmatprep.subr.mxu0 0.0
    %3367 = vmatpush1.msra.mxu0 0.0
    %3368 = vmatprep.subr.mxu0 0.0
    %3369 = vmatpush1.msra.mxu0 0.0
    %3370 = vmatprep.mubr.f32.mxu0 0.0
    %3371 = vmatmul.mubr.f32.gmra.mrb[0].mxu0 %v3143
    %v3372 = vpop.f32.mrb[0].mxu0
    %v3373 = vadd.f32 %v889, %v3372
    %v3374 = vpop.f32.mrb[0].mxu0
    %v3375 = vadd.f32 %v893, %v3374
    %3376 = vdwg.mxu0
    %3377 = vmatprep.subr.mxu0 0.0
    %3378 = vmatpush1.msra.mxu0 %v838
    %3379 = vmatprep.subr.mxu0 0.0
    %3380 = vmatpush1.msra.mxu0 %v841
    %3381 = vmatprep.subr.mxu0 0.0
    %3382 = vmatpush1.msra.mxu0 %v844
    %3383 = vmatprep.subr.mxu0 0.0
    %3384 = vmatpush1.msra.mxu0 %v847
    %3385 = vmatprep.subr.mxu0 0.0
    %3386 = vmatpush1.msra.mxu0 %v850
    %3387 = vmatprep.subr.mxu0 0.0
    %3388 = vmatpush1.msra.mxu0 %v853
    %3389 = vmatprep.subr.mxu0 0.0
    %3390 = vmatpush1.msra.mxu0 %v856
    %3391 = vmatprep.subr.mxu0 0.0
    %3392 = vmatpush1.msra.mxu0 %v859
    %3393 = vmatprep.subr.mxu0 0.0
    %3394 = vmatpush1.msra.mxu0 %v862
    %3395 = vmatprep.subr.mxu0 0.0
    %3396 = vmatpush1.msra.mxu0 %v865
    %3397 = vmatprep.subr.mxu0 0.0
    %3398 = vmatpush1.msra.mxu0 %v868
    %3399 = vmatprep.subr.mxu0 0.0
    %3400 = vmatpush1.msra.mxu0 %v871
    %3401 = vmatprep.subr.mxu0 0.0
    %3402 = vmatpush1.msra.mxu0 %v874
    %3403 = vmatprep.subr.mxu0 0.0
    %3404 = vmatpush1.msra.mxu0 %v877
    %3405 = vmatprep.subr.mxu0 0.0
    %3406 = vmatpush1.msra.mxu0 %v880
    %3407 = vmatprep.subr.mxu0 0.0
    %3408 = vmatpush1.msra.mxu0 %v883
    %3409 = vmatprep.subr.mxu0 0.0
    %3410 = vmatpush1.msra.mxu0 0.0
    %3411 = vmatprep.subr.mxu0 0.0
    %3412 = vmatpush1.msra.mxu0 0.0
    %3413 = vmatprep.subr.mxu0 0.0
    %3414 = vmatpush1.msra.mxu0 0.0
    %3415 = vmatprep.subr.mxu0 0.0
    %3416 = vmatpush1.msra.mxu0 0.0
    %3417 = vmatprep.subr.mxu0 0.0
    %3418 = vmatpush1.msra.mxu0 0.0
    %3419 = vmatprep.subr.mxu0 0.0
    %3420 = vmatpush1.msra.mxu0 0.0
    %3421 = vmatprep.subr.mxu0 0.0
    %3422 = vmatpush1.msra.mxu0 0.0
    %3423 = vmatprep.subr.mxu0 0.0
    %3424 = vmatpush1.msra.mxu0 0.0
    %3425 = vmatprep.subr.mxu0 0.0
    %3426 = vmatpush1.msra.mxu0 0.0
    %3427 = vmatprep.subr.mxu0 0.0
    %3428 = vmatpush1.msra.mxu0 0.0
    %3429 = vmatprep.subr.mxu0 0.0
    %3430 = vmatpush1.msra.mxu0 0.0
    %3431 = vmatprep.subr.mxu0 0.0
    %3432 = vmatpush1.msra.mxu0 0.0
    %3433 = vmatprep.subr.mxu0 0.0
    %3434 = vmatpush1.msra.mxu0 0.0
    %3435 = vmatprep.subr.mxu0 0.0
    %3436 = vmatpush1.msra.mxu0 0.0
    %3437 = vmatprep.subr.mxu0 0.0
    %3438 = vmatpush1.msra.mxu0 0.0
    %3439 = vmatprep.subr.mxu0 0.0
    %3440 = vmatpush1.msra.mxu0 0.0
    %3441 = vmatprep.mubr.f32.mxu0 0.0
    %3442 = vmatmul.mubr.f32.gmra.mrb[0].mxu0 %v3143
    %v3443 = vpop.f32.mrb[0].mxu0
    %v3444 = vadd.f32 %v897, %v3443
    %v3445 = vpop.f32.mrb[0].mxu0
    %3446 = vdwg.mxu0
    %v3447 = vld [vmem:[#allocation2 + $0x90] sm:$0xff]
    %v3448 = vld [vmem:[#allocation2 + $0x98] sm:$0xff]
    %v3449 = vld [vmem:[#allocation2 + $0xa0] sm:$0xff]
    %3450 = vmatprep.subr.mxu0 %v610
    %3451 = vmatpush1.msra.mxu0 %v609
    %3452 = vmatprep.subr.mxu0 %v613
    %3453 = vmatpush1.msra.mxu0 %v612
    %3454 = vmatprep.subr.mxu0 %v616
    %3455 = vmatpush1.msra.mxu0 %v615
    %3456 = vmatprep.subr.mxu0 %v619
    %3457 = vmatpush1.msra.mxu0 %v618
    %3458 = vmatprep.subr.mxu0 %v622
    %3459 = vmatpush1.msra.mxu0 %v621
    %3460 = vmatprep.subr.mxu0 %v625
    %3461 = vmatpush1.msra.mxu0 %v624
    %3462 = vmatprep.subr.mxu0 %v628
    %3463 = vmatpush1.msra.mxu0 %v627
    %3464 = vmatprep.subr.mxu0 %v631
    %3465 = vmatpush1.msra.mxu0 %v630
    %3466 = vmatprep.subr.mxu0 %v634
    %3467 = vmatpush1.msra.mxu0 %v633
    %3468 = vmatprep.subr.mxu0 %v637
    %3469 = vmatpush1.msra.mxu0 %v636
    %3470 = vmatprep.subr.mxu0 %v640
    %3471 = vmatpush1.msra.mxu0 %v639
    %3472 = vmatprep.subr.mxu0 %v643
    %3473 = vmatpush1.msra.mxu0 %v642
    %3474 = vmatprep.subr.mxu0 %v646
    %3475 = vmatpush1.msra.mxu0 %v645
    %3476 = vmatprep.subr.mxu0 %v649
    %3477 = vmatpush1.msra.mxu0 %v648
    %3478 = vmatprep.subr.mxu0 %v652
    %3479 = vmatpush1.msra.mxu0 %v651
    %3480 = vmatprep.subr.mxu0 %v655
    %3481 = vmatpush1.msra.mxu0 %v654
    %3482 = vmatprep.subr.mxu0 0.0
    %3483 = vmatpush1.msra.mxu0 0.0
    %3484 = vmatprep.subr.mxu0 0.0
    %3485 = vmatpush1.msra.mxu0 0.0
    %3486 = vmatprep.subr.mxu0 0.0
    %3487 = vmatpush1.msra.mxu0 0.0
    %3488 = vmatprep.subr.mxu0 0.0
    %3489 = vmatpush1.msra.mxu0 0.0
    %3490 = vmatprep.subr.mxu0 0.0
    %3491 = vmatpush1.msra.mxu0 0.0
    %3492 = vmatprep.subr.mxu0 0.0
    %3493 = vmatpush1.msra.mxu0 0.0
    %3494 = vmatprep.subr.mxu0 0.0
    %3495 = vmatpush1.msra.mxu0 0.0
    %3496 = vmatprep.subr.mxu0 0.0
    %3497 = vmatpush1.msra.mxu0 0.0
    %3498 = vmatprep.subr.mxu0 0.0
    %3499 = vmatpush1.msra.mxu0 0.0
    %3500 = vmatprep.subr.mxu0 0.0
    %3501 = vmatpush1.msra.mxu0 0.0
    %3502 = vmatprep.subr.mxu0 0.0
    %3503 = vmatpush1.msra.mxu0 0.0
    %3504 = vmatprep.subr.mxu0 0.0
    %3505 = vmatpush1.msra.mxu0 0.0
    %3506 = vmatprep.subr.mxu0 0.0
    %3507 = vmatpush1.msra.mxu0 0.0
    %3508 = vmatprep.subr.mxu0 0.0
    %3509 = vmatpush1.msra.mxu0 0.0
    %3510 = vmatprep.subr.mxu0 0.0
    %3511 = vmatpush1.msra.mxu0 0.0
    %3512 = vmatprep.subr.mxu0 0.0
    %3513 = vmatpush1.msra.mxu0 0.0
    %3514 = vmatprep.mubr.f32.mxu0 0.0
    %3515 = vmatmul.mubr.f32.gmra.mrb[0].mxu0 %v3143
    %v3516 = vpop.f32.mrb[0].mxu0
    %v3517 = vadd.f32 %v662, %v3516
    %v3518 = vpop.f32.mrb[0].mxu0
    %v3519 = vadd.f32 %v666, %v3518
    %3520 = vdwg.mxu0
    %3521 = vmatprep.subr.mxu0 0.0
    %3522 = vmatpush1.msra.mxu0 %v611
    %3523 = vmatprep.subr.mxu0 0.0
    %3524 = vmatpush1.msra.mxu0 %v614
    %3525 = vmatprep.subr.mxu0 0.0
    %3526 = vmatpush1.msra.mxu0 %v617
    %3527 = vmatprep.subr.mxu0 0.0
    %3528 = vmatpush1.msra.mxu0 %v620
    %3529 = vmatprep.subr.mxu0 0.0
    %3530 = vmatpush1.msra.mxu0 %v623
    %3531 = vmatprep.subr.mxu0 0.0
    %3532 = vmatpush1.msra.mxu0 %v626
    %3533 = vmatprep.subr.mxu0 0.0
    %3534 = vmatpush1.msra.mxu0 %v629
    %3535 = vmatprep.subr.mxu0 0.0
    %3536 = vmatpush1.msra.mxu0 %v632
    %3537 = vmatprep.subr.mxu0 0.0
    %3538 = vmatpush1.msra.mxu0 %v635
    %3539 = vmatprep.subr.mxu0 0.0
    %3540 = vmatpush1.msra.mxu0 %v638
    %3541 = vmatprep.subr.mxu0 0.0
    %3542 = vmatpush1.msra.mxu0 %v641
    %3543 = vmatprep.subr.mxu0 0.0
    %3544 = vmatpush1.msra.mxu0 %v644
    %3545 = vmatprep.subr.mxu0 0.0
    %3546 = vmatpush1.msra.mxu0 %v647
    %3547 = vmatprep.subr.mxu0 0.0
    %3548 = vmatpush1.msra.mxu0 %v650
    %3549 = vmatprep.subr.mxu0 0.0
    %3550 = vmatpush1.msra.mxu0 %v653
    %3551 = vmatprep.subr.mxu0 0.0
    %3552 = vmatpush1.msra.mxu0 %v656
    %3553 = vmatprep.subr.mxu0 0.0
    %3554 = vmatpush1.msra.mxu0 0.0
    %3555 = vmatprep.subr.mxu0 0.0
    %3556 = vmatpush1.msra.mxu0 0.0
    %3557 = vmatprep.subr.mxu0 0.0
    %3558 = vmatpush1.msra.mxu0 0.0
    %3559 = vmatprep.subr.mxu0 0.0
    %3560 = vmatpush1.msra.mxu0 0.0
    %3561 = vmatprep.subr.mxu0 0.0
    %3562 = vmatpush1.msra.mxu0 0.0
    %3563 = vmatprep.subr.mxu0 0.0
    %3564 = vmatpush1.msra.mxu0 0.0
    %3565 = vmatprep.subr.mxu0 0.0
    %3566 = vmatpush1.msra.mxu0 0.0
    %3567 = vmatprep.subr.mxu0 0.0
    %3568 = vmatpush1.msra.mxu0 0.0
    %3569 = vmatprep.subr.mxu0 0.0
    %3570 = vmatpush1.msra.mxu0 0.0
    %3571 = vmatprep.subr.mxu0 0.0
    %3572 = vmatpush1.msra.mxu0 0.0
    %3573 = vmatprep.subr.mxu0 0.0
    %3574 = vmatpush1.msra.mxu0 0.0
    %3575 = vmatprep.subr.mxu0 0.0
    %3576 = vmatpush1.msra.mxu0 0.0
    %3577 = vmatprep.subr.mxu0 0.0
    %3578 = vmatpush1.msra.mxu0 0.0
    %3579 = vmatprep.subr.mxu0 0.0
    %3580 = vmatpush1.msra.mxu0 0.0
    %3581 = vmatprep.subr.mxu0 0.0
    %3582 = vmatpush1.msra.mxu0 0.0
    %3583 = vmatprep.subr.mxu0 0.0
    %3584 = vmatpush1.msra.mxu0 0.0
    %3585 = vmatprep.mubr.f32.mxu0 0.0
    %3586 = vmatmul.mubr.f32.gmra.mrb[0].mxu0 %v3143
    %v3587 = vpop.f32.mrb[0].mxu0
    %v3588 = vadd.f32 %v670, %v3587
    %v3589 = vpop.f32.mrb[0].mxu0
    %3590 = vdwg.mxu0
    %v3591 = vadd.f32 %v3447, %v3517
    %v3592 = vadd.f32 %v3448, %v3519
    %v3593 = vxor.u32 %v3591, 2147483648
    %v3594 = vxor.u32 %v3592, 2147483648
    %v3595 = vmul.f32 %v3593, 1.442695
    %v3596 = vpow.pop %v3595
    %v3597 = vmul.f32 %v3594, 1.442695
    %v3598 = vpow.pop %v3597
    %v3599 = vadd.f32 %v3596, 1.0
    %v3600 = vadd.f32 %v3598, 1.0
    %v3601 = vrcp.pop %v3599
    %v3602 = vmul.f32 1.0, %v3601
    %v3603 = vrcp.pop %v3600
    %v3604 = vmul.f32 1.0, %v3603
    %v3605 = vmul.f32 %v3602, %v3588
    %v3606 = vadd.f32 %v3449, %v3605
    %v3607 = vtanh.pop %v3606
    %v3608 = vsub.f32 1.0, %v3604
    %v3609 = vmul.f32 %v3608, %v3607
    %v3610 = vmul.f32 %v3604, %v3143
    %v3611 = vadd.f32 %v3609, %v3610
    %3612 = vmatprep.subr.mxu0 %v1208
    %3613 = vmatpush1.msra.mxu0 %v1207
    %3614 = vmatprep.subr.mxu0 %v1211
    %3615 = vmatpush1.msra.mxu0 %v1210
    %3616 = vmatprep.subr.mxu0 %v1214
    %3617 = vmatpush1.msra.mxu0 %v1213
    %3618 = vmatprep.subr.mxu0 %v1217
    %3619 = vmatpush1.msra.mxu0 %v1216
    %3620 = vmatprep.subr.mxu0 %v1220
    %3621 = vmatpush1.msra.mxu0 %v1219
    %3622 = vmatprep.subr.mxu0 %v1223
    %3623 = vmatpush1.msra.mxu0 %v1222
    %3624 = vmatprep.subr.mxu0 %v1226
    %3625 = vmatpush1.msra.mxu0 %v1225
    %3626 = vmatprep.subr.mxu0 %v1229
    %3627 = vmatpush1.msra.mxu0 %v1228
    %3628 = vmatprep.subr.mxu0 %v1232
    %3629 = vmatpush1.msra.mxu0 %v1231
    %3630 = vmatprep.subr.mxu0 %v1235
    %3631 = vmatpush1.msra.mxu0 %v1234
    %3632 = vmatprep.subr.mxu0 %v1238
    %3633 = vmatpush1.msra.mxu0 %v1237
    %3634 = vmatprep.subr.mxu0 %v1241
    %3635 = vmatpush1.msra.mxu0 %v1240
    %3636 = vmatprep.subr.mxu0 %v1244
    %3637 = vmatpush1.msra.mxu0 %v1243
    %3638 = vmatprep.subr.mxu0 %v1247
    %3639 = vmatpush1.msra.mxu0 %v1246
    %3640 = vmatprep.subr.mxu0 %v1250
    %3641 = vmatpush1.msra.mxu0 %v1249
    %3642 = vmatprep.subr.mxu0 %v1253
    %3643 = vmatpush1.msra.mxu0 %v1252
    %3644 = vmatprep.subr.mxu0 0.0
    %3645 = vmatpush1.msra.mxu0 0.0
    %3646 = vmatprep.subr.mxu0 0.0
    %3647 = vmatpush1.msra.mxu0 0.0
    %3648 = vmatprep.subr.mxu0 0.0
    %3649 = vmatpush1.msra.mxu0 0.0
    %3650 = vmatprep.subr.mxu0 0.0
    %3651 = vmatpush1.msra.mxu0 0.0
    %3652 = vmatprep.subr.mxu0 0.0
    %3653 = vmatpush1.msra.mxu0 0.0
    %3654 = vmatprep.subr.mxu0 0.0
    %3655 = vmatpush1.msra.mxu0 0.0
    %3656 = vmatprep.subr.mxu0 0.0
    %3657 = vmatpush1.msra.mxu0 0.0
    %3658 = vmatprep.subr.mxu0 0.0
    %3659 = vmatpush1.msra.mxu0 0.0
    %3660 = vmatprep.subr.mxu0 0.0
    %3661 = vmatpush1.msra.mxu0 0.0
    %3662 = vmatprep.subr.mxu0 0.0
    %3663 = vmatpush1.msra.mxu0 0.0
    %3664 = vmatprep.subr.mxu0 0.0
    %3665 = vmatpush1.msra.mxu0 0.0
    %3666 = vmatprep.subr.mxu0 0.0
    %3667 = vmatpush1.msra.mxu0 0.0
    %3668 = vmatprep.subr.mxu0 0.0
    %3669 = vmatpush1.msra.mxu0 0.0
    %3670 = vmatprep.subr.mxu0 0.0
    %3671 = vmatpush1.msra.mxu0 0.0
    %3672 = vmatprep.subr.mxu0 0.0
    %3673 = vmatpush1.msra.mxu0 0.0
    %3674 = vmatprep.subr.mxu0 0.0
    %3675 = vmatpush1.msra.mxu0 0.0
    %3676 = vmatprep.mubr.f32.mxu0 0.0
    %3677 = vmatmul.mubr.f32.gmra.mrb[0].mxu0 %v3305
    %v3678 = vpop.f32.mrb[0].mxu0
    %v3679 = vadd.f32 %v1260, %v3678
    %v3680 = vpop.f32.mrb[0].mxu0
    %v3681 = vadd.f32 %v1264, %v3680
    %3682 = vdwg.mxu0
    %3683 = vmatprep.subr.mxu0 0.0
    %3684 = vmatpush1.msra.mxu0 %v1209
    %3685 = vmatprep.subr.mxu0 0.0
    %3686 = vmatpush1.msra.mxu0 %v1212
    %3687 = vmatprep.subr.mxu0 0.0
    %3688 = vmatpush1.msra.mxu0 %v1215
    %3689 = vmatprep.subr.mxu0 0.0
    %3690 = vmatpush1.msra.mxu0 %v1218
    %3691 = vmatprep.subr.mxu0 0.0
    %3692 = vmatpush1.msra.mxu0 %v1221
    %3693 = vmatprep.subr.mxu0 0.0
    %3694 = vmatpush1.msra.mxu0 %v1224
    %3695 = vmatprep.subr.mxu0 0.0
    %3696 = vmatpush1.msra.mxu0 %v1227
    %3697 = vmatprep.subr.mxu0 0.0
    %3698 = vmatpush1.msra.mxu0 %v1230
    %3699 = vmatprep.subr.mxu0 0.0
    %3700 = vmatpush1.msra.mxu0 %v1233
    %3701 = vmatprep.subr.mxu0 0.0
    %3702 = vmatpush1.msra.mxu0 %v1236
    %3703 = vmatprep.subr.mxu0 0.0
    %3704 = vmatpush1.msra.mxu0 %v1239
    %3705 = vmatprep.subr.mxu0 0.0
    %3706 = vmatpush1.msra.mxu0 %v1242
    %3707 = vmatprep.subr.mxu0 0.0
    %3708 = vmatpush1.msra.mxu0 %v1245
    %3709 = vmatprep.subr.mxu0 0.0
    %3710 = vmatpush1.msra.mxu0 %v1248
    %3711 = vmatprep.subr.mxu0 0.0
    %3712 = vmatpush1.msra.mxu0 %v1251
    %3713 = vmatprep.subr.mxu0 0.0
    %3714 = vmatpush1.msra.mxu0 %v1254
    %3715 = vmatprep.subr.mxu0 0.0
    %3716 = vmatpush1.msra.mxu0 0.0
    %3717 = vmatprep.subr.mxu0 0.0
    %3718 = vmatpush1.msra.mxu0 0.0
    %3719 = vmatprep.subr.mxu0 0.0
    %3720 = vmatpush1.msra.mxu0 0.0
    %3721 = vmatprep.subr.mxu0 0.0
    %3722 = vmatpush1.msra.mxu0 0.0
    %3723 = vmatprep.subr.mxu0 0.0
    %3724 = vmatpush1.msra.mxu0 0.0
    %3725 = vmatprep.subr.mxu0 0.0
    %3726 = vmatpush1.msra.mxu0 0.0
    %3727 = vmatprep.subr.mxu0 0.0
    %3728 = vmatpush1.msra.mxu0 0.0
    %3729 = vmatprep.subr.mxu0 0.0
    %3730 = vmatpush1.msra.mxu0 0.0
    %3731 = vmatprep.subr.mxu0 0.0
    %3732 = vmatpush1.msra.mxu0 0.0
    %3733 = vmatprep.subr.mxu0 0.0
    %3734 = vmatpush1.msra.mxu0 0.0
    %3735 = vmatprep.subr.mxu0 0.0
    %3736 = vmatpush1.msra.mxu0 0.0
    %3737 = vmatprep.subr.mxu0 0.0
    %3738 = vmatpush1.msra.mxu0 0.0
    %3739 = vmatprep.subr.mxu0 0.0
    %3740 = vmatpush1.msra.mxu0 0.0
    %3741 = vmatprep.subr.mxu0 0.0
    %3742 = vmatpush1.msra.mxu0 0.0
    %3743 = vmatprep.subr.mxu0 0.0
    %3744 = vmatpush1.msra.mxu0 0.0
    %3745 = vmatprep.subr.mxu0 0.0
    %3746 = vmatpush1.msra.mxu0 0.0
    %3747 = vmatprep.mubr.f32.mxu0 0.0
    %3748 = vmatmul.mubr.f32.gmra.mrb[0].mxu0 %v3305
    %v3749 = vpop.f32.mrb[0].mxu0
    %v3750 = vadd.f32 %v1268, %v3749
    %v3751 = vpop.f32.mrb[0].mxu0
    %3752 = vdwg.mxu0
    %v3753 = vadd.f32 %v3373, %v3679
    %v3754 = vadd.f32 %v3375, %v3681
    %v3755 = vxor.u32 %v3753, 2147483648
    %v3756 = vxor.u32 %v3754, 2147483648
    %v3757 = vmul.f32 %v3755, 1.442695
    %v3758 = vpow.pop %v3757
    %v3759 = vmul.f32 %v3756, 1.442695
    %v3760 = vpow.pop %v3759
    %v3761 = vadd.f32 %v3758, 1.0
    %v3762 = vadd.f32 %v3760, 1.0
    %v3763 = vrcp.pop %v3761
    %v3764 = vmul.f32 1.0, %v3763
    %v3765 = vrcp.pop %v3762
    %v3766 = vmul.f32 1.0, %v3765
    %v3767 = vmul.f32 %v3764, %v3750
    %v3768 = vadd.f32 %v3444, %v3767
    %v3769 = vtanh.pop %v3768
    %v3770 = vsub.f32 1.0, %v3766
    %v3771 = vmul.f32 %v3770, %v3769
    %v3772 = vmul.f32 %v3766, %v3305
    %v3773 = vadd.f32 %v3771, %v3772
    %3774 = vmatprep.subr.mxu0 %v837
    %3775 = vmatpush1.msra.mxu0 %v836
    %3776 = vmatprep.subr.mxu0 %v840
    %3777 = vmatpush1.msra.mxu0 %v839
    %3778 = vmatprep.subr.mxu0 %v843
    %3779 = vmatpush1.msra.mxu0 %v842
    %3780 = vmatprep.subr.mxu0 %v846
    %3781 = vmatpush1.msra.mxu0 %v845
    %3782 = vmatprep.subr.mxu0 %v849
    %3783 = vmatpush1.msra.mxu0 %v848
    %3784 = vmatprep.subr.mxu0 %v852
    %3785 = vmatpush1.msra.mxu0 %v851
    %3786 = vmatprep.subr.mxu0 %v855
    %3787 = vmatpush1.msra.mxu0 %v854
    %3788 = vmatprep.subr.mxu0 %v858
    %3789 = vmatpush1.msra.mxu0 %v857
    %3790 = vmatprep.subr.mxu0 %v861
    %3791 = vmatpush1.msra.mxu0 %v860
    %3792 = vmatprep.subr.mxu0 %v864
    %3793 = vmatpush1.msra.mxu0 %v863
    %3794 = vmatprep.subr.mxu0 %v867
    %3795 = vmatpush1.msra.mxu0 %v866
    %3796 = vmatprep.subr.mxu0 %v870
    %3797 = vmatpush1.msra.mxu0 %v869
    %3798 = vmatprep.subr.mxu0 %v873
    %3799 = vmatpush1.msra.mxu0 %v872
    %3800 = vmatprep.subr.mxu0 %v876
    %3801 = vmatpush1.msra.mxu0 %v875
    %3802 = vmatprep.subr.mxu0 %v879
    %3803 = vmatpush1.msra.mxu0 %v878
    %3804 = vmatprep.subr.mxu0 %v882
    %3805 = vmatpush1.msra.mxu0 %v881
    %3806 = vmatprep.subr.mxu0 0.0
    %3807 = vmatpush1.msra.mxu0 0.0
    %3808 = vmatprep.subr.mxu0 0.0
    %3809 = vmatpush1.msra.mxu0 0.0
    %3810 = vmatprep.subr.mxu0 0.0
    %3811 = vmatpush1.msra.mxu0 0.0
    %3812 = vmatprep.subr.mxu0 0.0
    %3813 = vmatpush1.msra.mxu0 0.0
    %3814 = vmatprep.subr.mxu0 0.0
    %3815 = vmatpush1.msra.mxu0 0.0
    %3816 = vmatprep.subr.mxu0 0.0
    %3817 = vmatpush1.msra.mxu0 0.0
    %3818 = vmatprep.subr.mxu0 0.0
    %3819 = vmatpush1.msra.mxu0 0.0
    %3820 = vmatprep.subr.mxu0 0.0
    %3821 = vmatpush1.msra.mxu0 0.0
    %3822 = vmatprep.subr.mxu0 0.0
    %3823 = vmatpush1.msra.mxu0 0.0
    %3824 = vmatprep.subr.mxu0 0.0
    %3825 = vmatpush1.msra.mxu0 0.0
    %3826 = vmatprep.subr.mxu0 0.0
    %3827 = vmatpush1.msra.mxu0 0.0
    %3828 = vmatprep.subr.mxu0 0.0
    %3829 = vmatpush1.msra.mxu0 0.0
    %3830 = vmatprep.subr.mxu0 0.0
    %3831 = vmatpush1.msra.mxu0 0.0
    %3832 = vmatprep.subr.mxu0 0.0
    %3833 = vmatpush1.msra.mxu0 0.0
    %3834 = vmatprep.subr.mxu0 0.0
    %3835 = vmatpush1.msra.mxu0 0.0
    %3836 = vmatprep.subr.mxu0 0.0
    %3837 = vmatpush1.msra.mxu0 0.0
    %3838 = vmatprep.mubr.f32.mxu0 0.0
    %3839 = vmatmul.mubr.f32.gmra.mrb[0].mxu0 %v3611
    %v3840 = vpop.f32.mrb[0].mxu0
    %v3841 = vadd.f32 %v889, %v3840
    %v3842 = vpop.f32.mrb[0].mxu0
    %v3843 = vadd.f32 %v893, %v3842
    %3844 = vdwg.mxu0
    %3845 = vmatprep.subr.mxu0 0.0
    %3846 = vmatpush1.msra.mxu0 %v838
    %3847 = vmatprep.subr.mxu0 0.0
    %3848 = vmatpush1.msra.mxu0 %v841
    %3849 = vmatprep.subr.mxu0 0.0
    %3850 = vmatpush1.msra.mxu0 %v844
    %3851 = vmatprep.subr.mxu0 0.0
    %3852 = vmatpush1.msra.mxu0 %v847
    %3853 = vmatprep.subr.mxu0 0.0
    %3854 = vmatpush1.msra.mxu0 %v850
    %3855 = vmatprep.subr.mxu0 0.0
    %3856 = vmatpush1.msra.mxu0 %v853
    %3857 = vmatprep.subr.mxu0 0.0
    %3858 = vmatpush1.msra.mxu0 %v856
    %3859 = vmatprep.subr.mxu0 0.0
    %3860 = vmatpush1.msra.mxu0 %v859
    %3861 = vmatprep.subr.mxu0 0.0
    %3862 = vmatpush1.msra.mxu0 %v862
    %3863 = vmatprep.subr.mxu0 0.0
    %3864 = vmatpush1.msra.mxu0 %v865
    %3865 = vmatprep.subr.mxu0 0.0
    %3866 = vmatpush1.msra.mxu0 %v868
    %3867 = vmatprep.subr.mxu0 0.0
    %3868 = vmatpush1.msra.mxu0 %v871
    %3869 = vmatprep.subr.mxu0 0.0
    %3870 = vmatpush1.msra.mxu0 %v874
    %3871 = vmatprep.subr.mxu0 0.0
    %3872 = vmatpush1.msra.mxu0 %v877
    %3873 = vmatprep.subr.mxu0 0.0
    %3874 = vmatpush1.msra.mxu0 %v880
    %3875 = vmatprep.subr.mxu0 0.0
    %3876 = vmatpush1.msra.mxu0 %v883
    %3877 = vmatprep.subr.mxu0 0.0
    %3878 = vmatpush1.msra.mxu0 0.0
    %3879 = vmatprep.subr.mxu0 0.0
    %3880 = vmatpush1.msra.mxu0 0.0
    %3881 = vmatprep.subr.mxu0 0.0
    %3882 = vmatpush1.msra.mxu0 0.0
    %3883 = vmatprep.subr.mxu0 0.0
    %3884 = vmatpush1.msra.mxu0 0.0
    %3885 = vmatprep.subr.mxu0 0.0
    %3886 = vmatpush1.msra.mxu0 0.0
    %3887 = vmatprep.subr.mxu0 0.0
    %3888 = vmatpush1.msra.mxu0 0.0
    %3889 = vmatprep.subr.mxu0 0.0
    %3890 = vmatpush1.msra.mxu0 0.0
    %3891 = vmatprep.subr.mxu0 0.0
    %3892 = vmatpush1.msra.mxu0 0.0
    %3893 = vmatprep.subr.mxu0 0.0
    %3894 = vmatpush1.msra.mxu0 0.0
    %3895 = vmatprep.subr.mxu0 0.0
    %3896 = vmatpush1.msra.mxu0 0.0
    %3897 = vmatprep.subr.mxu0 0.0
    %3898 = vmatpush1.msra.mxu0 0.0
    %3899 = vmatprep.subr.mxu0 0.0
    %3900 = vmatpush1.msra.mxu0 0.0
    %3901 = vmatprep.subr.mxu0 0.0
    %3902 = vmatpush1.msra.mxu0 0.0
    %3903 = vmatprep.subr.mxu0 0.0
    %3904 = vmatpush1.msra.mxu0 0.0
    %3905 = vmatprep.subr.mxu0 0.0
    %3906 = vmatpush1.msra.mxu0 0.0
    %3907 = vmatprep.subr.mxu0 0.0
    %3908 = vmatpush1.msra.mxu0 0.0
    %3909 = vmatprep.mubr.f32.mxu0 0.0
    %3910 = vmatmul.mubr.f32.gmra.mrb[0].mxu0 %v3611
    %v3911 = vpop.f32.mrb[0].mxu0
    %v3912 = vadd.f32 %v897, %v3911
    %v3913 = vpop.f32.mrb[0].mxu0
    %3914 = vdwg.mxu0
    %v3915 = vld [vmem:[#allocation2 + $0xa8] sm:$0xff]
    %v3916 = vld [vmem:[#allocation2 + $0xb0] sm:$0xff]
    %v3917 = vld [vmem:[#allocation2 + $0xb8] sm:$0xff]
    %3918 = vmatprep.subr.mxu0 %v610
    %3919 = vmatpush1.msra.mxu0 %v609
    %3920 = vmatprep.subr.mxu0 %v613
    %3921 = vmatpush1.msra.mxu0 %v612
    %3922 = vmatprep.subr.mxu0 %v616
    %3923 = vmatpush1.msra.mxu0 %v615
    %3924 = vmatprep.subr.mxu0 %v619
    %3925 = vmatpush1.msra.mxu0 %v618
    %3926 = vmatprep.subr.mxu0 %v622
    %3927 = vmatpush1.msra.mxu0 %v621
    %3928 = vmatprep.subr.mxu0 %v625
    %3929 = vmatpush1.msra.mxu0 %v624
    %3930 = vmatprep.subr.mxu0 %v628
    %3931 = vmatpush1.msra.mxu0 %v627
    %3932 = vmatprep.subr.mxu0 %v631
    %3933 = vmatpush1.msra.mxu0 %v630
    %3934 = vmatprep.subr.mxu0 %v634
    %3935 = vmatpush1.msra.mxu0 %v633
    %3936 = vmatprep.subr.mxu0 %v637
    %3937 = vmatpush1.msra.mxu0 %v636
    %3938 = vmatprep.subr.mxu0 %v640
    %3939 = vmatpush1.msra.mxu0 %v639
    %3940 = vmatprep.subr.mxu0 %v643
    %3941 = vmatpush1.msra.mxu0 %v642
    %3942 = vmatprep.subr.mxu0 %v646
    %3943 = vmatpush1.msra.mxu0 %v645
    %3944 = vmatprep.subr.mxu0 %v649
    %3945 = vmatpush1.msra.mxu0 %v648
    %3946 = vmatprep.subr.mxu0 %v652
    %3947 = vmatpush1.msra.mxu0 %v651
    %3948 = vmatprep.subr.mxu0 %v655
    %3949 = vmatpush1.msra.mxu0 %v654
    %3950 = vmatprep.subr.mxu0 0.0
    %3951 = vmatpush1.msra.mxu0 0.0
    %3952 = vmatprep.subr.mxu0 0.0
    %3953 = vmatpush1.msra.mxu0 0.0
    %3954 = vmatprep.subr.mxu0 0.0
    %3955 = vmatpush1.msra.mxu0 0.0
    %3956 = vmatprep.subr.mxu0 0.0
    %3957 = vmatpush1.msra.mxu0 0.0
    %3958 = vmatprep.subr.mxu0 0.0
    %3959 = vmatpush1.msra.mxu0 0.0
    %3960 = vmatprep.subr.mxu0 0.0
    %3961 = vmatpush1.msra.mxu0 0.0
    %3962 = vmatprep.subr.mxu0 0.0
    %3963 = vmatpush1.msra.mxu0 0.0
    %3964 = vmatprep.subr.mxu0 0.0
    %3965 = vmatpush1.msra.mxu0 0.0
    %3966 = vmatprep.subr.mxu0 0.0
    %3967 = vmatpush1.msra.mxu0 0.0
    %3968 = vmatprep.subr.mxu0 0.0
    %3969 = vmatpush1.msra.mxu0 0.0
    %3970 = vmatprep.subr.mxu0 0.0
    %3971 = vmatpush1.msra.mxu0 0.0
    %3972 = vmatprep.subr.mxu0 0.0
    %3973 = vmatpush1.msra.mxu0 0.0
    %3974 = vmatprep.subr.mxu0 0.0
    %3975 = vmatpush1.msra.mxu0 0.0
    %3976 = vmatprep.subr.mxu0 0.0
    %3977 = vmatpush1.msra.mxu0 0.0
    %3978 = vmatprep.subr.mxu0 0.0
    %3979 = vmatpush1.msra.mxu0 0.0
    %3980 = vmatprep.subr.mxu0 0.0
    %3981 = vmatpush1.msra.mxu0 0.0
    %3982 = vmatprep.mubr.f32.mxu0 0.0
    %3983 = vmatmul.mubr.f32.gmra.mrb[0].mxu0 %v3611
    %v3984 = vpop.f32.mrb[0].mxu0
    %v3985 = vadd.f32 %v662, %v3984
    %v3986 = vpop.f32.mrb[0].mxu0
    %v3987 = vadd.f32 %v666, %v3986
    %3988 = vdwg.mxu0
    %3989 = vmatprep.subr.mxu0 0.0
    %3990 = vmatpush1.msra.mxu0 %v611
    %3991 = vmatprep.subr.mxu0 0.0
    %3992 = vmatpush1.msra.mxu0 %v614
    %3993 = vmatprep.subr.mxu0 0.0
    %3994 = vmatpush1.msra.mxu0 %v617
    %3995 = vmatprep.subr.mxu0 0.0
    %3996 = vmatpush1.msra.mxu0 %v620
    %3997 = vmatprep.subr.mxu0 0.0
    %3998 = vmatpush1.msra.mxu0 %v623
    %3999 = vmatprep.subr.mxu0 0.0
    %4000 = vmatpush1.msra.mxu0 %v626
    %4001 = vmatprep.subr.mxu0 0.0
    %4002 = vmatpush1.msra.mxu0 %v629
    %4003 = vmatprep.subr.mxu0 0.0
    %4004 = vmatpush1.msra.mxu0 %v632
    %4005 = vmatprep.subr.mxu0 0.0
    %4006 = vmatpush1.msra.mxu0 %v635
    %4007 = vmatprep.subr.mxu0 0.0
    %4008 = vmatpush1.msra.mxu0 %v638
    %4009 = vmatprep.subr.mxu0 0.0
    %4010 = vmatpush1.msra.mxu0 %v641
    %4011 = vmatprep.subr.mxu0 0.0
    %4012 = vmatpush1.msra.mxu0 %v644
    %4013 = vmatprep.subr.mxu0 0.0
    %4014 = vmatpush1.msra.mxu0 %v647
    %4015 = vmatprep.subr.mxu0 0.0
    %4016 = vmatpush1.msra.mxu0 %v650
    %4017 = vmatprep.subr.mxu0 0.0
    %4018 = vmatpush1.msra.mxu0 %v653
    %4019 = vmatprep.subr.mxu0 0.0
    %4020 = vmatpush1.msra.mxu0 %v656
    %4021 = vmatprep.subr.mxu0 0.0
    %4022 = vmatpush1.msra.mxu0 0.0
    %4023 = vmatprep.subr.mxu0 0.0
    %4024 = vmatpush1.msra.mxu0 0.0
    %4025 = vmatprep.subr.mxu0 0.0
    %4026 = vmatpush1.msra.mxu0 0.0
    %4027 = vmatprep.subr.mxu0 0.0
    %4028 = vmatpush1.msra.mxu0 0.0
    %4029 = vmatprep.subr.mxu0 0.0
    %4030 = vmatpush1.msra.mxu0 0.0
    %4031 = vmatprep.subr.mxu0 0.0
    %4032 = vmatpush1.msra.mxu0 0.0
    %4033 = vmatprep.subr.mxu0 0.0
    %4034 = vmatpush1.msra.mxu0 0.0
    %4035 = vmatprep.subr.mxu0 0.0
    %4036 = vmatpush1.msra.mxu0 0.0
    %4037 = vmatprep.subr.mxu0 0.0
    %4038 = vmatpush1.msra.mxu0 0.0
    %4039 = vmatprep.subr.mxu0 0.0
    %4040 = vmatpush1.msra.mxu0 0.0
    %4041 = vmatprep.subr.mxu0 0.0
    %4042 = vmatpush1.msra.mxu0 0.0
    %4043 = vmatprep.subr.mxu0 0.0
    %4044 = vmatpush1.msra.mxu0 0.0
    %4045 = vmatprep.subr.mxu0 0.0
    %4046 = vmatpush1.msra.mxu0 0.0
    %4047 = vmatprep.subr.mxu0 0.0
    %4048 = vmatpush1.msra.mxu0 0.0
    %4049 = vmatprep.subr.mxu0 0.0
    %4050 = vmatpush1.msra.mxu0 0.0
    %4051 = vmatprep.subr.mxu0 0.0
    %4052 = vmatpush1.msra.mxu0 0.0
    %4053 = vmatprep.mubr.f32.mxu0 0.0
    %4054 = vmatmul.mubr.f32.gmra.mrb[0].mxu0 %v3611
    %v4055 = vpop.f32.mrb[0].mxu0
    %v4056 = vadd.f32 %v670, %v4055
    %v4057 = vpop.f32.mrb[0].mxu0
    %4058 = vdwg.mxu0
    %v4059 = vadd.f32 %v3915, %v3985
    %v4060 = vadd.f32 %v3916, %v3987
    %v4061 = vxor.u32 %v4059, 2147483648
    %v4062 = vxor.u32 %v4060, 2147483648
    %v4063 = vmul.f32 %v4061, 1.442695
    %v4064 = vpow.pop %v4063
    %v4065 = vmul.f32 %v4062, 1.442695
    %v4066 = vpow.pop %v4065
    %v4067 = vadd.f32 %v4064, 1.0
    %v4068 = vadd.f32 %v4066, 1.0
    %v4069 = vrcp.pop %v4067
    %v4070 = vmul.f32 1.0, %v4069
    %v4071 = vrcp.pop %v4068
    %v4072 = vmul.f32 1.0, %v4071
    %v4073 = vmul.f32 %v4070, %v4056
    %v4074 = vadd.f32 %v3917, %v4073
    %v4075 = vtanh.pop %v4074
    %v4076 = vsub.f32 1.0, %v4072
    %v4077 = vmul.f32 %v4076, %v4075
    %v4078 = vmul.f32 %v4072, %v3611
    %v4079 = vadd.f32 %v4077, %v4078
    %4080 = vmatprep.subr.mxu0 %v1208
    %4081 = vmatpush1.msra.mxu0 %v1207
    %4082 = vmatprep.subr.mxu0 %v1211
    %4083 = vmatpush1.msra.mxu0 %v1210
    %4084 = vmatprep.subr.mxu0 %v1214
    %4085 = vmatpush1.msra.mxu0 %v1213
    %4086 = vmatprep.subr.mxu0 %v1217
    %4087 = vmatpush1.msra.mxu0 %v1216
    %4088 = vmatprep.subr.mxu0 %v1220
    %4089 = vmatpush1.msra.mxu0 %v1219
    %4090 = vmatprep.subr.mxu0 %v1223
    %4091 = vmatpush1.msra.mxu0 %v1222
    %4092 = vmatprep.subr.mxu0 %v1226
    %4093 = vmatpush1.msra.mxu0 %v1225
    %4094 = vmatprep.subr.mxu0 %v1229
    %4095 = vmatpush1.msra.mxu0 %v1228
    %4096 = vmatprep.subr.mxu0 %v1232
    %4097 = vmatpush1.msra.mxu0 %v1231
    %4098 = vmatprep.subr.mxu0 %v1235
    %4099 = vmatpush1.msra.mxu0 %v1234
    %4100 = vmatprep.subr.mxu0 %v1238
    %4101 = vmatpush1.msra.mxu0 %v1237
    %4102 = vmatprep.subr.mxu0 %v1241
    %4103 = vmatpush1.msra.mxu0 %v1240
    %4104 = vmatprep.subr.mxu0 %v1244
    %4105 = vmatpush1.msra.mxu0 %v1243
    %4106 = vmatprep.subr.mxu0 %v1247
    %4107 = vmatpush1.msra.mxu0 %v1246
    %4108 = vmatprep.subr.mxu0 %v1250
    %4109 = vmatpush1.msra.mxu0 %v1249
    %4110 = vmatprep.subr.mxu0 %v1253
    %4111 = vmatpush1.msra.mxu0 %v1252
    %4112 = vmatprep.subr.mxu0 0.0
    %4113 = vmatpush1.msra.mxu0 0.0
    %4114 = vmatprep.subr.mxu0 0.0
    %4115 = vmatpush1.msra.mxu0 0.0
    %4116 = vmatprep.subr.mxu0 0.0
    %4117 = vmatpush1.msra.mxu0 0.0
    %4118 = vmatprep.subr.mxu0 0.0
    %4119 = vmatpush1.msra.mxu0 0.0
    %4120 = vmatprep.subr.mxu0 0.0
    %4121 = vmatpush1.msra.mxu0 0.0
    %4122 = vmatprep.subr.mxu0 0.0
    %4123 = vmatpush1.msra.mxu0 0.0
    %4124 = vmatprep.subr.mxu0 0.0
    %4125 = vmatpush1.msra.mxu0 0.0
    %4126 = vmatprep.subr.mxu0 0.0
    %4127 = vmatpush1.msra.mxu0 0.0
    %4128 = vmatprep.subr.mxu0 0.0
    %4129 = vmatpush1.msra.mxu0 0.0
    %4130 = vmatprep.subr.mxu0 0.0
    %4131 = vmatpush1.msra.mxu0 0.0
    %4132 = vmatprep.subr.mxu0 0.0
    %4133 = vmatpush1.msra.mxu0 0.0
    %4134 = vmatprep.subr.mxu0 0.0
    %4135 = vmatpush1.msra.mxu0 0.0
    %4136 = vmatprep.subr.mxu0 0.0
    %4137 = vmatpush1.msra.mxu0 0.0
    %4138 = vmatprep.subr.mxu0 0.0
    %4139 = vmatpush1.msra.mxu0 0.0
    %4140 = vmatprep.subr.mxu0 0.0
    %4141 = vmatpush1.msra.mxu0 0.0
    %4142 = vmatprep.subr.mxu0 0.0
    %4143 = vmatpush1.msra.mxu0 0.0
    %4144 = vmatprep.mubr.f32.mxu0 0.0
    %4145 = vmatmul.mubr.f32.gmra.mrb[0].mxu0 %v3773
    %v4146 = vpop.f32.mrb[0].mxu0
    %v4147 = vadd.f32 %v1260, %v4146
    %v4148 = vpop.f32.mrb[0].mxu0
    %v4149 = vadd.f32 %v1264, %v4148
    %4150 = vdwg.mxu0
    %4151 = vmatprep.subr.mxu0 0.0
    %4152 = vmatpush1.msra.mxu0 %v1209
    %4153 = vmatprep.subr.mxu0 0.0
    %4154 = vmatpush1.msra.mxu0 %v1212
    %4155 = vmatprep.subr.mxu0 0.0
    %4156 = vmatpush1.msra.mxu0 %v1215
    %4157 = vmatprep.subr.mxu0 0.0
    %4158 = vmatpush1.msra.mxu0 %v1218
    %4159 = vmatprep.subr.mxu0 0.0
    %4160 = vmatpush1.msra.mxu0 %v1221
    %4161 = vmatprep.subr.mxu0 0.0
    %4162 = vmatpush1.msra.mxu0 %v1224
    %4163 = vmatprep.subr.mxu0 0.0
    %4164 = vmatpush1.msra.mxu0 %v1227
    %4165 = vmatprep.subr.mxu0 0.0
    %4166 = vmatpush1.msra.mxu0 %v1230
    %4167 = vmatprep.subr.mxu0 0.0
    %4168 = vmatpush1.msra.mxu0 %v1233
    %4169 = vmatprep.subr.mxu0 0.0
    %4170 = vmatpush1.msra.mxu0 %v1236
    %4171 = vmatprep.subr.mxu0 0.0
    %4172 = vmatpush1.msra.mxu0 %v1239
    %4173 = vmatprep.subr.mxu0 0.0
    %4174 = vmatpush1.msra.mxu0 %v1242
    %4175 = vmatprep.subr.mxu0 0.0
    %4176 = vmatpush1.msra.mxu0 %v1245
    %4177 = vmatprep.subr.mxu0 0.0
    %4178 = vmatpush1.msra.mxu0 %v1248
    %4179 = vmatprep.subr.mxu0 0.0
    %4180 = vmatpush1.msra.mxu0 %v1251
    %4181 = vmatprep.subr.mxu0 0.0
    %4182 = vmatpush1.msra.mxu0 %v1254
    %4183 = vmatprep.subr.mxu0 0.0
    %4184 = vmatpush1.msra.mxu0 0.0
    %4185 = vmatprep.subr.mxu0 0.0
    %4186 = vmatpush1.msra.mxu0 0.0
    %4187 = vmatprep.subr.mxu0 0.0
    %4188 = vmatpush1.msra.mxu0 0.0
    %4189 = vmatprep.subr.mxu0 0.0
    %4190 = vmatpush1.msra.mxu0 0.0
    %4191 = vmatprep.subr.mxu0 0.0
    %4192 = vmatpush1.msra.mxu0 0.0
    %4193 = vmatprep.subr.mxu0 0.0
    %4194 = vmatpush1.msra.mxu0 0.0
    %4195 = vmatprep.subr.mxu0 0.0
    %4196 = vmatpush1.msra.mxu0 0.0
    %4197 = vmatprep.subr.mxu0 0.0
    %4198 = vmatpush1.msra.mxu0 0.0
    %4199 = vmatprep.subr.mxu0 0.0
    %4200 = vmatpush1.msra.mxu0 0.0
    %4201 = vmatprep.subr.mxu0 0.0
    %4202 = vmatpush1.msra.mxu0 0.0
    %4203 = vmatprep.subr.mxu0 0.0
    %4204 = vmatpush1.msra.mxu0 0.0
    %4205 = vmatprep.subr.mxu0 0.0
    %4206 = vmatpush1.msra.mxu0 0.0
    %4207 = vmatprep.subr.mxu0 0.0
    %4208 = vmatpush1.msra.mxu0 0.0
    %4209 = vmatprep.subr.mxu0 0.0
    %4210 = vmatpush1.msra.mxu0 0.0
    %4211 = vmatprep.subr.mxu0 0.0
    %4212 = vmatpush1.msra.mxu0 0.0
    %4213 = vmatprep.subr.mxu0 0.0
    %4214 = vmatpush1.msra.mxu0 0.0
    %4215 = vmatprep.mubr.f32.mxu0 0.0
    %4216 = vmatmul.mubr.f32.gmra.mrb[0].mxu0 %v3773
    %v4217 = vpop.f32.mrb[0].mxu0
    %v4218 = vadd.f32 %v1268, %v4217
    %v4219 = vpop.f32.mrb[0].mxu0
    %4220 = vdwg.mxu0
    %v4221 = vadd.f32 %v3841, %v4147
    %v4222 = vadd.f32 %v3843, %v4149
    %v4223 = vxor.u32 %v4221, 2147483648
    %v4224 = vxor.u32 %v4222, 2147483648
    %v4225 = vmul.f32 %v4223, 1.442695
    %v4226 = vpow.pop %v4225
    %v4227 = vmul.f32 %v4224, 1.442695
    %v4228 = vpow.pop %v4227
    %v4229 = vadd.f32 %v4226, 1.0
    %v4230 = vadd.f32 %v4228, 1.0
    %v4231 = vrcp.pop %v4229
    %v4232 = vmul.f32 1.0, %v4231
    %v4233 = vrcp.pop %v4230
    %v4234 = vmul.f32 1.0, %v4233
    %v4235 = vmul.f32 %v4232, %v4218
    %v4236 = vadd.f32 %v3912, %v4235
    %v4237 = vtanh.pop %v4236
    %v4238 = vsub.f32 1.0, %v4234
    %v4239 = vmul.f32 %v4238, %v4237
    %v4240 = vmul.f32 %v4234, %v3773
    %v4241 = vadd.f32 %v4239, %v4240
    %4242 = vmatprep.subr.mxu0 %v837
    %4243 = vmatpush1.msra.mxu0 %v836
    %4244 = vmatprep.subr.mxu0 %v840
    %4245 = vmatpush1.msra.mxu0 %v839
    %4246 = vmatprep.subr.mxu0 %v843
    %4247 = vmatpush1.msra.mxu0 %v842
    %4248 = vmatprep.subr.mxu0 %v846
    %4249 = vmatpush1.msra.mxu0 %v845
    %4250 = vmatprep.subr.mxu0 %v849
    %4251 = vmatpush1.msra.mxu0 %v848
    %4252 = vmatprep.subr.mxu0 %v852
    %4253 = vmatpush1.msra.mxu0 %v851
    %4254 = vmatprep.subr.mxu0 %v855
    %4255 = vmatpush1.msra.mxu0 %v854
    %4256 = vmatprep.subr.mxu0 %v858
    %4257 = vmatpush1.msra.mxu0 %v857
    %4258 = vmatprep.subr.mxu0 %v861
    %4259 = vmatpush1.msra.mxu0 %v860
    %4260 = vmatprep.subr.mxu0 %v864
    %4261 = vmatpush1.msra.mxu0 %v863
    %4262 = vmatprep.subr.mxu0 %v867
    %4263 = vmatpush1.msra.mxu0 %v866
    %4264 = vmatprep.subr.mxu0 %v870
    %4265 = vmatpush1.msra.mxu0 %v869
    %4266 = vmatprep.subr.mxu0 %v873
    %4267 = vmatpush1.msra.mxu0 %v872
    %4268 = vmatprep.subr.mxu0 %v876
    %4269 = vmatpush1.msra.mxu0 %v875
    %4270 = vmatprep.subr.mxu0 %v879
    %4271 = vmatpush1.msra.mxu0 %v878
    %4272 = vmatprep.subr.mxu0 %v882
    %4273 = vmatpush1.msra.mxu0 %v881
    %4274 = vmatprep.subr.mxu0 0.0
    %4275 = vmatpush1.msra.mxu0 0.0
    %4276 = vmatprep.subr.mxu0 0.0
    %4277 = vmatpush1.msra.mxu0 0.0
    %4278 = vmatprep.subr.mxu0 0.0
    %4279 = vmatpush1.msra.mxu0 0.0
    %4280 = vmatprep.subr.mxu0 0.0
    %4281 = vmatpush1.msra.mxu0 0.0
    %4282 = vmatprep.subr.mxu0 0.0
    %4283 = vmatpush1.msra.mxu0 0.0
    %4284 = vmatprep.subr.mxu0 0.0
    %4285 = vmatpush1.msra.mxu0 0.0
    %4286 = vmatprep.subr.mxu0 0.0
    %4287 = vmatpush1.msra.mxu0 0.0
    %4288 = vmatprep.subr.mxu0 0.0
    %4289 = vmatpush1.msra.mxu0 0.0
    %4290 = vmatprep.subr.mxu0 0.0
    %4291 = vmatpush1.msra.mxu0 0.0
    %4292 = vmatprep.subr.mxu0 0.0
    %4293 = vmatpush1.msra.mxu0 0.0
    %4294 = vmatprep.subr.mxu0 0.0
    %4295 = vmatpush1.msra.mxu0 0.0
    %4296 = vmatprep.subr.mxu0 0.0
    %4297 = vmatpush1.msra.mxu0 0.0
    %4298 = vmatprep.subr.mxu0 0.0
    %4299 = vmatpush1.msra.mxu0 0.0
    %4300 = vmatprep.subr.mxu0 0.0
    %4301 = vmatpush1.msra.mxu0 0.0
    %4302 = vmatprep.subr.mxu0 0.0
    %4303 = vmatpush1.msra.mxu0 0.0
    %4304 = vmatprep.subr.mxu0 0.0
    %4305 = vmatpush1.msra.mxu0 0.0
    %4306 = vmatprep.mubr.f32.mxu0 0.0
    %4307 = vmatmul.mubr.f32.gmra.mrb[0].mxu0 %v4079
    %v4308 = vpop.f32.mrb[0].mxu0
    %v4309 = vadd.f32 %v889, %v4308
    %v4310 = vpop.f32.mrb[0].mxu0
    %v4311 = vadd.f32 %v893, %v4310
    %4312 = vdwg.mxu0
    %4313 = vmatprep.subr.mxu0 0.0
    %4314 = vmatpush1.msra.mxu0 %v838
    %4315 = vmatprep.subr.mxu0 0.0
    %4316 = vmatpush1.msra.mxu0 %v841
    %4317 = vmatprep.subr.mxu0 0.0
    %4318 = vmatpush1.msra.mxu0 %v844
    %4319 = vmatprep.subr.mxu0 0.0
    %4320 = vmatpush1.msra.mxu0 %v847
    %4321 = vmatprep.subr.mxu0 0.0
    %4322 = vmatpush1.msra.mxu0 %v850
    %4323 = vmatprep.subr.mxu0 0.0
    %4324 = vmatpush1.msra.mxu0 %v853
    %4325 = vmatprep.subr.mxu0 0.0
    %4326 = vmatpush1.msra.mxu0 %v856
    %4327 = vmatprep.subr.mxu0 0.0
    %4328 = vmatpush1.msra.mxu0 %v859
    %4329 = vmatprep.subr.mxu0 0.0
    %4330 = vmatpush1.msra.mxu0 %v862
    %4331 = vmatprep.subr.mxu0 0.0
    %4332 = vmatpush1.msra.mxu0 %v865
    %4333 = vmatprep.subr.mxu0 0.0
    %4334 = vmatpush1.msra.mxu0 %v868
    %4335 = vmatprep.subr.mxu0 0.0
    %4336 = vmatpush1.msra.mxu0 %v871
    %4337 = vmatprep.subr.mxu0 0.0
    %4338 = vmatpush1.msra.mxu0 %v874
    %4339 = vmatprep.subr.mxu0 0.0
    %4340 = vmatpush1.msra.mxu0 %v877
    %4341 = vmatprep.subr.mxu0 0.0
    %4342 = vmatpush1.msra.mxu0 %v880
    %4343 = vmatprep.subr.mxu0 0.0
    %4344 = vmatpush1.msra.mxu0 %v883
    %4345 = vmatprep.subr.mxu0 0.0
    %4346 = vmatpush1.msra.mxu0 0.0
    %4347 = vmatprep.subr.mxu0 0.0
    %4348 = vmatpush1.msra.mxu0 0.0
    %4349 = vmatprep.subr.mxu0 0.0
    %4350 = vmatpush1.msra.mxu0 0.0
    %4351 = vmatprep.subr.mxu0 0.0
    %4352 = vmatpush1.msra.mxu0 0.0
    %4353 = vmatprep.subr.mxu0 0.0
    %4354 = vmatpush1.msra.mxu0 0.0
    %4355 = vmatprep.subr.mxu0 0.0
    %4356 = vmatpush1.msra.mxu0 0.0
    %4357 = vmatprep.subr.mxu0 0.0
    %4358 = vmatpush1.msra.mxu0 0.0
    %4359 = vmatprep.subr.mxu0 0.0
    %4360 = vmatpush1.msra.mxu0 0.0
    %4361 = vmatprep.subr.mxu0 0.0
    %4362 = vmatpush1.msra.mxu0 0.0
    %4363 = vmatprep.subr.mxu0 0.0
    %4364 = vmatpush1.msra.mxu0 0.0
    %4365 = vmatprep.subr.mxu0 0.0
    %4366 = vmatpush1.msra.mxu0 0.0
    %4367 = vmatprep.subr.mxu0 0.0
    %4368 = vmatpush1.msra.mxu0 0.0
    %4369 = vmatprep.subr.mxu0 0.0
    %4370 = vmatpush1.msra.mxu0 0.0
    %4371 = vmatprep.subr.mxu0 0.0
    %4372 = vmatpush1.msra.mxu0 0.0
    %4373 = vmatprep.subr.mxu0 0.0
    %4374 = vmatpush1.msra.mxu0 0.0
    %4375 = vmatprep.subr.mxu0 0.0
    %4376 = vmatpush1.msra.mxu0 0.0
    %4377 = vmatprep.mubr.f32.mxu0 0.0
    %4378 = vmatmul.mubr.f32.gmra.mrb[0].mxu0 %v4079
    %v4379 = vpop.f32.mrb[0].mxu0
    %v4380 = vadd.f32 %v897, %v4379
    %v4381 = vpop.f32.mrb[0].mxu0
    %4382 = vdwg.mxu0
    %v4383 = vld [vmem:[#allocation2 + $0xc0] sm:$0xff]
    %v4384 = vld [vmem:[#allocation2 + $0xc8] sm:$0xff]
    %v4385 = vld [vmem:[#allocation2 + $0xd0] sm:$0xff]
    %4386 = vmatprep.subr.mxu0 %v610
    %4387 = vmatpush1.msra.mxu0 %v609
    %4388 = vmatprep.subr.mxu0 %v613
    %4389 = vmatpush1.msra.mxu0 %v612
    %4390 = vmatprep.subr.mxu0 %v616
    %4391 = vmatpush1.msra.mxu0 %v615
    %4392 = vmatprep.subr.mxu0 %v619
    %4393 = vmatpush1.msra.mxu0 %v618
    %4394 = vmatprep.subr.mxu0 %v622
    %4395 = vmatpush1.msra.mxu0 %v621
    %4396 = vmatprep.subr.mxu0 %v625
    %4397 = vmatpush1.msra.mxu0 %v624
    %4398 = vmatprep.subr.mxu0 %v628
    %4399 = vmatpush1.msra.mxu0 %v627
    %4400 = vmatprep.subr.mxu0 %v631
    %4401 = vmatpush1.msra.mxu0 %v630
    %4402 = vmatprep.subr.mxu0 %v634
    %4403 = vmatpush1.msra.mxu0 %v633
    %4404 = vmatprep.subr.mxu0 %v637
    %4405 = vmatpush1.msra.mxu0 %v636
    %4406 = vmatprep.subr.mxu0 %v640
    %4407 = vmatpush1.msra.mxu0 %v639
    %4408 = vmatprep.subr.mxu0 %v643
    %4409 = vmatpush1.msra.mxu0 %v642
    %4410 = vmatprep.subr.mxu0 %v646
    %4411 = vmatpush1.msra.mxu0 %v645
    %4412 = vmatprep.subr.mxu0 %v649
    %4413 = vmatpush1.msra.mxu0 %v648
    %4414 = vmatprep.subr.mxu0 %v652
    %4415 = vmatpush1.msra.mxu0 %v651
    %4416 = vmatprep.subr.mxu0 %v655
    %4417 = vmatpush1.msra.mxu0 %v654
    %4418 = vmatprep.subr.mxu0 0.0
    %4419 = vmatpush1.msra.mxu0 0.0
    %4420 = vmatprep.subr.mxu0 0.0
    %4421 = vmatpush1.msra.mxu0 0.0
    %4422 = vmatprep.subr.mxu0 0.0
    %4423 = vmatpush1.msra.mxu0 0.0
    %4424 = vmatprep.subr.mxu0 0.0
    %4425 = vmatpush1.msra.mxu0 0.0
    %4426 = vmatprep.subr.mxu0 0.0
    %4427 = vmatpush1.msra.mxu0 0.0
    %4428 = vmatprep.subr.mxu0 0.0
    %4429 = vmatpush1.msra.mxu0 0.0
    %4430 = vmatprep.subr.mxu0 0.0
    %4431 = vmatpush1.msra.mxu0 0.0
    %4432 = vmatprep.subr.mxu0 0.0
    %4433 = vmatpush1.msra.mxu0 0.0
    %4434 = vmatprep.subr.mxu0 0.0
    %4435 = vmatpush1.msra.mxu0 0.0
    %4436 = vmatprep.subr.mxu0 0.0
    %4437 = vmatpush1.msra.mxu0 0.0
    %4438 = vmatprep.subr.mxu0 0.0
    %4439 = vmatpush1.msra.mxu0 0.0
    %4440 = vmatprep.subr.mxu0 0.0
    %4441 = vmatpush1.msra.mxu0 0.0
    %4442 = vmatprep.subr.mxu0 0.0
    %4443 = vmatpush1.msra.mxu0 0.0
    %4444 = vmatprep.subr.mxu0 0.0
    %4445 = vmatpush1.msra.mxu0 0.0
    %4446 = vmatprep.subr.mxu0 0.0
    %4447 = vmatpush1.msra.mxu0 0.0
    %4448 = vmatprep.subr.mxu0 0.0
    %4449 = vmatpush1.msra.mxu0 0.0
    %4450 = vmatprep.mubr.f32.mxu0 0.0
    %4451 = vmatmul.mubr.f32.gmra.mrb[0].mxu0 %v4079
    %v4452 = vpop.f32.mrb[0].mxu0
    %v4453 = vadd.f32 %v662, %v4452
    %v4454 = vpop.f32.mrb[0].mxu0
    %v4455 = vadd.f32 %v666, %v4454
    %4456 = vdwg.mxu0
    %4457 = vmatprep.subr.mxu0 0.0
    %4458 = vmatpush1.msra.mxu0 %v611
    %4459 = vmatprep.subr.mxu0 0.0
    %4460 = vmatpush1.msra.mxu0 %v614
    %4461 = vmatprep.subr.mxu0 0.0
    %4462 = vmatpush1.msra.mxu0 %v617
    %4463 = vmatprep.subr.mxu0 0.0
    %4464 = vmatpush1.msra.mxu0 %v620
    %4465 = vmatprep.subr.mxu0 0.0
    %4466 = vmatpush1.msra.mxu0 %v623
    %4467 = vmatprep.subr.mxu0 0.0
    %4468 = vmatpush1.msra.mxu0 %v626
    %4469 = vmatprep.subr.mxu0 0.0
    %4470 = vmatpush1.msra.mxu0 %v629
    %4471 = vmatprep.subr.mxu0 0.0
    %4472 = vmatpush1.msra.mxu0 %v632
    %4473 = vmatprep.subr.mxu0 0.0
    %4474 = vmatpush1.msra.mxu0 %v635
    %4475 = vmatprep.subr.mxu0 0.0
    %4476 = vmatpush1.msra.mxu0 %v638
    %4477 = vmatprep.subr.mxu0 0.0
    %4478 = vmatpush1.msra.mxu0 %v641
    %4479 = vmatprep.subr.mxu0 0.0
    %4480 = vmatpush1.msra.mxu0 %v644
    %4481 = vmatprep.subr.mxu0 0.0
    %4482 = vmatpush1.msra.mxu0 %v647
    %4483 = vmatprep.subr.mxu0 0.0
    %4484 = vmatpush1.msra.mxu0 %v650
    %4485 = vmatprep.subr.mxu0 0.0
    %4486 = vmatpush1.msra.mxu0 %v653
    %4487 = vmatprep.subr.mxu0 0.0
    %4488 = vmatpush1.msra.mxu0 %v656
    %4489 = vmatprep.subr.mxu0 0.0
    %4490 = vmatpush1.msra.mxu0 0.0
    %4491 = vmatprep.subr.mxu0 0.0
    %4492 = vmatpush1.msra.mxu0 0.0
    %4493 = vmatprep.subr.mxu0 0.0
    %4494 = vmatpush1.msra.mxu0 0.0
    %4495 = vmatprep.subr.mxu0 0.0
    %4496 = vmatpush1.msra.mxu0 0.0
    %4497 = vmatprep.subr.mxu0 0.0
    %4498 = vmatpush1.msra.mxu0 0.0
    %4499 = vmatprep.subr.mxu0 0.0
    %4500 = vmatpush1.msra.mxu0 0.0
    %4501 = vmatprep.subr.mxu0 0.0
    %4502 = vmatpush1.msra.mxu0 0.0
    %4503 = vmatprep.subr.mxu0 0.0
    %4504 = vmatpush1.msra.mxu0 0.0
    %4505 = vmatprep.subr.mxu0 0.0
    %4506 = vmatpush1.msra.mxu0 0.0
    %4507 = vmatprep.subr.mxu0 0.0
    %4508 = vmatpush1.msra.mxu0 0.0
    %4509 = vmatprep.subr.mxu0 0.0
    %4510 = vmatpush1.msra.mxu0 0.0
    %4511 = vmatprep.subr.mxu0 0.0
    %4512 = vmatpush1.msra.mxu0 0.0
    %4513 = vmatprep.subr.mxu0 0.0
    %4514 = vmatpush1.msra.mxu0 0.0
    %4515 = vmatprep.subr.mxu0 0.0
    %4516 = vmatpush1.msra.mxu0 0.0
    %4517 = vmatprep.subr.mxu0 0.0
    %4518 = vmatpush1.msra.mxu0 0.0
    %4519 = vmatprep.subr.mxu0 0.0
    %4520 = vmatpush1.msra.mxu0 0.0
    %4521 = vmatprep.mubr.f32.mxu0 0.0
    %4522 = vmatmul.mubr.f32.gmra.mrb[0].mxu0 %v4079
    %v4523 = vpop.f32.mrb[0].mxu0
    %v4524 = vadd.f32 %v670, %v4523
    %v4525 = vpop.f32.mrb[0].mxu0
    %4526 = vdwg.mxu0
    %v4527 = vadd.f32 %v4383, %v4453
    %v4528 = vadd.f32 %v4384, %v4455
    %v4529 = vxor.u32 %v4527, 2147483648
    %v4530 = vxor.u32 %v4528, 2147483648
    %v4531 = vmul.f32 %v4529, 1.442695
    %v4532 = vpow.pop %v4531
    %v4533 = vmul.f32 %v4530, 1.442695
    %v4534 = vpow.pop %v4533
    %v4535 = vadd.f32 %v4532, 1.0
    %v4536 = vadd.f32 %v4534, 1.0
    %v4537 = vrcp.pop %v4535
    %v4538 = vmul.f32 1.0, %v4537
    %v4539 = vrcp.pop %v4536
    %v4540 = vmul.f32 1.0, %v4539
    %v4541 = vmul.f32 %v4538, %v4524
    %v4542 = vadd.f32 %v4385, %v4541
    %v4543 = vtanh.pop %v4542
    %v4544 = vsub.f32 1.0, %v4540
    %v4545 = vmul.f32 %v4544, %v4543
    %v4546 = vmul.f32 %v4540, %v4079
    %v4547 = vadd.f32 %v4545, %v4546
    %4548 = vmatprep.subr.mxu0 %v1208
    %4549 = vmatpush1.msra.mxu0 %v1207
    %4550 = vmatprep.subr.mxu0 %v1211
    %4551 = vmatpush1.msra.mxu0 %v1210
    %4552 = vmatprep.subr.mxu0 %v1214
    %4553 = vmatpush1.msra.mxu0 %v1213
    %4554 = vmatprep.subr.mxu0 %v1217
    %4555 = vmatpush1.msra.mxu0 %v1216
    %4556 = vmatprep.subr.mxu0 %v1220
    %4557 = vmatpush1.msra.mxu0 %v1219
    %4558 = vmatprep.subr.mxu0 %v1223
    %4559 = vmatpush1.msra.mxu0 %v1222
    %4560 = vmatprep.subr.mxu0 %v1226
    %4561 = vmatpush1.msra.mxu0 %v1225
    %4562 = vmatprep.subr.mxu0 %v1229
    %4563 = vmatpush1.msra.mxu0 %v1228
    %4564 = vmatprep.subr.mxu0 %v1232
    %4565 = vmatpush1.msra.mxu0 %v1231
    %4566 = vmatprep.subr.mxu0 %v1235
    %4567 = vmatpush1.msra.mxu0 %v1234
    %4568 = vmatprep.subr.mxu0 %v1238
    %4569 = vmatpush1.msra.mxu0 %v1237
    %4570 = vmatprep.subr.mxu0 %v1241
    %4571 = vmatpush1.msra.mxu0 %v1240
    %4572 = vmatprep.subr.mxu0 %v1244
    %4573 = vmatpush1.msra.mxu0 %v1243
    %4574 = vmatprep.subr.mxu0 %v1247
    %4575 = vmatpush1.msra.mxu0 %v1246
    %4576 = vmatprep.subr.mxu0 %v1250
    %4577 = vmatpush1.msra.mxu0 %v1249
    %4578 = vmatprep.subr.mxu0 %v1253
    %4579 = vmatpush1.msra.mxu0 %v1252
    %4580 = vmatprep.subr.mxu0 0.0
    %4581 = vmatpush1.msra.mxu0 0.0
    %4582 = vmatprep.subr.mxu0 0.0
    %4583 = vmatpush1.msra.mxu0 0.0
    %4584 = vmatprep.subr.mxu0 0.0
    %4585 = vmatpush1.msra.mxu0 0.0
    %4586 = vmatprep.subr.mxu0 0.0
    %4587 = vmatpush1.msra.mxu0 0.0
    %4588 = vmatprep.subr.mxu0 0.0
    %4589 = vmatpush1.msra.mxu0 0.0
    %4590 = vmatprep.subr.mxu0 0.0
    %4591 = vmatpush1.msra.mxu0 0.0
    %4592 = vmatprep.subr.mxu0 0.0
    %4593 = vmatpush1.msra.mxu0 0.0
    %4594 = vmatprep.subr.mxu0 0.0
    %4595 = vmatpush1.msra.mxu0 0.0
    %4596 = vmatprep.subr.mxu0 0.0
    %4597 = vmatpush1.msra.mxu0 0.0
    %4598 = vmatprep.subr.mxu0 0.0
    %4599 = vmatpush1.msra.mxu0 0.0
    %4600 = vmatprep.subr.mxu0 0.0
    %4601 = vmatpush1.msra.mxu0 0.0
    %4602 = vmatprep.subr.mxu0 0.0
    %4603 = vmatpush1.msra.mxu0 0.0
    %4604 = vmatprep.subr.mxu0 0.0
    %4605 = vmatpush1.msra.mxu0 0.0
    %4606 = vmatprep.subr.mxu0 0.0
    %4607 = vmatpush1.msra.mxu0 0.0
    %4608 = vmatprep.subr.mxu0 0.0
    %4609 = vmatpush1.msra.mxu0 0.0
    %4610 = vmatprep.subr.mxu0 0.0
    %4611 = vmatpush1.msra.mxu0 0.0
    %4612 = vmatprep.mubr.f32.mxu0 0.0
    %4613 = vmatmul.mubr.f32.gmra.mrb[0].mxu0 %v4241
    %v4614 = vpop.f32.mrb[0].mxu0
    %v4615 = vadd.f32 %v1260, %v4614
    %v4616 = vpop.f32.mrb[0].mxu0
    %v4617 = vadd.f32 %v1264, %v4616
    %4618 = vdwg.mxu0
    %4619 = vmatprep.subr.mxu0 0.0
    %4620 = vmatpush1.msra.mxu0 %v1209
    %4621 = vmatprep.subr.mxu0 0.0
    %4622 = vmatpush1.msra.mxu0 %v1212
    %4623 = vmatprep.subr.mxu0 0.0
    %4624 = vmatpush1.msra.mxu0 %v1215
    %4625 = vmatprep.subr.mxu0 0.0
    %4626 = vmatpush1.msra.mxu0 %v1218
    %4627 = vmatprep.subr.mxu0 0.0
    %4628 = vmatpush1.msra.mxu0 %v1221
    %4629 = vmatprep.subr.mxu0 0.0
    %4630 = vmatpush1.msra.mxu0 %v1224
    %4631 = vmatprep.subr.mxu0 0.0
    %4632 = vmatpush1.msra.mxu0 %v1227
    %4633 = vmatprep.subr.mxu0 0.0
    %4634 = vmatpush1.msra.mxu0 %v1230
    %4635 = vmatprep.subr.mxu0 0.0
    %4636 = vmatpush1.msra.mxu0 %v1233
    %4637 = vmatprep.subr.mxu0 0.0
    %4638 = vmatpush1.msra.mxu0 %v1236
    %4639 = vmatprep.subr.mxu0 0.0
    %4640 = vmatpush1.msra.mxu0 %v1239
    %4641 = vmatprep.subr.mxu0 0.0
    %4642 = vmatpush1.msra.mxu0 %v1242
    %4643 = vmatprep.subr.mxu0 0.0
    %4644 = vmatpush1.msra.mxu0 %v1245
    %4645 = vmatprep.subr.mxu0 0.0
    %4646 = vmatpush1.msra.mxu0 %v1248
    %4647 = vmatprep.subr.mxu0 0.0
    %4648 = vmatpush1.msra.mxu0 %v1251
    %4649 = vmatprep.subr.mxu0 0.0
    %4650 = vmatpush1.msra.mxu0 %v1254
    %4651 = vmatprep.subr.mxu0 0.0
    %4652 = vmatpush1.msra.mxu0 0.0
    %4653 = vmatprep.subr.mxu0 0.0
    %4654 = vmatpush1.msra.mxu0 0.0
    %4655 = vmatprep.subr.mxu0 0.0
    %4656 = vmatpush1.msra.mxu0 0.0
    %4657 = vmatprep.subr.mxu0 0.0
    %4658 = vmatpush1.msra.mxu0 0.0
    %4659 = vmatprep.subr.mxu0 0.0
    %4660 = vmatpush1.msra.mxu0 0.0
    %4661 = vmatprep.subr.mxu0 0.0
    %4662 = vmatpush1.msra.mxu0 0.0
    %4663 = vmatprep.subr.mxu0 0.0
    %4664 = vmatpush1.msra.mxu0 0.0
    %4665 = vmatprep.subr.mxu0 0.0
    %4666 = vmatpush1.msra.mxu0 0.0
    %4667 = vmatprep.subr.mxu0 0.0
    %4668 = vmatpush1.msra.mxu0 0.0
    %4669 = vmatprep.subr.mxu0 0.0
    %4670 = vmatpush1.msra.mxu0 0.0
    %4671 = vmatprep.subr.mxu0 0.0
    %4672 = vmatpush1.msra.mxu0 0.0
    %4673 = vmatprep.subr.mxu0 0.0
    %4674 = vmatpush1.msra.mxu0 0.0
    %4675 = vmatprep.subr.mxu0 0.0
    %4676 = vmatpush1.msra.mxu0 0.0
    %4677 = vmatprep.subr.mxu0 0.0
    %4678 = vmatpush1.msra.mxu0 0.0
    %4679 = vmatprep.subr.mxu0 0.0
    %4680 = vmatpush1.msra.mxu0 0.0
    %4681 = vmatprep.subr.mxu0 0.0
    %4682 = vmatpush1.msra.mxu0 0.0
    %4683 = vmatprep.mubr.f32.mxu0 0.0
    %4684 = vmatmul.mubr.f32.gmra.mrb[0].mxu0 %v4241
    %v4685 = vpop.f32.mrb[0].mxu0
    %v4686 = vadd.f32 %v1268, %v4685
    %v4687 = vpop.f32.mrb[0].mxu0
    %4688 = vdwg.mxu0
    %v4689 = vadd.f32 %v4309, %v4615
    %v4690 = vadd.f32 %v4311, %v4617
    %v4691 = vxor.u32 %v4689, 2147483648
    %v4692 = vxor.u32 %v4690, 2147483648
    %v4693 = vmul.f32 %v4691, 1.442695
    %v4694 = vpow.pop %v4693
    %v4695 = vmul.f32 %v4692, 1.442695
    %v4696 = vpow.pop %v4695
    %v4697 = vadd.f32 %v4694, 1.0
    %v4698 = vadd.f32 %v4696, 1.0
    %v4699 = vrcp.pop %v4697
    %v4700 = vmul.f32 1.0, %v4699
    %v4701 = vrcp.pop %v4698
    %v4702 = vmul.f32 1.0, %v4701
    %v4703 = vmul.f32 %v4700, %v4686
    %v4704 = vadd.f32 %v4380, %v4703
    %v4705 = vtanh.pop %v4704
    %v4706 = vsub.f32 1.0, %v4702
    %v4707 = vmul.f32 %v4706, %v4705
    %v4708 = vmul.f32 %v4702, %v4241
    %v4709 = vadd.f32 %v4707, %v4708
    %4710 = vmatprep.subr.mxu0 %v837
    %4711 = vmatpush1.msra.mxu0 %v836
    %4712 = vmatprep.subr.mxu0 %v840
    %4713 = vmatpush1.msra.mxu0 %v839
    %4714 = vmatprep.subr.mxu0 %v843
    %4715 = vmatpush1.msra.mxu0 %v842
    %4716 = vmatprep.subr.mxu0 %v846
    %4717 = vmatpush1.msra.mxu0 %v845
    %4718 = vmatprep.subr.mxu0 %v849
    %4719 = vmatpush1.msra.mxu0 %v848
    %4720 = vmatprep.subr.mxu0 %v852
    %4721 = vmatpush1.msra.mxu0 %v851
    %4722 = vmatprep.subr.mxu0 %v855
    %4723 = vmatpush1.msra.mxu0 %v854
    %4724 = vmatprep.subr.mxu0 %v858
    %4725 = vmatpush1.msra.mxu0 %v857
    %4726 = vmatprep.subr.mxu0 %v861
    %4727 = vmatpush1.msra.mxu0 %v860
    %4728 = vmatprep.subr.mxu0 %v864
    %4729 = vmatpush1.msra.mxu0 %v863
    %4730 = vmatprep.subr.mxu0 %v867
    %4731 = vmatpush1.msra.mxu0 %v866
    %4732 = vmatprep.subr.mxu0 %v870
    %4733 = vmatpush1.msra.mxu0 %v869
    %4734 = vmatprep.subr.mxu0 %v873
    %4735 = vmatpush1.msra.mxu0 %v872
    %4736 = vmatprep.subr.mxu0 %v876
    %4737 = vmatpush1.msra.mxu0 %v875
    %4738 = vmatprep.subr.mxu0 %v879
    %4739 = vmatpush1.msra.mxu0 %v878
    %4740 = vmatprep.subr.mxu0 %v882
    %4741 = vmatpush1.msra.mxu0 %v881
    %4742 = vmatprep.subr.mxu0 0.0
    %4743 = vmatpush1.msra.mxu0 0.0
    %4744 = vmatprep.subr.mxu0 0.0
    %4745 = vmatpush1.msra.mxu0 0.0
    %4746 = vmatprep.subr.mxu0 0.0
    %4747 = vmatpush1.msra.mxu0 0.0
    %4748 = vmatprep.subr.mxu0 0.0
    %4749 = vmatpush1.msra.mxu0 0.0
    %4750 = vmatprep.subr.mxu0 0.0
    %4751 = vmatpush1.msra.mxu0 0.0
    %4752 = vmatprep.subr.mxu0 0.0
    %4753 = vmatpush1.msra.mxu0 0.0
    %4754 = vmatprep.subr.mxu0 0.0
    %4755 = vmatpush1.msra.mxu0 0.0
    %4756 = vmatprep.subr.mxu0 0.0
    %4757 = vmatpush1.msra.mxu0 0.0
    %4758 = vmatprep.subr.mxu0 0.0
    %4759 = vmatpush1.msra.mxu0 0.0
    %4760 = vmatprep.subr.mxu0 0.0
    %4761 = vmatpush1.msra.mxu0 0.0
    %4762 = vmatprep.subr.mxu0 0.0
    %4763 = vmatpush1.msra.mxu0 0.0
    %4764 = vmatprep.subr.mxu0 0.0
    %4765 = vmatpush1.msra.mxu0 0.0
    %4766 = vmatprep.subr.mxu0 0.0
    %4767 = vmatpush1.msra.mxu0 0.0
    %4768 = vmatprep.subr.mxu0 0.0
    %4769 = vmatpush1.msra.mxu0 0.0
    %4770 = vmatprep.subr.mxu0 0.0
    %4771 = vmatpush1.msra.mxu0 0.0
    %4772 = vmatprep.subr.mxu0 0.0
    %4773 = vmatpush1.msra.mxu0 0.0
    %4774 = vmatprep.mubr.f32.mxu0 0.0
    %4775 = vmatmul.mubr.f32.gmra.mrb[0].mxu0 %v4547
    %v4776 = vpop.f32.mrb[0].mxu0
    %v4777 = vadd.f32 %v889, %v4776
    %v4778 = vpop.f32.mrb[0].mxu0
    %v4779 = vadd.f32 %v893, %v4778
    %4780 = vdwg.mxu0
    %4781 = vmatprep.subr.mxu0 0.0
    %4782 = vmatpush1.msra.mxu0 %v838
    %4783 = vmatprep.subr.mxu0 0.0
    %4784 = vmatpush1.msra.mxu0 %v841
    %4785 = vmatprep.subr.mxu0 0.0
    %4786 = vmatpush1.msra.mxu0 %v844
    %4787 = vmatprep.subr.mxu0 0.0
    %4788 = vmatpush1.msra.mxu0 %v847
    %4789 = vmatprep.subr.mxu0 0.0
    %4790 = vmatpush1.msra.mxu0 %v850
    %4791 = vmatprep.subr.mxu0 0.0
    %4792 = vmatpush1.msra.mxu0 %v853
    %4793 = vmatprep.subr.mxu0 0.0
    %4794 = vmatpush1.msra.mxu0 %v856
    %4795 = vmatprep.subr.mxu0 0.0
    %4796 = vmatpush1.msra.mxu0 %v859
    %4797 = vmatprep.subr.mxu0 0.0
    %4798 = vmatpush1.msra.mxu0 %v862
    %4799 = vmatprep.subr.mxu0 0.0
    %4800 = vmatpush1.msra.mxu0 %v865
    %4801 = vmatprep.subr.mxu0 0.0
    %4802 = vmatpush1.msra.mxu0 %v868
    %4803 = vmatprep.subr.mxu0 0.0
    %4804 = vmatpush1.msra.mxu0 %v871
    %4805 = vmatprep.subr.mxu0 0.0
    %4806 = vmatpush1.msra.mxu0 %v874
    %4807 = vmatprep.subr.mxu0 0.0
    %4808 = vmatpush1.msra.mxu0 %v877
    %4809 = vmatprep.subr.mxu0 0.0
    %4810 = vmatpush1.msra.mxu0 %v880
    %4811 = vmatprep.subr.mxu0 0.0
    %4812 = vmatpush1.msra.mxu0 %v883
    %4813 = vmatprep.subr.mxu0 0.0
    %4814 = vmatpush1.msra.mxu0 0.0
    %4815 = vmatprep.subr.mxu0 0.0
    %4816 = vmatpush1.msra.mxu0 0.0
    %4817 = vmatprep.subr.mxu0 0.0
    %4818 = vmatpush1.msra.mxu0 0.0
    %4819 = vmatprep.subr.mxu0 0.0
    %4820 = vmatpush1.msra.mxu0 0.0
    %4821 = vmatprep.subr.mxu0 0.0
    %4822 = vmatpush1.msra.mxu0 0.0
    %4823 = vmatprep.subr.mxu0 0.0
    %4824 = vmatpush1.msra.mxu0 0.0
    %4825 = vmatprep.subr.mxu0 0.0
    %4826 = vmatpush1.msra.mxu0 0.0
    %4827 = vmatprep.subr.mxu0 0.0
    %4828 = vmatpush1.msra.mxu0 0.0
    %4829 = vmatprep.subr.mxu0 0.0
    %4830 = vmatpush1.msra.mxu0 0.0
    %4831 = vmatprep.subr.mxu0 0.0
    %4832 = vmatpush1.msra.mxu0 0.0
    %4833 = vmatprep.subr.mxu0 0.0
    %4834 = vmatpush1.msra.mxu0 0.0
    %4835 = vmatprep.subr.mxu0 0.0
    %4836 = vmatpush1.msra.mxu0 0.0
    %4837 = vmatprep.subr.mxu0 0.0
    %4838 = vmatpush1.msra.mxu0 0.0
    %4839 = vmatprep.subr.mxu0 0.0
    %4840 = vmatpush1.msra.mxu0 0.0
    %4841 = vmatprep.subr.mxu0 0.0
    %4842 = vmatpush1.msra.mxu0 0.0
    %4843 = vmatprep.subr.mxu0 0.0
    %4844 = vmatpush1.msra.mxu0 0.0
    %4845 = vmatprep.mubr.f32.mxu0 0.0
    %4846 = vmatmul.mubr.f32.gmra.mrb[0].mxu0 %v4547
    %v4847 = vpop.f32.mrb[0].mxu0
    %v4848 = vadd.f32 %v897, %v4847
    %v4849 = vpop.f32.mrb[0].mxu0
    %4850 = vdwg.mxu0
    %v4851 = vld [vmem:[#allocation2 + $0xd8] sm:$0xff]
    %v4852 = vld [vmem:[#allocation2 + $0xe0] sm:$0xff]
    %v4853 = vld [vmem:[#allocation2 + $0xe8] sm:$0xff]
    %4854 = vmatprep.subr.mxu0 %v610
    %4855 = vmatpush1.msra.mxu0 %v609
    %4856 = vmatprep.subr.mxu0 %v613
    %4857 = vmatpush1.msra.mxu0 %v612
    %4858 = vmatprep.subr.mxu0 %v616
    %4859 = vmatpush1.msra.mxu0 %v615
    %4860 = vmatprep.subr.mxu0 %v619
    %4861 = vmatpush1.msra.mxu0 %v618
    %4862 = vmatprep.subr.mxu0 %v622
    %4863 = vmatpush1.msra.mxu0 %v621
    %4864 = vmatprep.subr.mxu0 %v625
    %4865 = vmatpush1.msra.mxu0 %v624
    %4866 = vmatprep.subr.mxu0 %v628
    %4867 = vmatpush1.msra.mxu0 %v627
    %4868 = vmatprep.subr.mxu0 %v631
    %4869 = vmatpush1.msra.mxu0 %v630
    %4870 = vmatprep.subr.mxu0 %v634
    %4871 = vmatpush1.msra.mxu0 %v633
    %4872 = vmatprep.subr.mxu0 %v637
    %4873 = vmatpush1.msra.mxu0 %v636
    %4874 = vmatprep.subr.mxu0 %v640
    %4875 = vmatpush1.msra.mxu0 %v639
    %4876 = vmatprep.subr.mxu0 %v643
    %4877 = vmatpush1.msra.mxu0 %v642
    %4878 = vmatprep.subr.mxu0 %v646
    %4879 = vmatpush1.msra.mxu0 %v645
    %4880 = vmatprep.subr.mxu0 %v649
    %4881 = vmatpush1.msra.mxu0 %v648
    %4882 = vmatprep.subr.mxu0 %v652
    %4883 = vmatpush1.msra.mxu0 %v651
    %4884 = vmatprep.subr.mxu0 %v655
    %4885 = vmatpush1.msra.mxu0 %v654
    %4886 = vmatprep.subr.mxu0 0.0
    %4887 = vmatpush1.msra.mxu0 0.0
    %4888 = vmatprep.subr.mxu0 0.0
    %4889 = vmatpush1.msra.mxu0 0.0
    %4890 = vmatprep.subr.mxu0 0.0
    %4891 = vmatpush1.msra.mxu0 0.0
    %4892 = vmatprep.subr.mxu0 0.0
    %4893 = vmatpush1.msra.mxu0 0.0
    %4894 = vmatprep.subr.mxu0 0.0
    %4895 = vmatpush1.msra.mxu0 0.0
    %4896 = vmatprep.subr.mxu0 0.0
    %4897 = vmatpush1.msra.mxu0 0.0
    %4898 = vmatprep.subr.mxu0 0.0
    %4899 = vmatpush1.msra.mxu0 0.0
    %4900 = vmatprep.subr.mxu0 0.0
    %4901 = vmatpush1.msra.mxu0 0.0
    %4902 = vmatprep.subr.mxu0 0.0
    %4903 = vmatpush1.msra.mxu0 0.0
    %4904 = vmatprep.subr.mxu0 0.0
    %4905 = vmatpush1.msra.mxu0 0.0
    %4906 = vmatprep.subr.mxu0 0.0
    %4907 = vmatpush1.msra.mxu0 0.0
    %4908 = vmatprep.subr.mxu0 0.0
    %4909 = vmatpush1.msra.mxu0 0.0
    %4910 = vmatprep.subr.mxu0 0.0
    %4911 = vmatpush1.msra.mxu0 0.0
    %4912 = vmatprep.subr.mxu0 0.0
    %4913 = vmatpush1.msra.mxu0 0.0
    %4914 = vmatprep.subr.mxu0 0.0
    %4915 = vmatpush1.msra.mxu0 0.0
    %4916 = vmatprep.subr.mxu0 0.0
    %4917 = vmatpush1.msra.mxu0 0.0
    %4918 = vmatprep.mubr.f32.mxu0 0.0
    %4919 = vmatmul.mubr.f32.gmra.mrb[0].mxu0 %v4547
    %v4920 = vpop.f32.mrb[0].mxu0
    %v4921 = vadd.f32 %v662, %v4920
    %v4922 = vpop.f32.mrb[0].mxu0
    %v4923 = vadd.f32 %v666, %v4922
    %4924 = vdwg.mxu0
    %4925 = vmatprep.subr.mxu0 0.0
    %4926 = vmatpush1.msra.mxu0 %v611
    %4927 = vmatprep.subr.mxu0 0.0
    %4928 = vmatpush1.msra.mxu0 %v614
    %4929 = vmatprep.subr.mxu0 0.0
    %4930 = vmatpush1.msra.mxu0 %v617
    %4931 = vmatprep.subr.mxu0 0.0
    %4932 = vmatpush1.msra.mxu0 %v620
    %4933 = vmatprep.subr.mxu0 0.0
    %4934 = vmatpush1.msra.mxu0 %v623
    %4935 = vmatprep.subr.mxu0 0.0
    %4936 = vmatpush1.msra.mxu0 %v626
    %4937 = vmatprep.subr.mxu0 0.0
    %4938 = vmatpush1.msra.mxu0 %v629
    %4939 = vmatprep.subr.mxu0 0.0
    %4940 = vmatpush1.msra.mxu0 %v632
    %4941 = vmatprep.subr.mxu0 0.0
    %4942 = vmatpush1.msra.mxu0 %v635
    %4943 = vmatprep.subr.mxu0 0.0
    %4944 = vmatpush1.msra.mxu0 %v638
    %4945 = vmatprep.subr.mxu0 0.0
    %4946 = vmatpush1.msra.mxu0 %v641
    %4947 = vmatprep.subr.mxu0 0.0
    %4948 = vmatpush1.msra.mxu0 %v644
    %4949 = vmatprep.subr.mxu0 0.0
    %4950 = vmatpush1.msra.mxu0 %v647
    %4951 = vmatprep.subr.mxu0 0.0
    %4952 = vmatpush1.msra.mxu0 %v650
    %4953 = vmatprep.subr.mxu0 0.0
    %4954 = vmatpush1.msra.mxu0 %v653
    %4955 = vmatprep.subr.mxu0 0.0
    %4956 = vmatpush1.msra.mxu0 %v656
    %4957 = vmatprep.subr.mxu0 0.0
    %4958 = vmatpush1.msra.mxu0 0.0
    %4959 = vmatprep.subr.mxu0 0.0
    %4960 = vmatpush1.msra.mxu0 0.0
    %4961 = vmatprep.subr.mxu0 0.0
    %4962 = vmatpush1.msra.mxu0 0.0
    %4963 = vmatprep.subr.mxu0 0.0
    %4964 = vmatpush1.msra.mxu0 0.0
    %4965 = vmatprep.subr.mxu0 0.0
    %4966 = vmatpush1.msra.mxu0 0.0
    %4967 = vmatprep.subr.mxu0 0.0
    %4968 = vmatpush1.msra.mxu0 0.0
    %4969 = vmatprep.subr.mxu0 0.0
    %4970 = vmatpush1.msra.mxu0 0.0
    %4971 = vmatprep.subr.mxu0 0.0
    %4972 = vmatpush1.msra.mxu0 0.0
    %4973 = vmatprep.subr.mxu0 0.0
    %4974 = vmatpush1.msra.mxu0 0.0
    %4975 = vmatprep.subr.mxu0 0.0
    %4976 = vmatpush1.msra.mxu0 0.0
    %4977 = vmatprep.subr.mxu0 0.0
    %4978 = vmatpush1.msra.mxu0 0.0
    %4979 = vmatprep.subr.mxu0 0.0
    %4980 = vmatpush1.msra.mxu0 0.0
    %4981 = vmatprep.subr.mxu0 0.0
    %4982 = vmatpush1.msra.mxu0 0.0
    %4983 = vmatprep.subr.mxu0 0.0
    %4984 = vmatpush1.msra.mxu0 0.0
    %4985 = vmatprep.subr.mxu0 0.0
    %4986 = vmatpush1.msra.mxu0 0.0
    %4987 = vmatprep.subr.mxu0 0.0
    %4988 = vmatpush1.msra.mxu0 0.0
    %4989 = vmatprep.mubr.f32.mxu0 0.0
    %4990 = vmatmul.mubr.f32.gmra.mrb[0].mxu0 %v4547
    %v4991 = vpop.f32.mrb[0].mxu0
    %v4992 = vadd.f32 %v670, %v4991
    %v4993 = vpop.f32.mrb[0].mxu0
    %4994 = vdwg.mxu0
    %v4995 = vadd.f32 %v4851, %v4921
    %v4996 = vadd.f32 %v4852, %v4923
    %v4997 = vxor.u32 %v4995, 2147483648
    %v4998 = vxor.u32 %v4996, 2147483648
    %v4999 = vmul.f32 %v4997, 1.442695
    %v5000 = vpow.pop %v4999
    %v5001 = vmul.f32 %v4998, 1.442695
    %v5002 = vpow.pop %v5001
    %v5003 = vadd.f32 %v5000, 1.0
    %v5004 = vadd.f32 %v5002, 1.0
    %v5005 = vrcp.pop %v5003
    %v5006 = vmul.f32 1.0, %v5005
    %v5007 = vrcp.pop %v5004
    %v5008 = vmul.f32 1.0, %v5007
    %v5009 = vmul.f32 %v5006, %v4992
    %v5010 = vadd.f32 %v4853, %v5009
    %v5011 = vtanh.pop %v5010
    %v5012 = vsub.f32 1.0, %v5008
    %v5013 = vmul.f32 %v5012, %v5011
    %v5014 = vmul.f32 %v5008, %v4547
    %v5015 = vadd.f32 %v5013, %v5014
    %5016 = vmatprep.subr.mxu0 %v1208
    %5017 = vmatpush1.msra.mxu0 %v1207
    %5018 = vmatprep.subr.mxu0 %v1211
    %5019 = vmatpush1.msra.mxu0 %v1210
    %5020 = vmatprep.subr.mxu0 %v1214
    %5021 = vmatpush1.msra.mxu0 %v1213
    %5022 = vmatprep.subr.mxu0 %v1217
    %5023 = vmatpush1.msra.mxu0 %v1216
    %5024 = vmatprep.subr.mxu0 %v1220
    %5025 = vmatpush1.msra.mxu0 %v1219
    %5026 = vmatprep.subr.mxu0 %v1223
    %5027 = vmatpush1.msra.mxu0 %v1222
    %5028 = vmatprep.subr.mxu0 %v1226
    %5029 = vmatpush1.msra.mxu0 %v1225
    %5030 = vmatprep.subr.mxu0 %v1229
    %5031 = vmatpush1.msra.mxu0 %v1228
    %5032 = vmatprep.subr.mxu0 %v1232
    %5033 = vmatpush1.msra.mxu0 %v1231
    %5034 = vmatprep.subr.mxu0 %v1235
    %5035 = vmatpush1.msra.mxu0 %v1234
    %5036 = vmatprep.subr.mxu0 %v1238
    %5037 = vmatpush1.msra.mxu0 %v1237
    %5038 = vmatprep.subr.mxu0 %v1241
    %5039 = vmatpush1.msra.mxu0 %v1240
    %5040 = vmatprep.subr.mxu0 %v1244
    %5041 = vmatpush1.msra.mxu0 %v1243
    %5042 = vmatprep.subr.mxu0 %v1247
    %5043 = vmatpush1.msra.mxu0 %v1246
    %5044 = vmatprep.subr.mxu0 %v1250
    %5045 = vmatpush1.msra.mxu0 %v1249
    %5046 = vmatprep.subr.mxu0 %v1253
    %5047 = vmatpush1.msra.mxu0 %v1252
    %5048 = vmatprep.subr.mxu0 0.0
    %5049 = vmatpush1.msra.mxu0 0.0
    %5050 = vmatprep.subr.mxu0 0.0
    %5051 = vmatpush1.msra.mxu0 0.0
    %5052 = vmatprep.subr.mxu0 0.0
    %5053 = vmatpush1.msra.mxu0 0.0
    %5054 = vmatprep.subr.mxu0 0.0
    %5055 = vmatpush1.msra.mxu0 0.0
    %5056 = vmatprep.subr.mxu0 0.0
    %5057 = vmatpush1.msra.mxu0 0.0
    %5058 = vmatprep.subr.mxu0 0.0
    %5059 = vmatpush1.msra.mxu0 0.0
    %5060 = vmatprep.subr.mxu0 0.0
    %5061 = vmatpush1.msra.mxu0 0.0
    %5062 = vmatprep.subr.mxu0 0.0
    %5063 = vmatpush1.msra.mxu0 0.0
    %5064 = vmatprep.subr.mxu0 0.0
    %5065 = vmatpush1.msra.mxu0 0.0
    %5066 = vmatprep.subr.mxu0 0.0
    %5067 = vmatpush1.msra.mxu0 0.0
    %5068 = vmatprep.subr.mxu0 0.0
    %5069 = vmatpush1.msra.mxu0 0.0
    %5070 = vmatprep.subr.mxu0 0.0
    %5071 = vmatpush1.msra.mxu0 0.0
    %5072 = vmatprep.subr.mxu0 0.0
    %5073 = vmatpush1.msra.mxu0 0.0
    %5074 = vmatprep.subr.mxu0 0.0
    %5075 = vmatpush1.msra.mxu0 0.0
    %5076 = vmatprep.subr.mxu0 0.0
    %5077 = vmatpush1.msra.mxu0 0.0
    %5078 = vmatprep.subr.mxu0 0.0
    %5079 = vmatpush1.msra.mxu0 0.0
    %5080 = vmatprep.mubr.f32.mxu0 0.0
    %5081 = vmatmul.mubr.f32.gmra.mrb[0].mxu0 %v4709
    %v5082 = vpop.f32.mrb[0].mxu0
    %v5083 = vadd.f32 %v1260, %v5082
    %v5084 = vpop.f32.mrb[0].mxu0
    %v5085 = vadd.f32 %v1264, %v5084
    %5086 = vdwg.mxu0
    %5087 = vmatprep.subr.mxu0 0.0
    %5088 = vmatpush1.msra.mxu0 %v1209
    %5089 = vmatprep.subr.mxu0 0.0
    %5090 = vmatpush1.msra.mxu0 %v1212
    %5091 = vmatprep.subr.mxu0 0.0
    %5092 = vmatpush1.msra.mxu0 %v1215
    %5093 = vmatprep.subr.mxu0 0.0
    %5094 = vmatpush1.msra.mxu0 %v1218
    %5095 = vmatprep.subr.mxu0 0.0
    %5096 = vmatpush1.msra.mxu0 %v1221
    %5097 = vmatprep.subr.mxu0 0.0
    %5098 = vmatpush1.msra.mxu0 %v1224
    %5099 = vmatprep.subr.mxu0 0.0
    %5100 = vmatpush1.msra.mxu0 %v1227
    %5101 = vmatprep.subr.mxu0 0.0
    %5102 = vmatpush1.msra.mxu0 %v1230
    %5103 = vmatprep.subr.mxu0 0.0
    %5104 = vmatpush1.msra.mxu0 %v1233
    %5105 = vmatprep.subr.mxu0 0.0
    %5106 = vmatpush1.msra.mxu0 %v1236
    %5107 = vmatprep.subr.mxu0 0.0
    %5108 = vmatpush1.msra.mxu0 %v1239
    %5109 = vmatprep.subr.mxu0 0.0
    %5110 = vmatpush1.msra.mxu0 %v1242
    %5111 = vmatprep.subr.mxu0 0.0
    %5112 = vmatpush1.msra.mxu0 %v1245
    %5113 = vmatprep.subr.mxu0 0.0
    %5114 = vmatpush1.msra.mxu0 %v1248
    %5115 = vmatprep.subr.mxu0 0.0
    %5116 = vmatpush1.msra.mxu0 %v1251
    %5117 = vmatprep.subr.mxu0 0.0
    %5118 = vmatpush1.msra.mxu0 %v1254
    %5119 = vmatprep.subr.mxu0 0.0
    %5120 = vmatpush1.msra.mxu0 0.0
    %5121 = vmatprep.subr.mxu0 0.0
    %5122 = vmatpush1.msra.mxu0 0.0
    %5123 = vmatprep.subr.mxu0 0.0
    %5124 = vmatpush1.msra.mxu0 0.0
    %5125 = vmatprep.subr.mxu0 0.0
    %5126 = vmatpush1.msra.mxu0 0.0
    %5127 = vmatprep.subr.mxu0 0.0
    %5128 = vmatpush1.msra.mxu0 0.0
    %5129 = vmatprep.subr.mxu0 0.0
    %5130 = vmatpush1.msra.mxu0 0.0
    %5131 = vmatprep.subr.mxu0 0.0
    %5132 = vmatpush1.msra.mxu0 0.0
    %5133 = vmatprep.subr.mxu0 0.0
    %5134 = vmatpush1.msra.mxu0 0.0
    %5135 = vmatprep.subr.mxu0 0.0
    %5136 = vmatpush1.msra.mxu0 0.0
    %5137 = vmatprep.subr.mxu0 0.0
    %5138 = vmatpush1.msra.mxu0 0.0
    %5139 = vmatprep.subr.mxu0 0.0
    %5140 = vmatpush1.msra.mxu0 0.0
    %5141 = vmatprep.subr.mxu0 0.0
    %5142 = vmatpush1.msra.mxu0 0.0
    %5143 = vmatprep.subr.mxu0 0.0
    %5144 = vmatpush1.msra.mxu0 0.0
    %5145 = vmatprep.subr.mxu0 0.0
    %5146 = vmatpush1.msra.mxu0 0.0
    %5147 = vmatprep.subr.mxu0 0.0
    %5148 = vmatpush1.msra.mxu0 0.0
    %5149 = vmatprep.subr.mxu0 0.0
    %5150 = vmatpush1.msra.mxu0 0.0
    %5151 = vmatprep.mubr.f32.mxu0 0.0
    %5152 = vmatmul.mubr.f32.gmra.mrb[0].mxu0 %v4709
    %v5153 = vpop.f32.mrb[0].mxu0
    %v5154 = vadd.f32 %v1268, %v5153
    %v5155 = vpop.f32.mrb[0].mxu0
    %5156 = vdwg.mxu0
    %v5157 = vadd.f32 %v4777, %v5083
    %v5158 = vadd.f32 %v4779, %v5085
    %v5159 = vxor.u32 %v5157, 2147483648
    %v5160 = vxor.u32 %v5158, 2147483648
    %v5161 = vmul.f32 %v5159, 1.442695
    %v5162 = vpow.pop %v5161
    %v5163 = vmul.f32 %v5160, 1.442695
    %v5164 = vpow.pop %v5163
    %v5165 = vadd.f32 %v5162, 1.0
    %v5166 = vadd.f32 %v5164, 1.0
    %v5167 = vrcp.pop %v5165
    %v5168 = vmul.f32 1.0, %v5167
    %v5169 = vrcp.pop %v5166
    %v5170 = vmul.f32 1.0, %v5169
    %v5171 = vmul.f32 %v5168, %v5154
    %v5172 = vadd.f32 %v4848, %v5171
    %v5173 = vtanh.pop %v5172
    %v5174 = vsub.f32 1.0, %v5170
    %v5175 = vmul.f32 %v5174, %v5173
    %v5176 = vmul.f32 %v5170, %v4709
    %v5177 = vadd.f32 %v5175, %v5176
    %5178 = vmatprep.subr.mxu0 %v837
    %5179 = vmatpush1.msra.mxu0 %v836
    %5180 = vmatprep.subr.mxu0 %v840
    %5181 = vmatpush1.msra.mxu0 %v839
    %5182 = vmatprep.subr.mxu0 %v843
    %5183 = vmatpush1.msra.mxu0 %v842
    %5184 = vmatprep.subr.mxu0 %v846
    %5185 = vmatpush1.msra.mxu0 %v845
    %5186 = vmatprep.subr.mxu0 %v849
    %5187 = vmatpush1.msra.mxu0 %v848
    %5188 = vmatprep.subr.mxu0 %v852
    %5189 = vmatpush1.msra.mxu0 %v851
    %5190 = vmatprep.subr.mxu0 %v855
    %5191 = vmatpush1.msra.mxu0 %v854
    %5192 = vmatprep.subr.mxu0 %v858
    %5193 = vmatpush1.msra.mxu0 %v857
    %5194 = vmatprep.subr.mxu0 %v861
    %5195 = vmatpush1.msra.mxu0 %v860
    %5196 = vmatprep.subr.mxu0 %v864
    %5197 = vmatpush1.msra.mxu0 %v863
    %5198 = vmatprep.subr.mxu0 %v867
    %5199 = vmatpush1.msra.mxu0 %v866
    %5200 = vmatprep.subr.mxu0 %v870
    %5201 = vmatpush1.msra.mxu0 %v869
    %5202 = vmatprep.subr.mxu0 %v873
    %5203 = vmatpush1.msra.mxu0 %v872
    %5204 = vmatprep.subr.mxu0 %v876
    %5205 = vmatpush1.msra.mxu0 %v875
    %5206 = vmatprep.subr.mxu0 %v879
    %5207 = vmatpush1.msra.mxu0 %v878
    %5208 = vmatprep.subr.mxu0 %v882
    %5209 = vmatpush1.msra.mxu0 %v881
    %5210 = vmatprep.subr.mxu0 0.0
    %5211 = vmatpush1.msra.mxu0 0.0
    %5212 = vmatprep.subr.mxu0 0.0
    %5213 = vmatpush1.msra.mxu0 0.0
    %5214 = vmatprep.subr.mxu0 0.0
    %5215 = vmatpush1.msra.mxu0 0.0
    %5216 = vmatprep.subr.mxu0 0.0
    %5217 = vmatpush1.msra.mxu0 0.0
    %5218 = vmatprep.subr.mxu0 0.0
    %5219 = vmatpush1.msra.mxu0 0.0
    %5220 = vmatprep.subr.mxu0 0.0
    %5221 = vmatpush1.msra.mxu0 0.0
    %5222 = vmatprep.subr.mxu0 0.0
    %5223 = vmatpush1.msra.mxu0 0.0
    %5224 = vmatprep.subr.mxu0 0.0
    %5225 = vmatpush1.msra.mxu0 0.0
    %5226 = vmatprep.subr.mxu0 0.0
    %5227 = vmatpush1.msra.mxu0 0.0
    %5228 = vmatprep.subr.mxu0 0.0
    %5229 = vmatpush1.msra.mxu0 0.0
    %5230 = vmatprep.subr.mxu0 0.0
    %5231 = vmatpush1.msra.mxu0 0.0
    %5232 = vmatprep.subr.mxu0 0.0
    %5233 = vmatpush1.msra.mxu0 0.0
    %5234 = vmatprep.subr.mxu0 0.0
    %5235 = vmatpush1.msra.mxu0 0.0
    %5236 = vmatprep.subr.mxu0 0.0
    %5237 = vmatpush1.msra.mxu0 0.0
    %5238 = vmatprep.subr.mxu0 0.0
    %5239 = vmatpush1.msra.mxu0 0.0
    %5240 = vmatprep.subr.mxu0 0.0
    %5241 = vmatpush1.msra.mxu0 0.0
    %5242 = vmatprep.mubr.f32.mxu0 0.0
    %5243 = vmatmul.mubr.f32.gmra.mrb[0].mxu0 %v5015
    %v5244 = vpop.f32.mrb[0].mxu0
    %v5245 = vadd.f32 %v889, %v5244
    %v5246 = vpop.f32.mrb[0].mxu0
    %v5247 = vadd.f32 %v893, %v5246
    %5248 = vdwg.mxu0
    %5249 = vmatprep.subr.mxu0 0.0
    %5250 = vmatpush1.msra.mxu0 %v838
    %5251 = vmatprep.subr.mxu0 0.0
    %5252 = vmatpush1.msra.mxu0 %v841
    %5253 = vmatprep.subr.mxu0 0.0
    %5254 = vmatpush1.msra.mxu0 %v844
    %5255 = vmatprep.subr.mxu0 0.0
    %5256 = vmatpush1.msra.mxu0 %v847
    %5257 = vmatprep.subr.mxu0 0.0
    %5258 = vmatpush1.msra.mxu0 %v850
    %5259 = vmatprep.subr.mxu0 0.0
    %5260 = vmatpush1.msra.mxu0 %v853
    %5261 = vmatprep.subr.mxu0 0.0
    %5262 = vmatpush1.msra.mxu0 %v856
    %5263 = vmatprep.subr.mxu0 0.0
    %5264 = vmatpush1.msra.mxu0 %v859
    %5265 = vmatprep.subr.mxu0 0.0
    %5266 = vmatpush1.msra.mxu0 %v862
    %5267 = vmatprep.subr.mxu0 0.0
    %5268 = vmatpush1.msra.mxu0 %v865
    %5269 = vmatprep.subr.mxu0 0.0
    %5270 = vmatpush1.msra.mxu0 %v868
    %5271 = vmatprep.subr.mxu0 0.0
    %5272 = vmatpush1.msra.mxu0 %v871
    %5273 = vmatprep.subr.mxu0 0.0
    %5274 = vmatpush1.msra.mxu0 %v874
    %5275 = vmatprep.subr.mxu0 0.0
    %5276 = vmatpush1.msra.mxu0 %v877
    %5277 = vmatprep.subr.mxu0 0.0
    %5278 = vmatpush1.msra.mxu0 %v880
    %5279 = vmatprep.subr.mxu0 0.0
    %5280 = vmatpush1.msra.mxu0 %v883
    %5281 = vmatprep.subr.mxu0 0.0
    %5282 = vmatpush1.msra.mxu0 0.0
    %5283 = vmatprep.subr.mxu0 0.0
    %5284 = vmatpush1.msra.mxu0 0.0
    %5285 = vmatprep.subr.mxu0 0.0
    %5286 = vmatpush1.msra.mxu0 0.0
    %5287 = vmatprep.subr.mxu0 0.0
    %5288 = vmatpush1.msra.mxu0 0.0
    %5289 = vmatprep.subr.mxu0 0.0
    %5290 = vmatpush1.msra.mxu0 0.0
    %5291 = vmatprep.subr.mxu0 0.0
    %5292 = vmatpush1.msra.mxu0 0.0
    %5293 = vmatprep.subr.mxu0 0.0
    %5294 = vmatpush1.msra.mxu0 0.0
    %5295 = vmatprep.subr.mxu0 0.0
    %5296 = vmatpush1.msra.mxu0 0.0
    %5297 = vmatprep.subr.mxu0 0.0
    %5298 = vmatpush1.msra.mxu0 0.0
    %5299 = vmatprep.subr.mxu0 0.0
    %5300 = vmatpush1.msra.mxu0 0.0
    %5301 = vmatprep.subr.mxu0 0.0
    %5302 = vmatpush1.msra.mxu0 0.0
    %5303 = vmatprep.subr.mxu0 0.0
    %5304 = vmatpush1.msra.mxu0 0.0
    %5305 = vmatprep.subr.mxu0 0.0
    %5306 = vmatpush1.msra.mxu0 0.0
    %5307 = vmatprep.subr.mxu0 0.0
    %5308 = vmatpush1.msra.mxu0 0.0
    %5309 = vmatprep.subr.mxu0 0.0
    %5310 = vmatpush1.msra.mxu0 0.0
    %5311 = vmatprep.subr.mxu0 0.0
    %5312 = vmatpush1.msra.mxu0 0.0
    %5313 = vmatprep.mubr.f32.mxu0 0.0
    %5314 = vmatmul.mubr.f32.gmra.mrb[0].mxu0 %v5015
    %v5315 = vpop.f32.mrb[0].mxu0
    %v5316 = vadd.f32 %v897, %v5315
    %v5317 = vpop.f32.mrb[0].mxu0
    %5318 = vdwg.mxu0
    %v5319 = vld [vmem:[#allocation2 + $0xf0] sm:$0xff]
    %v5320 = vld [vmem:[#allocation2 + $0xf8] sm:$0xff]
    %v5321 = vld [vmem:[#allocation2 + $0x100] sm:$0xff]
    %5322 = vmatprep.subr.mxu0 %v610
    %5323 = vmatpush1.msra.mxu0 %v609
    %5324 = vmatprep.subr.mxu0 %v613
    %5325 = vmatpush1.msra.mxu0 %v612
    %5326 = vmatprep.subr.mxu0 %v616
    %5327 = vmatpush1.msra.mxu0 %v615
    %5328 = vmatprep.subr.mxu0 %v619
    %5329 = vmatpush1.msra.mxu0 %v618
    %5330 = vmatprep.subr.mxu0 %v622
    %5331 = vmatpush1.msra.mxu0 %v621
    %5332 = vmatprep.subr.mxu0 %v625
    %5333 = vmatpush1.msra.mxu0 %v624
    %5334 = vmatprep.subr.mxu0 %v628
    %5335 = vmatpush1.msra.mxu0 %v627
    %5336 = vmatprep.subr.mxu0 %v631
    %5337 = vmatpush1.msra.mxu0 %v630
    %5338 = vmatprep.subr.mxu0 %v634
    %5339 = vmatpush1.msra.mxu0 %v633
    %5340 = vmatprep.subr.mxu0 %v637
    %5341 = vmatpush1.msra.mxu0 %v636
    %5342 = vmatprep.subr.mxu0 %v640
    %5343 = vmatpush1.msra.mxu0 %v639
    %5344 = vmatprep.subr.mxu0 %v643
    %5345 = vmatpush1.msra.mxu0 %v642
    %5346 = vmatprep.subr.mxu0 %v646
    %5347 = vmatpush1.msra.mxu0 %v645
    %5348 = vmatprep.subr.mxu0 %v649
    %5349 = vmatpush1.msra.mxu0 %v648
    %5350 = vmatprep.subr.mxu0 %v652
    %5351 = vmatpush1.msra.mxu0 %v651
    %5352 = vmatprep.subr.mxu0 %v655
    %5353 = vmatpush1.msra.mxu0 %v654
    %5354 = vmatprep.subr.mxu0 0.0
    %5355 = vmatpush1.msra.mxu0 0.0
    %5356 = vmatprep.subr.mxu0 0.0
    %5357 = vmatpush1.msra.mxu0 0.0
    %5358 = vmatprep.subr.mxu0 0.0
    %5359 = vmatpush1.msra.mxu0 0.0
    %5360 = vmatprep.subr.mxu0 0.0
    %5361 = vmatpush1.msra.mxu0 0.0
    %5362 = vmatprep.subr.mxu0 0.0
    %5363 = vmatpush1.msra.mxu0 0.0
    %5364 = vmatprep.subr.mxu0 0.0
    %5365 = vmatpush1.msra.mxu0 0.0
    %5366 = vmatprep.subr.mxu0 0.0
    %5367 = vmatpush1.msra.mxu0 0.0
    %5368 = vmatprep.subr.mxu0 0.0
    %5369 = vmatpush1.msra.mxu0 0.0
    %5370 = vmatprep.subr.mxu0 0.0
    %5371 = vmatpush1.msra.mxu0 0.0
    %5372 = vmatprep.subr.mxu0 0.0
    %5373 = vmatpush1.msra.mxu0 0.0
    %5374 = vmatprep.subr.mxu0 0.0
    %5375 = vmatpush1.msra.mxu0 0.0
    %5376 = vmatprep.subr.mxu0 0.0
    %5377 = vmatpush1.msra.mxu0 0.0
    %5378 = vmatprep.subr.mxu0 0.0
    %5379 = vmatpush1.msra.mxu0 0.0
    %5380 = vmatprep.subr.mxu0 0.0
    %5381 = vmatpush1.msra.mxu0 0.0
    %5382 = vmatprep.subr.mxu0 0.0
    %5383 = vmatpush1.msra.mxu0 0.0
    %5384 = vmatprep.subr.mxu0 0.0
    %5385 = vmatpush1.msra.mxu0 0.0
    %5386 = vmatprep.mubr.f32.mxu0 0.0
    %5387 = vmatmul.mubr.f32.gmra.mrb[0].mxu0 %v5015
    %v5388 = vpop.f32.mrb[0].mxu0
    %v5389 = vadd.f32 %v662, %v5388
    %v5390 = vpop.f32.mrb[0].mxu0
    %v5391 = vadd.f32 %v666, %v5390
    %5392 = vdwg.mxu0
    %5393 = vmatprep.subr.mxu0 0.0
    %5394 = vmatpush1.msra.mxu0 %v611
    %5395 = vmatprep.subr.mxu0 0.0
    %5396 = vmatpush1.msra.mxu0 %v614
    %5397 = vmatprep.subr.mxu0 0.0
    %5398 = vmatpush1.msra.mxu0 %v617
    %5399 = vmatprep.subr.mxu0 0.0
    %5400 = vmatpush1.msra.mxu0 %v620
    %5401 = vmatprep.subr.mxu0 0.0
    %5402 = vmatpush1.msra.mxu0 %v623
    %5403 = vmatprep.subr.mxu0 0.0
    %5404 = vmatpush1.msra.mxu0 %v626
    %5405 = vmatprep.subr.mxu0 0.0
    %5406 = vmatpush1.msra.mxu0 %v629
    %5407 = vmatprep.subr.mxu0 0.0
    %5408 = vmatpush1.msra.mxu0 %v632
    %5409 = vmatprep.subr.mxu0 0.0
    %5410 = vmatpush1.msra.mxu0 %v635
    %5411 = vmatprep.subr.mxu0 0.0
    %5412 = vmatpush1.msra.mxu0 %v638
    %5413 = vmatprep.subr.mxu0 0.0
    %5414 = vmatpush1.msra.mxu0 %v641
    %5415 = vmatprep.subr.mxu0 0.0
    %5416 = vmatpush1.msra.mxu0 %v644
    %5417 = vmatprep.subr.mxu0 0.0
    %5418 = vmatpush1.msra.mxu0 %v647
    %5419 = vmatprep.subr.mxu0 0.0
    %5420 = vmatpush1.msra.mxu0 %v650
    %5421 = vmatprep.subr.mxu0 0.0
    %5422 = vmatpush1.msra.mxu0 %v653
    %5423 = vmatprep.subr.mxu0 0.0
    %5424 = vmatpush1.msra.mxu0 %v656
    %5425 = vmatprep.subr.mxu0 0.0
    %5426 = vmatpush1.msra.mxu0 0.0
    %5427 = vmatprep.subr.mxu0 0.0
    %5428 = vmatpush1.msra.mxu0 0.0
    %5429 = vmatprep.subr.mxu0 0.0
    %5430 = vmatpush1.msra.mxu0 0.0
    %5431 = vmatprep.subr.mxu0 0.0
    %5432 = vmatpush1.msra.mxu0 0.0
    %5433 = vmatprep.subr.mxu0 0.0
    %5434 = vmatpush1.msra.mxu0 0.0
    %5435 = vmatprep.subr.mxu0 0.0
    %5436 = vmatpush1.msra.mxu0 0.0
    %5437 = vmatprep.subr.mxu0 0.0
    %5438 = vmatpush1.msra.mxu0 0.0
    %5439 = vmatprep.subr.mxu0 0.0
    %5440 = vmatpush1.msra.mxu0 0.0
    %5441 = vmatprep.subr.mxu0 0.0
    %5442 = vmatpush1.msra.mxu0 0.0
    %5443 = vmatprep.subr.mxu0 0.0
    %5444 = vmatpush1.msra.mxu0 0.0
    %5445 = vmatprep.subr.mxu0 0.0
    %5446 = vmatpush1.msra.mxu0 0.0
    %5447 = vmatprep.subr.mxu0 0.0
    %5448 = vmatpush1.msra.mxu0 0.0
    %5449 = vmatprep.subr.mxu0 0.0
    %5450 = vmatpush1.msra.mxu0 0.0
    %5451 = vmatprep.subr.mxu0 0.0
    %5452 = vmatpush1.msra.mxu0 0.0
    %5453 = vmatprep.subr.mxu0 0.0
    %5454 = vmatpush1.msra.mxu0 0.0
    %5455 = vmatprep.subr.mxu0 0.0
    %5456 = vmatpush1.msra.mxu0 0.0
    %5457 = vmatprep.mubr.f32.mxu0 0.0
    %5458 = vmatmul.mubr.f32.gmra.mrb[0].mxu0 %v5015
    %v5459 = vpop.f32.mrb[0].mxu0
    %v5460 = vadd.f32 %v670, %v5459
    %v5461 = vpop.f32.mrb[0].mxu0
    %5462 = vdwg.mxu0
    %v5463 = vadd.f32 %v5319, %v5389
    %v5464 = vadd.f32 %v5320, %v5391
    %v5465 = vxor.u32 %v5463, 2147483648
    %v5466 = vxor.u32 %v5464, 2147483648
    %v5467 = vmul.f32 %v5465, 1.442695
    %v5468 = vpow.pop %v5467
    %v5469 = vmul.f32 %v5466, 1.442695
    %v5470 = vpow.pop %v5469
    %v5471 = vadd.f32 %v5468, 1.0
    %v5472 = vadd.f32 %v5470, 1.0
    %v5473 = vrcp.pop %v5471
    %v5474 = vmul.f32 1.0, %v5473
    %v5475 = vrcp.pop %v5472
    %v5476 = vmul.f32 1.0, %v5475
    %v5477 = vmul.f32 %v5474, %v5460
    %v5478 = vadd.f32 %v5321, %v5477
    %v5479 = vtanh.pop %v5478
    %v5480 = vsub.f32 1.0, %v5476
    %v5481 = vmul.f32 %v5480, %v5479
    %v5482 = vmul.f32 %v5476, %v5015
    %v5483 = vadd.f32 %v5481, %v5482
    %5484 = vmatprep.subr.mxu0 %v1208
    %5485 = vmatpush1.msra.mxu0 %v1207
    %5486 = vmatprep.subr.mxu0 %v1211
    %5487 = vmatpush1.msra.mxu0 %v1210
    %5488 = vmatprep.subr.mxu0 %v1214
    %5489 = vmatpush1.msra.mxu0 %v1213
    %5490 = vmatprep.subr.mxu0 %v1217
    %5491 = vmatpush1.msra.mxu0 %v1216
    %5492 = vmatprep.subr.mxu0 %v1220
    %5493 = vmatpush1.msra.mxu0 %v1219
    %5494 = vmatprep.subr.mxu0 %v1223
    %5495 = vmatpush1.msra.mxu0 %v1222
    %5496 = vmatprep.subr.mxu0 %v1226
    %5497 = vmatpush1.msra.mxu0 %v1225
    %5498 = vmatprep.subr.mxu0 %v1229
    %5499 = vmatpush1.msra.mxu0 %v1228
    %5500 = vmatprep.subr.mxu0 %v1232
    %5501 = vmatpush1.msra.mxu0 %v1231
    %5502 = vmatprep.subr.mxu0 %v1235
    %5503 = vmatpush1.msra.mxu0 %v1234
    %5504 = vmatprep.subr.mxu0 %v1238
    %5505 = vmatpush1.msra.mxu0 %v1237
    %5506 = vmatprep.subr.mxu0 %v1241
    %5507 = vmatpush1.msra.mxu0 %v1240
    %5508 = vmatprep.subr.mxu0 %v1244
    %5509 = vmatpush1.msra.mxu0 %v1243
    %5510 = vmatprep.subr.mxu0 %v1247
    %5511 = vmatpush1.msra.mxu0 %v1246
    %5512 = vmatprep.subr.mxu0 %v1250
    %5513 = vmatpush1.msra.mxu0 %v1249
    %5514 = vmatprep.subr.mxu0 %v1253
    %5515 = vmatpush1.msra.mxu0 %v1252
    %5516 = vmatprep.subr.mxu0 0.0
    %5517 = vmatpush1.msra.mxu0 0.0
    %5518 = vmatprep.subr.mxu0 0.0
    %5519 = vmatpush1.msra.mxu0 0.0
    %5520 = vmatprep.subr.mxu0 0.0
    %5521 = vmatpush1.msra.mxu0 0.0
    %5522 = vmatprep.subr.mxu0 0.0
    %5523 = vmatpush1.msra.mxu0 0.0
    %5524 = vmatprep.subr.mxu0 0.0
    %5525 = vmatpush1.msra.mxu0 0.0
    %5526 = vmatprep.subr.mxu0 0.0
    %5527 = vmatpush1.msra.mxu0 0.0
    %5528 = vmatprep.subr.mxu0 0.0
    %5529 = vmatpush1.msra.mxu0 0.0
    %5530 = vmatprep.subr.mxu0 0.0
    %5531 = vmatpush1.msra.mxu0 0.0
    %5532 = vmatprep.subr.mxu0 0.0
    %5533 = vmatpush1.msra.mxu0 0.0
    %5534 = vmatprep.subr.mxu0 0.0
    %5535 = vmatpush1.msra.mxu0 0.0
    %5536 = vmatprep.subr.mxu0 0.0
    %5537 = vmatpush1.msra.mxu0 0.0
    %5538 = vmatprep.subr.mxu0 0.0
    %5539 = vmatpush1.msra.mxu0 0.0
    %5540 = vmatprep.subr.mxu0 0.0
    %5541 = vmatpush1.msra.mxu0 0.0
    %5542 = vmatprep.subr.mxu0 0.0
    %5543 = vmatpush1.msra.mxu0 0.0
    %5544 = vmatprep.subr.mxu0 0.0
    %5545 = vmatpush1.msra.mxu0 0.0
    %5546 = vmatprep.subr.mxu0 0.0
    %5547 = vmatpush1.msra.mxu0 0.0
    %5548 = vmatprep.mubr.f32.mxu0 0.0
    %5549 = vmatmul.mubr.f32.gmra.mrb[0].mxu0 %v5177
    %v5550 = vpop.f32.mrb[0].mxu0
    %v5551 = vadd.f32 %v1260, %v5550
    %v5552 = vpop.f32.mrb[0].mxu0
    %v5553 = vadd.f32 %v1264, %v5552
    %5554 = vdwg.mxu0
    %5555 = vmatprep.subr.mxu0 0.0
    %5556 = vmatpush1.msra.mxu0 %v1209
    %5557 = vmatprep.subr.mxu0 0.0
    %5558 = vmatpush1.msra.mxu0 %v1212
    %5559 = vmatprep.subr.mxu0 0.0
    %5560 = vmatpush1.msra.mxu0 %v1215
    %5561 = vmatprep.subr.mxu0 0.0
    %5562 = vmatpush1.msra.mxu0 %v1218
    %5563 = vmatprep.subr.mxu0 0.0
    %5564 = vmatpush1.msra.mxu0 %v1221
    %5565 = vmatprep.subr.mxu0 0.0
    %5566 = vmatpush1.msra.mxu0 %v1224
    %5567 = vmatprep.subr.mxu0 0.0
    %5568 = vmatpush1.msra.mxu0 %v1227
    %5569 = vmatprep.subr.mxu0 0.0
    %5570 = vmatpush1.msra.mxu0 %v1230
    %5571 = vmatprep.subr.mxu0 0.0
    %5572 = vmatpush1.msra.mxu0 %v1233
    %5573 = vmatprep.subr.mxu0 0.0
    %5574 = vmatpush1.msra.mxu0 %v1236
    %5575 = vmatprep.subr.mxu0 0.0
    %5576 = vmatpush1.msra.mxu0 %v1239
    %5577 = vmatprep.subr.mxu0 0.0
    %5578 = vmatpush1.msra.mxu0 %v1242
    %5579 = vmatprep.subr.mxu0 0.0
    %5580 = vmatpush1.msra.mxu0 %v1245
    %5581 = vmatprep.subr.mxu0 0.0
    %5582 = vmatpush1.msra.mxu0 %v1248
    %5583 = vmatprep.subr.mxu0 0.0
    %5584 = vmatpush1.msra.mxu0 %v1251
    %5585 = vmatprep.subr.mxu0 0.0
    %5586 = vmatpush1.msra.mxu0 %v1254
    %5587 = vmatprep.subr.mxu0 0.0
    %5588 = vmatpush1.msra.mxu0 0.0
    %5589 = vmatprep.subr.mxu0 0.0
    %5590 = vmatpush1.msra.mxu0 0.0
    %5591 = vmatprep.subr.mxu0 0.0
    %5592 = vmatpush1.msra.mxu0 0.0
    %5593 = vmatprep.subr.mxu0 0.0
    %5594 = vmatpush1.msra.mxu0 0.0
    %5595 = vmatprep.subr.mxu0 0.0
    %5596 = vmatpush1.msra.mxu0 0.0
    %5597 = vmatprep.subr.mxu0 0.0
    %5598 = vmatpush1.msra.mxu0 0.0
    %5599 = vmatprep.subr.mxu0 0.0
    %5600 = vmatpush1.msra.mxu0 0.0
    %5601 = vmatprep.subr.mxu0 0.0
    %5602 = vmatpush1.msra.mxu0 0.0
    %5603 = vmatprep.subr.mxu0 0.0
    %5604 = vmatpush1.msra.mxu0 0.0
    %5605 = vmatprep.subr.mxu0 0.0
    %5606 = vmatpush1.msra.mxu0 0.0
    %5607 = vmatprep.subr.mxu0 0.0
    %5608 = vmatpush1.msra.mxu0 0.0
    %5609 = vmatprep.subr.mxu0 0.0
    %5610 = vmatpush1.msra.mxu0 0.0
    %5611 = vmatprep.subr.mxu0 0.0
    %5612 = vmatpush1.msra.mxu0 0.0
    %5613 = vmatprep.subr.mxu0 0.0
    %5614 = vmatpush1.msra.mxu0 0.0
    %5615 = vmatprep.subr.mxu0 0.0
    %5616 = vmatpush1.msra.mxu0 0.0
    %5617 = vmatprep.subr.mxu0 0.0
    %5618 = vmatpush1.msra.mxu0 0.0
    %5619 = vmatprep.mubr.f32.mxu0 0.0
    %5620 = vmatmul.mubr.f32.gmra.mrb[0].mxu0 %v5177
    %v5621 = vpop.f32.mrb[0].mxu0
    %v5622 = vadd.f32 %v1268, %v5621
    %v5623 = vpop.f32.mrb[0].mxu0
    %5624 = vdwg.mxu0
    %v5625 = vadd.f32 %v5245, %v5551
    %v5626 = vadd.f32 %v5247, %v5553
    %v5627 = vxor.u32 %v5625, 2147483648
    %v5628 = vxor.u32 %v5626, 2147483648
    %v5629 = vmul.f32 %v5627, 1.442695
    %v5630 = vpow.pop %v5629
    %v5631 = vmul.f32 %v5628, 1.442695
    %v5632 = vpow.pop %v5631
    %v5633 = vadd.f32 %v5630, 1.0
    %v5634 = vadd.f32 %v5632, 1.0
    %v5635 = vrcp.pop %v5633
    %v5636 = vmul.f32 1.0, %v5635
    %v5637 = vrcp.pop %v5634
    %v5638 = vmul.f32 1.0, %v5637
    %v5639 = vmul.f32 %v5636, %v5622
    %v5640 = vadd.f32 %v5316, %v5639
    %v5641 = vtanh.pop %v5640
    %v5642 = vsub.f32 1.0, %v5638
    %v5643 = vmul.f32 %v5642, %v5641
    %v5644 = vmul.f32 %v5638, %v5177
    %v5645 = vadd.f32 %v5643, %v5644
    %5646 = vmatprep.subr.mxu0 %v837
    %5647 = vmatpush1.msra.mxu0 %v836
    %5648 = vmatprep.subr.mxu0 %v840
    %5649 = vmatpush1.msra.mxu0 %v839
    %5650 = vmatprep.subr.mxu0 %v843
    %5651 = vmatpush1.msra.mxu0 %v842
    %5652 = vmatprep.subr.mxu0 %v846
    %5653 = vmatpush1.msra.mxu0 %v845
    %5654 = vmatprep.subr.mxu0 %v849
    %5655 = vmatpush1.msra.mxu0 %v848
    %5656 = vmatprep.subr.mxu0 %v852
    %5657 = vmatpush1.msra.mxu0 %v851
    %5658 = vmatprep.subr.mxu0 %v855
    %5659 = vmatpush1.msra.mxu0 %v854
    %5660 = vmatprep.subr.mxu0 %v858
    %5661 = vmatpush1.msra.mxu0 %v857
    %5662 = vmatprep.subr.mxu0 %v861
    %5663 = vmatpush1.msra.mxu0 %v860
    %5664 = vmatprep.subr.mxu0 %v864
    %5665 = vmatpush1.msra.mxu0 %v863
    %5666 = vmatprep.subr.mxu0 %v867
    %5667 = vmatpush1.msra.mxu0 %v866
    %5668 = vmatprep.subr.mxu0 %v870
    %5669 = vmatpush1.msra.mxu0 %v869
    %5670 = vmatprep.subr.mxu0 %v873
    %5671 = vmatpush1.msra.mxu0 %v872
    %5672 = vmatprep.subr.mxu0 %v876
    %5673 = vmatpush1.msra.mxu0 %v875
    %5674 = vmatprep.subr.mxu0 %v879
    %5675 = vmatpush1.msra.mxu0 %v878
    %5676 = vmatprep.subr.mxu0 %v882
    %5677 = vmatpush1.msra.mxu0 %v881
    %5678 = vmatprep.subr.mxu0 0.0
    %5679 = vmatpush1.msra.mxu0 0.0
    %5680 = vmatprep.subr.mxu0 0.0
    %5681 = vmatpush1.msra.mxu0 0.0
    %5682 = vmatprep.subr.mxu0 0.0
    %5683 = vmatpush1.msra.mxu0 0.0
    %5684 = vmatprep.subr.mxu0 0.0
    %5685 = vmatpush1.msra.mxu0 0.0
    %5686 = vmatprep.subr.mxu0 0.0
    %5687 = vmatpush1.msra.mxu0 0.0
    %5688 = vmatprep.subr.mxu0 0.0
    %5689 = vmatpush1.msra.mxu0 0.0
    %5690 = vmatprep.subr.mxu0 0.0
    %5691 = vmatpush1.msra.mxu0 0.0
    %5692 = vmatprep.subr.mxu0 0.0
    %5693 = vmatpush1.msra.mxu0 0.0
    %5694 = vmatprep.subr.mxu0 0.0
    %5695 = vmatpush1.msra.mxu0 0.0
    %5696 = vmatprep.subr.mxu0 0.0
    %5697 = vmatpush1.msra.mxu0 0.0
    %5698 = vmatprep.subr.mxu0 0.0
    %5699 = vmatpush1.msra.mxu0 0.0
    %5700 = vmatprep.subr.mxu0 0.0
    %5701 = vmatpush1.msra.mxu0 0.0
    %5702 = vmatprep.subr.mxu0 0.0
    %5703 = vmatpush1.msra.mxu0 0.0
    %5704 = vmatprep.subr.mxu0 0.0
    %5705 = vmatpush1.msra.mxu0 0.0
    %5706 = vmatprep.subr.mxu0 0.0
    %5707 = vmatpush1.msra.mxu0 0.0
    %5708 = vmatprep.subr.mxu0 0.0
    %5709 = vmatpush1.msra.mxu0 0.0
    %5710 = vmatprep.mubr.f32.mxu0 0.0
    %5711 = vmatmul.mubr.f32.gmra.mrb[0].mxu0 %v5483
    %v5712 = vpop.f32.mrb[0].mxu0
    %v5713 = vadd.f32 %v889, %v5712
    %v5714 = vpop.f32.mrb[0].mxu0
    %v5715 = vadd.f32 %v893, %v5714
    %5716 = vdwg.mxu0
    %5717 = vmatprep.subr.mxu0 0.0
    %5718 = vmatpush1.msra.mxu0 %v838
    %5719 = vmatprep.subr.mxu0 0.0
    %5720 = vmatpush1.msra.mxu0 %v841
    %5721 = vmatprep.subr.mxu0 0.0
    %5722 = vmatpush1.msra.mxu0 %v844
    %5723 = vmatprep.subr.mxu0 0.0
    %5724 = vmatpush1.msra.mxu0 %v847
    %5725 = vmatprep.subr.mxu0 0.0
    %5726 = vmatpush1.msra.mxu0 %v850
    %5727 = vmatprep.subr.mxu0 0.0
    %5728 = vmatpush1.msra.mxu0 %v853
    %5729 = vmatprep.subr.mxu0 0.0
    %5730 = vmatpush1.msra.mxu0 %v856
    %5731 = vmatprep.subr.mxu0 0.0
    %5732 = vmatpush1.msra.mxu0 %v859
    %5733 = vmatprep.subr.mxu0 0.0
    %5734 = vmatpush1.msra.mxu0 %v862
    %5735 = vmatprep.subr.mxu0 0.0
    %5736 = vmatpush1.msra.mxu0 %v865
    %5737 = vmatprep.subr.mxu0 0.0
    %5738 = vmatpush1.msra.mxu0 %v868
    %5739 = vmatprep.subr.mxu0 0.0
    %5740 = vmatpush1.msra.mxu0 %v871
    %5741 = vmatprep.subr.mxu0 0.0
    %5742 = vmatpush1.msra.mxu0 %v874
    %5743 = vmatprep.subr.mxu0 0.0
    %5744 = vmatpush1.msra.mxu0 %v877
    %5745 = vmatprep.subr.mxu0 0.0
    %5746 = vmatpush1.msra.mxu0 %v880
    %5747 = vmatprep.subr.mxu0 0.0
    %5748 = vmatpush1.msra.mxu0 %v883
    %5749 = vmatprep.subr.mxu0 0.0
    %5750 = vmatpush1.msra.mxu0 0.0
    %5751 = vmatprep.subr.mxu0 0.0
    %5752 = vmatpush1.msra.mxu0 0.0
    %5753 = vmatprep.subr.mxu0 0.0
    %5754 = vmatpush1.msra.mxu0 0.0
    %5755 = vmatprep.subr.mxu0 0.0
    %5756 = vmatpush1.msra.mxu0 0.0
    %5757 = vmatprep.subr.mxu0 0.0
    %5758 = vmatpush1.msra.mxu0 0.0
    %5759 = vmatprep.subr.mxu0 0.0
    %5760 = vmatpush1.msra.mxu0 0.0
    %5761 = vmatprep.subr.mxu0 0.0
    %5762 = vmatpush1.msra.mxu0 0.0
    %5763 = vmatprep.subr.mxu0 0.0
    %5764 = vmatpush1.msra.mxu0 0.0
    %5765 = vmatprep.subr.mxu0 0.0
    %5766 = vmatpush1.msra.mxu0 0.0
    %5767 = vmatprep.subr.mxu0 0.0
    %5768 = vmatpush1.msra.mxu0 0.0
    %5769 = vmatprep.subr.mxu0 0.0
    %5770 = vmatpush1.msra.mxu0 0.0
    %5771 = vmatprep.subr.mxu0 0.0
    %5772 = vmatpush1.msra.mxu0 0.0
    %5773 = vmatprep.subr.mxu0 0.0
    %5774 = vmatpush1.msra.mxu0 0.0
    %5775 = vmatprep.subr.mxu0 0.0
    %5776 = vmatpush1.msra.mxu0 0.0
    %5777 = vmatprep.subr.mxu0 0.0
    %5778 = vmatpush1.msra.mxu0 0.0
    %5779 = vmatprep.subr.mxu0 0.0
    %5780 = vmatpush1.msra.mxu0 0.0
    %5781 = vmatprep.mubr.f32.mxu0 0.0
    %5782 = vmatmul.mubr.f32.gmra.mrb[0].mxu0 %v5483
    %v5783 = vpop.f32.mrb[0].mxu0
    %v5784 = vadd.f32 %v897, %v5783
    %v5785 = vpop.f32.mrb[0].mxu0
    %5786 = vdwg.mxu0
    %v5787 = vld [vmem:[#allocation2 + $0x108] sm:$0xff]
    %v5788 = vld [vmem:[#allocation2 + $0x110] sm:$0xff]
    %v5789 = vld [vmem:[#allocation2 + $0x118] sm:$0xff]
    %5790 = vmatprep.subr.mxu0 %v610
    %5791 = vmatpush1.msra.mxu0 %v609
    %5792 = vmatprep.subr.mxu0 %v613
    %5793 = vmatpush1.msra.mxu0 %v612
    %5794 = vmatprep.subr.mxu0 %v616
    %5795 = vmatpush1.msra.mxu0 %v615
    %5796 = vmatprep.subr.mxu0 %v619
    %5797 = vmatpush1.msra.mxu0 %v618
    %5798 = vmatprep.subr.mxu0 %v622
    %5799 = vmatpush1.msra.mxu0 %v621
    %5800 = vmatprep.subr.mxu0 %v625
    %5801 = vmatpush1.msra.mxu0 %v624
    %5802 = vmatprep.subr.mxu0 %v628
    %5803 = vmatpush1.msra.mxu0 %v627
    %5804 = vmatprep.subr.mxu0 %v631
    %5805 = vmatpush1.msra.mxu0 %v630
    %5806 = vmatprep.subr.mxu0 %v634
    %5807 = vmatpush1.msra.mxu0 %v633
    %5808 = vmatprep.subr.mxu0 %v637
    %5809 = vmatpush1.msra.mxu0 %v636
    %5810 = vmatprep.subr.mxu0 %v640
    %5811 = vmatpush1.msra.mxu0 %v639
    %5812 = vmatprep.subr.mxu0 %v643
    %5813 = vmatpush1.msra.mxu0 %v642
    %5814 = vmatprep.subr.mxu0 %v646
    %5815 = vmatpush1.msra.mxu0 %v645
    %5816 = vmatprep.subr.mxu0 %v649
    %5817 = vmatpush1.msra.mxu0 %v648
    %5818 = vmatprep.subr.mxu0 %v652
    %5819 = vmatpush1.msra.mxu0 %v651
    %5820 = vmatprep.subr.mxu0 %v655
    %5821 = vmatpush1.msra.mxu0 %v654
    %5822 = vmatprep.subr.mxu0 0.0
    %5823 = vmatpush1.msra.mxu0 0.0
    %5824 = vmatprep.subr.mxu0 0.0
    %5825 = vmatpush1.msra.mxu0 0.0
    %5826 = vmatprep.subr.mxu0 0.0
    %5827 = vmatpush1.msra.mxu0 0.0
    %5828 = vmatprep.subr.mxu0 0.0
    %5829 = vmatpush1.msra.mxu0 0.0
    %5830 = vmatprep.subr.mxu0 0.0
    %5831 = vmatpush1.msra.mxu0 0.0
    %5832 = vmatprep.subr.mxu0 0.0
    %5833 = vmatpush1.msra.mxu0 0.0
    %5834 = vmatprep.subr.mxu0 0.0
    %5835 = vmatpush1.msra.mxu0 0.0
    %5836 = vmatprep.subr.mxu0 0.0
    %5837 = vmatpush1.msra.mxu0 0.0
    %5838 = vmatprep.subr.mxu0 0.0
    %5839 = vmatpush1.msra.mxu0 0.0
    %5840 = vmatprep.subr.mxu0 0.0
    %5841 = vmatpush1.msra.mxu0 0.0
    %5842 = vmatprep.subr.mxu0 0.0
    %5843 = vmatpush1.msra.mxu0 0.0
    %5844 = vmatprep.subr.mxu0 0.0
    %5845 = vmatpush1.msra.mxu0 0.0
    %5846 = vmatprep.subr.mxu0 0.0
    %5847 = vmatpush1.msra.mxu0 0.0
    %5848 = vmatprep.subr.mxu0 0.0
    %5849 = vmatpush1.msra.mxu0 0.0
    %5850 = vmatprep.subr.mxu0 0.0
    %5851 = vmatpush1.msra.mxu0 0.0
    %5852 = vmatprep.subr.mxu0 0.0
    %5853 = vmatpush1.msra.mxu0 0.0
    %5854 = vmatprep.mubr.f32.mxu0 0.0
    %5855 = vmatmul.mubr.f32.gmra.mrb[0].mxu0 %v5483
    %v5856 = vpop.f32.mrb[0].mxu0
    %v5857 = vadd.f32 %v662, %v5856
    %v5858 = vpop.f32.mrb[0].mxu0
    %v5859 = vadd.f32 %v666, %v5858
    %5860 = vdwg.mxu0
    %5861 = vmatprep.subr.mxu0 0.0
    %5862 = vmatpush1.msra.mxu0 %v611
    %5863 = vmatprep.subr.mxu0 0.0
    %5864 = vmatpush1.msra.mxu0 %v614
    %5865 = vmatprep.subr.mxu0 0.0
    %5866 = vmatpush1.msra.mxu0 %v617
    %5867 = vmatprep.subr.mxu0 0.0
    %5868 = vmatpush1.msra.mxu0 %v620
    %5869 = vmatprep.subr.mxu0 0.0
    %5870 = vmatpush1.msra.mxu0 %v623
    %5871 = vmatprep.subr.mxu0 0.0
    %5872 = vmatpush1.msra.mxu0 %v626
    %5873 = vmatprep.subr.mxu0 0.0
    %5874 = vmatpush1.msra.mxu0 %v629
    %5875 = vmatprep.subr.mxu0 0.0
    %5876 = vmatpush1.msra.mxu0 %v632
    %5877 = vmatprep.subr.mxu0 0.0
    %5878 = vmatpush1.msra.mxu0 %v635
    %5879 = vmatprep.subr.mxu0 0.0
    %5880 = vmatpush1.msra.mxu0 %v638
    %5881 = vmatprep.subr.mxu0 0.0
    %5882 = vmatpush1.msra.mxu0 %v641
    %5883 = vmatprep.subr.mxu0 0.0
    %5884 = vmatpush1.msra.mxu0 %v644
    %5885 = vmatprep.subr.mxu0 0.0
    %5886 = vmatpush1.msra.mxu0 %v647
    %5887 = vmatprep.subr.mxu0 0.0
    %5888 = vmatpush1.msra.mxu0 %v650
    %5889 = vmatprep.subr.mxu0 0.0
    %5890 = vmatpush1.msra.mxu0 %v653
    %5891 = vmatprep.subr.mxu0 0.0
    %5892 = vmatpush1.msra.mxu0 %v656
    %5893 = vmatprep.subr.mxu0 0.0
    %5894 = vmatpush1.msra.mxu0 0.0
    %5895 = vmatprep.subr.mxu0 0.0
    %5896 = vmatpush1.msra.mxu0 0.0
    %5897 = vmatprep.subr.mxu0 0.0
    %5898 = vmatpush1.msra.mxu0 0.0
    %5899 = vmatprep.subr.mxu0 0.0
    %5900 = vmatpush1.msra.mxu0 0.0
    %5901 = vmatprep.subr.mxu0 0.0
    %5902 = vmatpush1.msra.mxu0 0.0
    %5903 = vmatprep.subr.mxu0 0.0
    %5904 = vmatpush1.msra.mxu0 0.0
    %5905 = vmatprep.subr.mxu0 0.0
    %5906 = vmatpush1.msra.mxu0 0.0
    %5907 = vmatprep.subr.mxu0 0.0
    %5908 = vmatpush1.msra.mxu0 0.0
    %5909 = vmatprep.subr.mxu0 0.0
    %5910 = vmatpush1.msra.mxu0 0.0
    %5911 = vmatprep.subr.mxu0 0.0
    %5912 = vmatpush1.msra.mxu0 0.0
    %5913 = vmatprep.subr.mxu0 0.0
    %5914 = vmatpush1.msra.mxu0 0.0
    %5915 = vmatprep.subr.mxu0 0.0
    %5916 = vmatpush1.msra.mxu0 0.0
    %5917 = vmatprep.subr.mxu0 0.0
    %5918 = vmatpush1.msra.mxu0 0.0
    %5919 = vmatprep.subr.mxu0 0.0
    %5920 = vmatpush1.msra.mxu0 0.0
    %5921 = vmatprep.subr.mxu0 0.0
    %5922 = vmatpush1.msra.mxu0 0.0
    %5923 = vmatprep.subr.mxu0 0.0
    %5924 = vmatpush1.msra.mxu0 0.0
    %5925 = vmatprep.mubr.f32.mxu0 0.0
    %5926 = vmatmul.mubr.f32.gmra.mrb[0].mxu0 %v5483
    %v5927 = vpop.f32.mrb[0].mxu0
    %v5928 = vadd.f32 %v670, %v5927
    %v5929 = vpop.f32.mrb[0].mxu0
    %5930 = vdwg.mxu0
    %v5931 = vadd.f32 %v5787, %v5857
    %v5932 = vadd.f32 %v5788, %v5859
    %v5933 = vxor.u32 %v5931, 2147483648
    %v5934 = vxor.u32 %v5932, 2147483648
    %v5935 = vmul.f32 %v5933, 1.442695
    %v5936 = vpow.pop %v5935
    %v5937 = vmul.f32 %v5934, 1.442695
    %v5938 = vpow.pop %v5937
    %v5939 = vadd.f32 %v5936, 1.0
    %v5940 = vadd.f32 %v5938, 1.0
    %v5941 = vrcp.pop %v5939
    %v5942 = vmul.f32 1.0, %v5941
    %v5943 = vrcp.pop %v5940
    %v5944 = vmul.f32 1.0, %v5943
    %v5945 = vmul.f32 %v5942, %v5928
    %v5946 = vadd.f32 %v5789, %v5945
    %v5947 = vtanh.pop %v5946
    %v5948 = vsub.f32 1.0, %v5944
    %v5949 = vmul.f32 %v5948, %v5947
    %v5950 = vmul.f32 %v5944, %v5483
    %v5951 = vadd.f32 %v5949, %v5950
    %5952 = vmatprep.subr.mxu0 %v1208
    %5953 = vmatpush1.msra.mxu0 %v1207
    %5954 = vmatprep.subr.mxu0 %v1211
    %5955 = vmatpush1.msra.mxu0 %v1210
    %5956 = vmatprep.subr.mxu0 %v1214
    %5957 = vmatpush1.msra.mxu0 %v1213
    %5958 = vmatprep.subr.mxu0 %v1217
    %5959 = vmatpush1.msra.mxu0 %v1216
    %5960 = vmatprep.subr.mxu0 %v1220
    %5961 = vmatpush1.msra.mxu0 %v1219
    %5962 = vmatprep.subr.mxu0 %v1223
    %5963 = vmatpush1.msra.mxu0 %v1222
    %5964 = vmatprep.subr.mxu0 %v1226
    %5965 = vmatpush1.msra.mxu0 %v1225
    %5966 = vmatprep.subr.mxu0 %v1229
    %5967 = vmatpush1.msra.mxu0 %v1228
    %5968 = vmatprep.subr.mxu0 %v1232
    %5969 = vmatpush1.msra.mxu0 %v1231
    %5970 = vmatprep.subr.mxu0 %v1235
    %5971 = vmatpush1.msra.mxu0 %v1234
    %5972 = vmatprep.subr.mxu0 %v1238
    %5973 = vmatpush1.msra.mxu0 %v1237
    %5974 = vmatprep.subr.mxu0 %v1241
    %5975 = vmatpush1.msra.mxu0 %v1240
    %5976 = vmatprep.subr.mxu0 %v1244
    %5977 = vmatpush1.msra.mxu0 %v1243
    %5978 = vmatprep.subr.mxu0 %v1247
    %5979 = vmatpush1.msra.mxu0 %v1246
    %5980 = vmatprep.subr.mxu0 %v1250
    %5981 = vmatpush1.msra.mxu0 %v1249
    %5982 = vmatprep.subr.mxu0 %v1253
    %5983 = vmatpush1.msra.mxu0 %v1252
    %5984 = vmatprep.subr.mxu0 0.0
    %5985 = vmatpush1.msra.mxu0 0.0
    %5986 = vmatprep.subr.mxu0 0.0
    %5987 = vmatpush1.msra.mxu0 0.0
    %5988 = vmatprep.subr.mxu0 0.0
    %5989 = vmatpush1.msra.mxu0 0.0
    %5990 = vmatprep.subr.mxu0 0.0
    %5991 = vmatpush1.msra.mxu0 0.0
    %5992 = vmatprep.subr.mxu0 0.0
    %5993 = vmatpush1.msra.mxu0 0.0
    %5994 = vmatprep.subr.mxu0 0.0
    %5995 = vmatpush1.msra.mxu0 0.0
    %5996 = vmatprep.subr.mxu0 0.0
    %5997 = vmatpush1.msra.mxu0 0.0
    %5998 = vmatprep.subr.mxu0 0.0
    %5999 = vmatpush1.msra.mxu0 0.0
    %6000 = vmatprep.subr.mxu0 0.0
    %6001 = vmatpush1.msra.mxu0 0.0
    %6002 = vmatprep.subr.mxu0 0.0
    %6003 = vmatpush1.msra.mxu0 0.0
    %6004 = vmatprep.subr.mxu0 0.0
    %6005 = vmatpush1.msra.mxu0 0.0
    %6006 = vmatprep.subr.mxu0 0.0
    %6007 = vmatpush1.msra.mxu0 0.0
    %6008 = vmatprep.subr.mxu0 0.0
    %6009 = vmatpush1.msra.mxu0 0.0
    %6010 = vmatprep.subr.mxu0 0.0
    %6011 = vmatpush1.msra.mxu0 0.0
    %6012 = vmatprep.subr.mxu0 0.0
    %6013 = vmatpush1.msra.mxu0 0.0
    %6014 = vmatprep.subr.mxu0 0.0
    %6015 = vmatpush1.msra.mxu0 0.0
    %6016 = vmatprep.mubr.f32.mxu0 0.0
    %6017 = vmatmul.mubr.f32.gmra.mrb[0].mxu0 %v5645
    %v6018 = vpop.f32.mrb[0].mxu0
    %v6019 = vadd.f32 %v1260, %v6018
    %v6020 = vpop.f32.mrb[0].mxu0
    %v6021 = vadd.f32 %v1264, %v6020
    %6022 = vdwg.mxu0
    %6023 = vmatprep.subr.mxu0 0.0
    %6024 = vmatpush1.msra.mxu0 %v1209
    %6025 = vmatprep.subr.mxu0 0.0
    %6026 = vmatpush1.msra.mxu0 %v1212
    %6027 = vmatprep.subr.mxu0 0.0
    %6028 = vmatpush1.msra.mxu0 %v1215
    %6029 = vmatprep.subr.mxu0 0.0
    %6030 = vmatpush1.msra.mxu0 %v1218
    %6031 = vmatprep.subr.mxu0 0.0
    %6032 = vmatpush1.msra.mxu0 %v1221
    %6033 = vmatprep.subr.mxu0 0.0
    %6034 = vmatpush1.msra.mxu0 %v1224
    %6035 = vmatprep.subr.mxu0 0.0
    %6036 = vmatpush1.msra.mxu0 %v1227
    %6037 = vmatprep.subr.mxu0 0.0
    %6038 = vmatpush1.msra.mxu0 %v1230
    %6039 = vmatprep.subr.mxu0 0.0
    %6040 = vmatpush1.msra.mxu0 %v1233
    %6041 = vmatprep.subr.mxu0 0.0
    %6042 = vmatpush1.msra.mxu0 %v1236
    %6043 = vmatprep.subr.mxu0 0.0
    %6044 = vmatpush1.msra.mxu0 %v1239
    %6045 = vmatprep.subr.mxu0 0.0
    %6046 = vmatpush1.msra.mxu0 %v1242
    %6047 = vmatprep.subr.mxu0 0.0
    %6048 = vmatpush1.msra.mxu0 %v1245
    %6049 = vmatprep.subr.mxu0 0.0
    %6050 = vmatpush1.msra.mxu0 %v1248
    %6051 = vmatprep.subr.mxu0 0.0
    %6052 = vmatpush1.msra.mxu0 %v1251
    %6053 = vmatprep.subr.mxu0 0.0
    %6054 = vmatpush1.msra.mxu0 %v1254
    %6055 = vmatprep.subr.mxu0 0.0
    %6056 = vmatpush1.msra.mxu0 0.0
    %6057 = vmatprep.subr.mxu0 0.0
    %6058 = vmatpush1.msra.mxu0 0.0
    %6059 = vmatprep.subr.mxu0 0.0
    %6060 = vmatpush1.msra.mxu0 0.0
    %6061 = vmatprep.subr.mxu0 0.0
    %6062 = vmatpush1.msra.mxu0 0.0
    %6063 = vmatprep.subr.mxu0 0.0
    %6064 = vmatpush1.msra.mxu0 0.0
    %6065 = vmatprep.subr.mxu0 0.0
    %6066 = vmatpush1.msra.mxu0 0.0
    %6067 = vmatprep.subr.mxu0 0.0
    %6068 = vmatpush1.msra.mxu0 0.0
    %6069 = vmatprep.subr.mxu0 0.0
    %6070 = vmatpush1.msra.mxu0 0.0
    %6071 = vmatprep.subr.mxu0 0.0
    %6072 = vmatpush1.msra.mxu0 0.0
    %6073 = vmatprep.subr.mxu0 0.0
    %6074 = vmatpush1.msra.mxu0 0.0
    %6075 = vmatprep.subr.mxu0 0.0
    %6076 = vmatpush1.msra.mxu0 0.0
    %6077 = vmatprep.subr.mxu0 0.0
    %6078 = vmatpush1.msra.mxu0 0.0
    %6079 = vmatprep.subr.mxu0 0.0
    %6080 = vmatpush1.msra.mxu0 0.0
    %6081 = vmatprep.subr.mxu0 0.0
    %6082 = vmatpush1.msra.mxu0 0.0
    %6083 = vmatprep.subr.mxu0 0.0
    %6084 = vmatpush1.msra.mxu0 0.0
    %6085 = vmatprep.subr.mxu0 0.0
    %6086 = vmatpush1.msra.mxu0 0.0
    %6087 = vmatprep.mubr.f32.mxu0 0.0
    %6088 = vmatmul.mubr.f32.gmra.mrb[0].mxu0 %v5645
    %v6089 = vpop.f32.mrb[0].mxu0
    %v6090 = vadd.f32 %v1268, %v6089
    %v6091 = vpop.f32.mrb[0].mxu0
    %6092 = vdwg.mxu0
    %v6093 = vadd.f32 %v5713, %v6019
    %v6094 = vadd.f32 %v5715, %v6021
    %v6095 = vxor.u32 %v6093, 2147483648
    %v6096 = vxor.u32 %v6094, 2147483648
    %v6097 = vmul.f32 %v6095, 1.442695
    %v6098 = vpow.pop %v6097
    %v6099 = vmul.f32 %v6096, 1.442695
    %v6100 = vpow.pop %v6099
    %v6101 = vadd.f32 %v6098, 1.0
    %v6102 = vadd.f32 %v6100, 1.0
    %v6103 = vrcp.pop %v6101
    %v6104 = vmul.f32 1.0, %v6103
    %v6105 = vrcp.pop %v6102
    %v6106 = vmul.f32 1.0, %v6105
    %v6107 = vmul.f32 %v6104, %v6090
    %v6108 = vadd.f32 %v5784, %v6107
    %v6109 = vtanh.pop %v6108
    %v6110 = vsub.f32 1.0, %v6106
    %v6111 = vmul.f32 %v6110, %v6109
    %v6112 = vmul.f32 %v6106, %v5645
    %v6113 = vadd.f32 %v6111, %v6112
    %6114 = vmatprep.subr.mxu0 %v837
    %6115 = vmatpush1.msra.mxu0 %v836
    %6116 = vmatprep.subr.mxu0 %v840
    %6117 = vmatpush1.msra.mxu0 %v839
    %6118 = vmatprep.subr.mxu0 %v843
    %6119 = vmatpush1.msra.mxu0 %v842
    %6120 = vmatprep.subr.mxu0 %v846
    %6121 = vmatpush1.msra.mxu0 %v845
    %6122 = vmatprep.subr.mxu0 %v849
    %6123 = vmatpush1.msra.mxu0 %v848
    %6124 = vmatprep.subr.mxu0 %v852
    %6125 = vmatpush1.msra.mxu0 %v851
    %6126 = vmatprep.subr.mxu0 %v855
    %6127 = vmatpush1.msra.mxu0 %v854
    %6128 = vmatprep.subr.mxu0 %v858
    %6129 = vmatpush1.msra.mxu0 %v857
    %6130 = vmatprep.subr.mxu0 %v861
    %6131 = vmatpush1.msra.mxu0 %v860
    %6132 = vmatprep.subr.mxu0 %v864
    %6133 = vmatpush1.msra.mxu0 %v863
    %6134 = vmatprep.subr.mxu0 %v867
    %6135 = vmatpush1.msra.mxu0 %v866
    %6136 = vmatprep.subr.mxu0 %v870
    %6137 = vmatpush1.msra.mxu0 %v869
    %6138 = vmatprep.subr.mxu0 %v873
    %6139 = vmatpush1.msra.mxu0 %v872
    %6140 = vmatprep.subr.mxu0 %v876
    %6141 = vmatpush1.msra.mxu0 %v875
    %6142 = vmatprep.subr.mxu0 %v879
    %6143 = vmatpush1.msra.mxu0 %v878
    %6144 = vmatprep.subr.mxu0 %v882
    %6145 = vmatpush1.msra.mxu0 %v881
    %6146 = vmatprep.subr.mxu0 0.0
    %6147 = vmatpush1.msra.mxu0 0.0
    %6148 = vmatprep.subr.mxu0 0.0
    %6149 = vmatpush1.msra.mxu0 0.0
    %6150 = vmatprep.subr.mxu0 0.0
    %6151 = vmatpush1.msra.mxu0 0.0
    %6152 = vmatprep.subr.mxu0 0.0
    %6153 = vmatpush1.msra.mxu0 0.0
    %6154 = vmatprep.subr.mxu0 0.0
    %6155 = vmatpush1.msra.mxu0 0.0
    %6156 = vmatprep.subr.mxu0 0.0
    %6157 = vmatpush1.msra.mxu0 0.0
    %6158 = vmatprep.subr.mxu0 0.0
    %6159 = vmatpush1.msra.mxu0 0.0
    %6160 = vmatprep.subr.mxu0 0.0
    %6161 = vmatpush1.msra.mxu0 0.0
    %6162 = vmatprep.subr.mxu0 0.0
    %6163 = vmatpush1.msra.mxu0 0.0
    %6164 = vmatprep.subr.mxu0 0.0
    %6165 = vmatpush1.msra.mxu0 0.0
    %6166 = vmatprep.subr.mxu0 0.0
    %6167 = vmatpush1.msra.mxu0 0.0
    %6168 = vmatprep.subr.mxu0 0.0
    %6169 = vmatpush1.msra.mxu0 0.0
    %6170 = vmatprep.subr.mxu0 0.0
    %6171 = vmatpush1.msra.mxu0 0.0
    %6172 = vmatprep.subr.mxu0 0.0
    %6173 = vmatpush1.msra.mxu0 0.0
    %6174 = vmatprep.subr.mxu0 0.0
    %6175 = vmatpush1.msra.mxu0 0.0
    %6176 = vmatprep.subr.mxu0 0.0
    %6177 = vmatpush1.msra.mxu0 0.0
    %6178 = vmatprep.mubr.f32.mxu0 0.0
    %6179 = vmatmul.mubr.f32.gmra.mrb[0].mxu0 %v5951
    %v6180 = vpop.f32.mrb[0].mxu0
    %v6181 = vadd.f32 %v889, %v6180
    %v6182 = vpop.f32.mrb[0].mxu0
    %v6183 = vadd.f32 %v893, %v6182
    %6184 = vdwg.mxu0
    %6185 = vmatprep.subr.mxu0 0.0
    %6186 = vmatpush1.msra.mxu0 %v838
    %6187 = vmatprep.subr.mxu0 0.0
    %6188 = vmatpush1.msra.mxu0 %v841
    %6189 = vmatprep.subr.mxu0 0.0
    %6190 = vmatpush1.msra.mxu0 %v844
    %6191 = vmatprep.subr.mxu0 0.0
    %6192 = vmatpush1.msra.mxu0 %v847
    %6193 = vmatprep.subr.mxu0 0.0
    %6194 = vmatpush1.msra.mxu0 %v850
    %6195 = vmatprep.subr.mxu0 0.0
    %6196 = vmatpush1.msra.mxu0 %v853
    %6197 = vmatprep.subr.mxu0 0.0
    %6198 = vmatpush1.msra.mxu0 %v856
    %6199 = vmatprep.subr.mxu0 0.0
    %6200 = vmatpush1.msra.mxu0 %v859
    %6201 = vmatprep.subr.mxu0 0.0
    %6202 = vmatpush1.msra.mxu0 %v862
    %6203 = vmatprep.subr.mxu0 0.0
    %6204 = vmatpush1.msra.mxu0 %v865
    %6205 = vmatprep.subr.mxu0 0.0
    %6206 = vmatpush1.msra.mxu0 %v868
    %6207 = vmatprep.subr.mxu0 0.0
    %6208 = vmatpush1.msra.mxu0 %v871
    %6209 = vmatprep.subr.mxu0 0.0
    %6210 = vmatpush1.msra.mxu0 %v874
    %6211 = vmatprep.subr.mxu0 0.0
    %6212 = vmatpush1.msra.mxu0 %v877
    %6213 = vmatprep.subr.mxu0 0.0
    %6214 = vmatpush1.msra.mxu0 %v880
    %6215 = vmatprep.subr.mxu0 0.0
    %6216 = vmatpush1.msra.mxu0 %v883
    %6217 = vmatprep.subr.mxu0 0.0
    %6218 = vmatpush1.msra.mxu0 0.0
    %6219 = vmatprep.subr.mxu0 0.0
    %6220 = vmatpush1.msra.mxu0 0.0
    %6221 = vmatprep.subr.mxu0 0.0
    %6222 = vmatpush1.msra.mxu0 0.0
    %6223 = vmatprep.subr.mxu0 0.0
    %6224 = vmatpush1.msra.mxu0 0.0
    %6225 = vmatprep.subr.mxu0 0.0
    %6226 = vmatpush1.msra.mxu0 0.0
    %6227 = vmatprep.subr.mxu0 0.0
    %6228 = vmatpush1.msra.mxu0 0.0
    %6229 = vmatprep.subr.mxu0 0.0
    %6230 = vmatpush1.msra.mxu0 0.0
    %6231 = vmatprep.subr.mxu0 0.0
    %6232 = vmatpush1.msra.mxu0 0.0
    %6233 = vmatprep.subr.mxu0 0.0
    %6234 = vmatpush1.msra.mxu0 0.0
    %6235 = vmatprep.subr.mxu0 0.0
    %6236 = vmatpush1.msra.mxu0 0.0
    %6237 = vmatprep.subr.mxu0 0.0
    %6238 = vmatpush1.msra.mxu0 0.0
    %6239 = vmatprep.subr.mxu0 0.0
    %6240 = vmatpush1.msra.mxu0 0.0
    %6241 = vmatprep.subr.mxu0 0.0
    %6242 = vmatpush1.msra.mxu0 0.0
    %6243 = vmatprep.subr.mxu0 0.0
    %6244 = vmatpush1.msra.mxu0 0.0
    %6245 = vmatprep.subr.mxu0 0.0
    %6246 = vmatpush1.msra.mxu0 0.0
    %6247 = vmatprep.subr.mxu0 0.0
    %6248 = vmatpush1.msra.mxu0 0.0
    %6249 = vmatprep.mubr.f32.mxu0 0.0
    %6250 = vmatmul.mubr.f32.gmra.mrb[0].mxu0 %v5951
    %v6251 = vpop.f32.mrb[0].mxu0
    %v6252 = vadd.f32 %v897, %v6251
    %v6253 = vpop.f32.mrb[0].mxu0
    %6254 = vdwg.mxu0
    %v6255 = vld [vmem:[#allocation2 + $0x120] sm:$0xff]
    %v6256 = vld [vmem:[#allocation2 + $0x128] sm:$0xff]
    %v6257 = vld [vmem:[#allocation2 + $0x130] sm:$0xff]
    %6258 = vmatprep.subr.mxu0 %v610
    %6259 = vmatpush1.msra.mxu0 %v609
    %6260 = vmatprep.subr.mxu0 %v613
    %6261 = vmatpush1.msra.mxu0 %v612
    %6262 = vmatprep.subr.mxu0 %v616
    %6263 = vmatpush1.msra.mxu0 %v615
    %6264 = vmatprep.subr.mxu0 %v619
    %6265 = vmatpush1.msra.mxu0 %v618
    %6266 = vmatprep.subr.mxu0 %v622
    %6267 = vmatpush1.msra.mxu0 %v621
    %6268 = vmatprep.subr.mxu0 %v625
    %6269 = vmatpush1.msra.mxu0 %v624
    %6270 = vmatprep.subr.mxu0 %v628
    %6271 = vmatpush1.msra.mxu0 %v627
    %6272 = vmatprep.subr.mxu0 %v631
    %6273 = vmatpush1.msra.mxu0 %v630
    %6274 = vmatprep.subr.mxu0 %v634
    %6275 = vmatpush1.msra.mxu0 %v633
    %6276 = vmatprep.subr.mxu0 %v637
    %6277 = vmatpush1.msra.mxu0 %v636
    %6278 = vmatprep.subr.mxu0 %v640
    %6279 = vmatpush1.msra.mxu0 %v639
    %6280 = vmatprep.subr.mxu0 %v643
    %6281 = vmatpush1.msra.mxu0 %v642
    %6282 = vmatprep.subr.mxu0 %v646
    %6283 = vmatpush1.msra.mxu0 %v645
    %6284 = vmatprep.subr.mxu0 %v649
    %6285 = vmatpush1.msra.mxu0 %v648
    %6286 = vmatprep.subr.mxu0 %v652
    %6287 = vmatpush1.msra.mxu0 %v651
    %6288 = vmatprep.subr.mxu0 %v655
    %6289 = vmatpush1.msra.mxu0 %v654
    %6290 = vmatprep.subr.mxu0 0.0
    %6291 = vmatpush1.msra.mxu0 0.0
    %6292 = vmatprep.subr.mxu0 0.0
    %6293 = vmatpush1.msra.mxu0 0.0
    %6294 = vmatprep.subr.mxu0 0.0
    %6295 = vmatpush1.msra.mxu0 0.0
    %6296 = vmatprep.subr.mxu0 0.0
    %6297 = vmatpush1.msra.mxu0 0.0
    %6298 = vmatprep.subr.mxu0 0.0
    %6299 = vmatpush1.msra.mxu0 0.0
    %6300 = vmatprep.subr.mxu0 0.0
    %6301 = vmatpush1.msra.mxu0 0.0
    %6302 = vmatprep.subr.mxu0 0.0
    %6303 = vmatpush1.msra.mxu0 0.0
    %6304 = vmatprep.subr.mxu0 0.0
    %6305 = vmatpush1.msra.mxu0 0.0
    %6306 = vmatprep.subr.mxu0 0.0
    %6307 = vmatpush1.msra.mxu0 0.0
    %6308 = vmatprep.subr.mxu0 0.0
    %6309 = vmatpush1.msra.mxu0 0.0
    %6310 = vmatprep.subr.mxu0 0.0
    %6311 = vmatpush1.msra.mxu0 0.0
    %6312 = vmatprep.subr.mxu0 0.0
    %6313 = vmatpush1.msra.mxu0 0.0
    %6314 = vmatprep.subr.mxu0 0.0
    %6315 = vmatpush1.msra.mxu0 0.0
    %6316 = vmatprep.subr.mxu0 0.0
    %6317 = vmatpush1.msra.mxu0 0.0
    %6318 = vmatprep.subr.mxu0 0.0
    %6319 = vmatpush1.msra.mxu0 0.0
    %6320 = vmatprep.subr.mxu0 0.0
    %6321 = vmatpush1.msra.mxu0 0.0
    %6322 = vmatprep.mubr.f32.mxu0 0.0
    %6323 = vmatmul.mubr.f32.gmra.mrb[0].mxu0 %v5951
    %v6324 = vpop.f32.mrb[0].mxu0
    %v6325 = vadd.f32 %v662, %v6324
    %v6326 = vpop.f32.mrb[0].mxu0
    %v6327 = vadd.f32 %v666, %v6326
    %6328 = vdwg.mxu0
    %6329 = vmatprep.subr.mxu0 0.0
    %6330 = vmatpush1.msra.mxu0 %v611
    %6331 = vmatprep.subr.mxu0 0.0
    %6332 = vmatpush1.msra.mxu0 %v614
    %6333 = vmatprep.subr.mxu0 0.0
    %6334 = vmatpush1.msra.mxu0 %v617
    %6335 = vmatprep.subr.mxu0 0.0
    %6336 = vmatpush1.msra.mxu0 %v620
    %6337 = vmatprep.subr.mxu0 0.0
    %6338 = vmatpush1.msra.mxu0 %v623
    %6339 = vmatprep.subr.mxu0 0.0
    %6340 = vmatpush1.msra.mxu0 %v626
    %6341 = vmatprep.subr.mxu0 0.0
    %6342 = vmatpush1.msra.mxu0 %v629
    %6343 = vmatprep.subr.mxu0 0.0
    %6344 = vmatpush1.msra.mxu0 %v632
    %6345 = vmatprep.subr.mxu0 0.0
    %6346 = vmatpush1.msra.mxu0 %v635
    %6347 = vmatprep.subr.mxu0 0.0
    %6348 = vmatpush1.msra.mxu0 %v638
    %6349 = vmatprep.subr.mxu0 0.0
    %6350 = vmatpush1.msra.mxu0 %v641
    %6351 = vmatprep.subr.mxu0 0.0
    %6352 = vmatpush1.msra.mxu0 %v644
    %6353 = vmatprep.subr.mxu0 0.0
    %6354 = vmatpush1.msra.mxu0 %v647
    %6355 = vmatprep.subr.mxu0 0.0
    %6356 = vmatpush1.msra.mxu0 %v650
    %6357 = vmatprep.subr.mxu0 0.0
    %6358 = vmatpush1.msra.mxu0 %v653
    %6359 = vmatprep.subr.mxu0 0.0
    %6360 = vmatpush1.msra.mxu0 %v656
    %6361 = vmatprep.subr.mxu0 0.0
    %6362 = vmatpush1.msra.mxu0 0.0
    %6363 = vmatprep.subr.mxu0 0.0
    %6364 = vmatpush1.msra.mxu0 0.0
    %6365 = vmatprep.subr.mxu0 0.0
    %6366 = vmatpush1.msra.mxu0 0.0
    %6367 = vmatprep.subr.mxu0 0.0
    %6368 = vmatpush1.msra.mxu0 0.0
    %6369 = vmatprep.subr.mxu0 0.0
    %6370 = vmatpush1.msra.mxu0 0.0
    %6371 = vmatprep.subr.mxu0 0.0
    %6372 = vmatpush1.msra.mxu0 0.0
    %6373 = vmatprep.subr.mxu0 0.0
    %6374 = vmatpush1.msra.mxu0 0.0
    %6375 = vmatprep.subr.mxu0 0.0
    %6376 = vmatpush1.msra.mxu0 0.0
    %6377 = vmatprep.subr.mxu0 0.0
    %6378 = vmatpush1.msra.mxu0 0.0
    %6379 = vmatprep.subr.mxu0 0.0
    %6380 = vmatpush1.msra.mxu0 0.0
    %6381 = vmatprep.subr.mxu0 0.0
    %6382 = vmatpush1.msra.mxu0 0.0
    %6383 = vmatprep.subr.mxu0 0.0
    %6384 = vmatpush1.msra.mxu0 0.0
    %6385 = vmatprep.subr.mxu0 0.0
    %6386 = vmatpush1.msra.mxu0 0.0
    %6387 = vmatprep.subr.mxu0 0.0
    %6388 = vmatpush1.msra.mxu0 0.0
    %6389 = vmatprep.subr.mxu0 0.0
    %6390 = vmatpush1.msra.mxu0 0.0
    %6391 = vmatprep.subr.mxu0 0.0
    %6392 = vmatpush1.msra.mxu0 0.0
    %6393 = vmatprep.mubr.f32.mxu0 0.0
    %6394 = vmatmul.mubr.f32.gmra.mrb[0].mxu0 %v5951
    %v6395 = vpop.f32.mrb[0].mxu0
    %v6396 = vadd.f32 %v670, %v6395
    %v6397 = vpop.f32.mrb[0].mxu0
    %6398 = vdwg.mxu0
    %v6399 = vadd.f32 %v6255, %v6325
    %v6400 = vadd.f32 %v6256, %v6327
    %v6401 = vxor.u32 %v6399, 2147483648
    %v6402 = vxor.u32 %v6400, 2147483648
    %v6403 = vmul.f32 %v6401, 1.442695
    %v6404 = vpow.pop %v6403
    %v6405 = vmul.f32 %v6402, 1.442695
    %v6406 = vpow.pop %v6405
    %v6407 = vadd.f32 %v6404, 1.0
    %v6408 = vadd.f32 %v6406, 1.0
    %v6409 = vrcp.pop %v6407
    %v6410 = vmul.f32 1.0, %v6409
    %v6411 = vrcp.pop %v6408
    %v6412 = vmul.f32 1.0, %v6411
    %v6413 = vmul.f32 %v6410, %v6396
    %v6414 = vadd.f32 %v6257, %v6413
    %v6415 = vtanh.pop %v6414
    %v6416 = vsub.f32 1.0, %v6412
    %v6417 = vmul.f32 %v6416, %v6415
    %v6418 = vmul.f32 %v6412, %v5951
    %v6419 = vadd.f32 %v6417, %v6418
    %6420 = vmatprep.subr.mxu0 %v1208
    %6421 = vmatpush1.msra.mxu0 %v1207
    %6422 = vmatprep.subr.mxu0 %v1211
    %6423 = vmatpush1.msra.mxu0 %v1210
    %6424 = vmatprep.subr.mxu0 %v1214
    %6425 = vmatpush1.msra.mxu0 %v1213
    %6426 = vmatprep.subr.mxu0 %v1217
    %6427 = vmatpush1.msra.mxu0 %v1216
    %6428 = vmatprep.subr.mxu0 %v1220
    %6429 = vmatpush1.msra.mxu0 %v1219
    %6430 = vmatprep.subr.mxu0 %v1223
    %6431 = vmatpush1.msra.mxu0 %v1222
    %6432 = vmatprep.subr.mxu0 %v1226
    %6433 = vmatpush1.msra.mxu0 %v1225
    %6434 = vmatprep.subr.mxu0 %v1229
    %6435 = vmatpush1.msra.mxu0 %v1228
    %6436 = vmatprep.subr.mxu0 %v1232
    %6437 = vmatpush1.msra.mxu0 %v1231
    %6438 = vmatprep.subr.mxu0 %v1235
    %6439 = vmatpush1.msra.mxu0 %v1234
    %6440 = vmatprep.subr.mxu0 %v1238
    %6441 = vmatpush1.msra.mxu0 %v1237
    %6442 = vmatprep.subr.mxu0 %v1241
    %6443 = vmatpush1.msra.mxu0 %v1240
    %6444 = vmatprep.subr.mxu0 %v1244
    %6445 = vmatpush1.msra.mxu0 %v1243
    %6446 = vmatprep.subr.mxu0 %v1247
    %6447 = vmatpush1.msra.mxu0 %v1246
    %6448 = vmatprep.subr.mxu0 %v1250
    %6449 = vmatpush1.msra.mxu0 %v1249
    %6450 = vmatprep.subr.mxu0 %v1253
    %6451 = vmatpush1.msra.mxu0 %v1252
    %6452 = vmatprep.subr.mxu0 0.0
    %6453 = vmatpush1.msra.mxu0 0.0
    %6454 = vmatprep.subr.mxu0 0.0
    %6455 = vmatpush1.msra.mxu0 0.0
    %6456 = vmatprep.subr.mxu0 0.0
    %6457 = vmatpush1.msra.mxu0 0.0
    %6458 = vmatprep.subr.mxu0 0.0
    %6459 = vmatpush1.msra.mxu0 0.0
    %6460 = vmatprep.subr.mxu0 0.0
    %6461 = vmatpush1.msra.mxu0 0.0
    %6462 = vmatprep.subr.mxu0 0.0
    %6463 = vmatpush1.msra.mxu0 0.0
    %6464 = vmatprep.subr.mxu0 0.0
    %6465 = vmatpush1.msra.mxu0 0.0
    %6466 = vmatprep.subr.mxu0 0.0
    %6467 = vmatpush1.msra.mxu0 0.0
    %6468 = vmatprep.subr.mxu0 0.0
    %6469 = vmatpush1.msra.mxu0 0.0
    %6470 = vmatprep.subr.mxu0 0.0
    %6471 = vmatpush1.msra.mxu0 0.0
    %6472 = vmatprep.subr.mxu0 0.0
    %6473 = vmatpush1.msra.mxu0 0.0
    %6474 = vmatprep.subr.mxu0 0.0
    %6475 = vmatpush1.msra.mxu0 0.0
    %6476 = vmatprep.subr.mxu0 0.0
    %6477 = vmatpush1.msra.mxu0 0.0
    %6478 = vmatprep.subr.mxu0 0.0
    %6479 = vmatpush1.msra.mxu0 0.0
    %6480 = vmatprep.subr.mxu0 0.0
    %6481 = vmatpush1.msra.mxu0 0.0
    %6482 = vmatprep.subr.mxu0 0.0
    %6483 = vmatpush1.msra.mxu0 0.0
    %6484 = vmatprep.mubr.f32.mxu0 0.0
    %6485 = vmatmul.mubr.f32.gmra.mrb[0].mxu0 %v6113
    %v6486 = vpop.f32.mrb[0].mxu0
    %v6487 = vadd.f32 %v1260, %v6486
    %v6488 = vpop.f32.mrb[0].mxu0
    %v6489 = vadd.f32 %v1264, %v6488
    %6490 = vdwg.mxu0
    %6491 = vmatprep.subr.mxu0 0.0
    %6492 = vmatpush1.msra.mxu0 %v1209
    %6493 = vmatprep.subr.mxu0 0.0
    %6494 = vmatpush1.msra.mxu0 %v1212
    %6495 = vmatprep.subr.mxu0 0.0
    %6496 = vmatpush1.msra.mxu0 %v1215
    %6497 = vmatprep.subr.mxu0 0.0
    %6498 = vmatpush1.msra.mxu0 %v1218
    %6499 = vmatprep.subr.mxu0 0.0
    %6500 = vmatpush1.msra.mxu0 %v1221
    %6501 = vmatprep.subr.mxu0 0.0
    %6502 = vmatpush1.msra.mxu0 %v1224
    %6503 = vmatprep.subr.mxu0 0.0
    %6504 = vmatpush1.msra.mxu0 %v1227
    %6505 = vmatprep.subr.mxu0 0.0
    %6506 = vmatpush1.msra.mxu0 %v1230
    %6507 = vmatprep.subr.mxu0 0.0
    %6508 = vmatpush1.msra.mxu0 %v1233
    %6509 = vmatprep.subr.mxu0 0.0
    %6510 = vmatpush1.msra.mxu0 %v1236
    %6511 = vmatprep.subr.mxu0 0.0
    %6512 = vmatpush1.msra.mxu0 %v1239
    %6513 = vmatprep.subr.mxu0 0.0
    %6514 = vmatpush1.msra.mxu0 %v1242
    %6515 = vmatprep.subr.mxu0 0.0
    %6516 = vmatpush1.msra.mxu0 %v1245
    %6517 = vmatprep.subr.mxu0 0.0
    %6518 = vmatpush1.msra.mxu0 %v1248
    %6519 = vmatprep.subr.mxu0 0.0
    %6520 = vmatpush1.msra.mxu0 %v1251
    %6521 = vmatprep.subr.mxu0 0.0
    %6522 = vmatpush1.msra.mxu0 %v1254
    %6523 = vmatprep.subr.mxu0 0.0
    %6524 = vmatpush1.msra.mxu0 0.0
    %6525 = vmatprep.subr.mxu0 0.0
    %6526 = vmatpush1.msra.mxu0 0.0
    %6527 = vmatprep.subr.mxu0 0.0
    %6528 = vmatpush1.msra.mxu0 0.0
    %6529 = vmatprep.subr.mxu0 0.0
    %6530 = vmatpush1.msra.mxu0 0.0
    %6531 = vmatprep.subr.mxu0 0.0
    %6532 = vmatpush1.msra.mxu0 0.0
    %6533 = vmatprep.subr.mxu0 0.0
    %6534 = vmatpush1.msra.mxu0 0.0
    %6535 = vmatprep.subr.mxu0 0.0
    %6536 = vmatpush1.msra.mxu0 0.0
    %6537 = vmatprep.subr.mxu0 0.0
    %6538 = vmatpush1.msra.mxu0 0.0
    %6539 = vmatprep.subr.mxu0 0.0
    %6540 = vmatpush1.msra.mxu0 0.0
    %6541 = vmatprep.subr.mxu0 0.0
    %6542 = vmatpush1.msra.mxu0 0.0
    %6543 = vmatprep.subr.mxu0 0.0
    %6544 = vmatpush1.msra.mxu0 0.0
    %6545 = vmatprep.subr.mxu0 0.0
    %6546 = vmatpush1.msra.mxu0 0.0
    %6547 = vmatprep.subr.mxu0 0.0
    %6548 = vmatpush1.msra.mxu0 0.0
    %6549 = vmatprep.subr.mxu0 0.0
    %6550 = vmatpush1.msra.mxu0 0.0
    %6551 = vmatprep.subr.mxu0 0.0
    %6552 = vmatpush1.msra.mxu0 0.0
    %6553 = vmatprep.subr.mxu0 0.0
    %6554 = vmatpush1.msra.mxu0 0.0
    %6555 = vmatprep.mubr.f32.mxu0 0.0
    %6556 = vmatmul.mubr.f32.gmra.mrb[0].mxu0 %v6113
    %v6557 = vpop.f32.mrb[0].mxu0
    %v6558 = vadd.f32 %v1268, %v6557
    %v6559 = vpop.f32.mrb[0].mxu0
    %6560 = vdwg.mxu0
    %v6561 = vadd.f32 %v6181, %v6487
    %v6562 = vadd.f32 %v6183, %v6489
    %v6563 = vxor.u32 %v6561, 2147483648
    %v6564 = vxor.u32 %v6562, 2147483648
    %v6565 = vmul.f32 %v6563, 1.442695
    %v6566 = vpow.pop %v6565
    %v6567 = vmul.f32 %v6564, 1.442695
    %v6568 = vpow.pop %v6567
    %v6569 = vadd.f32 %v6566, 1.0
    %v6570 = vadd.f32 %v6568, 1.0
    %v6571 = vrcp.pop %v6569
    %v6572 = vmul.f32 1.0, %v6571
    %v6573 = vrcp.pop %v6570
    %v6574 = vmul.f32 1.0, %v6573
    %v6575 = vmul.f32 %v6572, %v6558
    %v6576 = vadd.f32 %v6252, %v6575
    %v6577 = vtanh.pop %v6576
    %v6578 = vsub.f32 1.0, %v6574
    %v6579 = vmul.f32 %v6578, %v6577
    %v6580 = vmul.f32 %v6574, %v6113
    %v6581 = vadd.f32 %v6579, %v6580
    %6582 = vmatprep.subr.mxu0 %v837
    %6583 = vmatpush1.msra.mxu0 %v836
    %6584 = vmatprep.subr.mxu0 %v840
    %6585 = vmatpush1.msra.mxu0 %v839
    %6586 = vmatprep.subr.mxu0 %v843
    %6587 = vmatpush1.msra.mxu0 %v842
    %6588 = vmatprep.subr.mxu0 %v846
    %6589 = vmatpush1.msra.mxu0 %v845
    %6590 = vmatprep.subr.mxu0 %v849
    %6591 = vmatpush1.msra.mxu0 %v848
    %6592 = vmatprep.subr.mxu0 %v852
    %6593 = vmatpush1.msra.mxu0 %v851
    %6594 = vmatprep.subr.mxu0 %v855
    %6595 = vmatpush1.msra.mxu0 %v854
    %6596 = vmatprep.subr.mxu0 %v858
    %6597 = vmatpush1.msra.mxu0 %v857
    %6598 = vmatprep.subr.mxu0 %v861
    %6599 = vmatpush1.msra.mxu0 %v860
    %6600 = vmatprep.subr.mxu0 %v864
    %6601 = vmatpush1.msra.mxu0 %v863
    %6602 = vmatprep.subr.mxu0 %v867
    %6603 = vmatpush1.msra.mxu0 %v866
    %6604 = vmatprep.subr.mxu0 %v870
    %6605 = vmatpush1.msra.mxu0 %v869
    %6606 = vmatprep.subr.mxu0 %v873
    %6607 = vmatpush1.msra.mxu0 %v872
    %6608 = vmatprep.subr.mxu0 %v876
    %6609 = vmatpush1.msra.mxu0 %v875
    %6610 = vmatprep.subr.mxu0 %v879
    %6611 = vmatpush1.msra.mxu0 %v878
    %6612 = vmatprep.subr.mxu0 %v882
    %6613 = vmatpush1.msra.mxu0 %v881
    %6614 = vmatprep.subr.mxu0 0.0
    %6615 = vmatpush1.msra.mxu0 0.0
    %6616 = vmatprep.subr.mxu0 0.0
    %6617 = vmatpush1.msra.mxu0 0.0
    %6618 = vmatprep.subr.mxu0 0.0
    %6619 = vmatpush1.msra.mxu0 0.0
    %6620 = vmatprep.subr.mxu0 0.0
    %6621 = vmatpush1.msra.mxu0 0.0
    %6622 = vmatprep.subr.mxu0 0.0
    %6623 = vmatpush1.msra.mxu0 0.0
    %6624 = vmatprep.subr.mxu0 0.0
    %6625 = vmatpush1.msra.mxu0 0.0
    %6626 = vmatprep.subr.mxu0 0.0
    %6627 = vmatpush1.msra.mxu0 0.0
    %6628 = vmatprep.subr.mxu0 0.0
    %6629 = vmatpush1.msra.mxu0 0.0
    %6630 = vmatprep.subr.mxu0 0.0
    %6631 = vmatpush1.msra.mxu0 0.0
    %6632 = vmatprep.subr.mxu0 0.0
    %6633 = vmatpush1.msra.mxu0 0.0
    %6634 = vmatprep.subr.mxu0 0.0
    %6635 = vmatpush1.msra.mxu0 0.0
    %6636 = vmatprep.subr.mxu0 0.0
    %6637 = vmatpush1.msra.mxu0 0.0
    %6638 = vmatprep.subr.mxu0 0.0
    %6639 = vmatpush1.msra.mxu0 0.0
    %6640 = vmatprep.subr.mxu0 0.0
    %6641 = vmatpush1.msra.mxu0 0.0
    %6642 = vmatprep.subr.mxu0 0.0
    %6643 = vmatpush1.msra.mxu0 0.0
    %6644 = vmatprep.subr.mxu0 0.0
    %6645 = vmatpush1.msra.mxu0 0.0
    %6646 = vmatprep.mubr.f32.mxu0 0.0
    %6647 = vmatmul.mubr.f32.gmra.mrb[0].mxu0 %v6419
    %v6648 = vpop.f32.mrb[0].mxu0
    %v6649 = vadd.f32 %v889, %v6648
    %v6650 = vpop.f32.mrb[0].mxu0
    %v6651 = vadd.f32 %v893, %v6650
    %6652 = vdwg.mxu0
    %6653 = vmatprep.subr.mxu0 0.0
    %6654 = vmatpush1.msra.mxu0 %v838
    %6655 = vmatprep.subr.mxu0 0.0
    %6656 = vmatpush1.msra.mxu0 %v841
    %6657 = vmatprep.subr.mxu0 0.0
    %6658 = vmatpush1.msra.mxu0 %v844
    %6659 = vmatprep.subr.mxu0 0.0
    %6660 = vmatpush1.msra.mxu0 %v847
    %6661 = vmatprep.subr.mxu0 0.0
    %6662 = vmatpush1.msra.mxu0 %v850
    %6663 = vmatprep.subr.mxu0 0.0
    %6664 = vmatpush1.msra.mxu0 %v853
    %6665 = vmatprep.subr.mxu0 0.0
    %6666 = vmatpush1.msra.mxu0 %v856
    %6667 = vmatprep.subr.mxu0 0.0
    %6668 = vmatpush1.msra.mxu0 %v859
    %6669 = vmatprep.subr.mxu0 0.0
    %6670 = vmatpush1.msra.mxu0 %v862
    %6671 = vmatprep.subr.mxu0 0.0
    %6672 = vmatpush1.msra.mxu0 %v865
    %6673 = vmatprep.subr.mxu0 0.0
    %6674 = vmatpush1.msra.mxu0 %v868
    %6675 = vmatprep.subr.mxu0 0.0
    %6676 = vmatpush1.msra.mxu0 %v871
    %6677 = vmatprep.subr.mxu0 0.0
    %6678 = vmatpush1.msra.mxu0 %v874
    %6679 = vmatprep.subr.mxu0 0.0
    %6680 = vmatpush1.msra.mxu0 %v877
    %6681 = vmatprep.subr.mxu0 0.0
    %6682 = vmatpush1.msra.mxu0 %v880
    %6683 = vmatprep.subr.mxu0 0.0
    %6684 = vmatpush1.msra.mxu0 %v883
    %6685 = vmatprep.subr.mxu0 0.0
    %6686 = vmatpush1.msra.mxu0 0.0
    %6687 = vmatprep.subr.mxu0 0.0
    %6688 = vmatpush1.msra.mxu0 0.0
    %6689 = vmatprep.subr.mxu0 0.0
    %6690 = vmatpush1.msra.mxu0 0.0
    %6691 = vmatprep.subr.mxu0 0.0
    %6692 = vmatpush1.msra.mxu0 0.0
    %6693 = vmatprep.subr.mxu0 0.0
    %6694 = vmatpush1.msra.mxu0 0.0
    %6695 = vmatprep.subr.mxu0 0.0
    %6696 = vmatpush1.msra.mxu0 0.0
    %6697 = vmatprep.subr.mxu0 0.0
    %6698 = vmatpush1.msra.mxu0 0.0
    %6699 = vmatprep.subr.mxu0 0.0
    %6700 = vmatpush1.msra.mxu0 0.0
    %6701 = vmatprep.subr.mxu0 0.0
    %6702 = vmatpush1.msra.mxu0 0.0
    %6703 = vmatprep.subr.mxu0 0.0
    %6704 = vmatpush1.msra.mxu0 0.0
    %6705 = vmatprep.subr.mxu0 0.0
    %6706 = vmatpush1.msra.mxu0 0.0
    %6707 = vmatprep.subr.mxu0 0.0
    %6708 = vmatpush1.msra.mxu0 0.0
    %6709 = vmatprep.subr.mxu0 0.0
    %6710 = vmatpush1.msra.mxu0 0.0
    %6711 = vmatprep.subr.mxu0 0.0
    %6712 = vmatpush1.msra.mxu0 0.0
    %6713 = vmatprep.subr.mxu0 0.0
    %6714 = vmatpush1.msra.mxu0 0.0
    %6715 = vmatprep.subr.mxu0 0.0
    %6716 = vmatpush1.msra.mxu0 0.0
    %6717 = vmatprep.mubr.f32.mxu0 0.0
    %6718 = vmatmul.mubr.f32.gmra.mrb[0].mxu0 %v6419
    %v6719 = vpop.f32.mrb[0].mxu0
    %v6720 = vadd.f32 %v897, %v6719
    %v6721 = vpop.f32.mrb[0].mxu0
    %6722 = vdwg.mxu0
    %v6723 = vld [vmem:[#allocation2 + $0x138] sm:$0xff]
    %v6724 = vld [vmem:[#allocation2 + $0x140] sm:$0xff]
    %v6725 = vld [vmem:[#allocation2 + $0x148] sm:$0xff]
    %6726 = vmatprep.subr.mxu0 %v610
    %6727 = vmatpush1.msra.mxu0 %v609
    %6728 = vmatprep.subr.mxu0 %v613
    %6729 = vmatpush1.msra.mxu0 %v612
    %6730 = vmatprep.subr.mxu0 %v616
    %6731 = vmatpush1.msra.mxu0 %v615
    %6732 = vmatprep.subr.mxu0 %v619
    %6733 = vmatpush1.msra.mxu0 %v618
    %6734 = vmatprep.subr.mxu0 %v622
    %6735 = vmatpush1.msra.mxu0 %v621
    %6736 = vmatprep.subr.mxu0 %v625
    %6737 = vmatpush1.msra.mxu0 %v624
    %6738 = vmatprep.subr.mxu0 %v628
    %6739 = vmatpush1.msra.mxu0 %v627
    %6740 = vmatprep.subr.mxu0 %v631
    %6741 = vmatpush1.msra.mxu0 %v630
    %6742 = vmatprep.subr.mxu0 %v634
    %6743 = vmatpush1.msra.mxu0 %v633
    %6744 = vmatprep.subr.mxu0 %v637
    %6745 = vmatpush1.msra.mxu0 %v636
    %6746 = vmatprep.subr.mxu0 %v640
    %6747 = vmatpush1.msra.mxu0 %v639
    %6748 = vmatprep.subr.mxu0 %v643
    %6749 = vmatpush1.msra.mxu0 %v642
    %6750 = vmatprep.subr.mxu0 %v646
    %6751 = vmatpush1.msra.mxu0 %v645
    %6752 = vmatprep.subr.mxu0 %v649
    %6753 = vmatpush1.msra.mxu0 %v648
    %6754 = vmatprep.subr.mxu0 %v652
    %6755 = vmatpush1.msra.mxu0 %v651
    %6756 = vmatprep.subr.mxu0 %v655
    %6757 = vmatpush1.msra.mxu0 %v654
    %6758 = vmatprep.subr.mxu0 0.0
    %6759 = vmatpush1.msra.mxu0 0.0
    %6760 = vmatprep.subr.mxu0 0.0
    %6761 = vmatpush1.msra.mxu0 0.0
    %6762 = vmatprep.subr.mxu0 0.0
    %6763 = vmatpush1.msra.mxu0 0.0
    %6764 = vmatprep.subr.mxu0 0.0
    %6765 = vmatpush1.msra.mxu0 0.0
    %6766 = vmatprep.subr.mxu0 0.0
    %6767 = vmatpush1.msra.mxu0 0.0
    %6768 = vmatprep.subr.mxu0 0.0
    %6769 = vmatpush1.msra.mxu0 0.0
    %6770 = vmatprep.subr.mxu0 0.0
    %6771 = vmatpush1.msra.mxu0 0.0
    %6772 = vmatprep.subr.mxu0 0.0
    %6773 = vmatpush1.msra.mxu0 0.0
    %6774 = vmatprep.subr.mxu0 0.0
    %6775 = vmatpush1.msra.mxu0 0.0
    %6776 = vmatprep.subr.mxu0 0.0
    %6777 = vmatpush1.msra.mxu0 0.0
    %6778 = vmatprep.subr.mxu0 0.0
    %6779 = vmatpush1.msra.mxu0 0.0
    %6780 = vmatprep.subr.mxu0 0.0
    %6781 = vmatpush1.msra.mxu0 0.0
    %6782 = vmatprep.subr.mxu0 0.0
    %6783 = vmatpush1.msra.mxu0 0.0
    %6784 = vmatprep.subr.mxu0 0.0
    %6785 = vmatpush1.msra.mxu0 0.0
    %6786 = vmatprep.subr.mxu0 0.0
    %6787 = vmatpush1.msra.mxu0 0.0
    %6788 = vmatprep.subr.mxu0 0.0
    %6789 = vmatpush1.msra.mxu0 0.0
    %6790 = vmatprep.mubr.f32.mxu0 0.0
    %6791 = vmatmul.mubr.f32.gmra.mrb[0].mxu0 %v6419
    %v6792 = vpop.f32.mrb[0].mxu0
    %v6793 = vadd.f32 %v662, %v6792
    %v6794 = vpop.f32.mrb[0].mxu0
    %v6795 = vadd.f32 %v666, %v6794
    %6796 = vdwg.mxu0
    %6797 = vmatprep.subr.mxu0 0.0
    %6798 = vmatpush1.msra.mxu0 %v611
    %6799 = vmatprep.subr.mxu0 0.0
    %6800 = vmatpush1.msra.mxu0 %v614
    %6801 = vmatprep.subr.mxu0 0.0
    %6802 = vmatpush1.msra.mxu0 %v617
    %6803 = vmatprep.subr.mxu0 0.0
    %6804 = vmatpush1.msra.mxu0 %v620
    %6805 = vmatprep.subr.mxu0 0.0
    %6806 = vmatpush1.msra.mxu0 %v623
    %6807 = vmatprep.subr.mxu0 0.0
    %6808 = vmatpush1.msra.mxu0 %v626
    %6809 = vmatprep.subr.mxu0 0.0
    %6810 = vmatpush1.msra.mxu0 %v629
    %6811 = vmatprep.subr.mxu0 0.0
    %6812 = vmatpush1.msra.mxu0 %v632
    %6813 = vmatprep.subr.mxu0 0.0
    %6814 = vmatpush1.msra.mxu0 %v635
    %6815 = vmatprep.subr.mxu0 0.0
    %6816 = vmatpush1.msra.mxu0 %v638
    %6817 = vmatprep.subr.mxu0 0.0
    %6818 = vmatpush1.msra.mxu0 %v641
    %6819 = vmatprep.subr.mxu0 0.0
    %6820 = vmatpush1.msra.mxu0 %v644
    %6821 = vmatprep.subr.mxu0 0.0
    %6822 = vmatpush1.msra.mxu0 %v647
    %6823 = vmatprep.subr.mxu0 0.0
    %6824 = vmatpush1.msra.mxu0 %v650
    %6825 = vmatprep.subr.mxu0 0.0
    %6826 = vmatpush1.msra.mxu0 %v653
    %6827 = vmatprep.subr.mxu0 0.0
    %6828 = vmatpush1.msra.mxu0 %v656
    %6829 = vmatprep.subr.mxu0 0.0
    %6830 = vmatpush1.msra.mxu0 0.0
    %6831 = vmatprep.subr.mxu0 0.0
    %6832 = vmatpush1.msra.mxu0 0.0
    %6833 = vmatprep.subr.mxu0 0.0
    %6834 = vmatpush1.msra.mxu0 0.0
    %6835 = vmatprep.subr.mxu0 0.0
    %6836 = vmatpush1.msra.mxu0 0.0
    %6837 = vmatprep.subr.mxu0 0.0
    %6838 = vmatpush1.msra.mxu0 0.0
    %6839 = vmatprep.subr.mxu0 0.0
    %6840 = vmatpush1.msra.mxu0 0.0
    %6841 = vmatprep.subr.mxu0 0.0
    %6842 = vmatpush1.msra.mxu0 0.0
    %6843 = vmatprep.subr.mxu0 0.0
    %6844 = vmatpush1.msra.mxu0 0.0
    %6845 = vmatprep.subr.mxu0 0.0
    %6846 = vmatpush1.msra.mxu0 0.0
    %6847 = vmatprep.subr.mxu0 0.0
    %6848 = vmatpush1.msra.mxu0 0.0
    %6849 = vmatprep.subr.mxu0 0.0
    %6850 = vmatpush1.msra.mxu0 0.0
    %6851 = vmatprep.subr.mxu0 0.0
    %6852 = vmatpush1.msra.mxu0 0.0
    %6853 = vmatprep.subr.mxu0 0.0
    %6854 = vmatpush1.msra.mxu0 0.0
    %6855 = vmatprep.subr.mxu0 0.0
    %6856 = vmatpush1.msra.mxu0 0.0
    %6857 = vmatprep.subr.mxu0 0.0
    %6858 = vmatpush1.msra.mxu0 0.0
    %6859 = vmatprep.subr.mxu0 0.0
    %6860 = vmatpush1.msra.mxu0 0.0
    %6861 = vmatprep.mubr.f32.mxu0 0.0
    %6862 = vmatmul.mubr.f32.gmra.mrb[0].mxu0 %v6419
    %v6863 = vpop.f32.mrb[0].mxu0
    %v6864 = vadd.f32 %v670, %v6863
    %v6865 = vpop.f32.mrb[0].mxu0
    %6866 = vdwg.mxu0
    %v6867 = vadd.f32 %v6723, %v6793
    %v6868 = vadd.f32 %v6724, %v6795
    %v6869 = vxor.u32 %v6867, 2147483648
    %v6870 = vxor.u32 %v6868, 2147483648
    %v6871 = vmul.f32 %v6869, 1.442695
    %v6872 = vpow.pop %v6871
    %v6873 = vmul.f32 %v6870, 1.442695
    %v6874 = vpow.pop %v6873
    %v6875 = vadd.f32 %v6872, 1.0
    %v6876 = vadd.f32 %v6874, 1.0
    %v6877 = vrcp.pop %v6875
    %v6878 = vmul.f32 1.0, %v6877
    %v6879 = vrcp.pop %v6876
    %v6880 = vmul.f32 1.0, %v6879
    %v6881 = vmul.f32 %v6878, %v6864
    %v6882 = vadd.f32 %v6725, %v6881
    %v6883 = vtanh.pop %v6882
    %v6884 = vsub.f32 1.0, %v6880
    %v6885 = vmul.f32 %v6884, %v6883
    %v6886 = vmul.f32 %v6880, %v6419
    %v6887 = vadd.f32 %v6885, %v6886
    %6888 = vmatprep.subr.mxu0 %v1208
    %6889 = vmatpush1.msra.mxu0 %v1207
    %6890 = vmatprep.subr.mxu0 %v1211
    %6891 = vmatpush1.msra.mxu0 %v1210
    %6892 = vmatprep.subr.mxu0 %v1214
    %6893 = vmatpush1.msra.mxu0 %v1213
    %6894 = vmatprep.subr.mxu0 %v1217
    %6895 = vmatpush1.msra.mxu0 %v1216
    %6896 = vmatprep.subr.mxu0 %v1220
    %6897 = vmatpush1.msra.mxu0 %v1219
    %6898 = vmatprep.subr.mxu0 %v1223
    %6899 = vmatpush1.msra.mxu0 %v1222
    %6900 = vmatprep.subr.mxu0 %v1226
    %6901 = vmatpush1.msra.mxu0 %v1225
    %6902 = vmatprep.subr.mxu0 %v1229
    %6903 = vmatpush1.msra.mxu0 %v1228
    %6904 = vmatprep.subr.mxu0 %v1232
    %6905 = vmatpush1.msra.mxu0 %v1231
    %6906 = vmatprep.subr.mxu0 %v1235
    %6907 = vmatpush1.msra.mxu0 %v1234
    %6908 = vmatprep.subr.mxu0 %v1238
    %6909 = vmatpush1.msra.mxu0 %v1237
    %6910 = vmatprep.subr.mxu0 %v1241
    %6911 = vmatpush1.msra.mxu0 %v1240
    %6912 = vmatprep.subr.mxu0 %v1244
    %6913 = vmatpush1.msra.mxu0 %v1243
    %6914 = vmatprep.subr.mxu0 %v1247
    %6915 = vmatpush1.msra.mxu0 %v1246
    %6916 = vmatprep.subr.mxu0 %v1250
    %6917 = vmatpush1.msra.mxu0 %v1249
    %6918 = vmatprep.subr.mxu0 %v1253
    %6919 = vmatpush1.msra.mxu0 %v1252
    %6920 = vmatprep.subr.mxu0 0.0
    %6921 = vmatpush1.msra.mxu0 0.0
    %6922 = vmatprep.subr.mxu0 0.0
    %6923 = vmatpush1.msra.mxu0 0.0
    %6924 = vmatprep.subr.mxu0 0.0
    %6925 = vmatpush1.msra.mxu0 0.0
    %6926 = vmatprep.subr.mxu0 0.0
    %6927 = vmatpush1.msra.mxu0 0.0
    %6928 = vmatprep.subr.mxu0 0.0
    %6929 = vmatpush1.msra.mxu0 0.0
    %6930 = vmatprep.subr.mxu0 0.0
    %6931 = vmatpush1.msra.mxu0 0.0
    %6932 = vmatprep.subr.mxu0 0.0
    %6933 = vmatpush1.msra.mxu0 0.0
    %6934 = vmatprep.subr.mxu0 0.0
    %6935 = vmatpush1.msra.mxu0 0.0
    %6936 = vmatprep.subr.mxu0 0.0
    %6937 = vmatpush1.msra.mxu0 0.0
    %6938 = vmatprep.subr.mxu0 0.0
    %6939 = vmatpush1.msra.mxu0 0.0
    %6940 = vmatprep.subr.mxu0 0.0
    %6941 = vmatpush1.msra.mxu0 0.0
    %6942 = vmatprep.subr.mxu0 0.0
    %6943 = vmatpush1.msra.mxu0 0.0
    %6944 = vmatprep.subr.mxu0 0.0
    %6945 = vmatpush1.msra.mxu0 0.0
    %6946 = vmatprep.subr.mxu0 0.0
    %6947 = vmatpush1.msra.mxu0 0.0
    %6948 = vmatprep.subr.mxu0 0.0
    %6949 = vmatpush1.msra.mxu0 0.0
    %6950 = vmatprep.subr.mxu0 0.0
    %6951 = vmatpush1.msra.mxu0 0.0
    %6952 = vmatprep.mubr.f32.mxu0 0.0
    %6953 = vmatmul.mubr.f32.gmra.mrb[0].mxu0 %v6581
    %v6954 = vpop.f32.mrb[0].mxu0
    %v6955 = vadd.f32 %v1260, %v6954
    %v6956 = vpop.f32.mrb[0].mxu0
    %v6957 = vadd.f32 %v1264, %v6956
    %6958 = vdwg.mxu0
    %6959 = vmatprep.subr.mxu0 0.0
    %6960 = vmatpush1.msra.mxu0 %v1209
    %6961 = vmatprep.subr.mxu0 0.0
    %6962 = vmatpush1.msra.mxu0 %v1212
    %6963 = vmatprep.subr.mxu0 0.0
    %6964 = vmatpush1.msra.mxu0 %v1215
    %6965 = vmatprep.subr.mxu0 0.0
    %6966 = vmatpush1.msra.mxu0 %v1218
    %6967 = vmatprep.subr.mxu0 0.0
    %6968 = vmatpush1.msra.mxu0 %v1221
    %6969 = vmatprep.subr.mxu0 0.0
    %6970 = vmatpush1.msra.mxu0 %v1224
    %6971 = vmatprep.subr.mxu0 0.0
    %6972 = vmatpush1.msra.mxu0 %v1227
    %6973 = vmatprep.subr.mxu0 0.0
    %6974 = vmatpush1.msra.mxu0 %v1230
    %6975 = vmatprep.subr.mxu0 0.0
    %6976 = vmatpush1.msra.mxu0 %v1233
    %6977 = vmatprep.subr.mxu0 0.0
    %6978 = vmatpush1.msra.mxu0 %v1236
    %6979 = vmatprep.subr.mxu0 0.0
    %6980 = vmatpush1.msra.mxu0 %v1239
    %6981 = vmatprep.subr.mxu0 0.0
    %6982 = vmatpush1.msra.mxu0 %v1242
    %6983 = vmatprep.subr.mxu0 0.0
    %6984 = vmatpush1.msra.mxu0 %v1245
    %6985 = vmatprep.subr.mxu0 0.0
    %6986 = vmatpush1.msra.mxu0 %v1248
    %6987 = vmatprep.subr.mxu0 0.0
    %6988 = vmatpush1.msra.mxu0 %v1251
    %6989 = vmatprep.subr.mxu0 0.0
    %6990 = vmatpush1.msra.mxu0 %v1254
    %6991 = vmatprep.subr.mxu0 0.0
    %6992 = vmatpush1.msra.mxu0 0.0
    %6993 = vmatprep.subr.mxu0 0.0
    %6994 = vmatpush1.msra.mxu0 0.0
    %6995 = vmatprep.subr.mxu0 0.0
    %6996 = vmatpush1.msra.mxu0 0.0
    %6997 = vmatprep.subr.mxu0 0.0
    %6998 = vmatpush1.msra.mxu0 0.0
    %6999 = vmatprep.subr.mxu0 0.0
    %7000 = vmatpush1.msra.mxu0 0.0
    %7001 = vmatprep.subr.mxu0 0.0
    %7002 = vmatpush1.msra.mxu0 0.0
    %7003 = vmatprep.subr.mxu0 0.0
    %7004 = vmatpush1.msra.mxu0 0.0
    %7005 = vmatprep.subr.mxu0 0.0
    %7006 = vmatpush1.msra.mxu0 0.0
    %7007 = vmatprep.subr.mxu0 0.0
    %7008 = vmatpush1.msra.mxu0 0.0
    %7009 = vmatprep.subr.mxu0 0.0
    %7010 = vmatpush1.msra.mxu0 0.0
    %7011 = vmatprep.subr.mxu0 0.0
    %7012 = vmatpush1.msra.mxu0 0.0
    %7013 = vmatprep.subr.mxu0 0.0
    %7014 = vmatpush1.msra.mxu0 0.0
    %7015 = vmatprep.subr.mxu0 0.0
    %7016 = vmatpush1.msra.mxu0 0.0
    %7017 = vmatprep.subr.mxu0 0.0
    %7018 = vmatpush1.msra.mxu0 0.0
    %7019 = vmatprep.subr.mxu0 0.0
    %7020 = vmatpush1.msra.mxu0 0.0
    %7021 = vmatprep.subr.mxu0 0.0
    %7022 = vmatpush1.msra.mxu0 0.0
    %7023 = vmatprep.mubr.f32.mxu0 0.0
    %7024 = vmatmul.mubr.f32.gmra.mrb[0].mxu0 %v6581
    %v7025 = vpop.f32.mrb[0].mxu0
    %v7026 = vadd.f32 %v1268, %v7025
    %v7027 = vpop.f32.mrb[0].mxu0
    %7028 = vdwg.mxu0
    %v7029 = vadd.f32 %v6649, %v6955
    %v7030 = vadd.f32 %v6651, %v6957
    %v7031 = vxor.u32 %v7029, 2147483648
    %v7032 = vxor.u32 %v7030, 2147483648
    %v7033 = vmul.f32 %v7031, 1.442695
    %v7034 = vpow.pop %v7033
    %v7035 = vmul.f32 %v7032, 1.442695
    %v7036 = vpow.pop %v7035
    %v7037 = vadd.f32 %v7034, 1.0
    %v7038 = vadd.f32 %v7036, 1.0
    %v7039 = vrcp.pop %v7037
    %v7040 = vmul.f32 1.0, %v7039
    %v7041 = vrcp.pop %v7038
    %v7042 = vmul.f32 1.0, %v7041
    %v7043 = vmul.f32 %v7040, %v7026
    %v7044 = vadd.f32 %v6720, %v7043
    %v7045 = vtanh.pop %v7044
    %v7046 = vsub.f32 1.0, %v7042
    %v7047 = vmul.f32 %v7046, %v7045
    %v7048 = vmul.f32 %v7042, %v6581
    %v7049 = vadd.f32 %v7047, %v7048
    %7050 = vmatprep.subr.mxu0 %v837
    %7051 = vmatpush1.msra.mxu0 %v836
    %7052 = vmatprep.subr.mxu0 %v840
    %7053 = vmatpush1.msra.mxu0 %v839
    %7054 = vmatprep.subr.mxu0 %v843
    %7055 = vmatpush1.msra.mxu0 %v842
    %7056 = vmatprep.subr.mxu0 %v846
    %7057 = vmatpush1.msra.mxu0 %v845
    %7058 = vmatprep.subr.mxu0 %v849
    %7059 = vmatpush1.msra.mxu0 %v848
    %7060 = vmatprep.subr.mxu0 %v852
    %7061 = vmatpush1.msra.mxu0 %v851
    %7062 = vmatprep.subr.mxu0 %v855
    %7063 = vmatpush1.msra.mxu0 %v854
    %7064 = vmatprep.subr.mxu0 %v858
    %7065 = vmatpush1.msra.mxu0 %v857
    %7066 = vmatprep.subr.mxu0 %v861
    %7067 = vmatpush1.msra.mxu0 %v860
    %7068 = vmatprep.subr.mxu0 %v864
    %7069 = vmatpush1.msra.mxu0 %v863
    %7070 = vmatprep.subr.mxu0 %v867
    %7071 = vmatpush1.msra.mxu0 %v866
    %7072 = vmatprep.subr.mxu0 %v870
    %7073 = vmatpush1.msra.mxu0 %v869
    %7074 = vmatprep.subr.mxu0 %v873
    %7075 = vmatpush1.msra.mxu0 %v872
    %7076 = vmatprep.subr.mxu0 %v876
    %7077 = vmatpush1.msra.mxu0 %v875
    %7078 = vmatprep.subr.mxu0 %v879
    %7079 = vmatpush1.msra.mxu0 %v878
    %7080 = vmatprep.subr.mxu0 %v882
    %7081 = vmatpush1.msra.mxu0 %v881
    %7082 = vmatprep.subr.mxu0 0.0
    %7083 = vmatpush1.msra.mxu0 0.0
    %7084 = vmatprep.subr.mxu0 0.0
    %7085 = vmatpush1.msra.mxu0 0.0
    %7086 = vmatprep.subr.mxu0 0.0
    %7087 = vmatpush1.msra.mxu0 0.0
    %7088 = vmatprep.subr.mxu0 0.0
    %7089 = vmatpush1.msra.mxu0 0.0
    %7090 = vmatprep.subr.mxu0 0.0
    %7091 = vmatpush1.msra.mxu0 0.0
    %7092 = vmatprep.subr.mxu0 0.0
    %7093 = vmatpush1.msra.mxu0 0.0
    %7094 = vmatprep.subr.mxu0 0.0
    %7095 = vmatpush1.msra.mxu0 0.0
    %7096 = vmatprep.subr.mxu0 0.0
    %7097 = vmatpush1.msra.mxu0 0.0
    %7098 = vmatprep.subr.mxu0 0.0
    %7099 = vmatpush1.msra.mxu0 0.0
    %7100 = vmatprep.subr.mxu0 0.0
    %7101 = vmatpush1.msra.mxu0 0.0
    %7102 = vmatprep.subr.mxu0 0.0
    %7103 = vmatpush1.msra.mxu0 0.0
    %7104 = vmatprep.subr.mxu0 0.0
    %7105 = vmatpush1.msra.mxu0 0.0
    %7106 = vmatprep.subr.mxu0 0.0
    %7107 = vmatpush1.msra.mxu0 0.0
    %7108 = vmatprep.subr.mxu0 0.0
    %7109 = vmatpush1.msra.mxu0 0.0
    %7110 = vmatprep.subr.mxu0 0.0
    %7111 = vmatpush1.msra.mxu0 0.0
    %7112 = vmatprep.subr.mxu0 0.0
    %7113 = vmatpush1.msra.mxu0 0.0
    %7114 = vmatprep.mubr.f32.mxu0 0.0
    %7115 = vmatmul.mubr.f32.gmra.mrb[0].mxu0 %v6887
    %v7116 = vpop.f32.mrb[0].mxu0
    %v7117 = vadd.f32 %v889, %v7116
    %v7118 = vpop.f32.mrb[0].mxu0
    %v7119 = vadd.f32 %v893, %v7118
    %7120 = vdwg.mxu0
    %7121 = vmatprep.subr.mxu0 0.0
    %7122 = vmatpush1.msra.mxu0 %v838
    %7123 = vmatprep.subr.mxu0 0.0
    %7124 = vmatpush1.msra.mxu0 %v841
    %7125 = vmatprep.subr.mxu0 0.0
    %7126 = vmatpush1.msra.mxu0 %v844
    %7127 = vmatprep.subr.mxu0 0.0
    %7128 = vmatpush1.msra.mxu0 %v847
    %7129 = vmatprep.subr.mxu0 0.0
    %7130 = vmatpush1.msra.mxu0 %v850
    %7131 = vmatprep.subr.mxu0 0.0
    %7132 = vmatpush1.msra.mxu0 %v853
    %7133 = vmatprep.subr.mxu0 0.0
    %7134 = vmatpush1.msra.mxu0 %v856
    %7135 = vmatprep.subr.mxu0 0.0
    %7136 = vmatpush1.msra.mxu0 %v859
    %7137 = vmatprep.subr.mxu0 0.0
    %7138 = vmatpush1.msra.mxu0 %v862
    %7139 = vmatprep.subr.mxu0 0.0
    %7140 = vmatpush1.msra.mxu0 %v865
    %7141 = vmatprep.subr.mxu0 0.0
    %7142 = vmatpush1.msra.mxu0 %v868
    %7143 = vmatprep.subr.mxu0 0.0
    %7144 = vmatpush1.msra.mxu0 %v871
    %7145 = vmatprep.subr.mxu0 0.0
    %7146 = vmatpush1.msra.mxu0 %v874
    %7147 = vmatprep.subr.mxu0 0.0
    %7148 = vmatpush1.msra.mxu0 %v877
    %7149 = vmatprep.subr.mxu0 0.0
    %7150 = vmatpush1.msra.mxu0 %v880
    %7151 = vmatprep.subr.mxu0 0.0
    %7152 = vmatpush1.msra.mxu0 %v883
    %7153 = vmatprep.subr.mxu0 0.0
    %7154 = vmatpush1.msra.mxu0 0.0
    %7155 = vmatprep.subr.mxu0 0.0
    %7156 = vmatpush1.msra.mxu0 0.0
    %7157 = vmatprep.subr.mxu0 0.0
    %7158 = vmatpush1.msra.mxu0 0.0
    %7159 = vmatprep.subr.mxu0 0.0
    %7160 = vmatpush1.msra.mxu0 0.0
    %7161 = vmatprep.subr.mxu0 0.0
    %7162 = vmatpush1.msra.mxu0 0.0
    %7163 = vmatprep.subr.mxu0 0.0
    %7164 = vmatpush1.msra.mxu0 0.0
    %7165 = vmatprep.subr.mxu0 0.0
    %7166 = vmatpush1.msra.mxu0 0.0
    %7167 = vmatprep.subr.mxu0 0.0
    %7168 = vmatpush1.msra.mxu0 0.0
    %7169 = vmatprep.subr.mxu0 0.0
    %7170 = vmatpush1.msra.mxu0 0.0
    %7171 = vmatprep.subr.mxu0 0.0
    %7172 = vmatpush1.msra.mxu0 0.0
    %7173 = vmatprep.subr.mxu0 0.0
    %7174 = vmatpush1.msra.mxu0 0.0
    %7175 = vmatprep.subr.mxu0 0.0
    %7176 = vmatpush1.msra.mxu0 0.0
    %7177 = vmatprep.subr.mxu0 0.0
    %7178 = vmatpush1.msra.mxu0 0.0
    %7179 = vmatprep.subr.mxu0 0.0
    %7180 = vmatpush1.msra.mxu0 0.0
    %7181 = vmatprep.subr.mxu0 0.0
    %7182 = vmatpush1.msra.mxu0 0.0
    %7183 = vmatprep.subr.mxu0 0.0
    %7184 = vmatpush1.msra.mxu0 0.0
    %7185 = vmatprep.mubr.f32.mxu0 0.0
    %7186 = vmatmul.mubr.f32.gmra.mrb[0].mxu0 %v6887
    %v7187 = vpop.f32.mrb[0].mxu0
    %v7188 = vadd.f32 %v897, %v7187
    %v7189 = vpop.f32.mrb[0].mxu0
    %7190 = vdwg.mxu0
    %v7191 = vld [vmem:[#allocation2 + $0x150] sm:$0xff]
    %v7192 = vld [vmem:[#allocation2 + $0x158] sm:$0xff]
    %v7193 = vld [vmem:[#allocation2 + $0x160] sm:$0xff]
    %7194 = vmatprep.subr.mxu0 %v610
    %7195 = vmatpush1.msra.mxu0 %v609
    %7196 = vmatprep.subr.mxu0 %v613
    %7197 = vmatpush1.msra.mxu0 %v612
    %7198 = vmatprep.subr.mxu0 %v616
    %7199 = vmatpush1.msra.mxu0 %v615
    %7200 = vmatprep.subr.mxu0 %v619
    %7201 = vmatpush1.msra.mxu0 %v618
    %7202 = vmatprep.subr.mxu0 %v622
    %7203 = vmatpush1.msra.mxu0 %v621
    %7204 = vmatprep.subr.mxu0 %v625
    %7205 = vmatpush1.msra.mxu0 %v624
    %7206 = vmatprep.subr.mxu0 %v628
    %7207 = vmatpush1.msra.mxu0 %v627
    %7208 = vmatprep.subr.mxu0 %v631
    %7209 = vmatpush1.msra.mxu0 %v630
    %7210 = vmatprep.subr.mxu0 %v634
    %7211 = vmatpush1.msra.mxu0 %v633
    %7212 = vmatprep.subr.mxu0 %v637
    %7213 = vmatpush1.msra.mxu0 %v636
    %7214 = vmatprep.subr.mxu0 %v640
    %7215 = vmatpush1.msra.mxu0 %v639
    %7216 = vmatprep.subr.mxu0 %v643
    %7217 = vmatpush1.msra.mxu0 %v642
    %7218 = vmatprep.subr.mxu0 %v646
    %7219 = vmatpush1.msra.mxu0 %v645
    %7220 = vmatprep.subr.mxu0 %v649
    %7221 = vmatpush1.msra.mxu0 %v648
    %7222 = vmatprep.subr.mxu0 %v652
    %7223 = vmatpush1.msra.mxu0 %v651
    %7224 = vmatprep.subr.mxu0 %v655
    %7225 = vmatpush1.msra.mxu0 %v654
    %7226 = vmatprep.subr.mxu0 0.0
    %7227 = vmatpush1.msra.mxu0 0.0
    %7228 = vmatprep.subr.mxu0 0.0
    %7229 = vmatpush1.msra.mxu0 0.0
    %7230 = vmatprep.subr.mxu0 0.0
    %7231 = vmatpush1.msra.mxu0 0.0
    %7232 = vmatprep.subr.mxu0 0.0
    %7233 = vmatpush1.msra.mxu0 0.0
    %7234 = vmatprep.subr.mxu0 0.0
    %7235 = vmatpush1.msra.mxu0 0.0
    %7236 = vmatprep.subr.mxu0 0.0
    %7237 = vmatpush1.msra.mxu0 0.0
    %7238 = vmatprep.subr.mxu0 0.0
    %7239 = vmatpush1.msra.mxu0 0.0
    %7240 = vmatprep.subr.mxu0 0.0
    %7241 = vmatpush1.msra.mxu0 0.0
    %7242 = vmatprep.subr.mxu0 0.0
    %7243 = vmatpush1.msra.mxu0 0.0
    %7244 = vmatprep.subr.mxu0 0.0
    %7245 = vmatpush1.msra.mxu0 0.0
    %7246 = vmatprep.subr.mxu0 0.0
    %7247 = vmatpush1.msra.mxu0 0.0
    %7248 = vmatprep.subr.mxu0 0.0
    %7249 = vmatpush1.msra.mxu0 0.0
    %7250 = vmatprep.subr.mxu0 0.0
    %7251 = vmatpush1.msra.mxu0 0.0
    %7252 = vmatprep.subr.mxu0 0.0
    %7253 = vmatpush1.msra.mxu0 0.0
    %7254 = vmatprep.subr.mxu0 0.0
    %7255 = vmatpush1.msra.mxu0 0.0
    %7256 = vmatprep.subr.mxu0 0.0
    %7257 = vmatpush1.msra.mxu0 0.0
    %7258 = vmatprep.mubr.f32.mxu0 0.0
    %7259 = vmatmul.mubr.f32.gmra.mrb[0].mxu0 %v6887
    %v7260 = vpop.f32.mrb[0].mxu0
    %v7261 = vadd.f32 %v662, %v7260
    %v7262 = vpop.f32.mrb[0].mxu0
    %v7263 = vadd.f32 %v666, %v7262
    %7264 = vdwg.mxu0
    %7265 = vmatprep.subr.mxu0 0.0
    %7266 = vmatpush1.msra.mxu0 %v611
    %7267 = vmatprep.subr.mxu0 0.0
    %7268 = vmatpush1.msra.mxu0 %v614
    %7269 = vmatprep.subr.mxu0 0.0
    %7270 = vmatpush1.msra.mxu0 %v617
    %7271 = vmatprep.subr.mxu0 0.0
    %7272 = vmatpush1.msra.mxu0 %v620
    %7273 = vmatprep.subr.mxu0 0.0
    %7274 = vmatpush1.msra.mxu0 %v623
    %7275 = vmatprep.subr.mxu0 0.0
    %7276 = vmatpush1.msra.mxu0 %v626
    %7277 = vmatprep.subr.mxu0 0.0
    %7278 = vmatpush1.msra.mxu0 %v629
    %7279 = vmatprep.subr.mxu0 0.0
    %7280 = vmatpush1.msra.mxu0 %v632
    %7281 = vmatprep.subr.mxu0 0.0
    %7282 = vmatpush1.msra.mxu0 %v635
    %7283 = vmatprep.subr.mxu0 0.0
    %7284 = vmatpush1.msra.mxu0 %v638
    %7285 = vmatprep.subr.mxu0 0.0
    %7286 = vmatpush1.msra.mxu0 %v641
    %7287 = vmatprep.subr.mxu0 0.0
    %7288 = vmatpush1.msra.mxu0 %v644
    %7289 = vmatprep.subr.mxu0 0.0
    %7290 = vmatpush1.msra.mxu0 %v647
    %7291 = vmatprep.subr.mxu0 0.0
    %7292 = vmatpush1.msra.mxu0 %v650
    %7293 = vmatprep.subr.mxu0 0.0
    %7294 = vmatpush1.msra.mxu0 %v653
    %7295 = vmatprep.subr.mxu0 0.0
    %7296 = vmatpush1.msra.mxu0 %v656
    %7297 = vmatprep.subr.mxu0 0.0
    %7298 = vmatpush1.msra.mxu0 0.0
    %7299 = vmatprep.subr.mxu0 0.0
    %7300 = vmatpush1.msra.mxu0 0.0
    %7301 = vmatprep.subr.mxu0 0.0
    %7302 = vmatpush1.msra.mxu0 0.0
    %7303 = vmatprep.subr.mxu0 0.0
    %7304 = vmatpush1.msra.mxu0 0.0
    %7305 = vmatprep.subr.mxu0 0.0
    %7306 = vmatpush1.msra.mxu0 0.0
    %7307 = vmatprep.subr.mxu0 0.0
    %7308 = vmatpush1.msra.mxu0 0.0
    %7309 = vmatprep.subr.mxu0 0.0
    %7310 = vmatpush1.msra.mxu0 0.0
    %7311 = vmatprep.subr.mxu0 0.0
    %7312 = vmatpush1.msra.mxu0 0.0
    %7313 = vmatprep.subr.mxu0 0.0
    %7314 = vmatpush1.msra.mxu0 0.0
    %7315 = vmatprep.subr.mxu0 0.0
    %7316 = vmatpush1.msra.mxu0 0.0
    %7317 = vmatprep.subr.mxu0 0.0
    %7318 = vmatpush1.msra.mxu0 0.0
    %7319 = vmatprep.subr.mxu0 0.0
    %7320 = vmatpush1.msra.mxu0 0.0
    %7321 = vmatprep.subr.mxu0 0.0
    %7322 = vmatpush1.msra.mxu0 0.0
    %7323 = vmatprep.subr.mxu0 0.0
    %7324 = vmatpush1.msra.mxu0 0.0
    %7325 = vmatprep.subr.mxu0 0.0
    %7326 = vmatpush1.msra.mxu0 0.0
    %7327 = vmatprep.subr.mxu0 0.0
    %7328 = vmatpush1.msra.mxu0 0.0
    %7329 = vmatprep.mubr.f32.mxu0 0.0
    %7330 = vmatmul.mubr.f32.gmra.mrb[0].mxu0 %v6887
    %v7331 = vpop.f32.mrb[0].mxu0
    %v7332 = vadd.f32 %v670, %v7331
    %v7333 = vpop.f32.mrb[0].mxu0
    %7334 = vdwg.mxu0
    %v7335 = vadd.f32 %v7191, %v7261
    %v7336 = vadd.f32 %v7192, %v7263
    %v7337 = vxor.u32 %v7335, 2147483648
    %v7338 = vxor.u32 %v7336, 2147483648
    %v7339 = vmul.f32 %v7337, 1.442695
    %v7340 = vpow.pop %v7339
    %v7341 = vmul.f32 %v7338, 1.442695
    %v7342 = vpow.pop %v7341
    %v7343 = vadd.f32 %v7340, 1.0
    %v7344 = vadd.f32 %v7342, 1.0
    %v7345 = vrcp.pop %v7343
    %v7346 = vmul.f32 1.0, %v7345
    %v7347 = vrcp.pop %v7344
    %v7348 = vmul.f32 1.0, %v7347
    %v7349 = vmul.f32 %v7346, %v7332
    %v7350 = vadd.f32 %v7193, %v7349
    %v7351 = vtanh.pop %v7350
    %v7352 = vsub.f32 1.0, %v7348
    %v7353 = vmul.f32 %v7352, %v7351
    %v7354 = vmul.f32 %v7348, %v6887
    %v7355 = vadd.f32 %v7353, %v7354
    %7356 = vmatprep.subr.mxu0 %v1208
    %7357 = vmatpush1.msra.mxu0 %v1207
    %7358 = vmatprep.subr.mxu0 %v1211
    %7359 = vmatpush1.msra.mxu0 %v1210
    %7360 = vmatprep.subr.mxu0 %v1214
    %7361 = vmatpush1.msra.mxu0 %v1213
    %7362 = vmatprep.subr.mxu0 %v1217
    %7363 = vmatpush1.msra.mxu0 %v1216
    %7364 = vmatprep.subr.mxu0 %v1220
    %7365 = vmatpush1.msra.mxu0 %v1219
    %7366 = vmatprep.subr.mxu0 %v1223
    %7367 = vmatpush1.msra.mxu0 %v1222
    %7368 = vmatprep.subr.mxu0 %v1226
    %7369 = vmatpush1.msra.mxu0 %v1225
    %7370 = vmatprep.subr.mxu0 %v1229
    %7371 = vmatpush1.msra.mxu0 %v1228
    %7372 = vmatprep.subr.mxu0 %v1232
    %7373 = vmatpush1.msra.mxu0 %v1231
    %7374 = vmatprep.subr.mxu0 %v1235
    %7375 = vmatpush1.msra.mxu0 %v1234
    %7376 = vmatprep.subr.mxu0 %v1238
    %7377 = vmatpush1.msra.mxu0 %v1237
    %7378 = vmatprep.subr.mxu0 %v1241
    %7379 = vmatpush1.msra.mxu0 %v1240
    %7380 = vmatprep.subr.mxu0 %v1244
    %7381 = vmatpush1.msra.mxu0 %v1243
    %7382 = vmatprep.subr.mxu0 %v1247
    %7383 = vmatpush1.msra.mxu0 %v1246
    %7384 = vmatprep.subr.mxu0 %v1250
    %7385 = vmatpush1.msra.mxu0 %v1249
    %7386 = vmatprep.subr.mxu0 %v1253
    %7387 = vmatpush1.msra.mxu0 %v1252
    %7388 = vmatprep.subr.mxu0 0.0
    %7389 = vmatpush1.msra.mxu0 0.0
    %7390 = vmatprep.subr.mxu0 0.0
    %7391 = vmatpush1.msra.mxu0 0.0
    %7392 = vmatprep.subr.mxu0 0.0
    %7393 = vmatpush1.msra.mxu0 0.0
    %7394 = vmatprep.subr.mxu0 0.0
    %7395 = vmatpush1.msra.mxu0 0.0
    %7396 = vmatprep.subr.mxu0 0.0
    %7397 = vmatpush1.msra.mxu0 0.0
    %7398 = vmatprep.subr.mxu0 0.0
    %7399 = vmatpush1.msra.mxu0 0.0
    %7400 = vmatprep.subr.mxu0 0.0
    %7401 = vmatpush1.msra.mxu0 0.0
    %7402 = vmatprep.subr.mxu0 0.0
    %7403 = vmatpush1.msra.mxu0 0.0
    %7404 = vmatprep.subr.mxu0 0.0
    %7405 = vmatpush1.msra.mxu0 0.0
    %7406 = vmatprep.subr.mxu0 0.0
    %7407 = vmatpush1.msra.mxu0 0.0
    %7408 = vmatprep.subr.mxu0 0.0
    %7409 = vmatpush1.msra.mxu0 0.0
    %7410 = vmatprep.subr.mxu0 0.0
    %7411 = vmatpush1.msra.mxu0 0.0
    %7412 = vmatprep.subr.mxu0 0.0
    %7413 = vmatpush1.msra.mxu0 0.0
    %7414 = vmatprep.subr.mxu0 0.0
    %7415 = vmatpush1.msra.mxu0 0.0
    %7416 = vmatprep.subr.mxu0 0.0
    %7417 = vmatpush1.msra.mxu0 0.0
    %7418 = vmatprep.subr.mxu0 0.0
    %7419 = vmatpush1.msra.mxu0 0.0
    %7420 = vmatprep.mubr.f32.mxu0 0.0
    %7421 = vmatmul.mubr.f32.gmra.mrb[0].mxu0 %v7049
    %v7422 = vpop.f32.mrb[0].mxu0
    %v7423 = vadd.f32 %v1260, %v7422
    %v7424 = vpop.f32.mrb[0].mxu0
    %v7425 = vadd.f32 %v1264, %v7424
    %7426 = vdwg.mxu0
    %7427 = vmatprep.subr.mxu0 0.0
    %7428 = vmatpush1.msra.mxu0 %v1209
    %7429 = vmatprep.subr.mxu0 0.0
    %7430 = vmatpush1.msra.mxu0 %v1212
    %7431 = vmatprep.subr.mxu0 0.0
    %7432 = vmatpush1.msra.mxu0 %v1215
    %7433 = vmatprep.subr.mxu0 0.0
    %7434 = vmatpush1.msra.mxu0 %v1218
    %7435 = vmatprep.subr.mxu0 0.0
    %7436 = vmatpush1.msra.mxu0 %v1221
    %7437 = vmatprep.subr.mxu0 0.0
    %7438 = vmatpush1.msra.mxu0 %v1224
    %7439 = vmatprep.subr.mxu0 0.0
    %7440 = vmatpush1.msra.mxu0 %v1227
    %7441 = vmatprep.subr.mxu0 0.0
    %7442 = vmatpush1.msra.mxu0 %v1230
    %7443 = vmatprep.subr.mxu0 0.0
    %7444 = vmatpush1.msra.mxu0 %v1233
    %7445 = vmatprep.subr.mxu0 0.0
    %7446 = vmatpush1.msra.mxu0 %v1236
    %7447 = vmatprep.subr.mxu0 0.0
    %7448 = vmatpush1.msra.mxu0 %v1239
    %7449 = vmatprep.subr.mxu0 0.0
    %7450 = vmatpush1.msra.mxu0 %v1242
    %7451 = vmatprep.subr.mxu0 0.0
    %7452 = vmatpush1.msra.mxu0 %v1245
    %7453 = vmatprep.subr.mxu0 0.0
    %7454 = vmatpush1.msra.mxu0 %v1248
    %7455 = vmatprep.subr.mxu0 0.0
    %7456 = vmatpush1.msra.mxu0 %v1251
    %7457 = vmatprep.subr.mxu0 0.0
    %7458 = vmatpush1.msra.mxu0 %v1254
    %7459 = vmatprep.subr.mxu0 0.0
    %7460 = vmatpush1.msra.mxu0 0.0
    %7461 = vmatprep.subr.mxu0 0.0
    %7462 = vmatpush1.msra.mxu0 0.0
    %7463 = vmatprep.subr.mxu0 0.0
    %7464 = vmatpush1.msra.mxu0 0.0
    %7465 = vmatprep.subr.mxu0 0.0
    %7466 = vmatpush1.msra.mxu0 0.0
    %7467 = vmatprep.subr.mxu0 0.0
    %7468 = vmatpush1.msra.mxu0 0.0
    %7469 = vmatprep.subr.mxu0 0.0
    %7470 = vmatpush1.msra.mxu0 0.0
    %7471 = vmatprep.subr.mxu0 0.0
    %7472 = vmatpush1.msra.mxu0 0.0
    %7473 = vmatprep.subr.mxu0 0.0
    %7474 = vmatpush1.msra.mxu0 0.0
    %7475 = vmatprep.subr.mxu0 0.0
    %7476 = vmatpush1.msra.mxu0 0.0
    %7477 = vmatprep.subr.mxu0 0.0
    %7478 = vmatpush1.msra.mxu0 0.0
    %7479 = vmatprep.subr.mxu0 0.0
    %7480 = vmatpush1.msra.mxu0 0.0
    %7481 = vmatprep.subr.mxu0 0.0
    %7482 = vmatpush1.msra.mxu0 0.0
    %7483 = vmatprep.subr.mxu0 0.0
    %7484 = vmatpush1.msra.mxu0 0.0
    %7485 = vmatprep.subr.mxu0 0.0
    %7486 = vmatpush1.msra.mxu0 0.0
    %7487 = vmatprep.subr.mxu0 0.0
    %7488 = vmatpush1.msra.mxu0 0.0
    %7489 = vmatprep.subr.mxu0 0.0
    %7490 = vmatpush1.msra.mxu0 0.0
    %7491 = vmatprep.mubr.f32.mxu0 0.0
    %7492 = vmatmul.mubr.f32.gmra.mrb[0].mxu0 %v7049
    %v7493 = vpop.f32.mrb[0].mxu0
    %v7494 = vadd.f32 %v1268, %v7493
    %v7495 = vpop.f32.mrb[0].mxu0
    %7496 = vdwg.mxu0
    %v7497 = vadd.f32 %v7117, %v7423
    %v7498 = vadd.f32 %v7119, %v7425
    %v7499 = vxor.u32 %v7497, 2147483648
    %v7500 = vxor.u32 %v7498, 2147483648
    %v7501 = vmul.f32 %v7499, 1.442695
    %v7502 = vpow.pop %v7501
    %v7503 = vmul.f32 %v7500, 1.442695
    %v7504 = vpow.pop %v7503
    %v7505 = vadd.f32 %v7502, 1.0
    %v7506 = vadd.f32 %v7504, 1.0
    %v7507 = vrcp.pop %v7505
    %v7508 = vmul.f32 1.0, %v7507
    %v7509 = vrcp.pop %v7506
    %v7510 = vmul.f32 1.0, %v7509
    %v7511 = vmul.f32 %v7508, %v7494
    %v7512 = vadd.f32 %v7188, %v7511
    %v7513 = vtanh.pop %v7512
    %v7514 = vsub.f32 1.0, %v7510
    %v7515 = vmul.f32 %v7514, %v7513
    %v7516 = vmul.f32 %v7510, %v7049
    %v7517 = vadd.f32 %v7515, %v7516
    %7518 = vmatprep.subr.mxu0 %v837
    %7519 = vmatpush1.msra.mxu0 %v836
    %7520 = vmatprep.subr.mxu0 %v840
    %7521 = vmatpush1.msra.mxu0 %v839
    %7522 = vmatprep.subr.mxu0 %v843
    %7523 = vmatpush1.msra.mxu0 %v842
    %7524 = vmatprep.subr.mxu0 %v846
    %7525 = vmatpush1.msra.mxu0 %v845
    %7526 = vmatprep.subr.mxu0 %v849
    %7527 = vmatpush1.msra.mxu0 %v848
    %7528 = vmatprep.subr.mxu0 %v852
    %7529 = vmatpush1.msra.mxu0 %v851
    %7530 = vmatprep.subr.mxu0 %v855
    %7531 = vmatpush1.msra.mxu0 %v854
    %7532 = vmatprep.subr.mxu0 %v858
    %7533 = vmatpush1.msra.mxu0 %v857
    %7534 = vmatprep.subr.mxu0 %v861
    %7535 = vmatpush1.msra.mxu0 %v860
    %7536 = vmatprep.subr.mxu0 %v864
    %7537 = vmatpush1.msra.mxu0 %v863
    %7538 = vmatprep.subr.mxu0 %v867
    %7539 = vmatpush1.msra.mxu0 %v866
    %7540 = vmatprep.subr.mxu0 %v870
    %7541 = vmatpush1.msra.mxu0 %v869
    %7542 = vmatprep.subr.mxu0 %v873
    %7543 = vmatpush1.msra.mxu0 %v872
    %7544 = vmatprep.subr.mxu0 %v876
    %7545 = vmatpush1.msra.mxu0 %v875
    %7546 = vmatprep.subr.mxu0 %v879
    %7547 = vmatpush1.msra.mxu0 %v878
    %7548 = vmatprep.subr.mxu0 %v882
    %7549 = vmatpush1.msra.mxu0 %v881
    %7550 = vmatprep.subr.mxu0 0.0
    %7551 = vmatpush1.msra.mxu0 0.0
    %7552 = vmatprep.subr.mxu0 0.0
    %7553 = vmatpush1.msra.mxu0 0.0
    %7554 = vmatprep.subr.mxu0 0.0
    %7555 = vmatpush1.msra.mxu0 0.0
    %7556 = vmatprep.subr.mxu0 0.0
    %7557 = vmatpush1.msra.mxu0 0.0
    %7558 = vmatprep.subr.mxu0 0.0
    %7559 = vmatpush1.msra.mxu0 0.0
    %7560 = vmatprep.subr.mxu0 0.0
    %7561 = vmatpush1.msra.mxu0 0.0
    %7562 = vmatprep.subr.mxu0 0.0
    %7563 = vmatpush1.msra.mxu0 0.0
    %7564 = vmatprep.subr.mxu0 0.0
    %7565 = vmatpush1.msra.mxu0 0.0
    %7566 = vmatprep.subr.mxu0 0.0
    %7567 = vmatpush1.msra.mxu0 0.0
    %7568 = vmatprep.subr.mxu0 0.0
    %7569 = vmatpush1.msra.mxu0 0.0
    %7570 = vmatprep.subr.mxu0 0.0
    %7571 = vmatpush1.msra.mxu0 0.0
    %7572 = vmatprep.subr.mxu0 0.0
    %7573 = vmatpush1.msra.mxu0 0.0
    %7574 = vmatprep.subr.mxu0 0.0
    %7575 = vmatpush1.msra.mxu0 0.0
    %7576 = vmatprep.subr.mxu0 0.0
    %7577 = vmatpush1.msra.mxu0 0.0
    %7578 = vmatprep.subr.mxu0 0.0
    %7579 = vmatpush1.msra.mxu0 0.0
    %7580 = vmatprep.subr.mxu0 0.0
    %7581 = vmatpush1.msra.mxu0 0.0
    %7582 = vmatprep.mubr.f32.mxu0 0.0
    %7583 = vmatmul.mubr.f32.gmra.mrb[0].mxu0 %v7355
    %v7584 = vpop.f32.mrb[0].mxu0
    %v7585 = vadd.f32 %v889, %v7584
    %v7586 = vpop.f32.mrb[0].mxu0
    %v7587 = vadd.f32 %v893, %v7586
    %7588 = vdwg.mxu0
    %7589 = vmatprep.subr.mxu0 0.0
    %7590 = vmatpush1.msra.mxu0 %v838
    %7591 = vmatprep.subr.mxu0 0.0
    %7592 = vmatpush1.msra.mxu0 %v841
    %7593 = vmatprep.subr.mxu0 0.0
    %7594 = vmatpush1.msra.mxu0 %v844
    %7595 = vmatprep.subr.mxu0 0.0
    %7596 = vmatpush1.msra.mxu0 %v847
    %7597 = vmatprep.subr.mxu0 0.0
    %7598 = vmatpush1.msra.mxu0 %v850
    %7599 = vmatprep.subr.mxu0 0.0
    %7600 = vmatpush1.msra.mxu0 %v853
    %7601 = vmatprep.subr.mxu0 0.0
    %7602 = vmatpush1.msra.mxu0 %v856
    %7603 = vmatprep.subr.mxu0 0.0
    %7604 = vmatpush1.msra.mxu0 %v859
    %7605 = vmatprep.subr.mxu0 0.0
    %7606 = vmatpush1.msra.mxu0 %v862
    %7607 = vmatprep.subr.mxu0 0.0
    %7608 = vmatpush1.msra.mxu0 %v865
    %7609 = vmatprep.subr.mxu0 0.0
    %7610 = vmatpush1.msra.mxu0 %v868
    %7611 = vmatprep.subr.mxu0 0.0
    %7612 = vmatpush1.msra.mxu0 %v871
    %7613 = vmatprep.subr.mxu0 0.0
    %7614 = vmatpush1.msra.mxu0 %v874
    %7615 = vmatprep.subr.mxu0 0.0
    %7616 = vmatpush1.msra.mxu0 %v877
    %7617 = vmatprep.subr.mxu0 0.0
    %7618 = vmatpush1.msra.mxu0 %v880
    %7619 = vmatprep.subr.mxu0 0.0
    %7620 = vmatpush1.msra.mxu0 %v883
    %7621 = vmatprep.subr.mxu0 0.0
    %7622 = vmatpush1.msra.mxu0 0.0
    %7623 = vmatprep.subr.mxu0 0.0
    %7624 = vmatpush1.msra.mxu0 0.0
    %7625 = vmatprep.subr.mxu0 0.0
    %7626 = vmatpush1.msra.mxu0 0.0
    %7627 = vmatprep.subr.mxu0 0.0
    %7628 = vmatpush1.msra.mxu0 0.0
    %7629 = vmatprep.subr.mxu0 0.0
    %7630 = vmatpush1.msra.mxu0 0.0
    %7631 = vmatprep.subr.mxu0 0.0
    %7632 = vmatpush1.msra.mxu0 0.0
    %7633 = vmatprep.subr.mxu0 0.0
    %7634 = vmatpush1.msra.mxu0 0.0
    %7635 = vmatprep.subr.mxu0 0.0
    %7636 = vmatpush1.msra.mxu0 0.0
    %7637 = vmatprep.subr.mxu0 0.0
    %7638 = vmatpush1.msra.mxu0 0.0
    %7639 = vmatprep.subr.mxu0 0.0
    %7640 = vmatpush1.msra.mxu0 0.0
    %7641 = vmatprep.subr.mxu0 0.0
    %7642 = vmatpush1.msra.mxu0 0.0
    %7643 = vmatprep.subr.mxu0 0.0
    %7644 = vmatpush1.msra.mxu0 0.0
    %7645 = vmatprep.subr.mxu0 0.0
    %7646 = vmatpush1.msra.mxu0 0.0
    %7647 = vmatprep.subr.mxu0 0.0
    %7648 = vmatpush1.msra.mxu0 0.0
    %7649 = vmatprep.subr.mxu0 0.0
    %7650 = vmatpush1.msra.mxu0 0.0
    %7651 = vmatprep.subr.mxu0 0.0
    %7652 = vmatpush1.msra.mxu0 0.0
    %7653 = vmatprep.mubr.f32.mxu0 0.0
    %7654 = vmatmul.mubr.f32.gmra.mrb[0].mxu0 %v7355
    %v7655 = vpop.f32.mrb[0].mxu0
    %v7656 = vadd.f32 %v897, %v7655
    %v7657 = vpop.f32.mrb[0].mxu0
    %7658 = vdwg.mxu0
    %v7659 = vld [vmem:[#allocation2 + $0x168] sm:$0xff]
    %v7660 = vld [vmem:[#allocation2 + $0x170] sm:$0xff]
    %v7661 = vld [vmem:[#allocation2 + $0x178] sm:$0xff]
    %7662 = vmatprep.subr.mxu0 %v610
    %7663 = vmatpush1.msra.mxu0 %v609
    %7664 = vmatprep.subr.mxu0 %v613
    %7665 = vmatpush1.msra.mxu0 %v612
    %7666 = vmatprep.subr.mxu0 %v616
    %7667 = vmatpush1.msra.mxu0 %v615
    %7668 = vmatprep.subr.mxu0 %v619
    %7669 = vmatpush1.msra.mxu0 %v618
    %7670 = vmatprep.subr.mxu0 %v622
    %7671 = vmatpush1.msra.mxu0 %v621
    %7672 = vmatprep.subr.mxu0 %v625
    %7673 = vmatpush1.msra.mxu0 %v624
    %7674 = vmatprep.subr.mxu0 %v628
    %7675 = vmatpush1.msra.mxu0 %v627
    %7676 = vmatprep.subr.mxu0 %v631
    %7677 = vmatpush1.msra.mxu0 %v630
    %7678 = vmatprep.subr.mxu0 %v634
    %7679 = vmatpush1.msra.mxu0 %v633
    %7680 = vmatprep.subr.mxu0 %v637
    %7681 = vmatpush1.msra.mxu0 %v636
    %7682 = vmatprep.subr.mxu0 %v640
    %7683 = vmatpush1.msra.mxu0 %v639
    %7684 = vmatprep.subr.mxu0 %v643
    %7685 = vmatpush1.msra.mxu0 %v642
    %7686 = vmatprep.subr.mxu0 %v646
    %7687 = vmatpush1.msra.mxu0 %v645
    %7688 = vmatprep.subr.mxu0 %v649
    %7689 = vmatpush1.msra.mxu0 %v648
    %7690 = vmatprep.subr.mxu0 %v652
    %7691 = vmatpush1.msra.mxu0 %v651
    %7692 = vmatprep.subr.mxu0 %v655
    %7693 = vmatpush1.msra.mxu0 %v654
    %7694 = vmatprep.subr.mxu0 0.0
    %7695 = vmatpush1.msra.mxu0 0.0
    %7696 = vmatprep.subr.mxu0 0.0
    %7697 = vmatpush1.msra.mxu0 0.0
    %7698 = vmatprep.subr.mxu0 0.0
    %7699 = vmatpush1.msra.mxu0 0.0
    %7700 = vmatprep.subr.mxu0 0.0
    %7701 = vmatpush1.msra.mxu0 0.0
    %7702 = vmatprep.subr.mxu0 0.0
    %7703 = vmatpush1.msra.mxu0 0.0
    %7704 = vmatprep.subr.mxu0 0.0
    %7705 = vmatpush1.msra.mxu0 0.0
    %7706 = vmatprep.subr.mxu0 0.0
    %7707 = vmatpush1.msra.mxu0 0.0
    %7708 = vmatprep.subr.mxu0 0.0
    %7709 = vmatpush1.msra.mxu0 0.0
    %7710 = vmatprep.subr.mxu0 0.0
    %7711 = vmatpush1.msra.mxu0 0.0
    %7712 = vmatprep.subr.mxu0 0.0
    %7713 = vmatpush1.msra.mxu0 0.0
    %7714 = vmatprep.subr.mxu0 0.0
    %7715 = vmatpush1.msra.mxu0 0.0
    %7716 = vmatprep.subr.mxu0 0.0
    %7717 = vmatpush1.msra.mxu0 0.0
    %7718 = vmatprep.subr.mxu0 0.0
    %7719 = vmatpush1.msra.mxu0 0.0
    %7720 = vmatprep.subr.mxu0 0.0
    %7721 = vmatpush1.msra.mxu0 0.0
    %7722 = vmatprep.subr.mxu0 0.0
    %7723 = vmatpush1.msra.mxu0 0.0
    %7724 = vmatprep.subr.mxu0 0.0
    %7725 = vmatpush1.msra.mxu0 0.0
    %7726 = vmatprep.mubr.f32.mxu0 0.0
    %7727 = vmatmul.mubr.f32.gmra.mrb[0].mxu0 %v7355
    %v7728 = vpop.f32.mrb[0].mxu0
    %v7729 = vadd.f32 %v662, %v7728
    %v7730 = vpop.f32.mrb[0].mxu0
    %v7731 = vadd.f32 %v666, %v7730
    %7732 = vdwg.mxu0
    %7733 = vmatprep.subr.mxu0 0.0
    %7734 = vmatpush1.msra.mxu0 %v611
    %7735 = vmatprep.subr.mxu0 0.0
    %7736 = vmatpush1.msra.mxu0 %v614
    %7737 = vmatprep.subr.mxu0 0.0
    %7738 = vmatpush1.msra.mxu0 %v617
    %7739 = vmatprep.subr.mxu0 0.0
    %7740 = vmatpush1.msra.mxu0 %v620
    %7741 = vmatprep.subr.mxu0 0.0
    %7742 = vmatpush1.msra.mxu0 %v623
    %7743 = vmatprep.subr.mxu0 0.0
    %7744 = vmatpush1.msra.mxu0 %v626
    %7745 = vmatprep.subr.mxu0 0.0
    %7746 = vmatpush1.msra.mxu0 %v629
    %7747 = vmatprep.subr.mxu0 0.0
    %7748 = vmatpush1.msra.mxu0 %v632
    %7749 = vmatprep.subr.mxu0 0.0
    %7750 = vmatpush1.msra.mxu0 %v635
    %7751 = vmatprep.subr.mxu0 0.0
    %7752 = vmatpush1.msra.mxu0 %v638
    %7753 = vmatprep.subr.mxu0 0.0
    %7754 = vmatpush1.msra.mxu0 %v641
    %7755 = vmatprep.subr.mxu0 0.0
    %7756 = vmatpush1.msra.mxu0 %v644
    %7757 = vmatprep.subr.mxu0 0.0
    %7758 = vmatpush1.msra.mxu0 %v647
    %7759 = vmatprep.subr.mxu0 0.0
    %7760 = vmatpush1.msra.mxu0 %v650
    %7761 = vmatprep.subr.mxu0 0.0
    %7762 = vmatpush1.msra.mxu0 %v653
    %7763 = vmatprep.subr.mxu0 0.0
    %7764 = vmatpush1.msra.mxu0 %v656
    %7765 = vmatprep.subr.mxu0 0.0
    %7766 = vmatpush1.msra.mxu0 0.0
    %7767 = vmatprep.subr.mxu0 0.0
    %7768 = vmatpush1.msra.mxu0 0.0
    %7769 = vmatprep.subr.mxu0 0.0
    %7770 = vmatpush1.msra.mxu0 0.0
    %7771 = vmatprep.subr.mxu0 0.0
    %7772 = vmatpush1.msra.mxu0 0.0
    %7773 = vmatprep.subr.mxu0 0.0
    %7774 = vmatpush1.msra.mxu0 0.0
    %7775 = vmatprep.subr.mxu0 0.0
    %7776 = vmatpush1.msra.mxu0 0.0
    %7777 = vmatprep.subr.mxu0 0.0
    %7778 = vmatpush1.msra.mxu0 0.0
    %7779 = vmatprep.subr.mxu0 0.0
    %7780 = vmatpush1.msra.mxu0 0.0
    %7781 = vmatprep.subr.mxu0 0.0
    %7782 = vmatpush1.msra.mxu0 0.0
    %7783 = vmatprep.subr.mxu0 0.0
    %7784 = vmatpush1.msra.mxu0 0.0
    %7785 = vmatprep.subr.mxu0 0.0
    %7786 = vmatpush1.msra.mxu0 0.0
    %7787 = vmatprep.subr.mxu0 0.0
    %7788 = vmatpush1.msra.mxu0 0.0
    %7789 = vmatprep.subr.mxu0 0.0
    %7790 = vmatpush1.msra.mxu0 0.0
    %7791 = vmatprep.subr.mxu0 0.0
    %7792 = vmatpush1.msra.mxu0 0.0
    %7793 = vmatprep.subr.mxu0 0.0
    %7794 = vmatpush1.msra.mxu0 0.0
    %7795 = vmatprep.subr.mxu0 0.0
    %7796 = vmatpush1.msra.mxu0 0.0
    %7797 = vmatprep.mubr.f32.mxu0 0.0
    %7798 = vmatmul.mubr.f32.gmra.mrb[0].mxu0 %v7355
    %v7799 = vpop.f32.mrb[0].mxu0
    %v7800 = vadd.f32 %v670, %v7799
    %v7801 = vpop.f32.mrb[0].mxu0
    %7802 = vdwg.mxu0
    %v7803 = vadd.f32 %v7659, %v7729
    %v7804 = vadd.f32 %v7660, %v7731
    %v7805 = vxor.u32 %v7803, 2147483648
    %v7806 = vxor.u32 %v7804, 2147483648
    %v7807 = vmul.f32 %v7805, 1.442695
    %v7808 = vpow.pop %v7807
    %v7809 = vmul.f32 %v7806, 1.442695
    %v7810 = vpow.pop %v7809
    %v7811 = vadd.f32 %v7808, 1.0
    %v7812 = vadd.f32 %v7810, 1.0
    %v7813 = vrcp.pop %v7811
    %v7814 = vmul.f32 1.0, %v7813
    %v7815 = vrcp.pop %v7812
    %v7816 = vmul.f32 1.0, %v7815
    %v7817 = vmul.f32 %v7814, %v7800
    %v7818 = vadd.f32 %v7661, %v7817
    %v7819 = vtanh.pop %v7818
    %v7820 = vsub.f32 1.0, %v7816
    %v7821 = vmul.f32 %v7820, %v7819
    %v7822 = vmul.f32 %v7816, %v7355
    %v7823 = vadd.f32 %v7821, %v7822
    %7824 = vmatprep.subr.mxu0 %v1208
    %7825 = vmatpush1.msra.mxu0 %v1207
    %7826 = vmatprep.subr.mxu0 %v1211
    %7827 = vmatpush1.msra.mxu0 %v1210
    %7828 = vmatprep.subr.mxu0 %v1214
    %7829 = vmatpush1.msra.mxu0 %v1213
    %7830 = vmatprep.subr.mxu0 %v1217
    %7831 = vmatpush1.msra.mxu0 %v1216
    %7832 = vmatprep.subr.mxu0 %v1220
    %7833 = vmatpush1.msra.mxu0 %v1219
    %7834 = vmatprep.subr.mxu0 %v1223
    %7835 = vmatpush1.msra.mxu0 %v1222
    %7836 = vmatprep.subr.mxu0 %v1226
    %7837 = vmatpush1.msra.mxu0 %v1225
    %7838 = vmatprep.subr.mxu0 %v1229
    %7839 = vmatpush1.msra.mxu0 %v1228
    %7840 = vmatprep.subr.mxu0 %v1232
    %7841 = vmatpush1.msra.mxu0 %v1231
    %7842 = vmatprep.subr.mxu0 %v1235
    %7843 = vmatpush1.msra.mxu0 %v1234
    %7844 = vmatprep.subr.mxu0 %v1238
    %7845 = vmatpush1.msra.mxu0 %v1237
    %7846 = vmatprep.subr.mxu0 %v1241
    %7847 = vmatpush1.msra.mxu0 %v1240
    %7848 = vmatprep.subr.mxu0 %v1244
    %7849 = vmatpush1.msra.mxu0 %v1243
    %7850 = vmatprep.subr.mxu0 %v1247
    %7851 = vmatpush1.msra.mxu0 %v1246
    %7852 = vmatprep.subr.mxu0 %v1250
    %7853 = vmatpush1.msra.mxu0 %v1249
    %7854 = vmatprep.subr.mxu0 %v1253
    %7855 = vmatpush1.msra.mxu0 %v1252
    %7856 = vmatprep.subr.mxu0 0.0
    %7857 = vmatpush1.msra.mxu0 0.0
    %7858 = vmatprep.subr.mxu0 0.0
    %7859 = vmatpush1.msra.mxu0 0.0
    %7860 = vmatprep.subr.mxu0 0.0
    %7861 = vmatpush1.msra.mxu0 0.0
    %7862 = vmatprep.subr.mxu0 0.0
    %7863 = vmatpush1.msra.mxu0 0.0
    %7864 = vmatprep.subr.mxu0 0.0
    %7865 = vmatpush1.msra.mxu0 0.0
    %7866 = vmatprep.subr.mxu0 0.0
    %7867 = vmatpush1.msra.mxu0 0.0
    %7868 = vmatprep.subr.mxu0 0.0
    %7869 = vmatpush1.msra.mxu0 0.0
    %7870 = vmatprep.subr.mxu0 0.0
    %7871 = vmatpush1.msra.mxu0 0.0
    %7872 = vmatprep.subr.mxu0 0.0
    %7873 = vmatpush1.msra.mxu0 0.0
    %7874 = vmatprep.subr.mxu0 0.0
    %7875 = vmatpush1.msra.mxu0 0.0
    %7876 = vmatprep.subr.mxu0 0.0
    %7877 = vmatpush1.msra.mxu0 0.0
    %7878 = vmatprep.subr.mxu0 0.0
    %7879 = vmatpush1.msra.mxu0 0.0
    %7880 = vmatprep.subr.mxu0 0.0
    %7881 = vmatpush1.msra.mxu0 0.0
    %7882 = vmatprep.subr.mxu0 0.0
    %7883 = vmatpush1.msra.mxu0 0.0
    %7884 = vmatprep.subr.mxu0 0.0
    %7885 = vmatpush1.msra.mxu0 0.0
    %7886 = vmatprep.subr.mxu0 0.0
    %7887 = vmatpush1.msra.mxu0 0.0
    %7888 = vmatprep.mubr.f32.mxu0 0.0
    %7889 = vmatmul.mubr.f32.gmra.mrb[0].mxu0 %v7517
    %v7890 = vpop.f32.mrb[0].mxu0
    %v7891 = vadd.f32 %v1260, %v7890
    %v7892 = vpop.f32.mrb[0].mxu0
    %v7893 = vadd.f32 %v1264, %v7892
    %7894 = vdwg.mxu0
    %7895 = vmatprep.subr.mxu0 0.0
    %7896 = vmatpush1.msra.mxu0 %v1209
    %7897 = vmatprep.subr.mxu0 0.0
    %7898 = vmatpush1.msra.mxu0 %v1212
    %7899 = vmatprep.subr.mxu0 0.0
    %7900 = vmatpush1.msra.mxu0 %v1215
    %7901 = vmatprep.subr.mxu0 0.0
    %7902 = vmatpush1.msra.mxu0 %v1218
    %7903 = vmatprep.subr.mxu0 0.0
    %7904 = vmatpush1.msra.mxu0 %v1221
    %7905 = vmatprep.subr.mxu0 0.0
    %7906 = vmatpush1.msra.mxu0 %v1224
    %7907 = vmatprep.subr.mxu0 0.0
    %7908 = vmatpush1.msra.mxu0 %v1227
    %7909 = vmatprep.subr.mxu0 0.0
    %7910 = vmatpush1.msra.mxu0 %v1230
    %7911 = vmatprep.subr.mxu0 0.0
    %7912 = vmatpush1.msra.mxu0 %v1233
    %7913 = vmatprep.subr.mxu0 0.0
    %7914 = vmatpush1.msra.mxu0 %v1236
    %7915 = vmatprep.subr.mxu0 0.0
    %7916 = vmatpush1.msra.mxu0 %v1239
    %7917 = vmatprep.subr.mxu0 0.0
    %7918 = vmatpush1.msra.mxu0 %v1242
    %7919 = vmatprep.subr.mxu0 0.0
    %7920 = vmatpush1.msra.mxu0 %v1245
    %7921 = vmatprep.subr.mxu0 0.0
    %7922 = vmatpush1.msra.mxu0 %v1248
    %7923 = vmatprep.subr.mxu0 0.0
    %7924 = vmatpush1.msra.mxu0 %v1251
    %7925 = vmatprep.subr.mxu0 0.0
    %7926 = vmatpush1.msra.mxu0 %v1254
    %7927 = vmatprep.subr.mxu0 0.0
    %7928 = vmatpush1.msra.mxu0 0.0
    %7929 = vmatprep.subr.mxu0 0.0
    %7930 = vmatpush1.msra.mxu0 0.0
    %7931 = vmatprep.subr.mxu0 0.0
    %7932 = vmatpush1.msra.mxu0 0.0
    %7933 = vmatprep.subr.mxu0 0.0
    %7934 = vmatpush1.msra.mxu0 0.0
    %7935 = vmatprep.subr.mxu0 0.0
    %7936 = vmatpush1.msra.mxu0 0.0
    %7937 = vmatprep.subr.mxu0 0.0
    %7938 = vmatpush1.msra.mxu0 0.0
    %7939 = vmatprep.subr.mxu0 0.0
    %7940 = vmatpush1.msra.mxu0 0.0
    %7941 = vmatprep.subr.mxu0 0.0
    %7942 = vmatpush1.msra.mxu0 0.0
    %7943 = vmatprep.subr.mxu0 0.0
    %7944 = vmatpush1.msra.mxu0 0.0
    %7945 = vmatprep.subr.mxu0 0.0
    %7946 = vmatpush1.msra.mxu0 0.0
    %7947 = vmatprep.subr.mxu0 0.0
    %7948 = vmatpush1.msra.mxu0 0.0
    %7949 = vmatprep.subr.mxu0 0.0
    %7950 = vmatpush1.msra.mxu0 0.0
    %7951 = vmatprep.subr.mxu0 0.0
    %7952 = vmatpush1.msra.mxu0 0.0
    %7953 = vmatprep.subr.mxu0 0.0
    %7954 = vmatpush1.msra.mxu0 0.0
    %7955 = vmatprep.subr.mxu0 0.0
    %7956 = vmatpush1.msra.mxu0 0.0
    %7957 = vmatprep.subr.mxu0 0.0
    %7958 = vmatpush1.msra.mxu0 0.0
    %7959 = vmatprep.mubr.f32.mxu0 0.0
    %7960 = vmatmul.mubr.f32.gmra.mrb[0].mxu0 %v7517
    %v7961 = vpop.f32.mrb[0].mxu0
    %v7962 = vadd.f32 %v1268, %v7961
    %v7963 = vpop.f32.mrb[0].mxu0
    %7964 = vdwg.mxu0
    %v7965 = vadd.f32 %v7585, %v7891
    %v7966 = vadd.f32 %v7587, %v7893
    %v7967 = vxor.u32 %v7965, 2147483648
    %v7968 = vxor.u32 %v7966, 2147483648
    %v7969 = vmul.f32 %v7967, 1.442695
    %v7970 = vpow.pop %v7969
    %v7971 = vmul.f32 %v7968, 1.442695
    %v7972 = vpow.pop %v7971
    %v7973 = vadd.f32 %v7970, 1.0
    %v7974 = vadd.f32 %v7972, 1.0
    %v7975 = vrcp.pop %v7973
    %v7976 = vmul.f32 1.0, %v7975
    %v7977 = vrcp.pop %v7974
    %v7978 = vmul.f32 1.0, %v7977
    %v7979 = vmul.f32 %v7976, %v7962
    %v7980 = vadd.f32 %v7656, %v7979
    %v7981 = vtanh.pop %v7980
    %v7982 = vsub.f32 1.0, %v7978
    %v7983 = vmul.f32 %v7982, %v7981
    %v7984 = vmul.f32 %v7978, %v7517
    %v7985 = vadd.f32 %v7983, %v7984
    %7986 = vmatprep.subr.mxu0 %v837
    %7987 = vmatpush1.msra.mxu0 %v836
    %7988 = vmatprep.subr.mxu0 %v840
    %7989 = vmatpush1.msra.mxu0 %v839
    %7990 = vmatprep.subr.mxu0 %v843
    %7991 = vmatpush1.msra.mxu0 %v842
    %7992 = vmatprep.subr.mxu0 %v846
    %7993 = vmatpush1.msra.mxu0 %v845
    %7994 = vmatprep.subr.mxu0 %v849
    %7995 = vmatpush1.msra.mxu0 %v848
    %7996 = vmatprep.subr.mxu0 %v852
    %7997 = vmatpush1.msra.mxu0 %v851
    %7998 = vmatprep.subr.mxu0 %v855
    %7999 = vmatpush1.msra.mxu0 %v854
    %8000 = vmatprep.subr.mxu0 %v858
    %8001 = vmatpush1.msra.mxu0 %v857
    %8002 = vmatprep.subr.mxu0 %v861
    %8003 = vmatpush1.msra.mxu0 %v860
    %8004 = vmatprep.subr.mxu0 %v864
    %8005 = vmatpush1.msra.mxu0 %v863
    %8006 = vmatprep.subr.mxu0 %v867
    %8007 = vmatpush1.msra.mxu0 %v866
    %8008 = vmatprep.subr.mxu0 %v870
    %8009 = vmatpush1.msra.mxu0 %v869
    %8010 = vmatprep.subr.mxu0 %v873
    %8011 = vmatpush1.msra.mxu0 %v872
    %8012 = vmatprep.subr.mxu0 %v876
    %8013 = vmatpush1.msra.mxu0 %v875
    %8014 = vmatprep.subr.mxu0 %v879
    %8015 = vmatpush1.msra.mxu0 %v878
    %8016 = vmatprep.subr.mxu0 %v882
    %8017 = vmatpush1.msra.mxu0 %v881
    %8018 = vmatprep.subr.mxu0 0.0
    %8019 = vmatpush1.msra.mxu0 0.0
    %8020 = vmatprep.subr.mxu0 0.0
    %8021 = vmatpush1.msra.mxu0 0.0
    %8022 = vmatprep.subr.mxu0 0.0
    %8023 = vmatpush1.msra.mxu0 0.0
    %8024 = vmatprep.subr.mxu0 0.0
    %8025 = vmatpush1.msra.mxu0 0.0
    %8026 = vmatprep.subr.mxu0 0.0
    %8027 = vmatpush1.msra.mxu0 0.0
    %8028 = vmatprep.subr.mxu0 0.0
    %8029 = vmatpush1.msra.mxu0 0.0
    %8030 = vmatprep.subr.mxu0 0.0
    %8031 = vmatpush1.msra.mxu0 0.0
    %8032 = vmatprep.subr.mxu0 0.0
    %8033 = vmatpush1.msra.mxu0 0.0
    %8034 = vmatprep.subr.mxu0 0.0
    %8035 = vmatpush1.msra.mxu0 0.0
    %8036 = vmatprep.subr.mxu0 0.0
    %8037 = vmatpush1.msra.mxu0 0.0
    %8038 = vmatprep.subr.mxu0 0.0
    %8039 = vmatpush1.msra.mxu0 0.0
    %8040 = vmatprep.subr.mxu0 0.0
    %8041 = vmatpush1.msra.mxu0 0.0
    %8042 = vmatprep.subr.mxu0 0.0
    %8043 = vmatpush1.msra.mxu0 0.0
    %8044 = vmatprep.subr.mxu0 0.0
    %8045 = vmatpush1.msra.mxu0 0.0
    %8046 = vmatprep.subr.mxu0 0.0
    %8047 = vmatpush1.msra.mxu0 0.0
    %8048 = vmatprep.subr.mxu0 0.0
    %8049 = vmatpush1.msra.mxu0 0.0
    %8050 = vmatprep.mubr.f32.mxu0 0.0
    %8051 = vmatmul.mubr.f32.gmra.mrb[0].mxu0 %v7823
    %v8052 = vpop.f32.mrb[0].mxu0
    %v8053 = vadd.f32 %v889, %v8052
    %v8054 = vpop.f32.mrb[0].mxu0
    %v8055 = vadd.f32 %v893, %v8054
    %8056 = vdwg.mxu0
    %8057 = vmatprep.subr.mxu0 0.0
    %8058 = vmatpush1.msra.mxu0 %v838
    %8059 = vmatprep.subr.mxu0 0.0
    %8060 = vmatpush1.msra.mxu0 %v841
    %8061 = vmatprep.subr.mxu0 0.0
    %8062 = vmatpush1.msra.mxu0 %v844
    %8063 = vmatprep.subr.mxu0 0.0
    %8064 = vmatpush1.msra.mxu0 %v847
    %8065 = vmatprep.subr.mxu0 0.0
    %8066 = vmatpush1.msra.mxu0 %v850
    %8067 = vmatprep.subr.mxu0 0.0
    %8068 = vmatpush1.msra.mxu0 %v853
    %8069 = vmatprep.subr.mxu0 0.0
    %8070 = vmatpush1.msra.mxu0 %v856
    %8071 = vmatprep.subr.mxu0 0.0
    %8072 = vmatpush1.msra.mxu0 %v859
    %8073 = vmatprep.subr.mxu0 0.0
    %8074 = vmatpush1.msra.mxu0 %v862
    %8075 = vmatprep.subr.mxu0 0.0
    %8076 = vmatpush1.msra.mxu0 %v865
    %8077 = vmatprep.subr.mxu0 0.0
    %8078 = vmatpush1.msra.mxu0 %v868
    %8079 = vmatprep.subr.mxu0 0.0
    %8080 = vmatpush1.msra.mxu0 %v871
    %8081 = vmatprep.subr.mxu0 0.0
    %8082 = vmatpush1.msra.mxu0 %v874
    %8083 = vmatprep.subr.mxu0 0.0
    %8084 = vmatpush1.msra.mxu0 %v877
    %8085 = vmatprep.subr.mxu0 0.0
    %8086 = vmatpush1.msra.mxu0 %v880
    %8087 = vmatprep.subr.mxu0 0.0
    %8088 = vmatpush1.msra.mxu0 %v883
    %8089 = vmatprep.subr.mxu0 0.0
    %8090 = vmatpush1.msra.mxu0 0.0
    %8091 = vmatprep.subr.mxu0 0.0
    %8092 = vmatpush1.msra.mxu0 0.0
    %8093 = vmatprep.subr.mxu0 0.0
    %8094 = vmatpush1.msra.mxu0 0.0
    %8095 = vmatprep.subr.mxu0 0.0
    %8096 = vmatpush1.msra.mxu0 0.0
    %8097 = vmatprep.subr.mxu0 0.0
    %8098 = vmatpush1.msra.mxu0 0.0
    %8099 = vmatprep.subr.mxu0 0.0
    %8100 = vmatpush1.msra.mxu0 0.0
    %8101 = vmatprep.subr.mxu0 0.0
    %8102 = vmatpush1.msra.mxu0 0.0
    %8103 = vmatprep.subr.mxu0 0.0
    %8104 = vmatpush1.msra.mxu0 0.0
    %8105 = vmatprep.subr.mxu0 0.0
    %8106 = vmatpush1.msra.mxu0 0.0
    %8107 = vmatprep.subr.mxu0 0.0
    %8108 = vmatpush1.msra.mxu0 0.0
    %8109 = vmatprep.subr.mxu0 0.0
    %8110 = vmatpush1.msra.mxu0 0.0
    %8111 = vmatprep.subr.mxu0 0.0
    %8112 = vmatpush1.msra.mxu0 0.0
    %8113 = vmatprep.subr.mxu0 0.0
    %8114 = vmatpush1.msra.mxu0 0.0
    %8115 = vmatprep.subr.mxu0 0.0
    %8116 = vmatpush1.msra.mxu0 0.0
    %8117 = vmatprep.subr.mxu0 0.0
    %8118 = vmatpush1.msra.mxu0 0.0
    %8119 = vmatprep.subr.mxu0 0.0
    %8120 = vmatpush1.msra.mxu0 0.0
    %8121 = vmatprep.mubr.f32.mxu0 0.0
    %8122 = vmatmul.mubr.f32.gmra.mrb[0].mxu0 %v7823
    %v8123 = vpop.f32.mrb[0].mxu0
    %v8124 = vadd.f32 %v897, %v8123
    %v8125 = vpop.f32.mrb[0].mxu0
    %8126 = vdwg.mxu0
    %8127 = vmatprep.subr.mxu0 %v1208
    %8128 = vmatpush1.msra.mxu0 %v1207
    %8129 = vmatprep.subr.mxu0 %v1211
    %8130 = vmatpush1.msra.mxu0 %v1210
    %8131 = vmatprep.subr.mxu0 %v1214
    %8132 = vmatpush1.msra.mxu0 %v1213
    %8133 = vmatprep.subr.mxu0 %v1217
    %8134 = vmatpush1.msra.mxu0 %v1216
    %8135 = vmatprep.subr.mxu0 %v1220
    %8136 = vmatpush1.msra.mxu0 %v1219
    %8137 = vmatprep.subr.mxu0 %v1223
    %8138 = vmatpush1.msra.mxu0 %v1222
    %8139 = vmatprep.subr.mxu0 %v1226
    %8140 = vmatpush1.msra.mxu0 %v1225
    %8141 = vmatprep.subr.mxu0 %v1229
    %8142 = vmatpush1.msra.mxu0 %v1228
    %8143 = vmatprep.subr.mxu0 %v1232
    %8144 = vmatpush1.msra.mxu0 %v1231
    %8145 = vmatprep.subr.mxu0 %v1235
    %8146 = vmatpush1.msra.mxu0 %v1234
    %8147 = vmatprep.subr.mxu0 %v1238
    %8148 = vmatpush1.msra.mxu0 %v1237
    %8149 = vmatprep.subr.mxu0 %v1241
    %8150 = vmatpush1.msra.mxu0 %v1240
    %8151 = vmatprep.subr.mxu0 %v1244
    %8152 = vmatpush1.msra.mxu0 %v1243
    %8153 = vmatprep.subr.mxu0 %v1247
    %8154 = vmatpush1.msra.mxu0 %v1246
    %8155 = vmatprep.subr.mxu0 %v1250
    %8156 = vmatpush1.msra.mxu0 %v1249
    %8157 = vmatprep.subr.mxu0 %v1253
    %8158 = vmatpush1.msra.mxu0 %v1252
    %8159 = vmatprep.subr.mxu0 0.0
    %8160 = vmatpush1.msra.mxu0 0.0
    %8161 = vmatprep.subr.mxu0 0.0
    %8162 = vmatpush1.msra.mxu0 0.0
    %8163 = vmatprep.subr.mxu0 0.0
    %8164 = vmatpush1.msra.mxu0 0.0
    %8165 = vmatprep.subr.mxu0 0.0
    %8166 = vmatpush1.msra.mxu0 0.0
    %8167 = vmatprep.subr.mxu0 0.0
    %8168 = vmatpush1.msra.mxu0 0.0
    %8169 = vmatprep.subr.mxu0 0.0
    %8170 = vmatpush1.msra.mxu0 0.0
    %8171 = vmatprep.subr.mxu0 0.0
    %8172 = vmatpush1.msra.mxu0 0.0
    %8173 = vmatprep.subr.mxu0 0.0
    %8174 = vmatpush1.msra.mxu0 0.0
    %8175 = vmatprep.subr.mxu0 0.0
    %8176 = vmatpush1.msra.mxu0 0.0
    %8177 = vmatprep.subr.mxu0 0.0
    %8178 = vmatpush1.msra.mxu0 0.0
    %8179 = vmatprep.subr.mxu0 0.0
    %8180 = vmatpush1.msra.mxu0 0.0
    %8181 = vmatprep.subr.mxu0 0.0
    %8182 = vmatpush1.msra.mxu0 0.0
    %8183 = vmatprep.subr.mxu0 0.0
    %8184 = vmatpush1.msra.mxu0 0.0
    %8185 = vmatprep.subr.mxu0 0.0
    %8186 = vmatpush1.msra.mxu0 0.0
    %8187 = vmatprep.subr.mxu0 0.0
    %8188 = vmatpush1.msra.mxu0 0.0
    %8189 = vmatprep.subr.mxu0 0.0
    %8190 = vmatpush1.msra.mxu0 0.0
    %8191 = vmatprep.mubr.f32.mxu0 0.0
    %8192 = vmatmul.mubr.f32.gmra.mrb[0].mxu0 %v7985
    %v8193 = vpop.f32.mrb[0].mxu0
    %v8194 = vadd.f32 %v1260, %v8193
    %v8195 = vpop.f32.mrb[0].mxu0
    %v8196 = vadd.f32 %v1264, %v8195
    %8197 = vdwg.mxu0
    %8198 = vmatprep.subr.mxu0 0.0
    %8199 = vmatpush1.msra.mxu0 %v1209
    %8200 = vmatprep.subr.mxu0 0.0
    %8201 = vmatpush1.msra.mxu0 %v1212
    %8202 = vmatprep.subr.mxu0 0.0
    %8203 = vmatpush1.msra.mxu0 %v1215
    %8204 = vmatprep.subr.mxu0 0.0
    %8205 = vmatpush1.msra.mxu0 %v1218
    %8206 = vmatprep.subr.mxu0 0.0
    %8207 = vmatpush1.msra.mxu0 %v1221
    %8208 = vmatprep.subr.mxu0 0.0
    %8209 = vmatpush1.msra.mxu0 %v1224
    %8210 = vmatprep.subr.mxu0 0.0
    %8211 = vmatpush1.msra.mxu0 %v1227
    %8212 = vmatprep.subr.mxu0 0.0
    %8213 = vmatpush1.msra.mxu0 %v1230
    %8214 = vmatprep.subr.mxu0 0.0
    %8215 = vmatpush1.msra.mxu0 %v1233
    %8216 = vmatprep.subr.mxu0 0.0
    %8217 = vmatpush1.msra.mxu0 %v1236
    %8218 = vmatprep.subr.mxu0 0.0
    %8219 = vmatpush1.msra.mxu0 %v1239
    %8220 = vmatprep.subr.mxu0 0.0
    %8221 = vmatpush1.msra.mxu0 %v1242
    %8222 = vmatprep.subr.mxu0 0.0
    %8223 = vmatpush1.msra.mxu0 %v1245
    %8224 = vmatprep.subr.mxu0 0.0
    %8225 = vmatpush1.msra.mxu0 %v1248
    %8226 = vmatprep.subr.mxu0 0.0
    %8227 = vmatpush1.msra.mxu0 %v1251
    %8228 = vmatprep.subr.mxu0 0.0
    %8229 = vmatpush1.msra.mxu0 %v1254
    %8230 = vmatprep.subr.mxu0 0.0
    %8231 = vmatpush1.msra.mxu0 0.0
    %8232 = vmatprep.subr.mxu0 0.0
    %8233 = vmatpush1.msra.mxu0 0.0
    %8234 = vmatprep.subr.mxu0 0.0
    %8235 = vmatpush1.msra.mxu0 0.0
    %8236 = vmatprep.subr.mxu0 0.0
    %8237 = vmatpush1.msra.mxu0 0.0
    %8238 = vmatprep.subr.mxu0 0.0
    %8239 = vmatpush1.msra.mxu0 0.0
    %8240 = vmatprep.subr.mxu0 0.0
    %8241 = vmatpush1.msra.mxu0 0.0
    %8242 = vmatprep.subr.mxu0 0.0
    %8243 = vmatpush1.msra.mxu0 0.0
    %8244 = vmatprep.subr.mxu0 0.0
    %8245 = vmatpush1.msra.mxu0 0.0
    %8246 = vmatprep.subr.mxu0 0.0
    %8247 = vmatpush1.msra.mxu0 0.0
    %8248 = vmatprep.subr.mxu0 0.0
    %8249 = vmatpush1.msra.mxu0 0.0
    %8250 = vmatprep.subr.mxu0 0.0
    %8251 = vmatpush1.msra.mxu0 0.0
    %8252 = vmatprep.subr.mxu0 0.0
    %8253 = vmatpush1.msra.mxu0 0.0
    %8254 = vmatprep.subr.mxu0 0.0
    %8255 = vmatpush1.msra.mxu0 0.0
    %8256 = vmatprep.subr.mxu0 0.0
    %8257 = vmatpush1.msra.mxu0 0.0
    %8258 = vmatprep.subr.mxu0 0.0
    %8259 = vmatpush1.msra.mxu0 0.0
    %8260 = vmatprep.subr.mxu0 0.0
    %8261 = vmatpush1.msra.mxu0 0.0
    %8262 = vmatprep.mubr.f32.mxu0 0.0
    %8263 = vmatmul.mubr.f32.gmra.mrb[0].mxu0 %v7985
    %v8264 = vpop.f32.mrb[0].mxu0
    %v8265 = vadd.f32 %v1268, %v8264
    %v8266 = vpop.f32.mrb[0].mxu0
    %8267 = vdwg.mxu0
    %v8268 = vadd.f32 %v8053, %v8194
    %v8269 = vadd.f32 %v8055, %v8196
    %v8270 = vxor.u32 %v8268, 2147483648
    %v8271 = vxor.u32 %v8269, 2147483648
    %v8272 = vmul.f32 %v8270, 1.442695
    %v8273 = vpow.pop %v8272
    %v8274 = vmul.f32 %v8271, 1.442695
    %v8275 = vpow.pop %v8274
    %v8276 = vadd.f32 %v8273, 1.0
    %v8277 = vadd.f32 %v8275, 1.0
    %v8278 = vrcp.pop %v8276
    %v8279 = vmul.f32 1.0, %v8278
    %v8280 = vrcp.pop %v8277
    %v8281 = vmul.f32 1.0, %v8280
    %v8282 = vmul.f32 %v8279, %v8265
    %v8283 = vadd.f32 %v8124, %v8282
    %v8284 = vtanh.pop %v8283
    %v8285 = vsub.f32 1.0, %v8281
    %v8286 = vmul.f32 %v8285, %v8284
    %v8287 = vmul.f32 %v8281, %v7985
    %v8288 = vadd.f32 %v8286, %v8287
    %v8289 = vld [vmem:[%s10] sm:$0xff]
    %v8290 = vld [vmem:[%s10 + $0x8] sm:$0xff]
    %v8291 = vld [vmem:[%s10 + $0x10] sm:$0xff]
    %v8292 = vld [vmem:[%s10 + $0x18] sm:$0xff]
    %v8293 = vld [vmem:[%s10 + $0x20] sm:$0xff]
    %v8294 = vld [vmem:[%s10 + $0x28] sm:$0xff]
    %v8295 = vld [vmem:[%s10 + $0x30] sm:$0xff]
    %v8296 = vld [vmem:[%s10 + $0x38] sm:$0xff]
    %v8297 = vld [vmem:[%s10 + $0x40] sm:$0xff]
    %v8298 = vld [vmem:[%s10 + $0x48] sm:$0xff]
    %v8299 = vld [vmem:[%s10 + $0x50] sm:$0xff]
    %v8300 = vld [vmem:[%s10 + $0x58] sm:$0xff]
    %v8301 = vld [vmem:[%s10 + $0x60] sm:$0xff]
    %v8302 = vld [vmem:[%s10 + $0x68] sm:$0xff]
    %v8303 = vld [vmem:[%s10 + $0x70] sm:$0xff]
    %v8304 = vld [vmem:[%s10 + $0x78] sm:$0xff]
    %v8305 = vld [vmem:[%s11] sm:$0x1]
    %v8307 = vlaneseq
    %v8308 = vshrl.u32 %v8307, 7
    %v8309 = vsub.s32 0, %v8308
    %v8310 = vrot.slane %v8305, %v8309
    %8312 = vmatprep.subr.mxu0 0.0
    %8313 = vmatpush1.msra.mxu0 %v8289
    %8314 = vmatprep.subr.mxu0 0.0
    %8315 = vmatpush1.msra.mxu0 %v8290
    %8316 = vmatprep.subr.mxu0 0.0
    %8317 = vmatpush1.msra.mxu0 %v8291
    %8318 = vmatprep.subr.mxu0 0.0
    %8319 = vmatpush1.msra.mxu0 %v8292
    %8320 = vmatprep.subr.mxu0 0.0
    %8321 = vmatpush1.msra.mxu0 %v8293
    %8322 = vmatprep.subr.mxu0 0.0
    %8323 = vmatpush1.msra.mxu0 %v8294
    %8324 = vmatprep.subr.mxu0 0.0
    %8325 = vmatpush1.msra.mxu0 %v8295
    %8326 = vmatprep.subr.mxu0 0.0
    %8327 = vmatpush1.msra.mxu0 %v8296
    %8328 = vmatprep.subr.mxu0 0.0
    %8329 = vmatpush1.msra.mxu0 %v8297
    %8330 = vmatprep.subr.mxu0 0.0
    %8331 = vmatpush1.msra.mxu0 %v8298
    %8332 = vmatprep.subr.mxu0 0.0
    %8333 = vmatpush1.msra.mxu0 %v8299
    %8334 = vmatprep.subr.mxu0 0.0
    %8335 = vmatpush1.msra.mxu0 %v8300
    %8336 = vmatprep.subr.mxu0 0.0
    %8337 = vmatpush1.msra.mxu0 %v8301
    %8338 = vmatprep.subr.mxu0 0.0
    %8339 = vmatpush1.msra.mxu0 %v8302
    %8340 = vmatprep.subr.mxu0 0.0
    %8341 = vmatpush1.msra.mxu0 %v8303
    %8342 = vmatprep.subr.mxu0 0.0
    %8343 = vmatpush1.msra.mxu0 %v8304
    %8344 = vmatprep.subr.mxu0 0.0
    %8345 = vmatpush1.msra.mxu0 0.0
    %8346 = vmatprep.subr.mxu0 0.0
    %8347 = vmatpush1.msra.mxu0 0.0
    %8348 = vmatprep.subr.mxu0 0.0
    %8349 = vmatpush1.msra.mxu0 0.0
    %8350 = vmatprep.subr.mxu0 0.0
    %8351 = vmatpush1.msra.mxu0 0.0
    %8352 = vmatprep.subr.mxu0 0.0
    %8353 = vmatpush1.msra.mxu0 0.0
    %8354 = vmatprep.subr.mxu0 0.0
    %8355 = vmatpush1.msra.mxu0 0.0
    %8356 = vmatprep.subr.mxu0 0.0
    %8357 = vmatpush1.msra.mxu0 0.0
    %8358 = vmatprep.subr.mxu0 0.0
    %8359 = vmatpush1.msra.mxu0 0.0
    %8360 = vmatprep.subr.mxu0 0.0
    %8361 = vmatpush1.msra.mxu0 0.0
    %8362 = vmatprep.subr.mxu0 0.0
    %8363 = vmatpush1.msra.mxu0 0.0
    %8364 = vmatprep.subr.mxu0 0.0
    %8365 = vmatpush1.msra.mxu0 0.0
    %8366 = vmatprep.subr.mxu0 0.0
    %8367 = vmatpush1.msra.mxu0 0.0
    %8368 = vmatprep.subr.mxu0 0.0
    %8369 = vmatpush1.msra.mxu0 0.0
    %8370 = vmatprep.subr.mxu0 0.0
    %8371 = vmatpush1.msra.mxu0 0.0
    %8372 = vmatprep.subr.mxu0 0.0
    %8373 = vmatpush1.msra.mxu0 0.0
    %8374 = vmatprep.subr.mxu0 0.0
    %8375 = vmatpush1.msra.mxu0 0.0
    %8376 = vmatprep.mubr.f32.mxu0 0.0
    %8377 = vmatmul.mubr.f32.gmra.mrb[0].mxu0 %v8288
    %v8378 = vpop.f32.mrb[0].mxu0
    %v8379 = vadd.f32 %v8310, %v8378
    %v8380 = vpop.f32.mrb[0].mxu0
    %8381 = vdwg.mxu0
    %v8382 = vtanh.pop %v8379
    %v8383 = vld [vmem:[%s12] sm:$0xff]
    %v8384 = vld [vmem:[%s12 + $0x8] sm:$0xff]
    %v8385 = vld [vmem:[%s12 + $0x10] sm:$0xff]
    %v8386 = vld [vmem:[%s12 + $0x18] sm:$0x3f]
    %v8387 = vld [vmem:[%s13] sm:$0x1]
    %v8389 = vlaneseq
    %v8390 = vshrl.u32 %v8389, 7
    %v8391 = vsub.s32 0, %v8390
    %v8392 = vrot.slane %v8387, %v8391
    %vm8394 = vcmask 244736
    %v8396 = vsel %vm8394, %v8382, 0
    %vm8398 = vcmask 1045504
    %v8400 = vsel %vm8398, %v8386, 0
    %8402 = vmatprep.subr.mxu0 0.0
    %8403 = vmatpush1.msra.mxu0 %v8383
    %8404 = vmatprep.subr.mxu0 0.0
    %8405 = vmatpush1.msra.mxu0 %v8384
    %8406 = vmatprep.subr.mxu0 0.0
    %8407 = vmatpush1.msra.mxu0 %v8385
    %8408 = vmatprep.subr.mxu0 0.0
    %8409 = vmatpush1.msra.mxu0 %v8400
    %8410 = vmatprep.subr.mxu0 0.0
    %8411 = vmatpush1.msra.mxu0 0.0
    %8412 = vmatprep.subr.mxu0 0.0
    %8413 = vmatpush1.msra.mxu0 0.0
    %8414 = vmatprep.subr.mxu0 0.0
    %8415 = vmatpush1.msra.mxu0 0.0
    %8416 = vmatprep.subr.mxu0 0.0
    %8417 = vmatpush1.msra.mxu0 0.0
    %8418 = vmatprep.subr.mxu0 0.0
    %8419 = vmatpush1.msra.mxu0 0.0
    %8420 = vmatprep.subr.mxu0 0.0
    %8421 = vmatpush1.msra.mxu0 0.0
    %8422 = vmatprep.subr.mxu0 0.0
    %8423 = vmatpush1.msra.mxu0 0.0
    %8424 = vmatprep.subr.mxu0 0.0
    %8425 = vmatpush1.msra.mxu0 0.0
    %8426 = vmatprep.subr.mxu0 0.0
    %8427 = vmatpush1.msra.mxu0 0.0
    %8428 = vmatprep.subr.mxu0 0.0
    %8429 = vmatpush1.msra.mxu0 0.0
    %8430 = vmatprep.subr.mxu0 0.0
    %8431 = vmatpush1.msra.mxu0 0.0
    %8432 = vmatprep.subr.mxu0 0.0
    %8433 = vmatpush1.msra.mxu0 0.0
    %8434 = vmatprep.subr.mxu0 0.0
    %8435 = vmatpush1.msra.mxu0 0.0
    %8436 = vmatprep.subr.mxu0 0.0
    %8437 = vmatpush1.msra.mxu0 0.0
    %8438 = vmatprep.subr.mxu0 0.0
    %8439 = vmatpush1.msra.mxu0 0.0
    %8440 = vmatprep.subr.mxu0 0.0
    %8441 = vmatpush1.msra.mxu0 0.0
    %8442 = vmatprep.subr.mxu0 0.0
    %8443 = vmatpush1.msra.mxu0 0.0
    %8444 = vmatprep.subr.mxu0 0.0
    %8445 = vmatpush1.msra.mxu0 0.0
    %8446 = vmatprep.subr.mxu0 0.0
    %8447 = vmatpush1.msra.mxu0 0.0
    %8448 = vmatprep.subr.mxu0 0.0
    %8449 = vmatpush1.msra.mxu0 0.0
    %8450 = vmatprep.subr.mxu0 0.0
    %8451 = vmatpush1.msra.mxu0 0.0
    %8452 = vmatprep.subr.mxu0 0.0
    %8453 = vmatpush1.msra.mxu0 0.0
    %8454 = vmatprep.subr.mxu0 0.0
    %8455 = vmatpush1.msra.mxu0 0.0
    %8456 = vmatprep.subr.mxu0 0.0
    %8457 = vmatpush1.msra.mxu0 0.0
    %8458 = vmatprep.subr.mxu0 0.0
    %8459 = vmatpush1.msra.mxu0 0.0
    %8460 = vmatprep.subr.mxu0 0.0
    %8461 = vmatpush1.msra.mxu0 0.0
    %8462 = vmatprep.subr.mxu0 0.0
    %8463 = vmatpush1.msra.mxu0 0.0
    %8464 = vmatprep.subr.mxu0 0.0
    %8465 = vmatpush1.msra.mxu0 0.0
    %8466 = vmatprep.mubr.f32.mxu0 0.0
    %8467 = vmatmul.mubr.f32.gmra.mrb[0].mxu0 %v8396
    %v8468 = vpop.f32.mrb[0].mxu0
    %v8469 = vadd.f32 %v8392, %v8468
    %v8470 = vpop.f32.mrb[0].mxu0
    %8471 = vdwg.mxu0
    %vm8472 = vcmask 121856
    %8473 = vst.msk [vmem:[#allocation17] sm:$0xff] %vm8472, %v8469
    // Predicated region
    $region90: #{tpu_custom_call.1} parent=1 // pred_check
      _
    $region91: #{tpu_custom_call.1} parent=1 // pred_check_branch
      %8475 = sbr.rel (0) target = $region93
    $region92: #{tpu_custom_call.1} parent=1 // pred_region
      %s8477 = ssub.s32 128, 128
      %8478 = vsyncadd [#allocation5], %s8477
      %s8480 = sshll.u32 [#allocation17], 4
      %s8481 = int_to_ptr.vmem [resolvable:$true] %s8480
      %8483 = dma.vmem_to_hbm [thread:$0]  %s8481, 128, %s14, [#allocation5]
    $region93: #{tpu_custom_call.1} parent=1 // pred_fallthru
      _
    // Predicated region
    $region94: #{tpu_custom_call.1} parent=1 // pred_check
      _
    $region95: #{tpu_custom_call.1} parent=1 // pred_check_branch
      %8485 = sbr.rel (0) target = $region97
    $region96: #{tpu_custom_call.1} parent=1 // pred_region
      %8486 = dma.done [#allocation5], 128
    $region97: #{tpu_custom_call.1} parent=1 // pred_fallthru
      _
    %8487 = vsyncpa [#allocation4], 1
    %8488 = vsyncpa [#allocation7], 1
    %8489 = vsyncpa [#allocation10], 1
    %8490 = vsyncpa [#allocation13], 1
    %8491 = vsyncpa [#allocation16], 1
    %8492 = vsyncpa [#allocation5], 1

</llo_original>
